<compile_context>
chip_gen: v6e
topology: v6e:2x2x1
jax: 0.10.0
libtpu: 0.0.40
codegen_flags: <defaults>
</compile_context>

<pallas_src>
import functools

import jax
import jax.numpy as jnp
from jax import lax
from jax.experimental import pallas as pl
from jax.experimental.pallas import tpu as pltpu


def _pick_tile(extent: int, target: int, align: int) -> int:
    """Largest divisor of `extent` that is a multiple of `align` and <= target.

    Falls back to the full extent (a full-extent block is always a legal
    block shape).
    TODO(synk): pathological extents with no aligned divisor fall back to a
    full-extent block; pad externally if that ever blows the VMEM budget.
    """
    best = None
    for d in range(1, min(extent, target) + 1):
        if extent % d == 0 and d % align == 0:
            best = d
    return best if best is not None else extent


def _row_dup_matrix(n: int, dtype) -> jax.Array:
    """(2n, n) 0/1 matrix D with D[a, k] = 1 iff a // 2 == k (row duplication)."""
    a = jnp.arange(2 * n, dtype=jnp.int32)[:, None] // 2
    k = jnp.arange(n, dtype=jnp.int32)[None, :]
    return (a == k).astype(dtype)


def _upsample2x_kernel(x_ref, rdup_ref, cdup_ref, o_ref, *, col_first, precision):
    # x_ref    : (rt, wt)        input tile
    # rdup_ref : (2*rt, rt)      row-duplication matrix    (constant over grid)
    # cdup_ref : (wt, 2*wt)      column-duplication matrix (constant over grid)
    # o_ref    : (2*rt, 2*wt)    lane-dense output tile, single unmasked store
    #
    # out[2h+i, 2w+j] = x[h, w] realized as R @ x @ S with 0/1 matrices; exact
    # (one nonzero term per output element, f32 accumulation, HIGHEST precision
    # so f32 inputs are never truncated to bf16 on the MXU).
    x = x_ref[...]
    if col_first:
        t = jnp.dot(x, cdup_ref[...], precision=precision,
                    preferred_element_type=jnp.float32).astype(x.dtype)
        y = jnp.dot(rdup_ref[...], t, precision=precision,
                    preferred_element_type=jnp.float32)
    else:
        t = jnp.dot(rdup_ref[...], x, precision=precision,
                    preferred_element_type=jnp.float32).astype(x.dtype)
        y = jnp.dot(t, cdup_ref[...], precision=precision,
                    preferred_element_type=jnp.float32)
    o_ref[...] = y.astype(o_ref.dtype)


def upsample2x_nchw(x):
    """Scale-2 nearest-neighbor upsample, NCHW -> NCHW (Pallas TPU hot path)."""
    B, C, H, W = x.shape
    N = B * C * H                      # independent rows of the flattened view
    itemsize = x.dtype.itemsize

    # --- tile selection -----------------------------------------------------
    # Column tile: prefer a multiple of 128 (lane-dense loads/stores), cap 256.
    wt = _pick_tile(W, target=256, align=128)
    # Row tile: per-step footprint ~ 10*rt*wt*itemsize (double-buffered in +
    # 4x out); keep ~4 MiB and cap rt at 256 so the (2rt, rt) row-dup matmul
    # stays well under the HBM roofline.
    rt_budget = max(8, (4 * 1024 * 1024) // (10 * wt * itemsize))
    rt = _pick_tile(N, target=int(min(256, rt_budget)), align=8)

    rdup = _row_dup_matrix(rt, x.dtype)        # (2rt, rt)
    cdup = _row_dup_matrix(wt, x.dtype).T      # (wt, 2wt)

    # Free reshapes: merging/splitting adjacent row-major dims is a bitcast.
    # Input rows r = b*C*H + c*H + h map to output rows 2r and 2r+1, so the
    # flattened 2-D formulation is exact across b/c boundaries.
    x2 = x.reshape(N, W)

    kernel = functools.partial(
        _upsample2x_kernel,
        col_first=(rt < wt),                   # cheaper MXU ordering (static)
        precision=lax.Precision.HIGHEST,
    )

    y2 = pl.pallas_call(
        kernel,
        out_shape=jax.ShapeDtypeStruct((2 * N, 2 * W), x.dtype),
        grid_spec=pltpu.PrefetchScalarGridSpec(
            num_scalar_prefetch=0,
            grid=(N // rt, W // wt),
            in_specs=[
                pl.BlockSpec((rt, wt), lambda r, c: (r, c)),
                # Constant block index -> fetched once, copy skipped afterwards.
                pl.BlockSpec((2 * rt, rt), lambda r, c: (0, 0)),
                pl.BlockSpec((wt, 2 * wt), lambda r, c: (0, 0)),
            ],
            out_specs=pl.BlockSpec((2 * rt, 2 * wt), lambda r, c: (r, c)),
        ),
        compiler_params=pltpu.CompilerParams(
            dimension_semantics=("parallel", "parallel"),
            vmem_limit_bytes=48 * 1024 * 1024,
        ),
    )(x2, rdup, cdup)

    return y2.reshape(B, C, 2 * H, 2 * W)      # free row-major split


class Upsample:
    """JAX/Pallas analogue of the PyTorch Upsample module (scale=2, NCHW)."""

    def __init__(self, input_resolution, dim=96):
        self.input_resolution = input_resolution
        self.scale = 2
        self.dim = dim
        # No learnable parameters in the reference __init__.

    def __call__(self, x_nchw):
        return upsample2x_nchw(x_nchw)


if __name__ == "__main__":
    key = jax.random.PRNGKey(0)
    B, C, H, W = 2, 96, 8, 8            # dim=96 matches the module default
    x = jax.random.normal(key, (B, C, H, W), dtype=jnp.float32)

    mod = Upsample(input_resolution=(H, W), dim=C)
    fwd = jax.jit(mod.__call__)
    y = jax.block_until_ready(fwd(x))

    # Sanity check against a pure-JAX nearest-neighbor 2x reference.
    ref = jnp.repeat(jnp.repeat(x, 2, axis=2), 2, axis=3)
    assert y.shape == (B, C, 2 * H, 2 * W), y.shape
    assert y.dtype == x.dtype
    assert jnp.allclose(y, ref), "mismatch vs reference nearest-neighbor upsample"

    print("KERNEL_OK")
</pallas_src>

<mosaic_0001>
module attributes {stable_mosaic.version = 11 : i64} {
  func.func @_upsample2x_kernel(%arg0: i32, %arg1: i32, %arg2: memref<256x8xf32, #tpu.memory_space<vmem>>, %arg3: memref<512x256xf32, #tpu.memory_space<vmem>>, %arg4: memref<8x16xf32, #tpu.memory_space<vmem>>, %arg5: memref<512x16xf32, #tpu.memory_space<vmem>>) attributes {dimension_semantics = [#tpu.dimension_semantics<parallel>, #tpu.dimension_semantics<parallel>], iteration_bounds = array<i64: 6, 1>, scalar_prefetch = 0 : i64, scratch_operands = 0 : i64, tpu.core_type = #tpu.core_type<tc>, window_params = [{transform_indices = @transform_0, window_bounds = array<i64: 256, 8>}, {pipeline_mode = #tpu.pipeline_mode<synchronous>, transform_indices = @transform_1, window_bounds = array<i64: 512, 256>}, {pipeline_mode = #tpu.pipeline_mode<synchronous>, transform_indices = @transform_2, window_bounds = array<i64: 8, 16>}, {transform_indices = @transform_3, window_bounds = array<i64: 512, 16>}]} {
    %c0 = arith.constant 0 : index
    %c0_0 = arith.constant 0 : index
    %0 = vector.load %arg2[%c0, %c0_0] : memref<256x8xf32, #tpu.memory_space<vmem>>, vector<256x8xf32>
    %c0_1 = arith.constant 0 : index
    %c0_2 = arith.constant 0 : index
    %1 = vector.load %arg3[%c0_1, %c0_2] : memref<512x256xf32, #tpu.memory_space<vmem>>, vector<512x256xf32>
    %cst = arith.constant dense<0.000000e+00> : vector<512x8xf32>
    %2 = tpu.matmul %1, %0, %cst {dimension_numbers = #tpu.dot_dimension_numbers<[1], [0], [0], [1], [0, 0, 1, 1], [], []>, precision = #tpu.contract_precision<fp32>} : vector<512x256xf32>, vector<256x8xf32>, vector<512x8xf32> -> vector<512x8xf32>
    %c0_3 = arith.constant 0 : index
    %c0_4 = arith.constant 0 : index
    %3 = vector.load %arg4[%c0_3, %c0_4] : memref<8x16xf32, #tpu.memory_space<vmem>>, vector<8x16xf32>
    %cst_5 = arith.constant dense<0.000000e+00> : vector<512x16xf32>
    %4 = tpu.matmul %2, %3, %cst_5 {dimension_numbers = #tpu.dot_dimension_numbers<[1], [0], [0], [1], [0, 0, 1, 1], [], []>, precision = #tpu.contract_precision<fp32>} : vector<512x8xf32>, vector<8x16xf32>, vector<512x16xf32> -> vector<512x16xf32>
    %c0_6 = arith.constant 0 : index
    %c0_7 = arith.constant 0 : index
    %5 = vector.load %arg5[%c0_6, %c0_7] : memref<512x16xf32, #tpu.memory_space<vmem>>, vector<512x16xf32>
    tpu.vector_store %arg5[%c0_6, %c0_7], %4 {strides = array<i32>} : memref<512x16xf32, #tpu.memory_space<vmem>>, vector<512x16xf32>,
    return
  }
  func.func @transform_0(%arg0: i32, %arg1: i32) -> (i32, i32) {
    %c0_i32 = arith.constant 0 : i32
    return %arg0, %arg1 : i32, i32
  }
  func.func @transform_1(%arg0: i32, %arg1: i32) -> (i32, i32) {
    %c0_i32 = arith.constant 0 : i32
    %c0_i32_0 = arith.constant 0 : i32
    %c0_i32_1 = arith.constant 0 : i32
    return %c0_i32, %c0_i32_0 : i32, i32
  }
  func.func @transform_2(%arg0: i32, %arg1: i32) -> (i32, i32) {
    %c0_i32 = arith.constant 0 : i32
    %c0_i32_0 = arith.constant 0 : i32
    %c0_i32_1 = arith.constant 0 : i32
    return %c0_i32, %c0_i32_0 : i32, i32
  }
  func.func @transform_3(%arg0: i32, %arg1: i32) -> (i32, i32) {
    %c0_i32 = arith.constant 0 : i32
    return %arg0, %arg1 : i32, i32
  }
}

</mosaic_0001>

<llo_original>
// kernel: a_call__.1
$region0: #{a_call__.1}
  #allocation0 [shape = 'u32[]', space=smem, size = 0x4, offset = 0x4, fixed_abs, tag = 'smem constant byte address 0x4 - core index']
  #allocation1 [shape = 'u32[144,128]{1,0:T(1,128)}', space=vmem, size = 0x12000, scoped, tag = 'internal scratch']
  %s0 = inlined_call_operand.vmem [shape: f32[1536,8], index: 0, kind: input, shape index: {}]
  %s1 = inlined_call_operand.vmem [shape: f32[512,256], index: 1, kind: input, shape index: {}]
  %s2 = inlined_call_operand.vmem [shape: f32[8,16], index: 2, kind: input, shape index: {}]
  %s3 = inlined_call_operand.vmem [shape: f32[3072,16], index: 3, kind: output, shape index: {}]
  %s4 = sld [smem:[#allocation0]]
  $region45: #{a_call__.1} parent=0
    _
  %s6 = ssub.s32 1, %s4
  %s7 = scalar_select 0, %s6, %s4
  loop: start=0, step=1, limit=8
  $region2: #{a_call__.1} parent=0 // loop_pre_header
    _
  $region3: #{a_call__.1} parent=0 // loop_header
    %s9 = sphi 0, %s13
    %p10 = scmp.ge.s32.totalorder %s9, 8
    %s16 = sphi 0, %s28
    %s17 = sphi 0, %s24
    %s18 = sphi 0, %s16
    %s19 = sphi 0, %s17
    %s20 = sphi 0, %s18
    %s21 = sphi 0, %s19
    %s33 = sphi 0, %s35
    %s36 = sphi 0, %s33
    %s37 = sphi 0, %s36
    %s53 = sphi 0, %s37
    %s57 = sphi 0, %s57
    %s59 = sphi 0, %s57
    %s60 = sphi 0, %s59
    %s74 = sphi 0, %s60
    %s78 = sphi 0, %s78
    %s80 = sphi 0, %s78
    %s81 = sphi 0, %s80
    %s95 = sphi 0, %s81
    %s103 = sphi 0, %s105
    %s106 = sphi 0, %s103
    %s107 = sphi 0, %s106
    %s123 = sphi 0, %s107
  $region4: #{a_call__.1} parent=0 // loop_header_branch
    %12 = sbr.rel (%p10) target = $region8
  $region5: #{a_call__.1} parent=0 // loop_body
    %s14 = ssub.s32 %s9, 1
    %s15 = ssub.s32 %s9, 2
    %s22 = sadd.s32 1, %s17
    %p23 = scmp.ge.s32.totalorder %s22, 1
    %s24 = scalar_select %p23, 0, %s22
    %s25 = sadd.s32 1, %s16
    %s26 = scalar_select %p23, %s25, %s16
    %p27 = scmp.ge.s32.totalorder %s26, 6
    %s28 = scalar_select %p27, 0, %s26
    %s29 = ssub.s32 %s16, %s28
    %s30 = ssub.s32 %s17, %s24
    %s31 = sor.u32 %s29, %s30
    %p32 = scmp.eq.s32.totalorder %s31, 0
    %s34 = sadd.s32 %s33, 1
    %s35 = scalar_select %p32, %s33, %s34
    %p38 = pneg %p32
    %p39 = scmp.eq.s32.totalorder %s9, 5
    %p40 = por %p38, %p39
    %p41 = scmp.ne.s32.totalorder %s33, %s36
    %p42 = scmp.eq.s32.totalorder %s9, 0
    %p43 = por %p41, %p42
    %p44 = scmp.ne.s32.totalorder %s33, %s36
    %p45 = scmp.eq.s32.totalorder %s14, 5
    %p46 = por %p44, %p45
    %p47 = scmp.ne.s32.totalorder %s36, %s37
    %p48 = scmp.eq.s32.totalorder %s14, 0
    %p49 = por %p47, %p48
    %p50 = scmp.ne.s32.totalorder %s36, %s37
    %p51 = scmp.eq.s32.totalorder %s15, 5
    %p52 = por %p50, %p51
    %p54 = scmp.ne.s32.totalorder %s37, %s53
    %p55 = scmp.eq.s32.totalorder %s15, 0
    %p56 = por %p54, %p55
    %s58 = sadd.s32 %s57, 1
    %p61 = scmp.eq.s32.totalorder %s9, 5
    %p62 = scmp.ne.s32.totalorder %s57, %s59
    %p63 = scmp.eq.s32.totalorder %s9, 0
    %p64 = por %p62, %p63
    %p65 = scmp.ne.s32.totalorder %s57, %s59
    %p66 = scmp.eq.s32.totalorder %s14, 5
    %p67 = por %p65, %p66
    %p68 = scmp.ne.s32.totalorder %s59, %s60
    %p69 = scmp.eq.s32.totalorder %s14, 0
    %p70 = por %p68, %p69
    %p71 = scmp.ne.s32.totalorder %s59, %s60
    %p72 = scmp.eq.s32.totalorder %s15, 5
    %p73 = por %p71, %p72
    %p75 = scmp.ne.s32.totalorder %s60, %s74
    %p76 = scmp.eq.s32.totalorder %s15, 0
    %p77 = por %p75, %p76
    %s79 = sadd.s32 %s78, 1
    %p82 = scmp.eq.s32.totalorder %s9, 5
    %p83 = scmp.ne.s32.totalorder %s78, %s80
    %p84 = scmp.eq.s32.totalorder %s9, 0
    %p85 = por %p83, %p84
    %p86 = scmp.ne.s32.totalorder %s78, %s80
    %p87 = scmp.eq.s32.totalorder %s14, 5
    %p88 = por %p86, %p87
    %p89 = scmp.ne.s32.totalorder %s80, %s81
    %p90 = scmp.eq.s32.totalorder %s14, 0
    %p91 = por %p89, %p90
    %p92 = scmp.ne.s32.totalorder %s80, %s81
    %p93 = scmp.eq.s32.totalorder %s15, 5
    %p94 = por %p92, %p93
    %p96 = scmp.ne.s32.totalorder %s81, %s95
    %p97 = scmp.eq.s32.totalorder %s15, 0
    %p98 = por %p96, %p97
    %s99 = ssub.s32 %s16, %s28
    %s100 = ssub.s32 %s17, %s24
    %s101 = sor.u32 %s99, %s100
    %p102 = scmp.eq.s32.totalorder %s101, 0
    %s104 = sadd.s32 %s103, 1
    %s105 = scalar_select %p102, %s103, %s104
    %p108 = pneg %p102
    %p109 = scmp.eq.s32.totalorder %s9, 5
    %p110 = por %p108, %p109
    %p111 = scmp.ne.s32.totalorder %s103, %s106
    %p112 = scmp.eq.s32.totalorder %s9, 0
    %p113 = por %p111, %p112
    %p114 = scmp.ne.s32.totalorder %s103, %s106
    %p115 = scmp.eq.s32.totalorder %s14, 5
    %p116 = por %p114, %p115
    %p117 = scmp.ne.s32.totalorder %s106, %s107
    %p118 = scmp.eq.s32.totalorder %s14, 0
    %p119 = por %p117, %p118
    %p120 = scmp.ne.s32.totalorder %s106, %s107
    %p121 = scmp.eq.s32.totalorder %s15, 5
    %p122 = por %p120, %p121
    %p124 = scmp.ne.s32.totalorder %s107, %s123
    %p125 = scmp.eq.s32.totalorder %s15, 0
    %p126 = por %p124, %p125
    %p127 = scmp.le.s32.totalorder 1, %s9
    %p128 = scmp.lt.s32.totalorder %s9, 7
    %p129 = pnand %p127, %p128
    %p130 = pneg %p129
    // Predicated region
    $region9: #{a_call__.1} parent=5 // pred_check
      _
    $region10: #{a_call__.1} parent=5 // pred_check_branch
      %132 = sbr.rel (%p129) target = $region12
    $region11: #{a_call__.1} parent=5 // pred_region
      %s133 = ssub.s32 %s9, 1
      // Predicated region
      $region13: #{a_call__.1} parent=11 // pred_check
        %p134 = pneg %p70
      $region14: #{a_call__.1} parent=11 // pred_check_branch
        %136 = sbr.rel (%p134) target = $region16
      $region15: #{a_call__.1} parent=11 // pred_region
        _
      $region16: #{a_call__.1} parent=11 // pred_fallthru
        _
      // Predicated region
      $region17: #{a_call__.1} parent=11 // pred_check
        %p137 = pneg %p91
      $region18: #{a_call__.1} parent=11 // pred_check_branch
        %139 = sbr.rel (%p137) target = $region20
      $region19: #{a_call__.1} parent=11 // pred_region
        _
      $region20: #{a_call__.1} parent=11 // pred_fallthru
        _
    $region12: #{a_call__.1} parent=5 // pred_fallthru
      _
    %p140 = scmp.lt.s32.totalorder %s9, 6
    // Predicated region
    $region21: #{a_call__.1} parent=5 // pred_check
      %p141 = pneg %p140
    $region22: #{a_call__.1} parent=5 // pred_check_branch
      %143 = sbr.rel (%p141) target = $region24
    $region23: #{a_call__.1} parent=5 // pred_region
      // Predicated region
      $region25: #{a_call__.1} parent=23 // pred_check
        %p144 = pneg %p43
      $region26: #{a_call__.1} parent=23 // pred_check_branch
        %146 = sbr.rel (%p144) target = $region28
      $region27: #{a_call__.1} parent=23 // pred_region
        %s147 = smul.u32 32, %s16
        %p148 = scmp.lt.s32.totalorder %s147, 191
        %s149 = scalar_select %p148, %s147, 191
        %p150 = scmp.lt.s32.totalorder %s17, 0
        %s151 = scalar_select %p150, %s17, 0
        %s152 = sadd.s32 %s151, %s149
        %s153 = smul.addr %s152, 8
        %s154 = scalar_lea.vmem %s0, %s153
        %s155 = smul.u32 32, %s16
      $region28: #{a_call__.1} parent=23 // pred_fallthru
        _
    $region24: #{a_call__.1} parent=5 // pred_fallthru
      _
    %p156 = scmp.le.s32.totalorder 1, %s9
    %p157 = scmp.lt.s32.totalorder %s9, 7
    %p158 = pnand %p156, %p157
    %p159 = pneg %p158
    // Predicated region
    $region29: #{a_call__.1} parent=5 // pred_check
      _
    $region30: #{a_call__.1} parent=5 // pred_check_branch
      %161 = sbr.rel (%p158) target = $region32
    $region31: #{a_call__.1} parent=5 // pred_region
      %s162 = ssub.s32 %s9, 1
      %s163 = smul.u32 32, %s18
      %p164 = scmp.lt.s32.totalorder %s163, 191
      %s165 = scalar_select %p164, %s163, 191
      %p166 = scmp.lt.s32.totalorder %s19, 0
      %s167 = scalar_select %p166, %s19, 0
      %s168 = sadd.s32 %s167, %s165
      %s169 = smul.addr %s168, 8
      %s170 = scalar_lea.vmem %s0, %s169
      %p171 = pneg %p49
      %p172 = pneg %p46
      %p173 = pneg %p70
      %p174 = pneg %p67
      %p175 = pneg %p91
      %p176 = pneg %p88
      %p177 = pneg %p119
      %p178 = pneg %p116
      %s179 = smul.u32 64, %s18
      %p180 = scmp.lt.s32.totalorder %s179, 383
      %s181 = scalar_select %p180, %s179, 383
      %p182 = scmp.lt.s32.totalorder %s19, 0
      %s183 = scalar_select %p182, %s19, 0
      %s184 = sadd.s32 %s183, %s181
      %s185 = smul.addr %s184, 8
      %s186 = scalar_lea.vmem %s3, %s185
      %s187 = smul.u32 32, %s18
      %p188 = scmp.lt.s32.totalorder %s187, 191
      %s189 = scalar_select %p188, %s187, 191
      %p190 = scmp.lt.s32.totalorder %s19, 0
      %s191 = scalar_select %p190, %s19, 0
      %s192 = sadd.s32 %s191, %s189
      %s193 = smul.addr %s192, 8
      %s194 = scalar_lea.vmem %s0, %s193
      %s195 = smul.u32 32, %s18
      %s196 = smul.u32 64, %s18
      %p197 = scmp.lt.s32.totalorder %s196, 383
      %s198 = scalar_select %p197, %s196, 383
      %p199 = scmp.lt.s32.totalorder %s19, 0
      %s200 = scalar_select %p199, %s19, 0
      %s201 = sadd.s32 %s200, %s198
      %s202 = smul.addr %s201, 8
      %s203 = scalar_lea.vmem %s3, %s202
      %s204 = smul.u32 64, %s18
      %v205 = vld [vmem:[%s194] sm:$0xff]
      %v206 = vld [vmem:[%s194 + $0x8] sm:$0xff]
      %v207 = vld [vmem:[%s194 + $0x10] sm:$0xff]
      %v208 = vld [vmem:[%s194 + $0x18] sm:$0xff]
      %v209 = vld [vmem:[%s194 + $0x20] sm:$0xff]
      %v210 = vld [vmem:[%s194 + $0x28] sm:$0xff]
      %v211 = vld [vmem:[%s194 + $0x30] sm:$0xff]
      %v212 = vld [vmem:[%s194 + $0x38] sm:$0xff]
      %v213 = vld [vmem:[%s194 + $0x40] sm:$0xff]
      %v214 = vld [vmem:[%s194 + $0x48] sm:$0xff]
      %v215 = vld [vmem:[%s194 + $0x50] sm:$0xff]
      %v216 = vld [vmem:[%s194 + $0x58] sm:$0xff]
      %v217 = vld [vmem:[%s194 + $0x60] sm:$0xff]
      %v218 = vld [vmem:[%s194 + $0x68] sm:$0xff]
      %v219 = vld [vmem:[%s194 + $0x70] sm:$0xff]
      %v220 = vld [vmem:[%s194 + $0x78] sm:$0xff]
      %v221 = vld [vmem:[%s194 + $0x80] sm:$0xff]
      %v222 = vld [vmem:[%s194 + $0x88] sm:$0xff]
      %v223 = vld [vmem:[%s194 + $0x90] sm:$0xff]
      %v224 = vld [vmem:[%s194 + $0x98] sm:$0xff]
      %v225 = vld [vmem:[%s194 + $0xa0] sm:$0xff]
      %v226 = vld [vmem:[%s194 + $0xa8] sm:$0xff]
      %v227 = vld [vmem:[%s194 + $0xb0] sm:$0xff]
      %v228 = vld [vmem:[%s194 + $0xb8] sm:$0xff]
      %v229 = vld [vmem:[%s194 + $0xc0] sm:$0xff]
      %v230 = vld [vmem:[%s194 + $0xc8] sm:$0xff]
      %v231 = vld [vmem:[%s194 + $0xd0] sm:$0xff]
      %v232 = vld [vmem:[%s194 + $0xd8] sm:$0xff]
      %v233 = vld [vmem:[%s194 + $0xe0] sm:$0xff]
      %v234 = vld [vmem:[%s194 + $0xe8] sm:$0xff]
      %v235 = vld [vmem:[%s194 + $0xf0] sm:$0xff]
      %v236 = vld [vmem:[%s194 + $0xf8] sm:$0xff]
      %v237 = vld [vmem:[%s1] sm:$0xff]
      %v238 = vld [vmem:[%s1 + $0x8] sm:$0xff]
      %v239 = vld [vmem:[%s1 + $0x10] sm:$0xff]
      %v240 = vld [vmem:[%s1 + $0x18] sm:$0xff]
      %v241 = vld [vmem:[%s1 + $0x20] sm:$0xff]
      %v242 = vld [vmem:[%s1 + $0x28] sm:$0xff]
      %v243 = vld [vmem:[%s1 + $0x30] sm:$0xff]
      %v244 = vld [vmem:[%s1 + $0x38] sm:$0xff]
      %v245 = vld [vmem:[%s1 + $0x40] sm:$0xff]
      %v246 = vld [vmem:[%s1 + $0x48] sm:$0xff]
      %v247 = vld [vmem:[%s1 + $0x50] sm:$0xff]
      %v248 = vld [vmem:[%s1 + $0x58] sm:$0xff]
      %v249 = vld [vmem:[%s1 + $0x60] sm:$0xff]
      %v250 = vld [vmem:[%s1 + $0x68] sm:$0xff]
      %v251 = vld [vmem:[%s1 + $0x70] sm:$0xff]
      %v252 = vld [vmem:[%s1 + $0x78] sm:$0xff]
      %v253 = vld [vmem:[%s1 + $0x80] sm:$0xff]
      %v254 = vld [vmem:[%s1 + $0x88] sm:$0xff]
      %v255 = vld [vmem:[%s1 + $0x90] sm:$0xff]
      %v256 = vld [vmem:[%s1 + $0x98] sm:$0xff]
      %v257 = vld [vmem:[%s1 + $0xa0] sm:$0xff]
      %v258 = vld [vmem:[%s1 + $0xa8] sm:$0xff]
      %v259 = vld [vmem:[%s1 + $0xb0] sm:$0xff]
      %v260 = vld [vmem:[%s1 + $0xb8] sm:$0xff]
      %v261 = vld [vmem:[%s1 + $0xc0] sm:$0xff]
      %v262 = vld [vmem:[%s1 + $0xc8] sm:$0xff]
      %v263 = vld [vmem:[%s1 + $0xd0] sm:$0xff]
      %v264 = vld [vmem:[%s1 + $0xd8] sm:$0xff]
      %v265 = vld [vmem:[%s1 + $0xe0] sm:$0xff]
      %v266 = vld [vmem:[%s1 + $0xe8] sm:$0xff]
      %v267 = vld [vmem:[%s1 + $0xf0] sm:$0xff]
      %v268 = vld [vmem:[%s1 + $0xf8] sm:$0xff]
      %v269 = vld [vmem:[%s1 + $0x100] sm:$0xff]
      %v270 = vld [vmem:[%s1 + $0x108] sm:$0xff]
      %v271 = vld [vmem:[%s1 + $0x110] sm:$0xff]
      %v272 = vld [vmem:[%s1 + $0x118] sm:$0xff]
      %v273 = vld [vmem:[%s1 + $0x120] sm:$0xff]
      %v274 = vld [vmem:[%s1 + $0x128] sm:$0xff]
      %v275 = vld [vmem:[%s1 + $0x130] sm:$0xff]
      %v276 = vld [vmem:[%s1 + $0x138] sm:$0xff]
      %v277 = vld [vmem:[%s1 + $0x140] sm:$0xff]
      %v278 = vld [vmem:[%s1 + $0x148] sm:$0xff]
      %v279 = vld [vmem:[%s1 + $0x150] sm:$0xff]
      %v280 = vld [vmem:[%s1 + $0x158] sm:$0xff]
      %v281 = vld [vmem:[%s1 + $0x160] sm:$0xff]
      %v282 = vld [vmem:[%s1 + $0x168] sm:$0xff]
      %v283 = vld [vmem:[%s1 + $0x170] sm:$0xff]
      %v284 = vld [vmem:[%s1 + $0x178] sm:$0xff]
      %v285 = vld [vmem:[%s1 + $0x180] sm:$0xff]
      %v286 = vld [vmem:[%s1 + $0x188] sm:$0xff]
      %v287 = vld [vmem:[%s1 + $0x190] sm:$0xff]
      %v288 = vld [vmem:[%s1 + $0x198] sm:$0xff]
      %v289 = vld [vmem:[%s1 + $0x1a0] sm:$0xff]
      %v290 = vld [vmem:[%s1 + $0x1a8] sm:$0xff]
      %v291 = vld [vmem:[%s1 + $0x1b0] sm:$0xff]
      %v292 = vld [vmem:[%s1 + $0x1b8] sm:$0xff]
      %v293 = vld [vmem:[%s1 + $0x1c0] sm:$0xff]
      %v294 = vld [vmem:[%s1 + $0x1c8] sm:$0xff]
      %v295 = vld [vmem:[%s1 + $0x1d0] sm:$0xff]
      %v296 = vld [vmem:[%s1 + $0x1d8] sm:$0xff]
      %v297 = vld [vmem:[%s1 + $0x1e0] sm:$0xff]
      %v298 = vld [vmem:[%s1 + $0x1e8] sm:$0xff]
      %v299 = vld [vmem:[%s1 + $0x1f0] sm:$0xff]
      %v300 = vld [vmem:[%s1 + $0x1f8] sm:$0xff]
      %v301 = vld [vmem:[%s1 + $0x200] sm:$0xff]
      %v302 = vld [vmem:[%s1 + $0x208] sm:$0xff]
      %v303 = vld [vmem:[%s1 + $0x210] sm:$0xff]
      %v304 = vld [vmem:[%s1 + $0x218] sm:$0xff]
      %v305 = vld [vmem:[%s1 + $0x220] sm:$0xff]
      %v306 = vld [vmem:[%s1 + $0x228] sm:$0xff]
      %v307 = vld [vmem:[%s1 + $0x230] sm:$0xff]
      %v308 = vld [vmem:[%s1 + $0x238] sm:$0xff]
      %v309 = vld [vmem:[%s1 + $0x240] sm:$0xff]
      %v310 = vld [vmem:[%s1 + $0x248] sm:$0xff]
      %v311 = vld [vmem:[%s1 + $0x250] sm:$0xff]
      %v312 = vld [vmem:[%s1 + $0x258] sm:$0xff]
      %v313 = vld [vmem:[%s1 + $0x260] sm:$0xff]
      %v314 = vld [vmem:[%s1 + $0x268] sm:$0xff]
      %v315 = vld [vmem:[%s1 + $0x270] sm:$0xff]
      %v316 = vld [vmem:[%s1 + $0x278] sm:$0xff]
      %v317 = vld [vmem:[%s1 + $0x280] sm:$0xff]
      %v318 = vld [vmem:[%s1 + $0x288] sm:$0xff]
      %v319 = vld [vmem:[%s1 + $0x290] sm:$0xff]
      %v320 = vld [vmem:[%s1 + $0x298] sm:$0xff]
      %v321 = vld [vmem:[%s1 + $0x2a0] sm:$0xff]
      %v322 = vld [vmem:[%s1 + $0x2a8] sm:$0xff]
      %v323 = vld [vmem:[%s1 + $0x2b0] sm:$0xff]
      %v324 = vld [vmem:[%s1 + $0x2b8] sm:$0xff]
      %v325 = vld [vmem:[%s1 + $0x2c0] sm:$0xff]
      %v326 = vld [vmem:[%s1 + $0x2c8] sm:$0xff]
      %v327 = vld [vmem:[%s1 + $0x2d0] sm:$0xff]
      %v328 = vld [vmem:[%s1 + $0x2d8] sm:$0xff]
      %v329 = vld [vmem:[%s1 + $0x2e0] sm:$0xff]
      %v330 = vld [vmem:[%s1 + $0x2e8] sm:$0xff]
      %v331 = vld [vmem:[%s1 + $0x2f0] sm:$0xff]
      %v332 = vld [vmem:[%s1 + $0x2f8] sm:$0xff]
      %v333 = vld [vmem:[%s1 + $0x300] sm:$0xff]
      %v334 = vld [vmem:[%s1 + $0x308] sm:$0xff]
      %v335 = vld [vmem:[%s1 + $0x310] sm:$0xff]
      %v336 = vld [vmem:[%s1 + $0x318] sm:$0xff]
      %v337 = vld [vmem:[%s1 + $0x320] sm:$0xff]
      %v338 = vld [vmem:[%s1 + $0x328] sm:$0xff]
      %v339 = vld [vmem:[%s1 + $0x330] sm:$0xff]
      %v340 = vld [vmem:[%s1 + $0x338] sm:$0xff]
      %v341 = vld [vmem:[%s1 + $0x340] sm:$0xff]
      %v342 = vld [vmem:[%s1 + $0x348] sm:$0xff]
      %v343 = vld [vmem:[%s1 + $0x350] sm:$0xff]
      %v344 = vld [vmem:[%s1 + $0x358] sm:$0xff]
      %v345 = vld [vmem:[%s1 + $0x360] sm:$0xff]
      %v346 = vld [vmem:[%s1 + $0x368] sm:$0xff]
      %v347 = vld [vmem:[%s1 + $0x370] sm:$0xff]
      %v348 = vld [vmem:[%s1 + $0x378] sm:$0xff]
      %v349 = vld [vmem:[%s1 + $0x380] sm:$0xff]
      %v350 = vld [vmem:[%s1 + $0x388] sm:$0xff]
      %v351 = vld [vmem:[%s1 + $0x390] sm:$0xff]
      %v352 = vld [vmem:[%s1 + $0x398] sm:$0xff]
      %v353 = vld [vmem:[%s1 + $0x3a0] sm:$0xff]
      %v354 = vld [vmem:[%s1 + $0x3a8] sm:$0xff]
      %v355 = vld [vmem:[%s1 + $0x3b0] sm:$0xff]
      %v356 = vld [vmem:[%s1 + $0x3b8] sm:$0xff]
      %v357 = vld [vmem:[%s1 + $0x3c0] sm:$0xff]
      %v358 = vld [vmem:[%s1 + $0x3c8] sm:$0xff]
      %v359 = vld [vmem:[%s1 + $0x3d0] sm:$0xff]
      %v360 = vld [vmem:[%s1 + $0x3d8] sm:$0xff]
      %v361 = vld [vmem:[%s1 + $0x3e0] sm:$0xff]
      %v362 = vld [vmem:[%s1 + $0x3e8] sm:$0xff]
      %v363 = vld [vmem:[%s1 + $0x3f0] sm:$0xff]
      %v364 = vld [vmem:[%s1 + $0x3f8] sm:$0xff]
      %365 = vmatprep.subr.mxu0 0.0
      %v366 = vand.u32 %v220, 4294901760
      %367 = vmatpush1.msra.mxu0 %v366
      %368 = vmatprep.subr.mxu0 0.0
      %v369 = vand.u32 %v219, 4294901760
      %370 = vmatpush1.msra.mxu0 %v369
      %371 = vmatprep.subr.mxu0 0.0
      %v372 = vand.u32 %v218, 4294901760
      %373 = vmatpush1.msra.mxu0 %v372
      %374 = vmatprep.subr.mxu0 0.0
      %v375 = vand.u32 %v217, 4294901760
      %376 = vmatpush1.msra.mxu0 %v375
      %377 = vmatprep.subr.mxu0 0.0
      %v378 = vand.u32 %v216, 4294901760
      %379 = vmatpush1.msra.mxu0 %v378
      %380 = vmatprep.subr.mxu0 0.0
      %v381 = vand.u32 %v215, 4294901760
      %382 = vmatpush1.msra.mxu0 %v381
      %383 = vmatprep.subr.mxu0 0.0
      %v384 = vand.u32 %v214, 4294901760
      %385 = vmatpush1.msra.mxu0 %v384
      %386 = vmatprep.subr.mxu0 0.0
      %v387 = vand.u32 %v213, 4294901760
      %388 = vmatpush1.msra.mxu0 %v387
      %389 = vmatprep.subr.mxu0 0.0
      %v390 = vand.u32 %v212, 4294901760
      %391 = vmatpush1.msra.mxu0 %v390
      %392 = vmatprep.subr.mxu0 0.0
      %v393 = vand.u32 %v211, 4294901760
      %394 = vmatpush1.msra.mxu0 %v393
      %395 = vmatprep.subr.mxu0 0.0
      %v396 = vand.u32 %v210, 4294901760
      %397 = vmatpush1.msra.mxu0 %v396
      %398 = vmatprep.subr.mxu0 0.0
      %v399 = vand.u32 %v209, 4294901760
      %400 = vmatpush1.msra.mxu0 %v399
      %401 = vmatprep.subr.mxu0 0.0
      %v402 = vand.u32 %v208, 4294901760
      %403 = vmatpush1.msra.mxu0 %v402
      %404 = vmatprep.subr.mxu0 0.0
      %v405 = vand.u32 %v207, 4294901760
      %406 = vmatpush1.msra.mxu0 %v405
      %407 = vmatprep.subr.mxu0 0.0
      %v408 = vand.u32 %v206, 4294901760
      %409 = vmatpush1.msra.mxu0 %v408
      %410 = vmatprep.subr.mxu0 0.0
      %v411 = vand.u32 %v205, 4294901760
      %412 = vmatpush1.msra.mxu0 %v411
      %413 = vmatprep.subr.mxu0 0.0
      %v414 = vand.u32 %v236, 4294901760
      %415 = vmatpush2.msra.mxu0 %v414
      %416 = vmatprep.subr.mxu0 0.0
      %v417 = vand.u32 %v235, 4294901760
      %418 = vmatpush2.msra.mxu0 %v417
      %419 = vmatprep.subr.mxu0 0.0
      %v420 = vand.u32 %v234, 4294901760
      %421 = vmatpush2.msra.mxu0 %v420
      %422 = vmatprep.subr.mxu0 0.0
      %v423 = vand.u32 %v233, 4294901760
      %424 = vmatpush2.msra.mxu0 %v423
      %425 = vmatprep.subr.mxu0 0.0
      %v426 = vand.u32 %v232, 4294901760
      %427 = vmatpush2.msra.mxu0 %v426
      %428 = vmatprep.subr.mxu0 0.0
      %v429 = vand.u32 %v231, 4294901760
      %430 = vmatpush2.msra.mxu0 %v429
      %431 = vmatprep.subr.mxu0 0.0
      %v432 = vand.u32 %v230, 4294901760
      %433 = vmatpush2.msra.mxu0 %v432
      %434 = vmatprep.subr.mxu0 0.0
      %v435 = vand.u32 %v229, 4294901760
      %436 = vmatpush2.msra.mxu0 %v435
      %437 = vmatprep.subr.mxu0 0.0
      %v438 = vand.u32 %v228, 4294901760
      %439 = vmatpush2.msra.mxu0 %v438
      %440 = vmatprep.subr.mxu0 0.0
      %v441 = vand.u32 %v227, 4294901760
      %442 = vmatpush2.msra.mxu0 %v441
      %443 = vmatprep.subr.mxu0 0.0
      %v444 = vand.u32 %v226, 4294901760
      %445 = vmatpush2.msra.mxu0 %v444
      %446 = vmatprep.subr.mxu0 0.0
      %v447 = vand.u32 %v225, 4294901760
      %448 = vmatpush2.msra.mxu0 %v447
      %449 = vmatprep.subr.mxu0 0.0
      %v450 = vand.u32 %v224, 4294901760
      %451 = vmatpush2.msra.mxu0 %v450
      %452 = vmatprep.subr.mxu0 0.0
      %v453 = vand.u32 %v223, 4294901760
      %454 = vmatpush2.msra.mxu0 %v453
      %455 = vmatprep.subr.mxu0 0.0
      %v456 = vand.u32 %v222, 4294901760
      %457 = vmatpush2.msra.mxu0 %v456
      %458 = vmatprep.subr.mxu0 0.0
      %v459 = vand.u32 %v221, 4294901760
      %460 = vmatpush2.msra.mxu0 %v459
      %v461 = vand.u32 %v238, 4294901760
      %v462 = vsub.f32 %v238, %v461
      %v463 = vand.u32 %v462, 4294901760
      %v464 = vsub.f32 %v462, %v463
      %v465 = vand.u32 %v464, 4294901760
      %466 = vmatprep.mubr.f32.mxu0 %v465
      %v467 = vand.u32 %v237, 4294901760
      %v468 = vsub.f32 %v237, %v467
      %v469 = vand.u32 %v468, 4294901760
      %v470 = vsub.f32 %v468, %v469
      %v471 = vand.u32 %v470, 4294901760
      %472 = vmatmul.mubr.f32.gmra.mxu0 %v471
      %v473 = vpop.f32.mrf.mxu0
      %v474 = vadd.f32 0.0, %v473
      %v475 = vpop.f32.mrf.mxu0
      %v476 = vand.u32 %v240, 4294901760
      %v477 = vsub.f32 %v240, %v476
      %v478 = vand.u32 %v477, 4294901760
      %v479 = vsub.f32 %v477, %v478
      %v480 = vand.u32 %v479, 4294901760
      %481 = vmatprep.mubr.f32.mxu0 %v480
      %v482 = vand.u32 %v239, 4294901760
      %v483 = vsub.f32 %v239, %v482
      %v484 = vand.u32 %v483, 4294901760
      %v485 = vsub.f32 %v483, %v484
      %v486 = vand.u32 %v485, 4294901760
      %487 = vmatmul.mubr.f32.gmra.mxu0 %v486
      %v488 = vpop.f32.mrf.mxu0
      %v489 = vadd.f32 0.0, %v488
      %v490 = vpop.f32.mrf.mxu0
      %v491 = vand.u32 %v242, 4294901760
      %v492 = vsub.f32 %v242, %v491
      %v493 = vand.u32 %v492, 4294901760
      %v494 = vsub.f32 %v492, %v493
      %v495 = vand.u32 %v494, 4294901760
      %496 = vmatprep.mubr.f32.mxu0 %v495
      %v497 = vand.u32 %v241, 4294901760
      %v498 = vsub.f32 %v241, %v497
      %v499 = vand.u32 %v498, 4294901760
      %v500 = vsub.f32 %v498, %v499
      %v501 = vand.u32 %v500, 4294901760
      %502 = vmatmul.mubr.f32.gmra.mxu0 %v501
      %v503 = vpop.f32.mrf.mxu0
      %v504 = vadd.f32 0.0, %v503
      %v505 = vpop.f32.mrf.mxu0
      %v506 = vand.u32 %v244, 4294901760
      %v507 = vsub.f32 %v244, %v506
      %v508 = vand.u32 %v507, 4294901760
      %v509 = vsub.f32 %v507, %v508
      %v510 = vand.u32 %v509, 4294901760
      %511 = vmatprep.mubr.f32.mxu0 %v510
      %v512 = vand.u32 %v243, 4294901760
      %v513 = vsub.f32 %v243, %v512
      %v514 = vand.u32 %v513, 4294901760
      %v515 = vsub.f32 %v513, %v514
      %v516 = vand.u32 %v515, 4294901760
      %517 = vmatmul.mubr.f32.gmra.mxu0 %v516
      %v518 = vpop.f32.mrf.mxu0
      %v519 = vadd.f32 0.0, %v518
      %v520 = vpop.f32.mrf.mxu0
      %v521 = vand.u32 %v246, 4294901760
      %v522 = vsub.f32 %v246, %v521
      %v523 = vand.u32 %v522, 4294901760
      %v524 = vsub.f32 %v522, %v523
      %v525 = vand.u32 %v524, 4294901760
      %526 = vmatprep.mubr.f32.mxu0 %v525
      %v527 = vand.u32 %v245, 4294901760
      %v528 = vsub.f32 %v245, %v527
      %v529 = vand.u32 %v528, 4294901760
      %v530 = vsub.f32 %v528, %v529
      %v531 = vand.u32 %v530, 4294901760
      %532 = vmatmul.mubr.f32.gmra.mxu0 %v531
      %v533 = vpop.f32.mrf.mxu0
      %v534 = vadd.f32 0.0, %v533
      %v535 = vpop.f32.mrf.mxu0
      %v536 = vand.u32 %v248, 4294901760
      %v537 = vsub.f32 %v248, %v536
      %v538 = vand.u32 %v537, 4294901760
      %v539 = vsub.f32 %v537, %v538
      %v540 = vand.u32 %v539, 4294901760
      %541 = vmatprep.mubr.f32.mxu0 %v540
      %v542 = vand.u32 %v247, 4294901760
      %v543 = vsub.f32 %v247, %v542
      %v544 = vand.u32 %v543, 4294901760
      %v545 = vsub.f32 %v543, %v544
      %v546 = vand.u32 %v545, 4294901760
      %547 = vmatmul.mubr.f32.gmra.mxu0 %v546
      %v548 = vpop.f32.mrf.mxu0
      %v549 = vadd.f32 0.0, %v548
      %v550 = vpop.f32.mrf.mxu0
      %v551 = vand.u32 %v250, 4294901760
      %v552 = vsub.f32 %v250, %v551
      %v553 = vand.u32 %v552, 4294901760
      %v554 = vsub.f32 %v552, %v553
      %v555 = vand.u32 %v554, 4294901760
      %556 = vmatprep.mubr.f32.mxu0 %v555
      %v557 = vand.u32 %v249, 4294901760
      %v558 = vsub.f32 %v249, %v557
      %v559 = vand.u32 %v558, 4294901760
      %v560 = vsub.f32 %v558, %v559
      %v561 = vand.u32 %v560, 4294901760
      %562 = vmatmul.mubr.f32.gmra.mxu0 %v561
      %v563 = vpop.f32.mrf.mxu0
      %v564 = vadd.f32 0.0, %v563
      %v565 = vpop.f32.mrf.mxu0
      %v566 = vand.u32 %v252, 4294901760
      %v567 = vsub.f32 %v252, %v566
      %v568 = vand.u32 %v567, 4294901760
      %v569 = vsub.f32 %v567, %v568
      %v570 = vand.u32 %v569, 4294901760
      %571 = vmatprep.mubr.f32.mxu0 %v570
      %v572 = vand.u32 %v251, 4294901760
      %v573 = vsub.f32 %v251, %v572
      %v574 = vand.u32 %v573, 4294901760
      %v575 = vsub.f32 %v573, %v574
      %v576 = vand.u32 %v575, 4294901760
      %577 = vmatmul.mubr.f32.gmra.mxu0 %v576
      %v578 = vpop.f32.mrf.mxu0
      %v579 = vadd.f32 0.0, %v578
      %v580 = vpop.f32.mrf.mxu0
      %v581 = vand.u32 %v254, 4294901760
      %v582 = vsub.f32 %v254, %v581
      %v583 = vand.u32 %v582, 4294901760
      %v584 = vsub.f32 %v582, %v583
      %v585 = vand.u32 %v584, 4294901760
      %586 = vmatprep.mubr.f32.mxu0 %v585
      %v587 = vand.u32 %v253, 4294901760
      %v588 = vsub.f32 %v253, %v587
      %v589 = vand.u32 %v588, 4294901760
      %v590 = vsub.f32 %v588, %v589
      %v591 = vand.u32 %v590, 4294901760
      %592 = vmatmul.mubr.f32.gmra.mxu0 %v591
      %v593 = vpop.f32.mrf.mxu0
      %v594 = vadd.f32 0.0, %v593
      %v595 = vpop.f32.mrf.mxu0
      %v596 = vand.u32 %v256, 4294901760
      %v597 = vsub.f32 %v256, %v596
      %v598 = vand.u32 %v597, 4294901760
      %v599 = vsub.f32 %v597, %v598
      %v600 = vand.u32 %v599, 4294901760
      %601 = vmatprep.mubr.f32.mxu0 %v600
      %v602 = vand.u32 %v255, 4294901760
      %v603 = vsub.f32 %v255, %v602
      %v604 = vand.u32 %v603, 4294901760
      %v605 = vsub.f32 %v603, %v604
      %v606 = vand.u32 %v605, 4294901760
      %607 = vmatmul.mubr.f32.gmra.mxu0 %v606
      %v608 = vpop.f32.mrf.mxu0
      %v609 = vadd.f32 0.0, %v608
      %v610 = vpop.f32.mrf.mxu0
      %v611 = vand.u32 %v258, 4294901760
      %v612 = vsub.f32 %v258, %v611
      %v613 = vand.u32 %v612, 4294901760
      %v614 = vsub.f32 %v612, %v613
      %v615 = vand.u32 %v614, 4294901760
      %616 = vmatprep.mubr.f32.mxu0 %v615
      %v617 = vand.u32 %v257, 4294901760
      %v618 = vsub.f32 %v257, %v617
      %v619 = vand.u32 %v618, 4294901760
      %v620 = vsub.f32 %v618, %v619
      %v621 = vand.u32 %v620, 4294901760
      %622 = vmatmul.mubr.f32.gmra.mxu0 %v621
      %v623 = vpop.f32.mrf.mxu0
      %v624 = vadd.f32 0.0, %v623
      %v625 = vpop.f32.mrf.mxu0
      %v626 = vand.u32 %v260, 4294901760
      %v627 = vsub.f32 %v260, %v626
      %v628 = vand.u32 %v627, 4294901760
      %v629 = vsub.f32 %v627, %v628
      %v630 = vand.u32 %v629, 4294901760
      %631 = vmatprep.mubr.f32.mxu0 %v630
      %v632 = vand.u32 %v259, 4294901760
      %v633 = vsub.f32 %v259, %v632
      %v634 = vand.u32 %v633, 4294901760
      %v635 = vsub.f32 %v633, %v634
      %v636 = vand.u32 %v635, 4294901760
      %637 = vmatmul.mubr.f32.gmra.mxu0 %v636
      %v638 = vpop.f32.mrf.mxu0
      %v639 = vadd.f32 0.0, %v638
      %v640 = vpop.f32.mrf.mxu0
      %v641 = vand.u32 %v262, 4294901760
      %v642 = vsub.f32 %v262, %v641
      %v643 = vand.u32 %v642, 4294901760
      %v644 = vsub.f32 %v642, %v643
      %v645 = vand.u32 %v644, 4294901760
      %646 = vmatprep.mubr.f32.mxu0 %v645
      %v647 = vand.u32 %v261, 4294901760
      %v648 = vsub.f32 %v261, %v647
      %v649 = vand.u32 %v648, 4294901760
      %v650 = vsub.f32 %v648, %v649
      %v651 = vand.u32 %v650, 4294901760
      %652 = vmatmul.mubr.f32.gmra.mxu0 %v651
      %v653 = vpop.f32.mrf.mxu0
      %v654 = vadd.f32 0.0, %v653
      %v655 = vpop.f32.mrf.mxu0
      %v656 = vand.u32 %v264, 4294901760
      %v657 = vsub.f32 %v264, %v656
      %v658 = vand.u32 %v657, 4294901760
      %v659 = vsub.f32 %v657, %v658
      %v660 = vand.u32 %v659, 4294901760
      %661 = vmatprep.mubr.f32.mxu0 %v660
      %v662 = vand.u32 %v263, 4294901760
      %v663 = vsub.f32 %v263, %v662
      %v664 = vand.u32 %v663, 4294901760
      %v665 = vsub.f32 %v663, %v664
      %v666 = vand.u32 %v665, 4294901760
      %667 = vmatmul.mubr.f32.gmra.mxu0 %v666
      %v668 = vpop.f32.mrf.mxu0
      %v669 = vadd.f32 0.0, %v668
      %v670 = vpop.f32.mrf.mxu0
      %v671 = vand.u32 %v266, 4294901760
      %v672 = vsub.f32 %v266, %v671
      %v673 = vand.u32 %v672, 4294901760
      %v674 = vsub.f32 %v672, %v673
      %v675 = vand.u32 %v674, 4294901760
      %676 = vmatprep.mubr.f32.mxu0 %v675
      %v677 = vand.u32 %v265, 4294901760
      %v678 = vsub.f32 %v265, %v677
      %v679 = vand.u32 %v678, 4294901760
      %v680 = vsub.f32 %v678, %v679
      %v681 = vand.u32 %v680, 4294901760
      %682 = vmatmul.mubr.f32.gmra.mxu0 %v681
      %v683 = vpop.f32.mrf.mxu0
      %v684 = vadd.f32 0.0, %v683
      %v685 = vpop.f32.mrf.mxu0
      %v686 = vand.u32 %v268, 4294901760
      %v687 = vsub.f32 %v268, %v686
      %v688 = vand.u32 %v687, 4294901760
      %v689 = vsub.f32 %v687, %v688
      %v690 = vand.u32 %v689, 4294901760
      %691 = vmatprep.mubr.f32.mxu0 %v690
      %v692 = vand.u32 %v267, 4294901760
      %v693 = vsub.f32 %v267, %v692
      %v694 = vand.u32 %v693, 4294901760
      %v695 = vsub.f32 %v693, %v694
      %v696 = vand.u32 %v695, 4294901760
      %697 = vmatmul.mubr.f32.gmra.mxu0 %v696
      %v698 = vpop.f32.mrf.mxu0
      %v699 = vadd.f32 0.0, %v698
      %v700 = vpop.f32.mrf.mxu0
      %v701 = vand.u32 %v270, 4294901760
      %v702 = vsub.f32 %v270, %v701
      %v703 = vand.u32 %v702, 4294901760
      %v704 = vsub.f32 %v702, %v703
      %v705 = vand.u32 %v704, 4294901760
      %706 = vmatprep.mubr.f32.mxu0 %v705
      %v707 = vand.u32 %v269, 4294901760
      %v708 = vsub.f32 %v269, %v707
      %v709 = vand.u32 %v708, 4294901760
      %v710 = vsub.f32 %v708, %v709
      %v711 = vand.u32 %v710, 4294901760
      %712 = vmatmul.mubr.f32.gmra.mxu0 %v711
      %v713 = vpop.f32.mrf.mxu0
      %v714 = vadd.f32 0.0, %v713
      %v715 = vpop.f32.mrf.mxu0
      %v716 = vand.u32 %v272, 4294901760
      %v717 = vsub.f32 %v272, %v716
      %v718 = vand.u32 %v717, 4294901760
      %v719 = vsub.f32 %v717, %v718
      %v720 = vand.u32 %v719, 4294901760
      %721 = vmatprep.mubr.f32.mxu0 %v720
      %v722 = vand.u32 %v271, 4294901760
      %v723 = vsub.f32 %v271, %v722
      %v724 = vand.u32 %v723, 4294901760
      %v725 = vsub.f32 %v723, %v724
      %v726 = vand.u32 %v725, 4294901760
      %727 = vmatmul.mubr.f32.gmra.mxu0 %v726
      %v728 = vpop.f32.mrf.mxu0
      %v729 = vadd.f32 0.0, %v728
      %v730 = vpop.f32.mrf.mxu0
      %v731 = vand.u32 %v274, 4294901760
      %v732 = vsub.f32 %v274, %v731
      %v733 = vand.u32 %v732, 4294901760
      %v734 = vsub.f32 %v732, %v733
      %v735 = vand.u32 %v734, 4294901760
      %736 = vmatprep.mubr.f32.mxu0 %v735
      %v737 = vand.u32 %v273, 4294901760
      %v738 = vsub.f32 %v273, %v737
      %v739 = vand.u32 %v738, 4294901760
      %v740 = vsub.f32 %v738, %v739
      %v741 = vand.u32 %v740, 4294901760
      %742 = vmatmul.mubr.f32.gmra.mxu0 %v741
      %v743 = vpop.f32.mrf.mxu0
      %v744 = vadd.f32 0.0, %v743
      %v745 = vpop.f32.mrf.mxu0
      %v746 = vand.u32 %v276, 4294901760
      %v747 = vsub.f32 %v276, %v746
      %v748 = vand.u32 %v747, 4294901760
      %v749 = vsub.f32 %v747, %v748
      %v750 = vand.u32 %v749, 4294901760
      %751 = vmatprep.mubr.f32.mxu0 %v750
      %v752 = vand.u32 %v275, 4294901760
      %v753 = vsub.f32 %v275, %v752
      %v754 = vand.u32 %v753, 4294901760
      %v755 = vsub.f32 %v753, %v754
      %v756 = vand.u32 %v755, 4294901760
      %757 = vmatmul.mubr.f32.gmra.mxu0 %v756
      %v758 = vpop.f32.mrf.mxu0
      %v759 = vadd.f32 0.0, %v758
      %v760 = vpop.f32.mrf.mxu0
      %v761 = vand.u32 %v278, 4294901760
      %v762 = vsub.f32 %v278, %v761
      %v763 = vand.u32 %v762, 4294901760
      %v764 = vsub.f32 %v762, %v763
      %v765 = vand.u32 %v764, 4294901760
      %766 = vmatprep.mubr.f32.mxu0 %v765
      %v767 = vand.u32 %v277, 4294901760
      %v768 = vsub.f32 %v277, %v767
      %v769 = vand.u32 %v768, 4294901760
      %v770 = vsub.f32 %v768, %v769
      %v771 = vand.u32 %v770, 4294901760
      %772 = vmatmul.mubr.f32.gmra.mxu0 %v771
      %v773 = vpop.f32.mrf.mxu0
      %v774 = vadd.f32 0.0, %v773
      %v775 = vpop.f32.mrf.mxu0
      %v776 = vand.u32 %v280, 4294901760
      %v777 = vsub.f32 %v280, %v776
      %v778 = vand.u32 %v777, 4294901760
      %v779 = vsub.f32 %v777, %v778
      %v780 = vand.u32 %v779, 4294901760
      %781 = vmatprep.mubr.f32.mxu0 %v780
      %v782 = vand.u32 %v279, 4294901760
      %v783 = vsub.f32 %v279, %v782
      %v784 = vand.u32 %v783, 4294901760
      %v785 = vsub.f32 %v783, %v784
      %v786 = vand.u32 %v785, 4294901760
      %787 = vmatmul.mubr.f32.gmra.mxu0 %v786
      %v788 = vpop.f32.mrf.mxu0
      %v789 = vadd.f32 0.0, %v788
      %v790 = vpop.f32.mrf.mxu0
      %v791 = vand.u32 %v282, 4294901760
      %v792 = vsub.f32 %v282, %v791
      %v793 = vand.u32 %v792, 4294901760
      %v794 = vsub.f32 %v792, %v793
      %v795 = vand.u32 %v794, 4294901760
      %796 = vmatprep.mubr.f32.mxu0 %v795
      %v797 = vand.u32 %v281, 4294901760
      %v798 = vsub.f32 %v281, %v797
      %v799 = vand.u32 %v798, 4294901760
      %v800 = vsub.f32 %v798, %v799
      %v801 = vand.u32 %v800, 4294901760
      %802 = vmatmul.mubr.f32.gmra.mxu0 %v801
      %v803 = vpop.f32.mrf.mxu0
      %v804 = vadd.f32 0.0, %v803
      %v805 = vpop.f32.mrf.mxu0
      %v806 = vand.u32 %v284, 4294901760
      %v807 = vsub.f32 %v284, %v806
      %v808 = vand.u32 %v807, 4294901760
      %v809 = vsub.f32 %v807, %v808
      %v810 = vand.u32 %v809, 4294901760
      %811 = vmatprep.mubr.f32.mxu0 %v810
      %v812 = vand.u32 %v283, 4294901760
      %v813 = vsub.f32 %v283, %v812
      %v814 = vand.u32 %v813, 4294901760
      %v815 = vsub.f32 %v813, %v814
      %v816 = vand.u32 %v815, 4294901760
      %817 = vmatmul.mubr.f32.gmra.mxu0 %v816
      %v818 = vpop.f32.mrf.mxu0
      %v819 = vadd.f32 0.0, %v818
      %v820 = vpop.f32.mrf.mxu0
      %v821 = vand.u32 %v286, 4294901760
      %v822 = vsub.f32 %v286, %v821
      %v823 = vand.u32 %v822, 4294901760
      %v824 = vsub.f32 %v822, %v823
      %v825 = vand.u32 %v824, 4294901760
      %826 = vmatprep.mubr.f32.mxu0 %v825
      %v827 = vand.u32 %v285, 4294901760
      %v828 = vsub.f32 %v285, %v827
      %v829 = vand.u32 %v828, 4294901760
      %v830 = vsub.f32 %v828, %v829
      %v831 = vand.u32 %v830, 4294901760
      %832 = vmatmul.mubr.f32.gmra.mxu0 %v831
      %v833 = vpop.f32.mrf.mxu0
      %v834 = vadd.f32 0.0, %v833
      %v835 = vpop.f32.mrf.mxu0
      %v836 = vand.u32 %v288, 4294901760
      %v837 = vsub.f32 %v288, %v836
      %v838 = vand.u32 %v837, 4294901760
      %v839 = vsub.f32 %v837, %v838
      %v840 = vand.u32 %v839, 4294901760
      %841 = vmatprep.mubr.f32.mxu0 %v840
      %v842 = vand.u32 %v287, 4294901760
      %v843 = vsub.f32 %v287, %v842
      %v844 = vand.u32 %v843, 4294901760
      %v845 = vsub.f32 %v843, %v844
      %v846 = vand.u32 %v845, 4294901760
      %847 = vmatmul.mubr.f32.gmra.mxu0 %v846
      %v848 = vpop.f32.mrf.mxu0
      %v849 = vadd.f32 0.0, %v848
      %v850 = vpop.f32.mrf.mxu0
      %v851 = vand.u32 %v290, 4294901760
      %v852 = vsub.f32 %v290, %v851
      %v853 = vand.u32 %v852, 4294901760
      %v854 = vsub.f32 %v852, %v853
      %v855 = vand.u32 %v854, 4294901760
      %856 = vmatprep.mubr.f32.mxu0 %v855
      %v857 = vand.u32 %v289, 4294901760
      %v858 = vsub.f32 %v289, %v857
      %v859 = vand.u32 %v858, 4294901760
      %v860 = vsub.f32 %v858, %v859
      %v861 = vand.u32 %v860, 4294901760
      %862 = vmatmul.mubr.f32.gmra.mxu0 %v861
      %v863 = vpop.f32.mrf.mxu0
      %v864 = vadd.f32 0.0, %v863
      %v865 = vpop.f32.mrf.mxu0
      %v866 = vand.u32 %v292, 4294901760
      %v867 = vsub.f32 %v292, %v866
      %v868 = vand.u32 %v867, 4294901760
      %v869 = vsub.f32 %v867, %v868
      %v870 = vand.u32 %v869, 4294901760
      %871 = vmatprep.mubr.f32.mxu0 %v870
      %v872 = vand.u32 %v291, 4294901760
      %v873 = vsub.f32 %v291, %v872
      %v874 = vand.u32 %v873, 4294901760
      %v875 = vsub.f32 %v873, %v874
      %v876 = vand.u32 %v875, 4294901760
      %877 = vmatmul.mubr.f32.gmra.mxu0 %v876
      %v878 = vpop.f32.mrf.mxu0
      %v879 = vadd.f32 0.0, %v878
      %v880 = vpop.f32.mrf.mxu0
      %v881 = vand.u32 %v294, 4294901760
      %v882 = vsub.f32 %v294, %v881
      %v883 = vand.u32 %v882, 4294901760
      %v884 = vsub.f32 %v882, %v883
      %v885 = vand.u32 %v884, 4294901760
      %886 = vmatprep.mubr.f32.mxu0 %v885
      %v887 = vand.u32 %v293, 4294901760
      %v888 = vsub.f32 %v293, %v887
      %v889 = vand.u32 %v888, 4294901760
      %v890 = vsub.f32 %v888, %v889
      %v891 = vand.u32 %v890, 4294901760
      %892 = vmatmul.mubr.f32.gmra.mxu0 %v891
      %v893 = vpop.f32.mrf.mxu0
      %v894 = vadd.f32 0.0, %v893
      %v895 = vpop.f32.mrf.mxu0
      %v896 = vand.u32 %v296, 4294901760
      %v897 = vsub.f32 %v296, %v896
      %v898 = vand.u32 %v897, 4294901760
      %v899 = vsub.f32 %v897, %v898
      %v900 = vand.u32 %v899, 4294901760
      %901 = vmatprep.mubr.f32.mxu0 %v900
      %v902 = vand.u32 %v295, 4294901760
      %v903 = vsub.f32 %v295, %v902
      %v904 = vand.u32 %v903, 4294901760
      %v905 = vsub.f32 %v903, %v904
      %v906 = vand.u32 %v905, 4294901760
      %907 = vmatmul.mubr.f32.gmra.mxu0 %v906
      %v908 = vpop.f32.mrf.mxu0
      %v909 = vadd.f32 0.0, %v908
      %v910 = vpop.f32.mrf.mxu0
      %v911 = vand.u32 %v298, 4294901760
      %v912 = vsub.f32 %v298, %v911
      %v913 = vand.u32 %v912, 4294901760
      %v914 = vsub.f32 %v912, %v913
      %v915 = vand.u32 %v914, 4294901760
      %916 = vmatprep.mubr.f32.mxu0 %v915
      %v917 = vand.u32 %v297, 4294901760
      %v918 = vsub.f32 %v297, %v917
      %v919 = vand.u32 %v918, 4294901760
      %v920 = vsub.f32 %v918, %v919
      %v921 = vand.u32 %v920, 4294901760
      %922 = vmatmul.mubr.f32.gmra.mxu0 %v921
      %v923 = vpop.f32.mrf.mxu0
      %v924 = vadd.f32 0.0, %v923
      %v925 = vpop.f32.mrf.mxu0
      %v926 = vand.u32 %v300, 4294901760
      %v927 = vsub.f32 %v300, %v926
      %v928 = vand.u32 %v927, 4294901760
      %v929 = vsub.f32 %v927, %v928
      %v930 = vand.u32 %v929, 4294901760
      %931 = vmatprep.mubr.f32.mxu0 %v930
      %v932 = vand.u32 %v299, 4294901760
      %v933 = vsub.f32 %v299, %v932
      %v934 = vand.u32 %v933, 4294901760
      %v935 = vsub.f32 %v933, %v934
      %v936 = vand.u32 %v935, 4294901760
      %937 = vmatmul.mubr.f32.gmra.mxu0 %v936
      %v938 = vpop.f32.mrf.mxu0
      %v939 = vadd.f32 0.0, %v938
      %v940 = vpop.f32.mrf.mxu0
      %v941 = vand.u32 %v302, 4294901760
      %v942 = vsub.f32 %v302, %v941
      %v943 = vand.u32 %v942, 4294901760
      %v944 = vsub.f32 %v942, %v943
      %v945 = vand.u32 %v944, 4294901760
      %946 = vmatprep.mubr.f32.mxu0 %v945
      %v947 = vand.u32 %v301, 4294901760
      %v948 = vsub.f32 %v301, %v947
      %v949 = vand.u32 %v948, 4294901760
      %v950 = vsub.f32 %v948, %v949
      %v951 = vand.u32 %v950, 4294901760
      %952 = vmatmul.mubr.f32.gmra.mxu0 %v951
      %v953 = vpop.f32.mrf.mxu0
      %v954 = vadd.f32 0.0, %v953
      %v955 = vpop.f32.mrf.mxu0
      %v956 = vand.u32 %v304, 4294901760
      %v957 = vsub.f32 %v304, %v956
      %v958 = vand.u32 %v957, 4294901760
      %v959 = vsub.f32 %v957, %v958
      %v960 = vand.u32 %v959, 4294901760
      %961 = vmatprep.mubr.f32.mxu0 %v960
      %v962 = vand.u32 %v303, 4294901760
      %v963 = vsub.f32 %v303, %v962
      %v964 = vand.u32 %v963, 4294901760
      %v965 = vsub.f32 %v963, %v964
      %v966 = vand.u32 %v965, 4294901760
      %967 = vmatmul.mubr.f32.gmra.mxu0 %v966
      %v968 = vpop.f32.mrf.mxu0
      %v969 = vadd.f32 0.0, %v968
      %v970 = vpop.f32.mrf.mxu0
      %v971 = vand.u32 %v306, 4294901760
      %v972 = vsub.f32 %v306, %v971
      %v973 = vand.u32 %v972, 4294901760
      %v974 = vsub.f32 %v972, %v973
      %v975 = vand.u32 %v974, 4294901760
      %976 = vmatprep.mubr.f32.mxu0 %v975
      %v977 = vand.u32 %v305, 4294901760
      %v978 = vsub.f32 %v305, %v977
      %v979 = vand.u32 %v978, 4294901760
      %v980 = vsub.f32 %v978, %v979
      %v981 = vand.u32 %v980, 4294901760
      %982 = vmatmul.mubr.f32.gmra.mxu0 %v981
      %v983 = vpop.f32.mrf.mxu0
      %v984 = vadd.f32 0.0, %v983
      %v985 = vpop.f32.mrf.mxu0
      %v986 = vand.u32 %v308, 4294901760
      %v987 = vsub.f32 %v308, %v986
      %v988 = vand.u32 %v987, 4294901760
      %v989 = vsub.f32 %v987, %v988
      %v990 = vand.u32 %v989, 4294901760
      %991 = vmatprep.mubr.f32.mxu0 %v990
      %v992 = vand.u32 %v307, 4294901760
      %v993 = vsub.f32 %v307, %v992
      %v994 = vand.u32 %v993, 4294901760
      %v995 = vsub.f32 %v993, %v994
      %v996 = vand.u32 %v995, 4294901760
      %997 = vmatmul.mubr.f32.gmra.mxu0 %v996
      %v998 = vpop.f32.mrf.mxu0
      %v999 = vadd.f32 0.0, %v998
      %v1000 = vpop.f32.mrf.mxu0
      %v1001 = vand.u32 %v310, 4294901760
      %v1002 = vsub.f32 %v310, %v1001
      %v1003 = vand.u32 %v1002, 4294901760
      %v1004 = vsub.f32 %v1002, %v1003
      %v1005 = vand.u32 %v1004, 4294901760
      %1006 = vmatprep.mubr.f32.mxu0 %v1005
      %v1007 = vand.u32 %v309, 4294901760
      %v1008 = vsub.f32 %v309, %v1007
      %v1009 = vand.u32 %v1008, 4294901760
      %v1010 = vsub.f32 %v1008, %v1009
      %v1011 = vand.u32 %v1010, 4294901760
      %1012 = vmatmul.mubr.f32.gmra.mxu0 %v1011
      %v1013 = vpop.f32.mrf.mxu0
      %v1014 = vadd.f32 0.0, %v1013
      %v1015 = vpop.f32.mrf.mxu0
      %v1016 = vand.u32 %v312, 4294901760
      %v1017 = vsub.f32 %v312, %v1016
      %v1018 = vand.u32 %v1017, 4294901760
      %v1019 = vsub.f32 %v1017, %v1018
      %v1020 = vand.u32 %v1019, 4294901760
      %1021 = vmatprep.mubr.f32.mxu0 %v1020
      %v1022 = vand.u32 %v311, 4294901760
      %v1023 = vsub.f32 %v311, %v1022
      %v1024 = vand.u32 %v1023, 4294901760
      %v1025 = vsub.f32 %v1023, %v1024
      %v1026 = vand.u32 %v1025, 4294901760
      %1027 = vmatmul.mubr.f32.gmra.mxu0 %v1026
      %v1028 = vpop.f32.mrf.mxu0
      %v1029 = vadd.f32 0.0, %v1028
      %v1030 = vpop.f32.mrf.mxu0
      %v1031 = vand.u32 %v314, 4294901760
      %v1032 = vsub.f32 %v314, %v1031
      %v1033 = vand.u32 %v1032, 4294901760
      %v1034 = vsub.f32 %v1032, %v1033
      %v1035 = vand.u32 %v1034, 4294901760
      %1036 = vmatprep.mubr.f32.mxu0 %v1035
      %v1037 = vand.u32 %v313, 4294901760
      %v1038 = vsub.f32 %v313, %v1037
      %v1039 = vand.u32 %v1038, 4294901760
      %v1040 = vsub.f32 %v1038, %v1039
      %v1041 = vand.u32 %v1040, 4294901760
      %1042 = vmatmul.mubr.f32.gmra.mxu0 %v1041
      %v1043 = vpop.f32.mrf.mxu0
      %v1044 = vadd.f32 0.0, %v1043
      %v1045 = vpop.f32.mrf.mxu0
      %v1046 = vand.u32 %v316, 4294901760
      %v1047 = vsub.f32 %v316, %v1046
      %v1048 = vand.u32 %v1047, 4294901760
      %v1049 = vsub.f32 %v1047, %v1048
      %v1050 = vand.u32 %v1049, 4294901760
      %1051 = vmatprep.mubr.f32.mxu0 %v1050
      %v1052 = vand.u32 %v315, 4294901760
      %v1053 = vsub.f32 %v315, %v1052
      %v1054 = vand.u32 %v1053, 4294901760
      %v1055 = vsub.f32 %v1053, %v1054
      %v1056 = vand.u32 %v1055, 4294901760
      %1057 = vmatmul.mubr.f32.gmra.mxu0 %v1056
      %v1058 = vpop.f32.mrf.mxu0
      %v1059 = vadd.f32 0.0, %v1058
      %v1060 = vpop.f32.mrf.mxu0
      %v1061 = vand.u32 %v318, 4294901760
      %v1062 = vsub.f32 %v318, %v1061
      %v1063 = vand.u32 %v1062, 4294901760
      %v1064 = vsub.f32 %v1062, %v1063
      %v1065 = vand.u32 %v1064, 4294901760
      %1066 = vmatprep.mubr.f32.mxu0 %v1065
      %v1067 = vand.u32 %v317, 4294901760
      %v1068 = vsub.f32 %v317, %v1067
      %v1069 = vand.u32 %v1068, 4294901760
      %v1070 = vsub.f32 %v1068, %v1069
      %v1071 = vand.u32 %v1070, 4294901760
      %1072 = vmatmul.mubr.f32.gmra.mxu0 %v1071
      %v1073 = vpop.f32.mrf.mxu0
      %v1074 = vadd.f32 0.0, %v1073
      %v1075 = vpop.f32.mrf.mxu0
      %v1076 = vand.u32 %v320, 4294901760
      %v1077 = vsub.f32 %v320, %v1076
      %v1078 = vand.u32 %v1077, 4294901760
      %v1079 = vsub.f32 %v1077, %v1078
      %v1080 = vand.u32 %v1079, 4294901760
      %1081 = vmatprep.mubr.f32.mxu0 %v1080
      %v1082 = vand.u32 %v319, 4294901760
      %v1083 = vsub.f32 %v319, %v1082
      %v1084 = vand.u32 %v1083, 4294901760
      %v1085 = vsub.f32 %v1083, %v1084
      %v1086 = vand.u32 %v1085, 4294901760
      %1087 = vmatmul.mubr.f32.gmra.mxu0 %v1086
      %v1088 = vpop.f32.mrf.mxu0
      %v1089 = vadd.f32 0.0, %v1088
      %v1090 = vpop.f32.mrf.mxu0
      %v1091 = vand.u32 %v322, 4294901760
      %v1092 = vsub.f32 %v322, %v1091
      %v1093 = vand.u32 %v1092, 4294901760
      %v1094 = vsub.f32 %v1092, %v1093
      %v1095 = vand.u32 %v1094, 4294901760
      %1096 = vmatprep.mubr.f32.mxu0 %v1095
      %v1097 = vand.u32 %v321, 4294901760
      %v1098 = vsub.f32 %v321, %v1097
      %v1099 = vand.u32 %v1098, 4294901760
      %v1100 = vsub.f32 %v1098, %v1099
      %v1101 = vand.u32 %v1100, 4294901760
      %1102 = vmatmul.mubr.f32.gmra.mxu0 %v1101
      %v1103 = vpop.f32.mrf.mxu0
      %v1104 = vadd.f32 0.0, %v1103
      %v1105 = vpop.f32.mrf.mxu0
      %v1106 = vand.u32 %v324, 4294901760
      %v1107 = vsub.f32 %v324, %v1106
      %v1108 = vand.u32 %v1107, 4294901760
      %v1109 = vsub.f32 %v1107, %v1108
      %v1110 = vand.u32 %v1109, 4294901760
      %1111 = vmatprep.mubr.f32.mxu0 %v1110
      %v1112 = vand.u32 %v323, 4294901760
      %v1113 = vsub.f32 %v323, %v1112
      %v1114 = vand.u32 %v1113, 4294901760
      %v1115 = vsub.f32 %v1113, %v1114
      %v1116 = vand.u32 %v1115, 4294901760
      %1117 = vmatmul.mubr.f32.gmra.mxu0 %v1116
      %v1118 = vpop.f32.mrf.mxu0
      %v1119 = vadd.f32 0.0, %v1118
      %v1120 = vpop.f32.mrf.mxu0
      %v1121 = vand.u32 %v326, 4294901760
      %v1122 = vsub.f32 %v326, %v1121
      %v1123 = vand.u32 %v1122, 4294901760
      %v1124 = vsub.f32 %v1122, %v1123
      %v1125 = vand.u32 %v1124, 4294901760
      %1126 = vmatprep.mubr.f32.mxu0 %v1125
      %v1127 = vand.u32 %v325, 4294901760
      %v1128 = vsub.f32 %v325, %v1127
      %v1129 = vand.u32 %v1128, 4294901760
      %v1130 = vsub.f32 %v1128, %v1129
      %v1131 = vand.u32 %v1130, 4294901760
      %1132 = vmatmul.mubr.f32.gmra.mxu0 %v1131
      %v1133 = vpop.f32.mrf.mxu0
      %v1134 = vadd.f32 0.0, %v1133
      %v1135 = vpop.f32.mrf.mxu0
      %v1136 = vand.u32 %v328, 4294901760
      %v1137 = vsub.f32 %v328, %v1136
      %v1138 = vand.u32 %v1137, 4294901760
      %v1139 = vsub.f32 %v1137, %v1138
      %v1140 = vand.u32 %v1139, 4294901760
      %1141 = vmatprep.mubr.f32.mxu0 %v1140
      %v1142 = vand.u32 %v327, 4294901760
      %v1143 = vsub.f32 %v327, %v1142
      %v1144 = vand.u32 %v1143, 4294901760
      %v1145 = vsub.f32 %v1143, %v1144
      %v1146 = vand.u32 %v1145, 4294901760
      %1147 = vmatmul.mubr.f32.gmra.mxu0 %v1146
      %v1148 = vpop.f32.mrf.mxu0
      %v1149 = vadd.f32 0.0, %v1148
      %v1150 = vpop.f32.mrf.mxu0
      %v1151 = vand.u32 %v330, 4294901760
      %v1152 = vsub.f32 %v330, %v1151
      %v1153 = vand.u32 %v1152, 4294901760
      %v1154 = vsub.f32 %v1152, %v1153
      %v1155 = vand.u32 %v1154, 4294901760
      %1156 = vmatprep.mubr.f32.mxu0 %v1155
      %v1157 = vand.u32 %v329, 4294901760
      %v1158 = vsub.f32 %v329, %v1157
      %v1159 = vand.u32 %v1158, 4294901760
      %v1160 = vsub.f32 %v1158, %v1159
      %v1161 = vand.u32 %v1160, 4294901760
      %1162 = vmatmul.mubr.f32.gmra.mxu0 %v1161
      %v1163 = vpop.f32.mrf.mxu0
      %v1164 = vadd.f32 0.0, %v1163
      %v1165 = vpop.f32.mrf.mxu0
      %v1166 = vand.u32 %v332, 4294901760
      %v1167 = vsub.f32 %v332, %v1166
      %v1168 = vand.u32 %v1167, 4294901760
      %v1169 = vsub.f32 %v1167, %v1168
      %v1170 = vand.u32 %v1169, 4294901760
      %1171 = vmatprep.mubr.f32.mxu0 %v1170
      %v1172 = vand.u32 %v331, 4294901760
      %v1173 = vsub.f32 %v331, %v1172
      %v1174 = vand.u32 %v1173, 4294901760
      %v1175 = vsub.f32 %v1173, %v1174
      %v1176 = vand.u32 %v1175, 4294901760
      %1177 = vmatmul.mubr.f32.gmra.mxu0 %v1176
      %v1178 = vpop.f32.mrf.mxu0
      %v1179 = vadd.f32 0.0, %v1178
      %v1180 = vpop.f32.mrf.mxu0
      %v1181 = vand.u32 %v334, 4294901760
      %v1182 = vsub.f32 %v334, %v1181
      %v1183 = vand.u32 %v1182, 4294901760
      %v1184 = vsub.f32 %v1182, %v1183
      %v1185 = vand.u32 %v1184, 4294901760
      %1186 = vmatprep.mubr.f32.mxu0 %v1185
      %v1187 = vand.u32 %v333, 4294901760
      %v1188 = vsub.f32 %v333, %v1187
      %v1189 = vand.u32 %v1188, 4294901760
      %v1190 = vsub.f32 %v1188, %v1189
      %v1191 = vand.u32 %v1190, 4294901760
      %1192 = vmatmul.mubr.f32.gmra.mxu0 %v1191
      %v1193 = vpop.f32.mrf.mxu0
      %v1194 = vadd.f32 0.0, %v1193
      %v1195 = vpop.f32.mrf.mxu0
      %v1196 = vand.u32 %v336, 4294901760
      %v1197 = vsub.f32 %v336, %v1196
      %v1198 = vand.u32 %v1197, 4294901760
      %v1199 = vsub.f32 %v1197, %v1198
      %v1200 = vand.u32 %v1199, 4294901760
      %1201 = vmatprep.mubr.f32.mxu0 %v1200
      %v1202 = vand.u32 %v335, 4294901760
      %v1203 = vsub.f32 %v335, %v1202
      %v1204 = vand.u32 %v1203, 4294901760
      %v1205 = vsub.f32 %v1203, %v1204
      %v1206 = vand.u32 %v1205, 4294901760
      %1207 = vmatmul.mubr.f32.gmra.mxu0 %v1206
      %v1208 = vpop.f32.mrf.mxu0
      %v1209 = vadd.f32 0.0, %v1208
      %v1210 = vpop.f32.mrf.mxu0
      %v1211 = vand.u32 %v338, 4294901760
      %v1212 = vsub.f32 %v338, %v1211
      %v1213 = vand.u32 %v1212, 4294901760
      %v1214 = vsub.f32 %v1212, %v1213
      %v1215 = vand.u32 %v1214, 4294901760
      %1216 = vmatprep.mubr.f32.mxu0 %v1215
      %v1217 = vand.u32 %v337, 4294901760
      %v1218 = vsub.f32 %v337, %v1217
      %v1219 = vand.u32 %v1218, 4294901760
      %v1220 = vsub.f32 %v1218, %v1219
      %v1221 = vand.u32 %v1220, 4294901760
      %1222 = vmatmul.mubr.f32.gmra.mxu0 %v1221
      %v1223 = vpop.f32.mrf.mxu0
      %v1224 = vadd.f32 0.0, %v1223
      %v1225 = vpop.f32.mrf.mxu0
      %v1226 = vand.u32 %v340, 4294901760
      %v1227 = vsub.f32 %v340, %v1226
      %v1228 = vand.u32 %v1227, 4294901760
      %v1229 = vsub.f32 %v1227, %v1228
      %v1230 = vand.u32 %v1229, 4294901760
      %1231 = vmatprep.mubr.f32.mxu0 %v1230
      %v1232 = vand.u32 %v339, 4294901760
      %v1233 = vsub.f32 %v339, %v1232
      %v1234 = vand.u32 %v1233, 4294901760
      %v1235 = vsub.f32 %v1233, %v1234
      %v1236 = vand.u32 %v1235, 4294901760
      %1237 = vmatmul.mubr.f32.gmra.mxu0 %v1236
      %v1238 = vpop.f32.mrf.mxu0
      %v1239 = vadd.f32 0.0, %v1238
      %v1240 = vpop.f32.mrf.mxu0
      %v1241 = vand.u32 %v342, 4294901760
      %v1242 = vsub.f32 %v342, %v1241
      %v1243 = vand.u32 %v1242, 4294901760
      %v1244 = vsub.f32 %v1242, %v1243
      %v1245 = vand.u32 %v1244, 4294901760
      %1246 = vmatprep.mubr.f32.mxu0 %v1245
      %v1247 = vand.u32 %v341, 4294901760
      %v1248 = vsub.f32 %v341, %v1247
      %v1249 = vand.u32 %v1248, 4294901760
      %v1250 = vsub.f32 %v1248, %v1249
      %v1251 = vand.u32 %v1250, 4294901760
      %1252 = vmatmul.mubr.f32.gmra.mxu0 %v1251
      %v1253 = vpop.f32.mrf.mxu0
      %v1254 = vadd.f32 0.0, %v1253
      %v1255 = vpop.f32.mrf.mxu0
      %v1256 = vand.u32 %v344, 4294901760
      %v1257 = vsub.f32 %v344, %v1256
      %v1258 = vand.u32 %v1257, 4294901760
      %v1259 = vsub.f32 %v1257, %v1258
      %v1260 = vand.u32 %v1259, 4294901760
      %1261 = vmatprep.mubr.f32.mxu0 %v1260
      %v1262 = vand.u32 %v343, 4294901760
      %v1263 = vsub.f32 %v343, %v1262
      %v1264 = vand.u32 %v1263, 4294901760
      %v1265 = vsub.f32 %v1263, %v1264
      %v1266 = vand.u32 %v1265, 4294901760
      %1267 = vmatmul.mubr.f32.gmra.mxu0 %v1266
      %v1268 = vpop.f32.mrf.mxu0
      %v1269 = vadd.f32 0.0, %v1268
      %v1270 = vpop.f32.mrf.mxu0
      %v1271 = vand.u32 %v346, 4294901760
      %v1272 = vsub.f32 %v346, %v1271
      %v1273 = vand.u32 %v1272, 4294901760
      %v1274 = vsub.f32 %v1272, %v1273
      %v1275 = vand.u32 %v1274, 4294901760
      %1276 = vmatprep.mubr.f32.mxu0 %v1275
      %v1277 = vand.u32 %v345, 4294901760
      %v1278 = vsub.f32 %v345, %v1277
      %v1279 = vand.u32 %v1278, 4294901760
      %v1280 = vsub.f32 %v1278, %v1279
      %v1281 = vand.u32 %v1280, 4294901760
      %1282 = vmatmul.mubr.f32.gmra.mxu0 %v1281
      %v1283 = vpop.f32.mrf.mxu0
      %v1284 = vadd.f32 0.0, %v1283
      %v1285 = vpop.f32.mrf.mxu0
      %v1286 = vand.u32 %v348, 4294901760
      %v1287 = vsub.f32 %v348, %v1286
      %v1288 = vand.u32 %v1287, 4294901760
      %v1289 = vsub.f32 %v1287, %v1288
      %v1290 = vand.u32 %v1289, 4294901760
      %1291 = vmatprep.mubr.f32.mxu0 %v1290
      %v1292 = vand.u32 %v347, 4294901760
      %v1293 = vsub.f32 %v347, %v1292
      %v1294 = vand.u32 %v1293, 4294901760
      %v1295 = vsub.f32 %v1293, %v1294
      %v1296 = vand.u32 %v1295, 4294901760
      %1297 = vmatmul.mubr.f32.gmra.mxu0 %v1296
      %v1298 = vpop.f32.mrf.mxu0
      %v1299 = vadd.f32 0.0, %v1298
      %v1300 = vpop.f32.mrf.mxu0
      %v1301 = vand.u32 %v350, 4294901760
      %v1302 = vsub.f32 %v350, %v1301
      %v1303 = vand.u32 %v1302, 4294901760
      %v1304 = vsub.f32 %v1302, %v1303
      %v1305 = vand.u32 %v1304, 4294901760
      %1306 = vmatprep.mubr.f32.mxu0 %v1305
      %v1307 = vand.u32 %v349, 4294901760
      %v1308 = vsub.f32 %v349, %v1307
      %v1309 = vand.u32 %v1308, 4294901760
      %v1310 = vsub.f32 %v1308, %v1309
      %v1311 = vand.u32 %v1310, 4294901760
      %1312 = vmatmul.mubr.f32.gmra.mxu0 %v1311
      %v1313 = vpop.f32.mrf.mxu0
      %v1314 = vadd.f32 0.0, %v1313
      %v1315 = vpop.f32.mrf.mxu0
      %v1316 = vand.u32 %v352, 4294901760
      %v1317 = vsub.f32 %v352, %v1316
      %v1318 = vand.u32 %v1317, 4294901760
      %v1319 = vsub.f32 %v1317, %v1318
      %v1320 = vand.u32 %v1319, 4294901760
      %1321 = vmatprep.mubr.f32.mxu0 %v1320
      %v1322 = vand.u32 %v351, 4294901760
      %v1323 = vsub.f32 %v351, %v1322
      %v1324 = vand.u32 %v1323, 4294901760
      %v1325 = vsub.f32 %v1323, %v1324
      %v1326 = vand.u32 %v1325, 4294901760
      %1327 = vmatmul.mubr.f32.gmra.mxu0 %v1326
      %v1328 = vpop.f32.mrf.mxu0
      %v1329 = vadd.f32 0.0, %v1328
      %v1330 = vpop.f32.mrf.mxu0
      %v1331 = vand.u32 %v354, 4294901760
      %v1332 = vsub.f32 %v354, %v1331
      %v1333 = vand.u32 %v1332, 4294901760
      %v1334 = vsub.f32 %v1332, %v1333
      %v1335 = vand.u32 %v1334, 4294901760
      %1336 = vmatprep.mubr.f32.mxu0 %v1335
      %v1337 = vand.u32 %v353, 4294901760
      %v1338 = vsub.f32 %v353, %v1337
      %v1339 = vand.u32 %v1338, 4294901760
      %v1340 = vsub.f32 %v1338, %v1339
      %v1341 = vand.u32 %v1340, 4294901760
      %1342 = vmatmul.mubr.f32.gmra.mxu0 %v1341
      %v1343 = vpop.f32.mrf.mxu0
      %v1344 = vadd.f32 0.0, %v1343
      %v1345 = vpop.f32.mrf.mxu0
      %v1346 = vand.u32 %v356, 4294901760
      %v1347 = vsub.f32 %v356, %v1346
      %v1348 = vand.u32 %v1347, 4294901760
      %v1349 = vsub.f32 %v1347, %v1348
      %v1350 = vand.u32 %v1349, 4294901760
      %1351 = vmatprep.mubr.f32.mxu0 %v1350
      %v1352 = vand.u32 %v355, 4294901760
      %v1353 = vsub.f32 %v355, %v1352
      %v1354 = vand.u32 %v1353, 4294901760
      %v1355 = vsub.f32 %v1353, %v1354
      %v1356 = vand.u32 %v1355, 4294901760
      %1357 = vmatmul.mubr.f32.gmra.mxu0 %v1356
      %v1358 = vpop.f32.mrf.mxu0
      %v1359 = vadd.f32 0.0, %v1358
      %v1360 = vpop.f32.mrf.mxu0
      %v1361 = vand.u32 %v358, 4294901760
      %v1362 = vsub.f32 %v358, %v1361
      %v1363 = vand.u32 %v1362, 4294901760
      %v1364 = vsub.f32 %v1362, %v1363
      %v1365 = vand.u32 %v1364, 4294901760
      %1366 = vmatprep.mubr.f32.mxu0 %v1365
      %v1367 = vand.u32 %v357, 4294901760
      %v1368 = vsub.f32 %v357, %v1367
      %v1369 = vand.u32 %v1368, 4294901760
      %v1370 = vsub.f32 %v1368, %v1369
      %v1371 = vand.u32 %v1370, 4294901760
      %1372 = vmatmul.mubr.f32.gmra.mxu0 %v1371
      %v1373 = vpop.f32.mrf.mxu0
      %v1374 = vadd.f32 0.0, %v1373
      %v1375 = vpop.f32.mrf.mxu0
      %v1376 = vand.u32 %v360, 4294901760
      %v1377 = vsub.f32 %v360, %v1376
      %v1378 = vand.u32 %v1377, 4294901760
      %v1379 = vsub.f32 %v1377, %v1378
      %v1380 = vand.u32 %v1379, 4294901760
      %1381 = vmatprep.mubr.f32.mxu0 %v1380
      %v1382 = vand.u32 %v359, 4294901760
      %v1383 = vsub.f32 %v359, %v1382
      %v1384 = vand.u32 %v1383, 4294901760
      %v1385 = vsub.f32 %v1383, %v1384
      %v1386 = vand.u32 %v1385, 4294901760
      %1387 = vmatmul.mubr.f32.gmra.mxu0 %v1386
      %v1388 = vpop.f32.mrf.mxu0
      %v1389 = vadd.f32 0.0, %v1388
      %v1390 = vpop.f32.mrf.mxu0
      %v1391 = vand.u32 %v362, 4294901760
      %v1392 = vsub.f32 %v362, %v1391
      %v1393 = vand.u32 %v1392, 4294901760
      %v1394 = vsub.f32 %v1392, %v1393
      %v1395 = vand.u32 %v1394, 4294901760
      %1396 = vmatprep.mubr.f32.mxu0 %v1395
      %v1397 = vand.u32 %v361, 4294901760
      %v1398 = vsub.f32 %v361, %v1397
      %v1399 = vand.u32 %v1398, 4294901760
      %v1400 = vsub.f32 %v1398, %v1399
      %v1401 = vand.u32 %v1400, 4294901760
      %1402 = vmatmul.mubr.f32.gmra.mxu0 %v1401
      %v1403 = vpop.f32.mrf.mxu0
      %v1404 = vadd.f32 0.0, %v1403
      %v1405 = vpop.f32.mrf.mxu0
      %v1406 = vand.u32 %v364, 4294901760
      %v1407 = vsub.f32 %v364, %v1406
      %v1408 = vand.u32 %v1407, 4294901760
      %v1409 = vsub.f32 %v1407, %v1408
      %v1410 = vand.u32 %v1409, 4294901760
      %1411 = vmatprep.mubr.f32.mxu0 %v1410
      %v1412 = vand.u32 %v363, 4294901760
      %v1413 = vsub.f32 %v363, %v1412
      %v1414 = vand.u32 %v1413, 4294901760
      %v1415 = vsub.f32 %v1413, %v1414
      %v1416 = vand.u32 %v1415, 4294901760
      %1417 = vmatmul.mubr.f32.gmra.mxu0 %v1416
      %v1418 = vpop.f32.mrf.mxu0
      %v1419 = vadd.f32 0.0, %v1418
      %v1420 = vpop.f32.mrf.mxu0
      %1421 = vdwg.mxu0
      %1422 = vmatprep.subr.mxu0 0.0
      %v1423 = vand.u32 %v220, 4294901760
      %v1424 = vsub.f32 %v220, %v1423
      %v1425 = vand.u32 %v1424, 4294901760
      %v1426 = vsub.f32 %v1424, %v1425
      %v1427 = vand.u32 %v1426, 4294901760
      %1428 = vmatpush1.msra.mxu0 %v1427
      %1429 = vmatprep.subr.mxu0 0.0
      %v1430 = vand.u32 %v219, 4294901760
      %v1431 = vsub.f32 %v219, %v1430
      %v1432 = vand.u32 %v1431, 4294901760
      %v1433 = vsub.f32 %v1431, %v1432
      %v1434 = vand.u32 %v1433, 4294901760
      %1435 = vmatpush1.msra.mxu0 %v1434
      %1436 = vmatprep.subr.mxu0 0.0
      %v1437 = vand.u32 %v218, 4294901760
      %v1438 = vsub.f32 %v218, %v1437
      %v1439 = vand.u32 %v1438, 4294901760
      %v1440 = vsub.f32 %v1438, %v1439
      %v1441 = vand.u32 %v1440, 4294901760
      %1442 = vmatpush1.msra.mxu0 %v1441
      %1443 = vmatprep.subr.mxu0 0.0
      %v1444 = vand.u32 %v217, 4294901760
      %v1445 = vsub.f32 %v217, %v1444
      %v1446 = vand.u32 %v1445, 4294901760
      %v1447 = vsub.f32 %v1445, %v1446
      %v1448 = vand.u32 %v1447, 4294901760
      %1449 = vmatpush1.msra.mxu0 %v1448
      %1450 = vmatprep.subr.mxu0 0.0
      %v1451 = vand.u32 %v216, 4294901760
      %v1452 = vsub.f32 %v216, %v1451
      %v1453 = vand.u32 %v1452, 4294901760
      %v1454 = vsub.f32 %v1452, %v1453
      %v1455 = vand.u32 %v1454, 4294901760
      %1456 = vmatpush1.msra.mxu0 %v1455
      %1457 = vmatprep.subr.mxu0 0.0
      %v1458 = vand.u32 %v215, 4294901760
      %v1459 = vsub.f32 %v215, %v1458
      %v1460 = vand.u32 %v1459, 4294901760
      %v1461 = vsub.f32 %v1459, %v1460
      %v1462 = vand.u32 %v1461, 4294901760
      %1463 = vmatpush1.msra.mxu0 %v1462
      %1464 = vmatprep.subr.mxu0 0.0
      %v1465 = vand.u32 %v214, 4294901760
      %v1466 = vsub.f32 %v214, %v1465
      %v1467 = vand.u32 %v1466, 4294901760
      %v1468 = vsub.f32 %v1466, %v1467
      %v1469 = vand.u32 %v1468, 4294901760
      %1470 = vmatpush1.msra.mxu0 %v1469
      %1471 = vmatprep.subr.mxu0 0.0
      %v1472 = vand.u32 %v213, 4294901760
      %v1473 = vsub.f32 %v213, %v1472
      %v1474 = vand.u32 %v1473, 4294901760
      %v1475 = vsub.f32 %v1473, %v1474
      %v1476 = vand.u32 %v1475, 4294901760
      %1477 = vmatpush1.msra.mxu0 %v1476
      %1478 = vmatprep.subr.mxu0 0.0
      %v1479 = vand.u32 %v212, 4294901760
      %v1480 = vsub.f32 %v212, %v1479
      %v1481 = vand.u32 %v1480, 4294901760
      %v1482 = vsub.f32 %v1480, %v1481
      %v1483 = vand.u32 %v1482, 4294901760
      %1484 = vmatpush1.msra.mxu0 %v1483
      %1485 = vmatprep.subr.mxu0 0.0
      %v1486 = vand.u32 %v211, 4294901760
      %v1487 = vsub.f32 %v211, %v1486
      %v1488 = vand.u32 %v1487, 4294901760
      %v1489 = vsub.f32 %v1487, %v1488
      %v1490 = vand.u32 %v1489, 4294901760
      %1491 = vmatpush1.msra.mxu0 %v1490
      %1492 = vmatprep.subr.mxu0 0.0
      %v1493 = vand.u32 %v210, 4294901760
      %v1494 = vsub.f32 %v210, %v1493
      %v1495 = vand.u32 %v1494, 4294901760
      %v1496 = vsub.f32 %v1494, %v1495
      %v1497 = vand.u32 %v1496, 4294901760
      %1498 = vmatpush1.msra.mxu0 %v1497
      %1499 = vmatprep.subr.mxu0 0.0
      %v1500 = vand.u32 %v209, 4294901760
      %v1501 = vsub.f32 %v209, %v1500
      %v1502 = vand.u32 %v1501, 4294901760
      %v1503 = vsub.f32 %v1501, %v1502
      %v1504 = vand.u32 %v1503, 4294901760
      %1505 = vmatpush1.msra.mxu0 %v1504
      %1506 = vmatprep.subr.mxu0 0.0
      %v1507 = vand.u32 %v208, 4294901760
      %v1508 = vsub.f32 %v208, %v1507
      %v1509 = vand.u32 %v1508, 4294901760
      %v1510 = vsub.f32 %v1508, %v1509
      %v1511 = vand.u32 %v1510, 4294901760
      %1512 = vmatpush1.msra.mxu0 %v1511
      %1513 = vmatprep.subr.mxu0 0.0
      %v1514 = vand.u32 %v207, 4294901760
      %v1515 = vsub.f32 %v207, %v1514
      %v1516 = vand.u32 %v1515, 4294901760
      %v1517 = vsub.f32 %v1515, %v1516
      %v1518 = vand.u32 %v1517, 4294901760
      %1519 = vmatpush1.msra.mxu0 %v1518
      %1520 = vmatprep.subr.mxu0 0.0
      %v1521 = vand.u32 %v206, 4294901760
      %v1522 = vsub.f32 %v206, %v1521
      %v1523 = vand.u32 %v1522, 4294901760
      %v1524 = vsub.f32 %v1522, %v1523
      %v1525 = vand.u32 %v1524, 4294901760
      %1526 = vmatpush1.msra.mxu0 %v1525
      %1527 = vmatprep.subr.mxu0 0.0
      %v1528 = vand.u32 %v205, 4294901760
      %v1529 = vsub.f32 %v205, %v1528
      %v1530 = vand.u32 %v1529, 4294901760
      %v1531 = vsub.f32 %v1529, %v1530
      %v1532 = vand.u32 %v1531, 4294901760
      %1533 = vmatpush1.msra.mxu0 %v1532
      %1534 = vmatprep.subr.mxu0 0.0
      %v1535 = vand.u32 %v236, 4294901760
      %v1536 = vsub.f32 %v236, %v1535
      %v1537 = vand.u32 %v1536, 4294901760
      %v1538 = vsub.f32 %v1536, %v1537
      %v1539 = vand.u32 %v1538, 4294901760
      %1540 = vmatpush2.msra.mxu0 %v1539
      %1541 = vmatprep.subr.mxu0 0.0
      %v1542 = vand.u32 %v235, 4294901760
      %v1543 = vsub.f32 %v235, %v1542
      %v1544 = vand.u32 %v1543, 4294901760
      %v1545 = vsub.f32 %v1543, %v1544
      %v1546 = vand.u32 %v1545, 4294901760
      %1547 = vmatpush2.msra.mxu0 %v1546
      %1548 = vmatprep.subr.mxu0 0.0
      %v1549 = vand.u32 %v234, 4294901760
      %v1550 = vsub.f32 %v234, %v1549
      %v1551 = vand.u32 %v1550, 4294901760
      %v1552 = vsub.f32 %v1550, %v1551
      %v1553 = vand.u32 %v1552, 4294901760
      %1554 = vmatpush2.msra.mxu0 %v1553
      %1555 = vmatprep.subr.mxu0 0.0
      %v1556 = vand.u32 %v233, 4294901760
      %v1557 = vsub.f32 %v233, %v1556
      %v1558 = vand.u32 %v1557, 4294901760
      %v1559 = vsub.f32 %v1557, %v1558
      %v1560 = vand.u32 %v1559, 4294901760
      %1561 = vmatpush2.msra.mxu0 %v1560
      %1562 = vmatprep.subr.mxu0 0.0
      %v1563 = vand.u32 %v232, 4294901760
      %v1564 = vsub.f32 %v232, %v1563
      %v1565 = vand.u32 %v1564, 4294901760
      %v1566 = vsub.f32 %v1564, %v1565
      %v1567 = vand.u32 %v1566, 4294901760
      %1568 = vmatpush2.msra.mxu0 %v1567
      %1569 = vmatprep.subr.mxu0 0.0
      %v1570 = vand.u32 %v231, 4294901760
      %v1571 = vsub.f32 %v231, %v1570
      %v1572 = vand.u32 %v1571, 4294901760
      %v1573 = vsub.f32 %v1571, %v1572
      %v1574 = vand.u32 %v1573, 4294901760
      %1575 = vmatpush2.msra.mxu0 %v1574
      %1576 = vmatprep.subr.mxu0 0.0
      %v1577 = vand.u32 %v230, 4294901760
      %v1578 = vsub.f32 %v230, %v1577
      %v1579 = vand.u32 %v1578, 4294901760
      %v1580 = vsub.f32 %v1578, %v1579
      %v1581 = vand.u32 %v1580, 4294901760
      %1582 = vmatpush2.msra.mxu0 %v1581
      %1583 = vmatprep.subr.mxu0 0.0
      %v1584 = vand.u32 %v229, 4294901760
      %v1585 = vsub.f32 %v229, %v1584
      %v1586 = vand.u32 %v1585, 4294901760
      %v1587 = vsub.f32 %v1585, %v1586
      %v1588 = vand.u32 %v1587, 4294901760
      %1589 = vmatpush2.msra.mxu0 %v1588
      %1590 = vmatprep.subr.mxu0 0.0
      %v1591 = vand.u32 %v228, 4294901760
      %v1592 = vsub.f32 %v228, %v1591
      %v1593 = vand.u32 %v1592, 4294901760
      %v1594 = vsub.f32 %v1592, %v1593
      %v1595 = vand.u32 %v1594, 4294901760
      %1596 = vmatpush2.msra.mxu0 %v1595
      %1597 = vmatprep.subr.mxu0 0.0
      %v1598 = vand.u32 %v227, 4294901760
      %v1599 = vsub.f32 %v227, %v1598
      %v1600 = vand.u32 %v1599, 4294901760
      %v1601 = vsub.f32 %v1599, %v1600
      %v1602 = vand.u32 %v1601, 4294901760
      %1603 = vmatpush2.msra.mxu0 %v1602
      %1604 = vmatprep.subr.mxu0 0.0
      %v1605 = vand.u32 %v226, 4294901760
      %v1606 = vsub.f32 %v226, %v1605
      %v1607 = vand.u32 %v1606, 4294901760
      %v1608 = vsub.f32 %v1606, %v1607
      %v1609 = vand.u32 %v1608, 4294901760
      %1610 = vmatpush2.msra.mxu0 %v1609
      %1611 = vmatprep.subr.mxu0 0.0
      %v1612 = vand.u32 %v225, 4294901760
      %v1613 = vsub.f32 %v225, %v1612
      %v1614 = vand.u32 %v1613, 4294901760
      %v1615 = vsub.f32 %v1613, %v1614
      %v1616 = vand.u32 %v1615, 4294901760
      %1617 = vmatpush2.msra.mxu0 %v1616
      %1618 = vmatprep.subr.mxu0 0.0
      %v1619 = vand.u32 %v224, 4294901760
      %v1620 = vsub.f32 %v224, %v1619
      %v1621 = vand.u32 %v1620, 4294901760
      %v1622 = vsub.f32 %v1620, %v1621
      %v1623 = vand.u32 %v1622, 4294901760
      %1624 = vmatpush2.msra.mxu0 %v1623
      %1625 = vmatprep.subr.mxu0 0.0
      %v1626 = vand.u32 %v223, 4294901760
      %v1627 = vsub.f32 %v223, %v1626
      %v1628 = vand.u32 %v1627, 4294901760
      %v1629 = vsub.f32 %v1627, %v1628
      %v1630 = vand.u32 %v1629, 4294901760
      %1631 = vmatpush2.msra.mxu0 %v1630
      %1632 = vmatprep.subr.mxu0 0.0
      %v1633 = vand.u32 %v222, 4294901760
      %v1634 = vsub.f32 %v222, %v1633
      %v1635 = vand.u32 %v1634, 4294901760
      %v1636 = vsub.f32 %v1634, %v1635
      %v1637 = vand.u32 %v1636, 4294901760
      %1638 = vmatpush2.msra.mxu0 %v1637
      %1639 = vmatprep.subr.mxu0 0.0
      %v1640 = vand.u32 %v221, 4294901760
      %v1641 = vsub.f32 %v221, %v1640
      %v1642 = vand.u32 %v1641, 4294901760
      %v1643 = vsub.f32 %v1641, %v1642
      %v1644 = vand.u32 %v1643, 4294901760
      %1645 = vmatpush2.msra.mxu0 %v1644
      %v1646 = vand.u32 %v238, 4294901760
      %1647 = vmatprep.mubr.f32.mxu0 %v1646
      %v1648 = vand.u32 %v237, 4294901760
      %1649 = vmatmul.mubr.f32.gmra.mxu0 %v1648
      %v1650 = vpop.f32.mrf.mxu0
      %v1651 = vadd.f32 %v474, %v1650
      %v1652 = vpop.f32.mrf.mxu0
      %v1653 = vand.u32 %v240, 4294901760
      %1654 = vmatprep.mubr.f32.mxu0 %v1653
      %v1655 = vand.u32 %v239, 4294901760
      %1656 = vmatmul.mubr.f32.gmra.mxu0 %v1655
      %v1657 = vpop.f32.mrf.mxu0
      %v1658 = vadd.f32 %v489, %v1657
      %v1659 = vpop.f32.mrf.mxu0
      %v1660 = vand.u32 %v242, 4294901760
      %1661 = vmatprep.mubr.f32.mxu0 %v1660
      %v1662 = vand.u32 %v241, 4294901760
      %1663 = vmatmul.mubr.f32.gmra.mxu0 %v1662
      %v1664 = vpop.f32.mrf.mxu0
      %v1665 = vadd.f32 %v504, %v1664
      %v1666 = vpop.f32.mrf.mxu0
      %v1667 = vand.u32 %v244, 4294901760
      %1668 = vmatprep.mubr.f32.mxu0 %v1667
      %v1669 = vand.u32 %v243, 4294901760
      %1670 = vmatmul.mubr.f32.gmra.mxu0 %v1669
      %v1671 = vpop.f32.mrf.mxu0
      %v1672 = vadd.f32 %v519, %v1671
      %v1673 = vpop.f32.mrf.mxu0
      %v1674 = vand.u32 %v246, 4294901760
      %1675 = vmatprep.mubr.f32.mxu0 %v1674
      %v1676 = vand.u32 %v245, 4294901760
      %1677 = vmatmul.mubr.f32.gmra.mxu0 %v1676
      %v1678 = vpop.f32.mrf.mxu0
      %v1679 = vadd.f32 %v534, %v1678
      %v1680 = vpop.f32.mrf.mxu0
      %v1681 = vand.u32 %v248, 4294901760
      %1682 = vmatprep.mubr.f32.mxu0 %v1681
      %v1683 = vand.u32 %v247, 4294901760
      %1684 = vmatmul.mubr.f32.gmra.mxu0 %v1683
      %v1685 = vpop.f32.mrf.mxu0
      %v1686 = vadd.f32 %v549, %v1685
      %v1687 = vpop.f32.mrf.mxu0
      %v1688 = vand.u32 %v250, 4294901760
      %1689 = vmatprep.mubr.f32.mxu0 %v1688
      %v1690 = vand.u32 %v249, 4294901760
      %1691 = vmatmul.mubr.f32.gmra.mxu0 %v1690
      %v1692 = vpop.f32.mrf.mxu0
      %v1693 = vadd.f32 %v564, %v1692
      %v1694 = vpop.f32.mrf.mxu0
      %v1695 = vand.u32 %v252, 4294901760
      %1696 = vmatprep.mubr.f32.mxu0 %v1695
      %v1697 = vand.u32 %v251, 4294901760
      %1698 = vmatmul.mubr.f32.gmra.mxu0 %v1697
      %v1699 = vpop.f32.mrf.mxu0
      %v1700 = vadd.f32 %v579, %v1699
      %v1701 = vpop.f32.mrf.mxu0
      %v1702 = vand.u32 %v254, 4294901760
      %1703 = vmatprep.mubr.f32.mxu0 %v1702
      %v1704 = vand.u32 %v253, 4294901760
      %1705 = vmatmul.mubr.f32.gmra.mxu0 %v1704
      %v1706 = vpop.f32.mrf.mxu0
      %v1707 = vadd.f32 %v594, %v1706
      %v1708 = vpop.f32.mrf.mxu0
      %v1709 = vand.u32 %v256, 4294901760
      %1710 = vmatprep.mubr.f32.mxu0 %v1709
      %v1711 = vand.u32 %v255, 4294901760
      %1712 = vmatmul.mubr.f32.gmra.mxu0 %v1711
      %v1713 = vpop.f32.mrf.mxu0
      %v1714 = vadd.f32 %v609, %v1713
      %v1715 = vpop.f32.mrf.mxu0
      %v1716 = vand.u32 %v258, 4294901760
      %1717 = vmatprep.mubr.f32.mxu0 %v1716
      %v1718 = vand.u32 %v257, 4294901760
      %1719 = vmatmul.mubr.f32.gmra.mxu0 %v1718
      %v1720 = vpop.f32.mrf.mxu0
      %v1721 = vadd.f32 %v624, %v1720
      %v1722 = vpop.f32.mrf.mxu0
      %v1723 = vand.u32 %v260, 4294901760
      %1724 = vmatprep.mubr.f32.mxu0 %v1723
      %v1725 = vand.u32 %v259, 4294901760
      %1726 = vmatmul.mubr.f32.gmra.mxu0 %v1725
      %v1727 = vpop.f32.mrf.mxu0
      %v1728 = vadd.f32 %v639, %v1727
      %v1729 = vpop.f32.mrf.mxu0
      %v1730 = vand.u32 %v262, 4294901760
      %1731 = vmatprep.mubr.f32.mxu0 %v1730
      %v1732 = vand.u32 %v261, 4294901760
      %1733 = vmatmul.mubr.f32.gmra.mxu0 %v1732
      %v1734 = vpop.f32.mrf.mxu0
      %v1735 = vadd.f32 %v654, %v1734
      %v1736 = vpop.f32.mrf.mxu0
      %v1737 = vand.u32 %v264, 4294901760
      %1738 = vmatprep.mubr.f32.mxu0 %v1737
      %v1739 = vand.u32 %v263, 4294901760
      %1740 = vmatmul.mubr.f32.gmra.mxu0 %v1739
      %v1741 = vpop.f32.mrf.mxu0
      %v1742 = vadd.f32 %v669, %v1741
      %v1743 = vpop.f32.mrf.mxu0
      %v1744 = vand.u32 %v266, 4294901760
      %1745 = vmatprep.mubr.f32.mxu0 %v1744
      %v1746 = vand.u32 %v265, 4294901760
      %1747 = vmatmul.mubr.f32.gmra.mxu0 %v1746
      %v1748 = vpop.f32.mrf.mxu0
      %v1749 = vadd.f32 %v684, %v1748
      %v1750 = vpop.f32.mrf.mxu0
      %v1751 = vand.u32 %v268, 4294901760
      %1752 = vmatprep.mubr.f32.mxu0 %v1751
      %v1753 = vand.u32 %v267, 4294901760
      %1754 = vmatmul.mubr.f32.gmra.mxu0 %v1753
      %v1755 = vpop.f32.mrf.mxu0
      %v1756 = vadd.f32 %v699, %v1755
      %v1757 = vpop.f32.mrf.mxu0
      %v1758 = vand.u32 %v270, 4294901760
      %1759 = vmatprep.mubr.f32.mxu0 %v1758
      %v1760 = vand.u32 %v269, 4294901760
      %1761 = vmatmul.mubr.f32.gmra.mxu0 %v1760
      %v1762 = vpop.f32.mrf.mxu0
      %v1763 = vadd.f32 %v714, %v1762
      %v1764 = vpop.f32.mrf.mxu0
      %v1765 = vand.u32 %v272, 4294901760
      %1766 = vmatprep.mubr.f32.mxu0 %v1765
      %v1767 = vand.u32 %v271, 4294901760
      %1768 = vmatmul.mubr.f32.gmra.mxu0 %v1767
      %v1769 = vpop.f32.mrf.mxu0
      %v1770 = vadd.f32 %v729, %v1769
      %v1771 = vpop.f32.mrf.mxu0
      %v1772 = vand.u32 %v274, 4294901760
      %1773 = vmatprep.mubr.f32.mxu0 %v1772
      %v1774 = vand.u32 %v273, 4294901760
      %1775 = vmatmul.mubr.f32.gmra.mxu0 %v1774
      %v1776 = vpop.f32.mrf.mxu0
      %v1777 = vadd.f32 %v744, %v1776
      %v1778 = vpop.f32.mrf.mxu0
      %v1779 = vand.u32 %v276, 4294901760
      %1780 = vmatprep.mubr.f32.mxu0 %v1779
      %v1781 = vand.u32 %v275, 4294901760
      %1782 = vmatmul.mubr.f32.gmra.mxu0 %v1781
      %v1783 = vpop.f32.mrf.mxu0
      %v1784 = vadd.f32 %v759, %v1783
      %v1785 = vpop.f32.mrf.mxu0
      %v1786 = vand.u32 %v278, 4294901760
      %1787 = vmatprep.mubr.f32.mxu0 %v1786
      %v1788 = vand.u32 %v277, 4294901760
      %1789 = vmatmul.mubr.f32.gmra.mxu0 %v1788
      %v1790 = vpop.f32.mrf.mxu0
      %v1791 = vadd.f32 %v774, %v1790
      %v1792 = vpop.f32.mrf.mxu0
      %v1793 = vand.u32 %v280, 4294901760
      %1794 = vmatprep.mubr.f32.mxu0 %v1793
      %v1795 = vand.u32 %v279, 4294901760
      %1796 = vmatmul.mubr.f32.gmra.mxu0 %v1795
      %v1797 = vpop.f32.mrf.mxu0
      %v1798 = vadd.f32 %v789, %v1797
      %v1799 = vpop.f32.mrf.mxu0
      %v1800 = vand.u32 %v282, 4294901760
      %1801 = vmatprep.mubr.f32.mxu0 %v1800
      %v1802 = vand.u32 %v281, 4294901760
      %1803 = vmatmul.mubr.f32.gmra.mxu0 %v1802
      %v1804 = vpop.f32.mrf.mxu0
      %v1805 = vadd.f32 %v804, %v1804
      %v1806 = vpop.f32.mrf.mxu0
      %v1807 = vand.u32 %v284, 4294901760
      %1808 = vmatprep.mubr.f32.mxu0 %v1807
      %v1809 = vand.u32 %v283, 4294901760
      %1810 = vmatmul.mubr.f32.gmra.mxu0 %v1809
      %v1811 = vpop.f32.mrf.mxu0
      %v1812 = vadd.f32 %v819, %v1811
      %v1813 = vpop.f32.mrf.mxu0
      %v1814 = vand.u32 %v286, 4294901760
      %1815 = vmatprep.mubr.f32.mxu0 %v1814
      %v1816 = vand.u32 %v285, 4294901760
      %1817 = vmatmul.mubr.f32.gmra.mxu0 %v1816
      %v1818 = vpop.f32.mrf.mxu0
      %v1819 = vadd.f32 %v834, %v1818
      %v1820 = vpop.f32.mrf.mxu0
      %v1821 = vand.u32 %v288, 4294901760
      %1822 = vmatprep.mubr.f32.mxu0 %v1821
      %v1823 = vand.u32 %v287, 4294901760
      %1824 = vmatmul.mubr.f32.gmra.mxu0 %v1823
      %v1825 = vpop.f32.mrf.mxu0
      %v1826 = vadd.f32 %v849, %v1825
      %v1827 = vpop.f32.mrf.mxu0
      %v1828 = vand.u32 %v290, 4294901760
      %1829 = vmatprep.mubr.f32.mxu0 %v1828
      %v1830 = vand.u32 %v289, 4294901760
      %1831 = vmatmul.mubr.f32.gmra.mxu0 %v1830
      %v1832 = vpop.f32.mrf.mxu0
      %v1833 = vadd.f32 %v864, %v1832
      %v1834 = vpop.f32.mrf.mxu0
      %v1835 = vand.u32 %v292, 4294901760
      %1836 = vmatprep.mubr.f32.mxu0 %v1835
      %v1837 = vand.u32 %v291, 4294901760
      %1838 = vmatmul.mubr.f32.gmra.mxu0 %v1837
      %v1839 = vpop.f32.mrf.mxu0
      %v1840 = vadd.f32 %v879, %v1839
      %v1841 = vpop.f32.mrf.mxu0
      %v1842 = vand.u32 %v294, 4294901760
      %1843 = vmatprep.mubr.f32.mxu0 %v1842
      %v1844 = vand.u32 %v293, 4294901760
      %1845 = vmatmul.mubr.f32.gmra.mxu0 %v1844
      %v1846 = vpop.f32.mrf.mxu0
      %v1847 = vadd.f32 %v894, %v1846
      %v1848 = vpop.f32.mrf.mxu0
      %v1849 = vand.u32 %v296, 4294901760
      %1850 = vmatprep.mubr.f32.mxu0 %v1849
      %v1851 = vand.u32 %v295, 4294901760
      %1852 = vmatmul.mubr.f32.gmra.mxu0 %v1851
      %v1853 = vpop.f32.mrf.mxu0
      %v1854 = vadd.f32 %v909, %v1853
      %v1855 = vpop.f32.mrf.mxu0
      %v1856 = vand.u32 %v298, 4294901760
      %1857 = vmatprep.mubr.f32.mxu0 %v1856
      %v1858 = vand.u32 %v297, 4294901760
      %1859 = vmatmul.mubr.f32.gmra.mxu0 %v1858
      %v1860 = vpop.f32.mrf.mxu0
      %v1861 = vadd.f32 %v924, %v1860
      %v1862 = vpop.f32.mrf.mxu0
      %v1863 = vand.u32 %v300, 4294901760
      %1864 = vmatprep.mubr.f32.mxu0 %v1863
      %v1865 = vand.u32 %v299, 4294901760
      %1866 = vmatmul.mubr.f32.gmra.mxu0 %v1865
      %v1867 = vpop.f32.mrf.mxu0
      %v1868 = vadd.f32 %v939, %v1867
      %v1869 = vpop.f32.mrf.mxu0
      %v1870 = vand.u32 %v302, 4294901760
      %1871 = vmatprep.mubr.f32.mxu0 %v1870
      %v1872 = vand.u32 %v301, 4294901760
      %1873 = vmatmul.mubr.f32.gmra.mxu0 %v1872
      %v1874 = vpop.f32.mrf.mxu0
      %v1875 = vadd.f32 %v954, %v1874
      %v1876 = vpop.f32.mrf.mxu0
      %v1877 = vand.u32 %v304, 4294901760
      %1878 = vmatprep.mubr.f32.mxu0 %v1877
      %v1879 = vand.u32 %v303, 4294901760
      %1880 = vmatmul.mubr.f32.gmra.mxu0 %v1879
      %v1881 = vpop.f32.mrf.mxu0
      %v1882 = vadd.f32 %v969, %v1881
      %v1883 = vpop.f32.mrf.mxu0
      %v1884 = vand.u32 %v306, 4294901760
      %1885 = vmatprep.mubr.f32.mxu0 %v1884
      %v1886 = vand.u32 %v305, 4294901760
      %1887 = vmatmul.mubr.f32.gmra.mxu0 %v1886
      %v1888 = vpop.f32.mrf.mxu0
      %v1889 = vadd.f32 %v984, %v1888
      %v1890 = vpop.f32.mrf.mxu0
      %v1891 = vand.u32 %v308, 4294901760
      %1892 = vmatprep.mubr.f32.mxu0 %v1891
      %v1893 = vand.u32 %v307, 4294901760
      %1894 = vmatmul.mubr.f32.gmra.mxu0 %v1893
      %v1895 = vpop.f32.mrf.mxu0
      %v1896 = vadd.f32 %v999, %v1895
      %v1897 = vpop.f32.mrf.mxu0
      %v1898 = vand.u32 %v310, 4294901760
      %1899 = vmatprep.mubr.f32.mxu0 %v1898
      %v1900 = vand.u32 %v309, 4294901760
      %1901 = vmatmul.mubr.f32.gmra.mxu0 %v1900
      %v1902 = vpop.f32.mrf.mxu0
      %v1903 = vadd.f32 %v1014, %v1902
      %v1904 = vpop.f32.mrf.mxu0
      %v1905 = vand.u32 %v312, 4294901760
      %1906 = vmatprep.mubr.f32.mxu0 %v1905
      %v1907 = vand.u32 %v311, 4294901760
      %1908 = vmatmul.mubr.f32.gmra.mxu0 %v1907
      %v1909 = vpop.f32.mrf.mxu0
      %v1910 = vadd.f32 %v1029, %v1909
      %v1911 = vpop.f32.mrf.mxu0
      %v1912 = vand.u32 %v314, 4294901760
      %1913 = vmatprep.mubr.f32.mxu0 %v1912
      %v1914 = vand.u32 %v313, 4294901760
      %1915 = vmatmul.mubr.f32.gmra.mxu0 %v1914
      %v1916 = vpop.f32.mrf.mxu0
      %v1917 = vadd.f32 %v1044, %v1916
      %v1918 = vpop.f32.mrf.mxu0
      %v1919 = vand.u32 %v316, 4294901760
      %1920 = vmatprep.mubr.f32.mxu0 %v1919
      %v1921 = vand.u32 %v315, 4294901760
      %1922 = vmatmul.mubr.f32.gmra.mxu0 %v1921
      %v1923 = vpop.f32.mrf.mxu0
      %v1924 = vadd.f32 %v1059, %v1923
      %v1925 = vpop.f32.mrf.mxu0
      %v1926 = vand.u32 %v318, 4294901760
      %1927 = vmatprep.mubr.f32.mxu0 %v1926
      %v1928 = vand.u32 %v317, 4294901760
      %1929 = vmatmul.mubr.f32.gmra.mxu0 %v1928
      %v1930 = vpop.f32.mrf.mxu0
      %v1931 = vadd.f32 %v1074, %v1930
      %v1932 = vpop.f32.mrf.mxu0
      %v1933 = vand.u32 %v320, 4294901760
      %1934 = vmatprep.mubr.f32.mxu0 %v1933
      %v1935 = vand.u32 %v319, 4294901760
      %1936 = vmatmul.mubr.f32.gmra.mxu0 %v1935
      %v1937 = vpop.f32.mrf.mxu0
      %v1938 = vadd.f32 %v1089, %v1937
      %v1939 = vpop.f32.mrf.mxu0
      %v1940 = vand.u32 %v322, 4294901760
      %1941 = vmatprep.mubr.f32.mxu0 %v1940
      %v1942 = vand.u32 %v321, 4294901760
      %1943 = vmatmul.mubr.f32.gmra.mxu0 %v1942
      %v1944 = vpop.f32.mrf.mxu0
      %v1945 = vadd.f32 %v1104, %v1944
      %v1946 = vpop.f32.mrf.mxu0
      %v1947 = vand.u32 %v324, 4294901760
      %1948 = vmatprep.mubr.f32.mxu0 %v1947
      %v1949 = vand.u32 %v323, 4294901760
      %1950 = vmatmul.mubr.f32.gmra.mxu0 %v1949
      %v1951 = vpop.f32.mrf.mxu0
      %v1952 = vadd.f32 %v1119, %v1951
      %v1953 = vpop.f32.mrf.mxu0
      %v1954 = vand.u32 %v326, 4294901760
      %1955 = vmatprep.mubr.f32.mxu0 %v1954
      %v1956 = vand.u32 %v325, 4294901760
      %1957 = vmatmul.mubr.f32.gmra.mxu0 %v1956
      %v1958 = vpop.f32.mrf.mxu0
      %v1959 = vadd.f32 %v1134, %v1958
      %v1960 = vpop.f32.mrf.mxu0
      %v1961 = vand.u32 %v328, 4294901760
      %1962 = vmatprep.mubr.f32.mxu0 %v1961
      %v1963 = vand.u32 %v327, 4294901760
      %1964 = vmatmul.mubr.f32.gmra.mxu0 %v1963
      %v1965 = vpop.f32.mrf.mxu0
      %v1966 = vadd.f32 %v1149, %v1965
      %v1967 = vpop.f32.mrf.mxu0
      %v1968 = vand.u32 %v330, 4294901760
      %1969 = vmatprep.mubr.f32.mxu0 %v1968
      %v1970 = vand.u32 %v329, 4294901760
      %1971 = vmatmul.mubr.f32.gmra.mxu0 %v1970
      %v1972 = vpop.f32.mrf.mxu0
      %v1973 = vadd.f32 %v1164, %v1972
      %v1974 = vpop.f32.mrf.mxu0
      %v1975 = vand.u32 %v332, 4294901760
      %1976 = vmatprep.mubr.f32.mxu0 %v1975
      %v1977 = vand.u32 %v331, 4294901760
      %1978 = vmatmul.mubr.f32.gmra.mxu0 %v1977
      %v1979 = vpop.f32.mrf.mxu0
      %v1980 = vadd.f32 %v1179, %v1979
      %v1981 = vpop.f32.mrf.mxu0
      %v1982 = vand.u32 %v334, 4294901760
      %1983 = vmatprep.mubr.f32.mxu0 %v1982
      %v1984 = vand.u32 %v333, 4294901760
      %1985 = vmatmul.mubr.f32.gmra.mxu0 %v1984
      %v1986 = vpop.f32.mrf.mxu0
      %v1987 = vadd.f32 %v1194, %v1986
      %v1988 = vpop.f32.mrf.mxu0
      %v1989 = vand.u32 %v336, 4294901760
      %1990 = vmatprep.mubr.f32.mxu0 %v1989
      %v1991 = vand.u32 %v335, 4294901760
      %1992 = vmatmul.mubr.f32.gmra.mxu0 %v1991
      %v1993 = vpop.f32.mrf.mxu0
      %v1994 = vadd.f32 %v1209, %v1993
      %v1995 = vpop.f32.mrf.mxu0
      %v1996 = vand.u32 %v338, 4294901760
      %1997 = vmatprep.mubr.f32.mxu0 %v1996
      %v1998 = vand.u32 %v337, 4294901760
      %1999 = vmatmul.mubr.f32.gmra.mxu0 %v1998
      %v2000 = vpop.f32.mrf.mxu0
      %v2001 = vadd.f32 %v1224, %v2000
      %v2002 = vpop.f32.mrf.mxu0
      %v2003 = vand.u32 %v340, 4294901760
      %2004 = vmatprep.mubr.f32.mxu0 %v2003
      %v2005 = vand.u32 %v339, 4294901760
      %2006 = vmatmul.mubr.f32.gmra.mxu0 %v2005
      %v2007 = vpop.f32.mrf.mxu0
      %v2008 = vadd.f32 %v1239, %v2007
      %v2009 = vpop.f32.mrf.mxu0
      %v2010 = vand.u32 %v342, 4294901760
      %2011 = vmatprep.mubr.f32.mxu0 %v2010
      %v2012 = vand.u32 %v341, 4294901760
      %2013 = vmatmul.mubr.f32.gmra.mxu0 %v2012
      %v2014 = vpop.f32.mrf.mxu0
      %v2015 = vadd.f32 %v1254, %v2014
      %v2016 = vpop.f32.mrf.mxu0
      %v2017 = vand.u32 %v344, 4294901760
      %2018 = vmatprep.mubr.f32.mxu0 %v2017
      %v2019 = vand.u32 %v343, 4294901760
      %2020 = vmatmul.mubr.f32.gmra.mxu0 %v2019
      %v2021 = vpop.f32.mrf.mxu0
      %v2022 = vadd.f32 %v1269, %v2021
      %v2023 = vpop.f32.mrf.mxu0
      %v2024 = vand.u32 %v346, 4294901760
      %2025 = vmatprep.mubr.f32.mxu0 %v2024
      %v2026 = vand.u32 %v345, 4294901760
      %2027 = vmatmul.mubr.f32.gmra.mxu0 %v2026
      %v2028 = vpop.f32.mrf.mxu0
      %v2029 = vadd.f32 %v1284, %v2028
      %v2030 = vpop.f32.mrf.mxu0
      %v2031 = vand.u32 %v348, 4294901760
      %2032 = vmatprep.mubr.f32.mxu0 %v2031
      %v2033 = vand.u32 %v347, 4294901760
      %2034 = vmatmul.mubr.f32.gmra.mxu0 %v2033
      %v2035 = vpop.f32.mrf.mxu0
      %v2036 = vadd.f32 %v1299, %v2035
      %v2037 = vpop.f32.mrf.mxu0
      %v2038 = vand.u32 %v350, 4294901760
      %2039 = vmatprep.mubr.f32.mxu0 %v2038
      %v2040 = vand.u32 %v349, 4294901760
      %2041 = vmatmul.mubr.f32.gmra.mxu0 %v2040
      %v2042 = vpop.f32.mrf.mxu0
      %v2043 = vadd.f32 %v1314, %v2042
      %v2044 = vpop.f32.mrf.mxu0
      %v2045 = vand.u32 %v352, 4294901760
      %2046 = vmatprep.mubr.f32.mxu0 %v2045
      %v2047 = vand.u32 %v351, 4294901760
      %2048 = vmatmul.mubr.f32.gmra.mxu0 %v2047
      %v2049 = vpop.f32.mrf.mxu0
      %v2050 = vadd.f32 %v1329, %v2049
      %v2051 = vpop.f32.mrf.mxu0
      %v2052 = vand.u32 %v354, 4294901760
      %2053 = vmatprep.mubr.f32.mxu0 %v2052
      %v2054 = vand.u32 %v353, 4294901760
      %2055 = vmatmul.mubr.f32.gmra.mxu0 %v2054
      %v2056 = vpop.f32.mrf.mxu0
      %v2057 = vadd.f32 %v1344, %v2056
      %v2058 = vpop.f32.mrf.mxu0
      %v2059 = vand.u32 %v356, 4294901760
      %2060 = vmatprep.mubr.f32.mxu0 %v2059
      %v2061 = vand.u32 %v355, 4294901760
      %2062 = vmatmul.mubr.f32.gmra.mxu0 %v2061
      %v2063 = vpop.f32.mrf.mxu0
      %v2064 = vadd.f32 %v1359, %v2063
      %v2065 = vpop.f32.mrf.mxu0
      %v2066 = vand.u32 %v358, 4294901760
      %2067 = vmatprep.mubr.f32.mxu0 %v2066
      %v2068 = vand.u32 %v357, 4294901760
      %2069 = vmatmul.mubr.f32.gmra.mxu0 %v2068
      %v2070 = vpop.f32.mrf.mxu0
      %v2071 = vadd.f32 %v1374, %v2070
      %v2072 = vpop.f32.mrf.mxu0
      %v2073 = vand.u32 %v360, 4294901760
      %2074 = vmatprep.mubr.f32.mxu0 %v2073
      %v2075 = vand.u32 %v359, 4294901760
      %2076 = vmatmul.mubr.f32.gmra.mxu0 %v2075
      %v2077 = vpop.f32.mrf.mxu0
      %v2078 = vadd.f32 %v1389, %v2077
      %v2079 = vpop.f32.mrf.mxu0
      %v2080 = vand.u32 %v362, 4294901760
      %2081 = vmatprep.mubr.f32.mxu0 %v2080
      %v2082 = vand.u32 %v361, 4294901760
      %2083 = vmatmul.mubr.f32.gmra.mxu0 %v2082
      %v2084 = vpop.f32.mrf.mxu0
      %v2085 = vadd.f32 %v1404, %v2084
      %v2086 = vpop.f32.mrf.mxu0
      %v2087 = vand.u32 %v364, 4294901760
      %2088 = vmatprep.mubr.f32.mxu0 %v2087
      %v2089 = vand.u32 %v363, 4294901760
      %2090 = vmatmul.mubr.f32.gmra.mxu0 %v2089
      %v2091 = vpop.f32.mrf.mxu0
      %v2092 = vadd.f32 %v1419, %v2091
      %v2093 = vpop.f32.mrf.mxu0
      %2094 = vdwg.mxu0
      %2095 = vmatprep.subr.mxu0 0.0
      %v2096 = vand.u32 %v220, 4294901760
      %v2097 = vsub.f32 %v220, %v2096
      %2098 = vmatpush1.msra.mxu0 %v2097
      %2099 = vmatprep.subr.mxu0 0.0
      %v2100 = vand.u32 %v219, 4294901760
      %v2101 = vsub.f32 %v219, %v2100
      %2102 = vmatpush1.msra.mxu0 %v2101
      %2103 = vmatprep.subr.mxu0 0.0
      %v2104 = vand.u32 %v218, 4294901760
      %v2105 = vsub.f32 %v218, %v2104
      %2106 = vmatpush1.msra.mxu0 %v2105
      %2107 = vmatprep.subr.mxu0 0.0
      %v2108 = vand.u32 %v217, 4294901760
      %v2109 = vsub.f32 %v217, %v2108
      %2110 = vmatpush1.msra.mxu0 %v2109
      %2111 = vmatprep.subr.mxu0 0.0
      %v2112 = vand.u32 %v216, 4294901760
      %v2113 = vsub.f32 %v216, %v2112
      %2114 = vmatpush1.msra.mxu0 %v2113
      %2115 = vmatprep.subr.mxu0 0.0
      %v2116 = vand.u32 %v215, 4294901760
      %v2117 = vsub.f32 %v215, %v2116
      %2118 = vmatpush1.msra.mxu0 %v2117
      %2119 = vmatprep.subr.mxu0 0.0
      %v2120 = vand.u32 %v214, 4294901760
      %v2121 = vsub.f32 %v214, %v2120
      %2122 = vmatpush1.msra.mxu0 %v2121
      %2123 = vmatprep.subr.mxu0 0.0
      %v2124 = vand.u32 %v213, 4294901760
      %v2125 = vsub.f32 %v213, %v2124
      %2126 = vmatpush1.msra.mxu0 %v2125
      %2127 = vmatprep.subr.mxu0 0.0
      %v2128 = vand.u32 %v212, 4294901760
      %v2129 = vsub.f32 %v212, %v2128
      %2130 = vmatpush1.msra.mxu0 %v2129
      %2131 = vmatprep.subr.mxu0 0.0
      %v2132 = vand.u32 %v211, 4294901760
      %v2133 = vsub.f32 %v211, %v2132
      %2134 = vmatpush1.msra.mxu0 %v2133
      %2135 = vmatprep.subr.mxu0 0.0
      %v2136 = vand.u32 %v210, 4294901760
      %v2137 = vsub.f32 %v210, %v2136
      %2138 = vmatpush1.msra.mxu0 %v2137
      %2139 = vmatprep.subr.mxu0 0.0
      %v2140 = vand.u32 %v209, 4294901760
      %v2141 = vsub.f32 %v209, %v2140
      %2142 = vmatpush1.msra.mxu0 %v2141
      %2143 = vmatprep.subr.mxu0 0.0
      %v2144 = vand.u32 %v208, 4294901760
      %v2145 = vsub.f32 %v208, %v2144
      %2146 = vmatpush1.msra.mxu0 %v2145
      %2147 = vmatprep.subr.mxu0 0.0
      %v2148 = vand.u32 %v207, 4294901760
      %v2149 = vsub.f32 %v207, %v2148
      %2150 = vmatpush1.msra.mxu0 %v2149
      %2151 = vmatprep.subr.mxu0 0.0
      %v2152 = vand.u32 %v206, 4294901760
      %v2153 = vsub.f32 %v206, %v2152
      %2154 = vmatpush1.msra.mxu0 %v2153
      %2155 = vmatprep.subr.mxu0 0.0
      %v2156 = vand.u32 %v205, 4294901760
      %v2157 = vsub.f32 %v205, %v2156
      %2158 = vmatpush1.msra.mxu0 %v2157
      %2159 = vmatprep.subr.mxu0 0.0
      %v2160 = vand.u32 %v236, 4294901760
      %v2161 = vsub.f32 %v236, %v2160
      %2162 = vmatpush2.msra.mxu0 %v2161
      %2163 = vmatprep.subr.mxu0 0.0
      %v2164 = vand.u32 %v235, 4294901760
      %v2165 = vsub.f32 %v235, %v2164
      %2166 = vmatpush2.msra.mxu0 %v2165
      %2167 = vmatprep.subr.mxu0 0.0
      %v2168 = vand.u32 %v234, 4294901760
      %v2169 = vsub.f32 %v234, %v2168
      %2170 = vmatpush2.msra.mxu0 %v2169
      %2171 = vmatprep.subr.mxu0 0.0
      %v2172 = vand.u32 %v233, 4294901760
      %v2173 = vsub.f32 %v233, %v2172
      %2174 = vmatpush2.msra.mxu0 %v2173
      %2175 = vmatprep.subr.mxu0 0.0
      %v2176 = vand.u32 %v232, 4294901760
      %v2177 = vsub.f32 %v232, %v2176
      %2178 = vmatpush2.msra.mxu0 %v2177
      %2179 = vmatprep.subr.mxu0 0.0
      %v2180 = vand.u32 %v231, 4294901760
      %v2181 = vsub.f32 %v231, %v2180
      %2182 = vmatpush2.msra.mxu0 %v2181
      %2183 = vmatprep.subr.mxu0 0.0
      %v2184 = vand.u32 %v230, 4294901760
      %v2185 = vsub.f32 %v230, %v2184
      %2186 = vmatpush2.msra.mxu0 %v2185
      %2187 = vmatprep.subr.mxu0 0.0
      %v2188 = vand.u32 %v229, 4294901760
      %v2189 = vsub.f32 %v229, %v2188
      %2190 = vmatpush2.msra.mxu0 %v2189
      %2191 = vmatprep.subr.mxu0 0.0
      %v2192 = vand.u32 %v228, 4294901760
      %v2193 = vsub.f32 %v228, %v2192
      %2194 = vmatpush2.msra.mxu0 %v2193
      %2195 = vmatprep.subr.mxu0 0.0
      %v2196 = vand.u32 %v227, 4294901760
      %v2197 = vsub.f32 %v227, %v2196
      %2198 = vmatpush2.msra.mxu0 %v2197
      %2199 = vmatprep.subr.mxu0 0.0
      %v2200 = vand.u32 %v226, 4294901760
      %v2201 = vsub.f32 %v226, %v2200
      %2202 = vmatpush2.msra.mxu0 %v2201
      %2203 = vmatprep.subr.mxu0 0.0
      %v2204 = vand.u32 %v225, 4294901760
      %v2205 = vsub.f32 %v225, %v2204
      %2206 = vmatpush2.msra.mxu0 %v2205
      %2207 = vmatprep.subr.mxu0 0.0
      %v2208 = vand.u32 %v224, 4294901760
      %v2209 = vsub.f32 %v224, %v2208
      %2210 = vmatpush2.msra.mxu0 %v2209
      %2211 = vmatprep.subr.mxu0 0.0
      %v2212 = vand.u32 %v223, 4294901760
      %v2213 = vsub.f32 %v223, %v2212
      %2214 = vmatpush2.msra.mxu0 %v2213
      %2215 = vmatprep.subr.mxu0 0.0
      %v2216 = vand.u32 %v222, 4294901760
      %v2217 = vsub.f32 %v222, %v2216
      %2218 = vmatpush2.msra.mxu0 %v2217
      %2219 = vmatprep.subr.mxu0 0.0
      %v2220 = vand.u32 %v221, 4294901760
      %v2221 = vsub.f32 %v221, %v2220
      %2222 = vmatpush2.msra.mxu0 %v2221
      %v2223 = vand.u32 %v238, 4294901760
      %v2224 = vsub.f32 %v238, %v2223
      %2225 = vmatprep.mubr.f32.mxu0 %v2224
      %v2226 = vand.u32 %v237, 4294901760
      %v2227 = vsub.f32 %v237, %v2226
      %2228 = vmatmul.mubr.f32.gmra.mxu0 %v2227
      %v2229 = vpop.f32.mrf.mxu0
      %v2230 = vadd.f32 %v1651, %v2229
      %v2231 = vpop.f32.mrf.mxu0
      %v2232 = vand.u32 %v240, 4294901760
      %v2233 = vsub.f32 %v240, %v2232
      %2234 = vmatprep.mubr.f32.mxu0 %v2233
      %v2235 = vand.u32 %v239, 4294901760
      %v2236 = vsub.f32 %v239, %v2235
      %2237 = vmatmul.mubr.f32.gmra.mxu0 %v2236
      %v2238 = vpop.f32.mrf.mxu0
      %v2239 = vadd.f32 %v1658, %v2238
      %v2240 = vpop.f32.mrf.mxu0
      %v2241 = vand.u32 %v242, 4294901760
      %v2242 = vsub.f32 %v242, %v2241
      %2243 = vmatprep.mubr.f32.mxu0 %v2242
      %v2244 = vand.u32 %v241, 4294901760
      %v2245 = vsub.f32 %v241, %v2244
      %2246 = vmatmul.mubr.f32.gmra.mxu0 %v2245
      %v2247 = vpop.f32.mrf.mxu0
      %v2248 = vadd.f32 %v1665, %v2247
      %v2249 = vpop.f32.mrf.mxu0
      %v2250 = vand.u32 %v244, 4294901760
      %v2251 = vsub.f32 %v244, %v2250
      %2252 = vmatprep.mubr.f32.mxu0 %v2251
      %v2253 = vand.u32 %v243, 4294901760
      %v2254 = vsub.f32 %v243, %v2253
      %2255 = vmatmul.mubr.f32.gmra.mxu0 %v2254
      %v2256 = vpop.f32.mrf.mxu0
      %v2257 = vadd.f32 %v1672, %v2256
      %v2258 = vpop.f32.mrf.mxu0
      %v2259 = vand.u32 %v246, 4294901760
      %v2260 = vsub.f32 %v246, %v2259
      %2261 = vmatprep.mubr.f32.mxu0 %v2260
      %v2262 = vand.u32 %v245, 4294901760
      %v2263 = vsub.f32 %v245, %v2262
      %2264 = vmatmul.mubr.f32.gmra.mxu0 %v2263
      %v2265 = vpop.f32.mrf.mxu0
      %v2266 = vadd.f32 %v1679, %v2265
      %v2267 = vpop.f32.mrf.mxu0
      %v2268 = vand.u32 %v248, 4294901760
      %v2269 = vsub.f32 %v248, %v2268
      %2270 = vmatprep.mubr.f32.mxu0 %v2269
      %v2271 = vand.u32 %v247, 4294901760
      %v2272 = vsub.f32 %v247, %v2271
      %2273 = vmatmul.mubr.f32.gmra.mxu0 %v2272
      %v2274 = vpop.f32.mrf.mxu0
      %v2275 = vadd.f32 %v1686, %v2274
      %v2276 = vpop.f32.mrf.mxu0
      %v2277 = vand.u32 %v250, 4294901760
      %v2278 = vsub.f32 %v250, %v2277
      %2279 = vmatprep.mubr.f32.mxu0 %v2278
      %v2280 = vand.u32 %v249, 4294901760
      %v2281 = vsub.f32 %v249, %v2280
      %2282 = vmatmul.mubr.f32.gmra.mxu0 %v2281
      %v2283 = vpop.f32.mrf.mxu0
      %v2284 = vadd.f32 %v1693, %v2283
      %v2285 = vpop.f32.mrf.mxu0
      %v2286 = vand.u32 %v252, 4294901760
      %v2287 = vsub.f32 %v252, %v2286
      %2288 = vmatprep.mubr.f32.mxu0 %v2287
      %v2289 = vand.u32 %v251, 4294901760
      %v2290 = vsub.f32 %v251, %v2289
      %2291 = vmatmul.mubr.f32.gmra.mxu0 %v2290
      %v2292 = vpop.f32.mrf.mxu0
      %v2293 = vadd.f32 %v1700, %v2292
      %v2294 = vpop.f32.mrf.mxu0
      %v2295 = vand.u32 %v254, 4294901760
      %v2296 = vsub.f32 %v254, %v2295
      %2297 = vmatprep.mubr.f32.mxu0 %v2296
      %v2298 = vand.u32 %v253, 4294901760
      %v2299 = vsub.f32 %v253, %v2298
      %2300 = vmatmul.mubr.f32.gmra.mxu0 %v2299
      %v2301 = vpop.f32.mrf.mxu0
      %v2302 = vadd.f32 %v1707, %v2301
      %v2303 = vpop.f32.mrf.mxu0
      %v2304 = vand.u32 %v256, 4294901760
      %v2305 = vsub.f32 %v256, %v2304
      %2306 = vmatprep.mubr.f32.mxu0 %v2305
      %v2307 = vand.u32 %v255, 4294901760
      %v2308 = vsub.f32 %v255, %v2307
      %2309 = vmatmul.mubr.f32.gmra.mxu0 %v2308
      %v2310 = vpop.f32.mrf.mxu0
      %v2311 = vadd.f32 %v1714, %v2310
      %v2312 = vpop.f32.mrf.mxu0
      %v2313 = vand.u32 %v258, 4294901760
      %v2314 = vsub.f32 %v258, %v2313
      %2315 = vmatprep.mubr.f32.mxu0 %v2314
      %v2316 = vand.u32 %v257, 4294901760
      %v2317 = vsub.f32 %v257, %v2316
      %2318 = vmatmul.mubr.f32.gmra.mxu0 %v2317
      %v2319 = vpop.f32.mrf.mxu0
      %v2320 = vadd.f32 %v1721, %v2319
      %v2321 = vpop.f32.mrf.mxu0
      %v2322 = vand.u32 %v260, 4294901760
      %v2323 = vsub.f32 %v260, %v2322
      %2324 = vmatprep.mubr.f32.mxu0 %v2323
      %v2325 = vand.u32 %v259, 4294901760
      %v2326 = vsub.f32 %v259, %v2325
      %2327 = vmatmul.mubr.f32.gmra.mxu0 %v2326
      %v2328 = vpop.f32.mrf.mxu0
      %v2329 = vadd.f32 %v1728, %v2328
      %v2330 = vpop.f32.mrf.mxu0
      %v2331 = vand.u32 %v262, 4294901760
      %v2332 = vsub.f32 %v262, %v2331
      %2333 = vmatprep.mubr.f32.mxu0 %v2332
      %v2334 = vand.u32 %v261, 4294901760
      %v2335 = vsub.f32 %v261, %v2334
      %2336 = vmatmul.mubr.f32.gmra.mxu0 %v2335
      %v2337 = vpop.f32.mrf.mxu0
      %v2338 = vadd.f32 %v1735, %v2337
      %v2339 = vpop.f32.mrf.mxu0
      %v2340 = vand.u32 %v264, 4294901760
      %v2341 = vsub.f32 %v264, %v2340
      %2342 = vmatprep.mubr.f32.mxu0 %v2341
      %v2343 = vand.u32 %v263, 4294901760
      %v2344 = vsub.f32 %v263, %v2343
      %2345 = vmatmul.mubr.f32.gmra.mxu0 %v2344
      %v2346 = vpop.f32.mrf.mxu0
      %v2347 = vadd.f32 %v1742, %v2346
      %v2348 = vpop.f32.mrf.mxu0
      %v2349 = vand.u32 %v266, 4294901760
      %v2350 = vsub.f32 %v266, %v2349
      %2351 = vmatprep.mubr.f32.mxu0 %v2350
      %v2352 = vand.u32 %v265, 4294901760
      %v2353 = vsub.f32 %v265, %v2352
      %2354 = vmatmul.mubr.f32.gmra.mxu0 %v2353
      %v2355 = vpop.f32.mrf.mxu0
      %v2356 = vadd.f32 %v1749, %v2355
      %v2357 = vpop.f32.mrf.mxu0
      %v2358 = vand.u32 %v268, 4294901760
      %v2359 = vsub.f32 %v268, %v2358
      %2360 = vmatprep.mubr.f32.mxu0 %v2359
      %v2361 = vand.u32 %v267, 4294901760
      %v2362 = vsub.f32 %v267, %v2361
      %2363 = vmatmul.mubr.f32.gmra.mxu0 %v2362
      %v2364 = vpop.f32.mrf.mxu0
      %v2365 = vadd.f32 %v1756, %v2364
      %v2366 = vpop.f32.mrf.mxu0
      %v2367 = vand.u32 %v270, 4294901760
      %v2368 = vsub.f32 %v270, %v2367
      %2369 = vmatprep.mubr.f32.mxu0 %v2368
      %v2370 = vand.u32 %v269, 4294901760
      %v2371 = vsub.f32 %v269, %v2370
      %2372 = vmatmul.mubr.f32.gmra.mxu0 %v2371
      %v2373 = vpop.f32.mrf.mxu0
      %v2374 = vadd.f32 %v1763, %v2373
      %v2375 = vpop.f32.mrf.mxu0
      %v2376 = vand.u32 %v272, 4294901760
      %v2377 = vsub.f32 %v272, %v2376
      %2378 = vmatprep.mubr.f32.mxu0 %v2377
      %v2379 = vand.u32 %v271, 4294901760
      %v2380 = vsub.f32 %v271, %v2379
      %2381 = vmatmul.mubr.f32.gmra.mxu0 %v2380
      %v2382 = vpop.f32.mrf.mxu0
      %v2383 = vadd.f32 %v1770, %v2382
      %v2384 = vpop.f32.mrf.mxu0
      %v2385 = vand.u32 %v274, 4294901760
      %v2386 = vsub.f32 %v274, %v2385
      %2387 = vmatprep.mubr.f32.mxu0 %v2386
      %v2388 = vand.u32 %v273, 4294901760
      %v2389 = vsub.f32 %v273, %v2388
      %2390 = vmatmul.mubr.f32.gmra.mxu0 %v2389
      %v2391 = vpop.f32.mrf.mxu0
      %v2392 = vadd.f32 %v1777, %v2391
      %v2393 = vpop.f32.mrf.mxu0
      %v2394 = vand.u32 %v276, 4294901760
      %v2395 = vsub.f32 %v276, %v2394
      %2396 = vmatprep.mubr.f32.mxu0 %v2395
      %v2397 = vand.u32 %v275, 4294901760
      %v2398 = vsub.f32 %v275, %v2397
      %2399 = vmatmul.mubr.f32.gmra.mxu0 %v2398
      %v2400 = vpop.f32.mrf.mxu0
      %v2401 = vadd.f32 %v1784, %v2400
      %v2402 = vpop.f32.mrf.mxu0
      %v2403 = vand.u32 %v278, 4294901760
      %v2404 = vsub.f32 %v278, %v2403
      %2405 = vmatprep.mubr.f32.mxu0 %v2404
      %v2406 = vand.u32 %v277, 4294901760
      %v2407 = vsub.f32 %v277, %v2406
      %2408 = vmatmul.mubr.f32.gmra.mxu0 %v2407
      %v2409 = vpop.f32.mrf.mxu0
      %v2410 = vadd.f32 %v1791, %v2409
      %v2411 = vpop.f32.mrf.mxu0
      %v2412 = vand.u32 %v280, 4294901760
      %v2413 = vsub.f32 %v280, %v2412
      %2414 = vmatprep.mubr.f32.mxu0 %v2413
      %v2415 = vand.u32 %v279, 4294901760
      %v2416 = vsub.f32 %v279, %v2415
      %2417 = vmatmul.mubr.f32.gmra.mxu0 %v2416
      %v2418 = vpop.f32.mrf.mxu0
      %v2419 = vadd.f32 %v1798, %v2418
      %v2420 = vpop.f32.mrf.mxu0
      %v2421 = vand.u32 %v282, 4294901760
      %v2422 = vsub.f32 %v282, %v2421
      %2423 = vmatprep.mubr.f32.mxu0 %v2422
      %v2424 = vand.u32 %v281, 4294901760
      %v2425 = vsub.f32 %v281, %v2424
      %2426 = vmatmul.mubr.f32.gmra.mxu0 %v2425
      %v2427 = vpop.f32.mrf.mxu0
      %v2428 = vadd.f32 %v1805, %v2427
      %v2429 = vpop.f32.mrf.mxu0
      %v2430 = vand.u32 %v284, 4294901760
      %v2431 = vsub.f32 %v284, %v2430
      %2432 = vmatprep.mubr.f32.mxu0 %v2431
      %v2433 = vand.u32 %v283, 4294901760
      %v2434 = vsub.f32 %v283, %v2433
      %2435 = vmatmul.mubr.f32.gmra.mxu0 %v2434
      %v2436 = vpop.f32.mrf.mxu0
      %v2437 = vadd.f32 %v1812, %v2436
      %v2438 = vpop.f32.mrf.mxu0
      %v2439 = vand.u32 %v286, 4294901760
      %v2440 = vsub.f32 %v286, %v2439
      %2441 = vmatprep.mubr.f32.mxu0 %v2440
      %v2442 = vand.u32 %v285, 4294901760
      %v2443 = vsub.f32 %v285, %v2442
      %2444 = vmatmul.mubr.f32.gmra.mxu0 %v2443
      %v2445 = vpop.f32.mrf.mxu0
      %v2446 = vadd.f32 %v1819, %v2445
      %v2447 = vpop.f32.mrf.mxu0
      %v2448 = vand.u32 %v288, 4294901760
      %v2449 = vsub.f32 %v288, %v2448
      %2450 = vmatprep.mubr.f32.mxu0 %v2449
      %v2451 = vand.u32 %v287, 4294901760
      %v2452 = vsub.f32 %v287, %v2451
      %2453 = vmatmul.mubr.f32.gmra.mxu0 %v2452
      %v2454 = vpop.f32.mrf.mxu0
      %v2455 = vadd.f32 %v1826, %v2454
      %v2456 = vpop.f32.mrf.mxu0
      %v2457 = vand.u32 %v290, 4294901760
      %v2458 = vsub.f32 %v290, %v2457
      %2459 = vmatprep.mubr.f32.mxu0 %v2458
      %v2460 = vand.u32 %v289, 4294901760
      %v2461 = vsub.f32 %v289, %v2460
      %2462 = vmatmul.mubr.f32.gmra.mxu0 %v2461
      %v2463 = vpop.f32.mrf.mxu0
      %v2464 = vadd.f32 %v1833, %v2463
      %v2465 = vpop.f32.mrf.mxu0
      %v2466 = vand.u32 %v292, 4294901760
      %v2467 = vsub.f32 %v292, %v2466
      %2468 = vmatprep.mubr.f32.mxu0 %v2467
      %v2469 = vand.u32 %v291, 4294901760
      %v2470 = vsub.f32 %v291, %v2469
      %2471 = vmatmul.mubr.f32.gmra.mxu0 %v2470
      %v2472 = vpop.f32.mrf.mxu0
      %v2473 = vadd.f32 %v1840, %v2472
      %v2474 = vpop.f32.mrf.mxu0
      %v2475 = vand.u32 %v294, 4294901760
      %v2476 = vsub.f32 %v294, %v2475
      %2477 = vmatprep.mubr.f32.mxu0 %v2476
      %v2478 = vand.u32 %v293, 4294901760
      %v2479 = vsub.f32 %v293, %v2478
      %2480 = vmatmul.mubr.f32.gmra.mxu0 %v2479
      %v2481 = vpop.f32.mrf.mxu0
      %v2482 = vadd.f32 %v1847, %v2481
      %v2483 = vpop.f32.mrf.mxu0
      %v2484 = vand.u32 %v296, 4294901760
      %v2485 = vsub.f32 %v296, %v2484
      %2486 = vmatprep.mubr.f32.mxu0 %v2485
      %v2487 = vand.u32 %v295, 4294901760
      %v2488 = vsub.f32 %v295, %v2487
      %2489 = vmatmul.mubr.f32.gmra.mxu0 %v2488
      %v2490 = vpop.f32.mrf.mxu0
      %v2491 = vadd.f32 %v1854, %v2490
      %v2492 = vpop.f32.mrf.mxu0
      %v2493 = vand.u32 %v298, 4294901760
      %v2494 = vsub.f32 %v298, %v2493
      %2495 = vmatprep.mubr.f32.mxu0 %v2494
      %v2496 = vand.u32 %v297, 4294901760
      %v2497 = vsub.f32 %v297, %v2496
      %2498 = vmatmul.mubr.f32.gmra.mxu0 %v2497
      %v2499 = vpop.f32.mrf.mxu0
      %v2500 = vadd.f32 %v1861, %v2499
      %v2501 = vpop.f32.mrf.mxu0
      %v2502 = vand.u32 %v300, 4294901760
      %v2503 = vsub.f32 %v300, %v2502
      %2504 = vmatprep.mubr.f32.mxu0 %v2503
      %v2505 = vand.u32 %v299, 4294901760
      %v2506 = vsub.f32 %v299, %v2505
      %2507 = vmatmul.mubr.f32.gmra.mxu0 %v2506
      %v2508 = vpop.f32.mrf.mxu0
      %v2509 = vadd.f32 %v1868, %v2508
      %v2510 = vpop.f32.mrf.mxu0
      %v2511 = vand.u32 %v302, 4294901760
      %v2512 = vsub.f32 %v302, %v2511
      %2513 = vmatprep.mubr.f32.mxu0 %v2512
      %v2514 = vand.u32 %v301, 4294901760
      %v2515 = vsub.f32 %v301, %v2514
      %2516 = vmatmul.mubr.f32.gmra.mxu0 %v2515
      %v2517 = vpop.f32.mrf.mxu0
      %v2518 = vadd.f32 %v1875, %v2517
      %v2519 = vpop.f32.mrf.mxu0
      %v2520 = vand.u32 %v304, 4294901760
      %v2521 = vsub.f32 %v304, %v2520
      %2522 = vmatprep.mubr.f32.mxu0 %v2521
      %v2523 = vand.u32 %v303, 4294901760
      %v2524 = vsub.f32 %v303, %v2523
      %2525 = vmatmul.mubr.f32.gmra.mxu0 %v2524
      %v2526 = vpop.f32.mrf.mxu0
      %v2527 = vadd.f32 %v1882, %v2526
      %v2528 = vpop.f32.mrf.mxu0
      %v2529 = vand.u32 %v306, 4294901760
      %v2530 = vsub.f32 %v306, %v2529
      %2531 = vmatprep.mubr.f32.mxu0 %v2530
      %v2532 = vand.u32 %v305, 4294901760
      %v2533 = vsub.f32 %v305, %v2532
      %2534 = vmatmul.mubr.f32.gmra.mxu0 %v2533
      %v2535 = vpop.f32.mrf.mxu0
      %v2536 = vadd.f32 %v1889, %v2535
      %v2537 = vpop.f32.mrf.mxu0
      %v2538 = vand.u32 %v308, 4294901760
      %v2539 = vsub.f32 %v308, %v2538
      %2540 = vmatprep.mubr.f32.mxu0 %v2539
      %v2541 = vand.u32 %v307, 4294901760
      %v2542 = vsub.f32 %v307, %v2541
      %2543 = vmatmul.mubr.f32.gmra.mxu0 %v2542
      %v2544 = vpop.f32.mrf.mxu0
      %v2545 = vadd.f32 %v1896, %v2544
      %v2546 = vpop.f32.mrf.mxu0
      %v2547 = vand.u32 %v310, 4294901760
      %v2548 = vsub.f32 %v310, %v2547
      %2549 = vmatprep.mubr.f32.mxu0 %v2548
      %v2550 = vand.u32 %v309, 4294901760
      %v2551 = vsub.f32 %v309, %v2550
      %2552 = vmatmul.mubr.f32.gmra.mxu0 %v2551
      %v2553 = vpop.f32.mrf.mxu0
      %v2554 = vadd.f32 %v1903, %v2553
      %v2555 = vpop.f32.mrf.mxu0
      %v2556 = vand.u32 %v312, 4294901760
      %v2557 = vsub.f32 %v312, %v2556
      %2558 = vmatprep.mubr.f32.mxu0 %v2557
      %v2559 = vand.u32 %v311, 4294901760
      %v2560 = vsub.f32 %v311, %v2559
      %2561 = vmatmul.mubr.f32.gmra.mxu0 %v2560
      %v2562 = vpop.f32.mrf.mxu0
      %v2563 = vadd.f32 %v1910, %v2562
      %v2564 = vpop.f32.mrf.mxu0
      %v2565 = vand.u32 %v314, 4294901760
      %v2566 = vsub.f32 %v314, %v2565
      %2567 = vmatprep.mubr.f32.mxu0 %v2566
      %v2568 = vand.u32 %v313, 4294901760
      %v2569 = vsub.f32 %v313, %v2568
      %2570 = vmatmul.mubr.f32.gmra.mxu0 %v2569
      %v2571 = vpop.f32.mrf.mxu0
      %v2572 = vadd.f32 %v1917, %v2571
      %v2573 = vpop.f32.mrf.mxu0
      %v2574 = vand.u32 %v316, 4294901760
      %v2575 = vsub.f32 %v316, %v2574
      %2576 = vmatprep.mubr.f32.mxu0 %v2575
      %v2577 = vand.u32 %v315, 4294901760
      %v2578 = vsub.f32 %v315, %v2577
      %2579 = vmatmul.mubr.f32.gmra.mxu0 %v2578
      %v2580 = vpop.f32.mrf.mxu0
      %v2581 = vadd.f32 %v1924, %v2580
      %v2582 = vpop.f32.mrf.mxu0
      %v2583 = vand.u32 %v318, 4294901760
      %v2584 = vsub.f32 %v318, %v2583
      %2585 = vmatprep.mubr.f32.mxu0 %v2584
      %v2586 = vand.u32 %v317, 4294901760
      %v2587 = vsub.f32 %v317, %v2586
      %2588 = vmatmul.mubr.f32.gmra.mxu0 %v2587
      %v2589 = vpop.f32.mrf.mxu0
      %v2590 = vadd.f32 %v1931, %v2589
      %v2591 = vpop.f32.mrf.mxu0
      %v2592 = vand.u32 %v320, 4294901760
      %v2593 = vsub.f32 %v320, %v2592
      %2594 = vmatprep.mubr.f32.mxu0 %v2593
      %v2595 = vand.u32 %v319, 4294901760
      %v2596 = vsub.f32 %v319, %v2595
      %2597 = vmatmul.mubr.f32.gmra.mxu0 %v2596
      %v2598 = vpop.f32.mrf.mxu0
      %v2599 = vadd.f32 %v1938, %v2598
      %v2600 = vpop.f32.mrf.mxu0
      %v2601 = vand.u32 %v322, 4294901760
      %v2602 = vsub.f32 %v322, %v2601
      %2603 = vmatprep.mubr.f32.mxu0 %v2602
      %v2604 = vand.u32 %v321, 4294901760
      %v2605 = vsub.f32 %v321, %v2604
      %2606 = vmatmul.mubr.f32.gmra.mxu0 %v2605
      %v2607 = vpop.f32.mrf.mxu0
      %v2608 = vadd.f32 %v1945, %v2607
      %v2609 = vpop.f32.mrf.mxu0
      %v2610 = vand.u32 %v324, 4294901760
      %v2611 = vsub.f32 %v324, %v2610
      %2612 = vmatprep.mubr.f32.mxu0 %v2611
      %v2613 = vand.u32 %v323, 4294901760
      %v2614 = vsub.f32 %v323, %v2613
      %2615 = vmatmul.mubr.f32.gmra.mxu0 %v2614
      %v2616 = vpop.f32.mrf.mxu0
      %v2617 = vadd.f32 %v1952, %v2616
      %v2618 = vpop.f32.mrf.mxu0
      %v2619 = vand.u32 %v326, 4294901760
      %v2620 = vsub.f32 %v326, %v2619
      %2621 = vmatprep.mubr.f32.mxu0 %v2620
      %v2622 = vand.u32 %v325, 4294901760
      %v2623 = vsub.f32 %v325, %v2622
      %2624 = vmatmul.mubr.f32.gmra.mxu0 %v2623
      %v2625 = vpop.f32.mrf.mxu0
      %v2626 = vadd.f32 %v1959, %v2625
      %v2627 = vpop.f32.mrf.mxu0
      %v2628 = vand.u32 %v328, 4294901760
      %v2629 = vsub.f32 %v328, %v2628
      %2630 = vmatprep.mubr.f32.mxu0 %v2629
      %v2631 = vand.u32 %v327, 4294901760
      %v2632 = vsub.f32 %v327, %v2631
      %2633 = vmatmul.mubr.f32.gmra.mxu0 %v2632
      %v2634 = vpop.f32.mrf.mxu0
      %v2635 = vadd.f32 %v1966, %v2634
      %v2636 = vpop.f32.mrf.mxu0
      %v2637 = vand.u32 %v330, 4294901760
      %v2638 = vsub.f32 %v330, %v2637
      %2639 = vmatprep.mubr.f32.mxu0 %v2638
      %v2640 = vand.u32 %v329, 4294901760
      %v2641 = vsub.f32 %v329, %v2640
      %2642 = vmatmul.mubr.f32.gmra.mxu0 %v2641
      %v2643 = vpop.f32.mrf.mxu0
      %v2644 = vadd.f32 %v1973, %v2643
      %v2645 = vpop.f32.mrf.mxu0
      %v2646 = vand.u32 %v332, 4294901760
      %v2647 = vsub.f32 %v332, %v2646
      %2648 = vmatprep.mubr.f32.mxu0 %v2647
      %v2649 = vand.u32 %v331, 4294901760
      %v2650 = vsub.f32 %v331, %v2649
      %2651 = vmatmul.mubr.f32.gmra.mxu0 %v2650
      %v2652 = vpop.f32.mrf.mxu0
      %v2653 = vadd.f32 %v1980, %v2652
      %v2654 = vpop.f32.mrf.mxu0
      %v2655 = vand.u32 %v334, 4294901760
      %v2656 = vsub.f32 %v334, %v2655
      %2657 = vmatprep.mubr.f32.mxu0 %v2656
      %v2658 = vand.u32 %v333, 4294901760
      %v2659 = vsub.f32 %v333, %v2658
      %2660 = vmatmul.mubr.f32.gmra.mxu0 %v2659
      %v2661 = vpop.f32.mrf.mxu0
      %v2662 = vadd.f32 %v1987, %v2661
      %v2663 = vpop.f32.mrf.mxu0
      %v2664 = vand.u32 %v336, 4294901760
      %v2665 = vsub.f32 %v336, %v2664
      %2666 = vmatprep.mubr.f32.mxu0 %v2665
      %v2667 = vand.u32 %v335, 4294901760
      %v2668 = vsub.f32 %v335, %v2667
      %2669 = vmatmul.mubr.f32.gmra.mxu0 %v2668
      %v2670 = vpop.f32.mrf.mxu0
      %v2671 = vadd.f32 %v1994, %v2670
      %v2672 = vpop.f32.mrf.mxu0
      %v2673 = vand.u32 %v338, 4294901760
      %v2674 = vsub.f32 %v338, %v2673
      %2675 = vmatprep.mubr.f32.mxu0 %v2674
      %v2676 = vand.u32 %v337, 4294901760
      %v2677 = vsub.f32 %v337, %v2676
      %2678 = vmatmul.mubr.f32.gmra.mxu0 %v2677
      %v2679 = vpop.f32.mrf.mxu0
      %v2680 = vadd.f32 %v2001, %v2679
      %v2681 = vpop.f32.mrf.mxu0
      %v2682 = vand.u32 %v340, 4294901760
      %v2683 = vsub.f32 %v340, %v2682
      %2684 = vmatprep.mubr.f32.mxu0 %v2683
      %v2685 = vand.u32 %v339, 4294901760
      %v2686 = vsub.f32 %v339, %v2685
      %2687 = vmatmul.mubr.f32.gmra.mxu0 %v2686
      %v2688 = vpop.f32.mrf.mxu0
      %v2689 = vadd.f32 %v2008, %v2688
      %v2690 = vpop.f32.mrf.mxu0
      %v2691 = vand.u32 %v342, 4294901760
      %v2692 = vsub.f32 %v342, %v2691
      %2693 = vmatprep.mubr.f32.mxu0 %v2692
      %v2694 = vand.u32 %v341, 4294901760
      %v2695 = vsub.f32 %v341, %v2694
      %2696 = vmatmul.mubr.f32.gmra.mxu0 %v2695
      %v2697 = vpop.f32.mrf.mxu0
      %v2698 = vadd.f32 %v2015, %v2697
      %v2699 = vpop.f32.mrf.mxu0
      %v2700 = vand.u32 %v344, 4294901760
      %v2701 = vsub.f32 %v344, %v2700
      %2702 = vmatprep.mubr.f32.mxu0 %v2701
      %v2703 = vand.u32 %v343, 4294901760
      %v2704 = vsub.f32 %v343, %v2703
      %2705 = vmatmul.mubr.f32.gmra.mxu0 %v2704
      %v2706 = vpop.f32.mrf.mxu0
      %v2707 = vadd.f32 %v2022, %v2706
      %v2708 = vpop.f32.mrf.mxu0
      %v2709 = vand.u32 %v346, 4294901760
      %v2710 = vsub.f32 %v346, %v2709
      %2711 = vmatprep.mubr.f32.mxu0 %v2710
      %v2712 = vand.u32 %v345, 4294901760
      %v2713 = vsub.f32 %v345, %v2712
      %2714 = vmatmul.mubr.f32.gmra.mxu0 %v2713
      %v2715 = vpop.f32.mrf.mxu0
      %v2716 = vadd.f32 %v2029, %v2715
      %v2717 = vpop.f32.mrf.mxu0
      %v2718 = vand.u32 %v348, 4294901760
      %v2719 = vsub.f32 %v348, %v2718
      %2720 = vmatprep.mubr.f32.mxu0 %v2719
      %v2721 = vand.u32 %v347, 4294901760
      %v2722 = vsub.f32 %v347, %v2721
      %2723 = vmatmul.mubr.f32.gmra.mxu0 %v2722
      %v2724 = vpop.f32.mrf.mxu0
      %v2725 = vadd.f32 %v2036, %v2724
      %v2726 = vpop.f32.mrf.mxu0
      %v2727 = vand.u32 %v350, 4294901760
      %v2728 = vsub.f32 %v350, %v2727
      %2729 = vmatprep.mubr.f32.mxu0 %v2728
      %v2730 = vand.u32 %v349, 4294901760
      %v2731 = vsub.f32 %v349, %v2730
      %2732 = vmatmul.mubr.f32.gmra.mxu0 %v2731
      %v2733 = vpop.f32.mrf.mxu0
      %v2734 = vadd.f32 %v2043, %v2733
      %v2735 = vpop.f32.mrf.mxu0
      %v2736 = vand.u32 %v352, 4294901760
      %v2737 = vsub.f32 %v352, %v2736
      %2738 = vmatprep.mubr.f32.mxu0 %v2737
      %v2739 = vand.u32 %v351, 4294901760
      %v2740 = vsub.f32 %v351, %v2739
      %2741 = vmatmul.mubr.f32.gmra.mxu0 %v2740
      %v2742 = vpop.f32.mrf.mxu0
      %v2743 = vadd.f32 %v2050, %v2742
      %v2744 = vpop.f32.mrf.mxu0
      %v2745 = vand.u32 %v354, 4294901760
      %v2746 = vsub.f32 %v354, %v2745
      %2747 = vmatprep.mubr.f32.mxu0 %v2746
      %v2748 = vand.u32 %v353, 4294901760
      %v2749 = vsub.f32 %v353, %v2748
      %2750 = vmatmul.mubr.f32.gmra.mxu0 %v2749
      %v2751 = vpop.f32.mrf.mxu0
      %v2752 = vadd.f32 %v2057, %v2751
      %v2753 = vpop.f32.mrf.mxu0
      %v2754 = vand.u32 %v356, 4294901760
      %v2755 = vsub.f32 %v356, %v2754
      %2756 = vmatprep.mubr.f32.mxu0 %v2755
      %v2757 = vand.u32 %v355, 4294901760
      %v2758 = vsub.f32 %v355, %v2757
      %2759 = vmatmul.mubr.f32.gmra.mxu0 %v2758
      %v2760 = vpop.f32.mrf.mxu0
      %v2761 = vadd.f32 %v2064, %v2760
      %v2762 = vpop.f32.mrf.mxu0
      %v2763 = vand.u32 %v358, 4294901760
      %v2764 = vsub.f32 %v358, %v2763
      %2765 = vmatprep.mubr.f32.mxu0 %v2764
      %v2766 = vand.u32 %v357, 4294901760
      %v2767 = vsub.f32 %v357, %v2766
      %2768 = vmatmul.mubr.f32.gmra.mxu0 %v2767
      %v2769 = vpop.f32.mrf.mxu0
      %v2770 = vadd.f32 %v2071, %v2769
      %v2771 = vpop.f32.mrf.mxu0
      %v2772 = vand.u32 %v360, 4294901760
      %v2773 = vsub.f32 %v360, %v2772
      %2774 = vmatprep.mubr.f32.mxu0 %v2773
      %v2775 = vand.u32 %v359, 4294901760
      %v2776 = vsub.f32 %v359, %v2775
      %2777 = vmatmul.mubr.f32.gmra.mxu0 %v2776
      %v2778 = vpop.f32.mrf.mxu0
      %v2779 = vadd.f32 %v2078, %v2778
      %v2780 = vpop.f32.mrf.mxu0
      %v2781 = vand.u32 %v362, 4294901760
      %v2782 = vsub.f32 %v362, %v2781
      %2783 = vmatprep.mubr.f32.mxu0 %v2782
      %v2784 = vand.u32 %v361, 4294901760
      %v2785 = vsub.f32 %v361, %v2784
      %2786 = vmatmul.mubr.f32.gmra.mxu0 %v2785
      %v2787 = vpop.f32.mrf.mxu0
      %v2788 = vadd.f32 %v2085, %v2787
      %v2789 = vpop.f32.mrf.mxu0
      %v2790 = vand.u32 %v364, 4294901760
      %v2791 = vsub.f32 %v364, %v2790
      %2792 = vmatprep.mubr.f32.mxu0 %v2791
      %v2793 = vand.u32 %v363, 4294901760
      %v2794 = vsub.f32 %v363, %v2793
      %2795 = vmatmul.mubr.f32.gmra.mxu0 %v2794
      %v2796 = vpop.f32.mrf.mxu0
      %v2797 = vadd.f32 %v2092, %v2796
      %v2798 = vpop.f32.mrf.mxu0
      %2799 = vdwg.mxu0
      %2800 = vmatprep.subr.mxu0 0.0
      %v2801 = vand.u32 %v220, 4294901760
      %2802 = vmatpush1.msra.mxu0 %v2801
      %2803 = vmatprep.subr.mxu0 0.0
      %v2804 = vand.u32 %v219, 4294901760
      %2805 = vmatpush1.msra.mxu0 %v2804
      %2806 = vmatprep.subr.mxu0 0.0
      %v2807 = vand.u32 %v218, 4294901760
      %2808 = vmatpush1.msra.mxu0 %v2807
      %2809 = vmatprep.subr.mxu0 0.0
      %v2810 = vand.u32 %v217, 4294901760
      %2811 = vmatpush1.msra.mxu0 %v2810
      %2812 = vmatprep.subr.mxu0 0.0
      %v2813 = vand.u32 %v216, 4294901760
      %2814 = vmatpush1.msra.mxu0 %v2813
      %2815 = vmatprep.subr.mxu0 0.0
      %v2816 = vand.u32 %v215, 4294901760
      %2817 = vmatpush1.msra.mxu0 %v2816
      %2818 = vmatprep.subr.mxu0 0.0
      %v2819 = vand.u32 %v214, 4294901760
      %2820 = vmatpush1.msra.mxu0 %v2819
      %2821 = vmatprep.subr.mxu0 0.0
      %v2822 = vand.u32 %v213, 4294901760
      %2823 = vmatpush1.msra.mxu0 %v2822
      %2824 = vmatprep.subr.mxu0 0.0
      %v2825 = vand.u32 %v212, 4294901760
      %2826 = vmatpush1.msra.mxu0 %v2825
      %2827 = vmatprep.subr.mxu0 0.0
      %v2828 = vand.u32 %v211, 4294901760
      %2829 = vmatpush1.msra.mxu0 %v2828
      %2830 = vmatprep.subr.mxu0 0.0
      %v2831 = vand.u32 %v210, 4294901760
      %2832 = vmatpush1.msra.mxu0 %v2831
      %2833 = vmatprep.subr.mxu0 0.0
      %v2834 = vand.u32 %v209, 4294901760
      %2835 = vmatpush1.msra.mxu0 %v2834
      %2836 = vmatprep.subr.mxu0 0.0
      %v2837 = vand.u32 %v208, 4294901760
      %2838 = vmatpush1.msra.mxu0 %v2837
      %2839 = vmatprep.subr.mxu0 0.0
      %v2840 = vand.u32 %v207, 4294901760
      %2841 = vmatpush1.msra.mxu0 %v2840
      %2842 = vmatprep.subr.mxu0 0.0
      %v2843 = vand.u32 %v206, 4294901760
      %2844 = vmatpush1.msra.mxu0 %v2843
      %2845 = vmatprep.subr.mxu0 0.0
      %v2846 = vand.u32 %v205, 4294901760
      %2847 = vmatpush1.msra.mxu0 %v2846
      %2848 = vmatprep.subr.mxu0 0.0
      %v2849 = vand.u32 %v236, 4294901760
      %2850 = vmatpush2.msra.mxu0 %v2849
      %2851 = vmatprep.subr.mxu0 0.0
      %v2852 = vand.u32 %v235, 4294901760
      %2853 = vmatpush2.msra.mxu0 %v2852
      %2854 = vmatprep.subr.mxu0 0.0
      %v2855 = vand.u32 %v234, 4294901760
      %2856 = vmatpush2.msra.mxu0 %v2855
      %2857 = vmatprep.subr.mxu0 0.0
      %v2858 = vand.u32 %v233, 4294901760
      %2859 = vmatpush2.msra.mxu0 %v2858
      %2860 = vmatprep.subr.mxu0 0.0
      %v2861 = vand.u32 %v232, 4294901760
      %2862 = vmatpush2.msra.mxu0 %v2861
      %2863 = vmatprep.subr.mxu0 0.0
      %v2864 = vand.u32 %v231, 4294901760
      %2865 = vmatpush2.msra.mxu0 %v2864
      %2866 = vmatprep.subr.mxu0 0.0
      %v2867 = vand.u32 %v230, 4294901760
      %2868 = vmatpush2.msra.mxu0 %v2867
      %2869 = vmatprep.subr.mxu0 0.0
      %v2870 = vand.u32 %v229, 4294901760
      %2871 = vmatpush2.msra.mxu0 %v2870
      %2872 = vmatprep.subr.mxu0 0.0
      %v2873 = vand.u32 %v228, 4294901760
      %2874 = vmatpush2.msra.mxu0 %v2873
      %2875 = vmatprep.subr.mxu0 0.0
      %v2876 = vand.u32 %v227, 4294901760
      %2877 = vmatpush2.msra.mxu0 %v2876
      %2878 = vmatprep.subr.mxu0 0.0
      %v2879 = vand.u32 %v226, 4294901760
      %2880 = vmatpush2.msra.mxu0 %v2879
      %2881 = vmatprep.subr.mxu0 0.0
      %v2882 = vand.u32 %v225, 4294901760
      %2883 = vmatpush2.msra.mxu0 %v2882
      %2884 = vmatprep.subr.mxu0 0.0
      %v2885 = vand.u32 %v224, 4294901760
      %2886 = vmatpush2.msra.mxu0 %v2885
      %2887 = vmatprep.subr.mxu0 0.0
      %v2888 = vand.u32 %v223, 4294901760
      %2889 = vmatpush2.msra.mxu0 %v2888
      %2890 = vmatprep.subr.mxu0 0.0
      %v2891 = vand.u32 %v222, 4294901760
      %2892 = vmatpush2.msra.mxu0 %v2891
      %2893 = vmatprep.subr.mxu0 0.0
      %v2894 = vand.u32 %v221, 4294901760
      %2895 = vmatpush2.msra.mxu0 %v2894
      %v2896 = vand.u32 %v238, 4294901760
      %v2897 = vsub.f32 %v238, %v2896
      %v2898 = vand.u32 %v2897, 4294901760
      %2899 = vmatprep.mubr.f32.mxu0 %v2898
      %v2900 = vand.u32 %v237, 4294901760
      %v2901 = vsub.f32 %v237, %v2900
      %v2902 = vand.u32 %v2901, 4294901760
      %2903 = vmatmul.mubr.f32.gmra.mxu0 %v2902
      %v2904 = vpop.f32.mrf.mxu0
      %v2905 = vadd.f32 %v2230, %v2904
      %v2906 = vpop.f32.mrf.mxu0
      %v2907 = vand.u32 %v240, 4294901760
      %v2908 = vsub.f32 %v240, %v2907
      %v2909 = vand.u32 %v2908, 4294901760
      %2910 = vmatprep.mubr.f32.mxu0 %v2909
      %v2911 = vand.u32 %v239, 4294901760
      %v2912 = vsub.f32 %v239, %v2911
      %v2913 = vand.u32 %v2912, 4294901760
      %2914 = vmatmul.mubr.f32.gmra.mxu0 %v2913
      %v2915 = vpop.f32.mrf.mxu0
      %v2916 = vadd.f32 %v2239, %v2915
      %v2917 = vpop.f32.mrf.mxu0
      %v2918 = vand.u32 %v242, 4294901760
      %v2919 = vsub.f32 %v242, %v2918
      %v2920 = vand.u32 %v2919, 4294901760
      %2921 = vmatprep.mubr.f32.mxu0 %v2920
      %v2922 = vand.u32 %v241, 4294901760
      %v2923 = vsub.f32 %v241, %v2922
      %v2924 = vand.u32 %v2923, 4294901760
      %2925 = vmatmul.mubr.f32.gmra.mxu0 %v2924
      %v2926 = vpop.f32.mrf.mxu0
      %v2927 = vadd.f32 %v2248, %v2926
      %v2928 = vpop.f32.mrf.mxu0
      %v2929 = vand.u32 %v244, 4294901760
      %v2930 = vsub.f32 %v244, %v2929
      %v2931 = vand.u32 %v2930, 4294901760
      %2932 = vmatprep.mubr.f32.mxu0 %v2931
      %v2933 = vand.u32 %v243, 4294901760
      %v2934 = vsub.f32 %v243, %v2933
      %v2935 = vand.u32 %v2934, 4294901760
      %2936 = vmatmul.mubr.f32.gmra.mxu0 %v2935
      %v2937 = vpop.f32.mrf.mxu0
      %v2938 = vadd.f32 %v2257, %v2937
      %v2939 = vpop.f32.mrf.mxu0
      %v2940 = vand.u32 %v246, 4294901760
      %v2941 = vsub.f32 %v246, %v2940
      %v2942 = vand.u32 %v2941, 4294901760
      %2943 = vmatprep.mubr.f32.mxu0 %v2942
      %v2944 = vand.u32 %v245, 4294901760
      %v2945 = vsub.f32 %v245, %v2944
      %v2946 = vand.u32 %v2945, 4294901760
      %2947 = vmatmul.mubr.f32.gmra.mxu0 %v2946
      %v2948 = vpop.f32.mrf.mxu0
      %v2949 = vadd.f32 %v2266, %v2948
      %v2950 = vpop.f32.mrf.mxu0
      %v2951 = vand.u32 %v248, 4294901760
      %v2952 = vsub.f32 %v248, %v2951
      %v2953 = vand.u32 %v2952, 4294901760
      %2954 = vmatprep.mubr.f32.mxu0 %v2953
      %v2955 = vand.u32 %v247, 4294901760
      %v2956 = vsub.f32 %v247, %v2955
      %v2957 = vand.u32 %v2956, 4294901760
      %2958 = vmatmul.mubr.f32.gmra.mxu0 %v2957
      %v2959 = vpop.f32.mrf.mxu0
      %v2960 = vadd.f32 %v2275, %v2959
      %v2961 = vpop.f32.mrf.mxu0
      %v2962 = vand.u32 %v250, 4294901760
      %v2963 = vsub.f32 %v250, %v2962
      %v2964 = vand.u32 %v2963, 4294901760
      %2965 = vmatprep.mubr.f32.mxu0 %v2964
      %v2966 = vand.u32 %v249, 4294901760
      %v2967 = vsub.f32 %v249, %v2966
      %v2968 = vand.u32 %v2967, 4294901760
      %2969 = vmatmul.mubr.f32.gmra.mxu0 %v2968
      %v2970 = vpop.f32.mrf.mxu0
      %v2971 = vadd.f32 %v2284, %v2970
      %v2972 = vpop.f32.mrf.mxu0
      %v2973 = vand.u32 %v252, 4294901760
      %v2974 = vsub.f32 %v252, %v2973
      %v2975 = vand.u32 %v2974, 4294901760
      %2976 = vmatprep.mubr.f32.mxu0 %v2975
      %v2977 = vand.u32 %v251, 4294901760
      %v2978 = vsub.f32 %v251, %v2977
      %v2979 = vand.u32 %v2978, 4294901760
      %2980 = vmatmul.mubr.f32.gmra.mxu0 %v2979
      %v2981 = vpop.f32.mrf.mxu0
      %v2982 = vadd.f32 %v2293, %v2981
      %v2983 = vpop.f32.mrf.mxu0
      %v2984 = vand.u32 %v254, 4294901760
      %v2985 = vsub.f32 %v254, %v2984
      %v2986 = vand.u32 %v2985, 4294901760
      %2987 = vmatprep.mubr.f32.mxu0 %v2986
      %v2988 = vand.u32 %v253, 4294901760
      %v2989 = vsub.f32 %v253, %v2988
      %v2990 = vand.u32 %v2989, 4294901760
      %2991 = vmatmul.mubr.f32.gmra.mxu0 %v2990
      %v2992 = vpop.f32.mrf.mxu0
      %v2993 = vadd.f32 %v2302, %v2992
      %v2994 = vpop.f32.mrf.mxu0
      %v2995 = vand.u32 %v256, 4294901760
      %v2996 = vsub.f32 %v256, %v2995
      %v2997 = vand.u32 %v2996, 4294901760
      %2998 = vmatprep.mubr.f32.mxu0 %v2997
      %v2999 = vand.u32 %v255, 4294901760
      %v3000 = vsub.f32 %v255, %v2999
      %v3001 = vand.u32 %v3000, 4294901760
      %3002 = vmatmul.mubr.f32.gmra.mxu0 %v3001
      %v3003 = vpop.f32.mrf.mxu0
      %v3004 = vadd.f32 %v2311, %v3003
      %v3005 = vpop.f32.mrf.mxu0
      %v3006 = vand.u32 %v258, 4294901760
      %v3007 = vsub.f32 %v258, %v3006
      %v3008 = vand.u32 %v3007, 4294901760
      %3009 = vmatprep.mubr.f32.mxu0 %v3008
      %v3010 = vand.u32 %v257, 4294901760
      %v3011 = vsub.f32 %v257, %v3010
      %v3012 = vand.u32 %v3011, 4294901760
      %3013 = vmatmul.mubr.f32.gmra.mxu0 %v3012
      %v3014 = vpop.f32.mrf.mxu0
      %v3015 = vadd.f32 %v2320, %v3014
      %v3016 = vpop.f32.mrf.mxu0
      %v3017 = vand.u32 %v260, 4294901760
      %v3018 = vsub.f32 %v260, %v3017
      %v3019 = vand.u32 %v3018, 4294901760
      %3020 = vmatprep.mubr.f32.mxu0 %v3019
      %v3021 = vand.u32 %v259, 4294901760
      %v3022 = vsub.f32 %v259, %v3021
      %v3023 = vand.u32 %v3022, 4294901760
      %3024 = vmatmul.mubr.f32.gmra.mxu0 %v3023
      %v3025 = vpop.f32.mrf.mxu0
      %v3026 = vadd.f32 %v2329, %v3025
      %v3027 = vpop.f32.mrf.mxu0
      %v3028 = vand.u32 %v262, 4294901760
      %v3029 = vsub.f32 %v262, %v3028
      %v3030 = vand.u32 %v3029, 4294901760
      %3031 = vmatprep.mubr.f32.mxu0 %v3030
      %v3032 = vand.u32 %v261, 4294901760
      %v3033 = vsub.f32 %v261, %v3032
      %v3034 = vand.u32 %v3033, 4294901760
      %3035 = vmatmul.mubr.f32.gmra.mxu0 %v3034
      %v3036 = vpop.f32.mrf.mxu0
      %v3037 = vadd.f32 %v2338, %v3036
      %v3038 = vpop.f32.mrf.mxu0
      %v3039 = vand.u32 %v264, 4294901760
      %v3040 = vsub.f32 %v264, %v3039
      %v3041 = vand.u32 %v3040, 4294901760
      %3042 = vmatprep.mubr.f32.mxu0 %v3041
      %v3043 = vand.u32 %v263, 4294901760
      %v3044 = vsub.f32 %v263, %v3043
      %v3045 = vand.u32 %v3044, 4294901760
      %3046 = vmatmul.mubr.f32.gmra.mxu0 %v3045
      %v3047 = vpop.f32.mrf.mxu0
      %v3048 = vadd.f32 %v2347, %v3047
      %v3049 = vpop.f32.mrf.mxu0
      %v3050 = vand.u32 %v266, 4294901760
      %v3051 = vsub.f32 %v266, %v3050
      %v3052 = vand.u32 %v3051, 4294901760
      %3053 = vmatprep.mubr.f32.mxu0 %v3052
      %v3054 = vand.u32 %v265, 4294901760
      %v3055 = vsub.f32 %v265, %v3054
      %v3056 = vand.u32 %v3055, 4294901760
      %3057 = vmatmul.mubr.f32.gmra.mxu0 %v3056
      %v3058 = vpop.f32.mrf.mxu0
      %v3059 = vadd.f32 %v2356, %v3058
      %v3060 = vpop.f32.mrf.mxu0
      %v3061 = vand.u32 %v268, 4294901760
      %v3062 = vsub.f32 %v268, %v3061
      %v3063 = vand.u32 %v3062, 4294901760
      %3064 = vmatprep.mubr.f32.mxu0 %v3063
      %v3065 = vand.u32 %v267, 4294901760
      %v3066 = vsub.f32 %v267, %v3065
      %v3067 = vand.u32 %v3066, 4294901760
      %3068 = vmatmul.mubr.f32.gmra.mxu0 %v3067
      %v3069 = vpop.f32.mrf.mxu0
      %v3070 = vadd.f32 %v2365, %v3069
      %v3071 = vpop.f32.mrf.mxu0
      %v3072 = vand.u32 %v270, 4294901760
      %v3073 = vsub.f32 %v270, %v3072
      %v3074 = vand.u32 %v3073, 4294901760
      %3075 = vmatprep.mubr.f32.mxu0 %v3074
      %v3076 = vand.u32 %v269, 4294901760
      %v3077 = vsub.f32 %v269, %v3076
      %v3078 = vand.u32 %v3077, 4294901760
      %3079 = vmatmul.mubr.f32.gmra.mxu0 %v3078
      %v3080 = vpop.f32.mrf.mxu0
      %v3081 = vadd.f32 %v2374, %v3080
      %v3082 = vpop.f32.mrf.mxu0
      %v3083 = vand.u32 %v272, 4294901760
      %v3084 = vsub.f32 %v272, %v3083
      %v3085 = vand.u32 %v3084, 4294901760
      %3086 = vmatprep.mubr.f32.mxu0 %v3085
      %v3087 = vand.u32 %v271, 4294901760
      %v3088 = vsub.f32 %v271, %v3087
      %v3089 = vand.u32 %v3088, 4294901760
      %3090 = vmatmul.mubr.f32.gmra.mxu0 %v3089
      %v3091 = vpop.f32.mrf.mxu0
      %v3092 = vadd.f32 %v2383, %v3091
      %v3093 = vpop.f32.mrf.mxu0
      %v3094 = vand.u32 %v274, 4294901760
      %v3095 = vsub.f32 %v274, %v3094
      %v3096 = vand.u32 %v3095, 4294901760
      %3097 = vmatprep.mubr.f32.mxu0 %v3096
      %v3098 = vand.u32 %v273, 4294901760
      %v3099 = vsub.f32 %v273, %v3098
      %v3100 = vand.u32 %v3099, 4294901760
      %3101 = vmatmul.mubr.f32.gmra.mxu0 %v3100
      %v3102 = vpop.f32.mrf.mxu0
      %v3103 = vadd.f32 %v2392, %v3102
      %v3104 = vpop.f32.mrf.mxu0
      %v3105 = vand.u32 %v276, 4294901760
      %v3106 = vsub.f32 %v276, %v3105
      %v3107 = vand.u32 %v3106, 4294901760
      %3108 = vmatprep.mubr.f32.mxu0 %v3107
      %v3109 = vand.u32 %v275, 4294901760
      %v3110 = vsub.f32 %v275, %v3109
      %v3111 = vand.u32 %v3110, 4294901760
      %3112 = vmatmul.mubr.f32.gmra.mxu0 %v3111
      %v3113 = vpop.f32.mrf.mxu0
      %v3114 = vadd.f32 %v2401, %v3113
      %v3115 = vpop.f32.mrf.mxu0
      %v3116 = vand.u32 %v278, 4294901760
      %v3117 = vsub.f32 %v278, %v3116
      %v3118 = vand.u32 %v3117, 4294901760
      %3119 = vmatprep.mubr.f32.mxu0 %v3118
      %v3120 = vand.u32 %v277, 4294901760
      %v3121 = vsub.f32 %v277, %v3120
      %v3122 = vand.u32 %v3121, 4294901760
      %3123 = vmatmul.mubr.f32.gmra.mxu0 %v3122
      %v3124 = vpop.f32.mrf.mxu0
      %v3125 = vadd.f32 %v2410, %v3124
      %v3126 = vpop.f32.mrf.mxu0
      %v3127 = vand.u32 %v280, 4294901760
      %v3128 = vsub.f32 %v280, %v3127
      %v3129 = vand.u32 %v3128, 4294901760
      %3130 = vmatprep.mubr.f32.mxu0 %v3129
      %v3131 = vand.u32 %v279, 4294901760
      %v3132 = vsub.f32 %v279, %v3131
      %v3133 = vand.u32 %v3132, 4294901760
      %3134 = vmatmul.mubr.f32.gmra.mxu0 %v3133
      %v3135 = vpop.f32.mrf.mxu0
      %v3136 = vadd.f32 %v2419, %v3135
      %v3137 = vpop.f32.mrf.mxu0
      %v3138 = vand.u32 %v282, 4294901760
      %v3139 = vsub.f32 %v282, %v3138
      %v3140 = vand.u32 %v3139, 4294901760
      %3141 = vmatprep.mubr.f32.mxu0 %v3140
      %v3142 = vand.u32 %v281, 4294901760
      %v3143 = vsub.f32 %v281, %v3142
      %v3144 = vand.u32 %v3143, 4294901760
      %3145 = vmatmul.mubr.f32.gmra.mxu0 %v3144
      %v3146 = vpop.f32.mrf.mxu0
      %v3147 = vadd.f32 %v2428, %v3146
      %v3148 = vpop.f32.mrf.mxu0
      %v3149 = vand.u32 %v284, 4294901760
      %v3150 = vsub.f32 %v284, %v3149
      %v3151 = vand.u32 %v3150, 4294901760
      %3152 = vmatprep.mubr.f32.mxu0 %v3151
      %v3153 = vand.u32 %v283, 4294901760
      %v3154 = vsub.f32 %v283, %v3153
      %v3155 = vand.u32 %v3154, 4294901760
      %3156 = vmatmul.mubr.f32.gmra.mxu0 %v3155
      %v3157 = vpop.f32.mrf.mxu0
      %v3158 = vadd.f32 %v2437, %v3157
      %v3159 = vpop.f32.mrf.mxu0
      %v3160 = vand.u32 %v286, 4294901760
      %v3161 = vsub.f32 %v286, %v3160
      %v3162 = vand.u32 %v3161, 4294901760
      %3163 = vmatprep.mubr.f32.mxu0 %v3162
      %v3164 = vand.u32 %v285, 4294901760
      %v3165 = vsub.f32 %v285, %v3164
      %v3166 = vand.u32 %v3165, 4294901760
      %3167 = vmatmul.mubr.f32.gmra.mxu0 %v3166
      %v3168 = vpop.f32.mrf.mxu0
      %v3169 = vadd.f32 %v2446, %v3168
      %v3170 = vpop.f32.mrf.mxu0
      %v3171 = vand.u32 %v288, 4294901760
      %v3172 = vsub.f32 %v288, %v3171
      %v3173 = vand.u32 %v3172, 4294901760
      %3174 = vmatprep.mubr.f32.mxu0 %v3173
      %v3175 = vand.u32 %v287, 4294901760
      %v3176 = vsub.f32 %v287, %v3175
      %v3177 = vand.u32 %v3176, 4294901760
      %3178 = vmatmul.mubr.f32.gmra.mxu0 %v3177
      %v3179 = vpop.f32.mrf.mxu0
      %v3180 = vadd.f32 %v2455, %v3179
      %v3181 = vpop.f32.mrf.mxu0
      %v3182 = vand.u32 %v290, 4294901760
      %v3183 = vsub.f32 %v290, %v3182
      %v3184 = vand.u32 %v3183, 4294901760
      %3185 = vmatprep.mubr.f32.mxu0 %v3184
      %v3186 = vand.u32 %v289, 4294901760
      %v3187 = vsub.f32 %v289, %v3186
      %v3188 = vand.u32 %v3187, 4294901760
      %3189 = vmatmul.mubr.f32.gmra.mxu0 %v3188
      %v3190 = vpop.f32.mrf.mxu0
      %v3191 = vadd.f32 %v2464, %v3190
      %v3192 = vpop.f32.mrf.mxu0
      %v3193 = vand.u32 %v292, 4294901760
      %v3194 = vsub.f32 %v292, %v3193
      %v3195 = vand.u32 %v3194, 4294901760
      %3196 = vmatprep.mubr.f32.mxu0 %v3195
      %v3197 = vand.u32 %v291, 4294901760
      %v3198 = vsub.f32 %v291, %v3197
      %v3199 = vand.u32 %v3198, 4294901760
      %3200 = vmatmul.mubr.f32.gmra.mxu0 %v3199
      %v3201 = vpop.f32.mrf.mxu0
      %v3202 = vadd.f32 %v2473, %v3201
      %v3203 = vpop.f32.mrf.mxu0
      %v3204 = vand.u32 %v294, 4294901760
      %v3205 = vsub.f32 %v294, %v3204
      %v3206 = vand.u32 %v3205, 4294901760
      %3207 = vmatprep.mubr.f32.mxu0 %v3206
      %v3208 = vand.u32 %v293, 4294901760
      %v3209 = vsub.f32 %v293, %v3208
      %v3210 = vand.u32 %v3209, 4294901760
      %3211 = vmatmul.mubr.f32.gmra.mxu0 %v3210
      %v3212 = vpop.f32.mrf.mxu0
      %v3213 = vadd.f32 %v2482, %v3212
      %v3214 = vpop.f32.mrf.mxu0
      %v3215 = vand.u32 %v296, 4294901760
      %v3216 = vsub.f32 %v296, %v3215
      %v3217 = vand.u32 %v3216, 4294901760
      %3218 = vmatprep.mubr.f32.mxu0 %v3217
      %v3219 = vand.u32 %v295, 4294901760
      %v3220 = vsub.f32 %v295, %v3219
      %v3221 = vand.u32 %v3220, 4294901760
      %3222 = vmatmul.mubr.f32.gmra.mxu0 %v3221
      %v3223 = vpop.f32.mrf.mxu0
      %v3224 = vadd.f32 %v2491, %v3223
      %v3225 = vpop.f32.mrf.mxu0
      %v3226 = vand.u32 %v298, 4294901760
      %v3227 = vsub.f32 %v298, %v3226
      %v3228 = vand.u32 %v3227, 4294901760
      %3229 = vmatprep.mubr.f32.mxu0 %v3228
      %v3230 = vand.u32 %v297, 4294901760
      %v3231 = vsub.f32 %v297, %v3230
      %v3232 = vand.u32 %v3231, 4294901760
      %3233 = vmatmul.mubr.f32.gmra.mxu0 %v3232
      %v3234 = vpop.f32.mrf.mxu0
      %v3235 = vadd.f32 %v2500, %v3234
      %v3236 = vpop.f32.mrf.mxu0
      %v3237 = vand.u32 %v300, 4294901760
      %v3238 = vsub.f32 %v300, %v3237
      %v3239 = vand.u32 %v3238, 4294901760
      %3240 = vmatprep.mubr.f32.mxu0 %v3239
      %v3241 = vand.u32 %v299, 4294901760
      %v3242 = vsub.f32 %v299, %v3241
      %v3243 = vand.u32 %v3242, 4294901760
      %3244 = vmatmul.mubr.f32.gmra.mxu0 %v3243
      %v3245 = vpop.f32.mrf.mxu0
      %v3246 = vadd.f32 %v2509, %v3245
      %v3247 = vpop.f32.mrf.mxu0
      %v3248 = vand.u32 %v302, 4294901760
      %v3249 = vsub.f32 %v302, %v3248
      %v3250 = vand.u32 %v3249, 4294901760
      %3251 = vmatprep.mubr.f32.mxu0 %v3250
      %v3252 = vand.u32 %v301, 4294901760
      %v3253 = vsub.f32 %v301, %v3252
      %v3254 = vand.u32 %v3253, 4294901760
      %3255 = vmatmul.mubr.f32.gmra.mxu0 %v3254
      %v3256 = vpop.f32.mrf.mxu0
      %v3257 = vadd.f32 %v2518, %v3256
      %v3258 = vpop.f32.mrf.mxu0
      %v3259 = vand.u32 %v304, 4294901760
      %v3260 = vsub.f32 %v304, %v3259
      %v3261 = vand.u32 %v3260, 4294901760
      %3262 = vmatprep.mubr.f32.mxu0 %v3261
      %v3263 = vand.u32 %v303, 4294901760
      %v3264 = vsub.f32 %v303, %v3263
      %v3265 = vand.u32 %v3264, 4294901760
      %3266 = vmatmul.mubr.f32.gmra.mxu0 %v3265
      %v3267 = vpop.f32.mrf.mxu0
      %v3268 = vadd.f32 %v2527, %v3267
      %v3269 = vpop.f32.mrf.mxu0
      %v3270 = vand.u32 %v306, 4294901760
      %v3271 = vsub.f32 %v306, %v3270
      %v3272 = vand.u32 %v3271, 4294901760
      %3273 = vmatprep.mubr.f32.mxu0 %v3272
      %v3274 = vand.u32 %v305, 4294901760
      %v3275 = vsub.f32 %v305, %v3274
      %v3276 = vand.u32 %v3275, 4294901760
      %3277 = vmatmul.mubr.f32.gmra.mxu0 %v3276
      %v3278 = vpop.f32.mrf.mxu0
      %v3279 = vadd.f32 %v2536, %v3278
      %v3280 = vpop.f32.mrf.mxu0
      %v3281 = vand.u32 %v308, 4294901760
      %v3282 = vsub.f32 %v308, %v3281
      %v3283 = vand.u32 %v3282, 4294901760
      %3284 = vmatprep.mubr.f32.mxu0 %v3283
      %v3285 = vand.u32 %v307, 4294901760
      %v3286 = vsub.f32 %v307, %v3285
      %v3287 = vand.u32 %v3286, 4294901760
      %3288 = vmatmul.mubr.f32.gmra.mxu0 %v3287
      %v3289 = vpop.f32.mrf.mxu0
      %v3290 = vadd.f32 %v2545, %v3289
      %v3291 = vpop.f32.mrf.mxu0
      %v3292 = vand.u32 %v310, 4294901760
      %v3293 = vsub.f32 %v310, %v3292
      %v3294 = vand.u32 %v3293, 4294901760
      %3295 = vmatprep.mubr.f32.mxu0 %v3294
      %v3296 = vand.u32 %v309, 4294901760
      %v3297 = vsub.f32 %v309, %v3296
      %v3298 = vand.u32 %v3297, 4294901760
      %3299 = vmatmul.mubr.f32.gmra.mxu0 %v3298
      %v3300 = vpop.f32.mrf.mxu0
      %v3301 = vadd.f32 %v2554, %v3300
      %v3302 = vpop.f32.mrf.mxu0
      %v3303 = vand.u32 %v312, 4294901760
      %v3304 = vsub.f32 %v312, %v3303
      %v3305 = vand.u32 %v3304, 4294901760
      %3306 = vmatprep.mubr.f32.mxu0 %v3305
      %v3307 = vand.u32 %v311, 4294901760
      %v3308 = vsub.f32 %v311, %v3307
      %v3309 = vand.u32 %v3308, 4294901760
      %3310 = vmatmul.mubr.f32.gmra.mxu0 %v3309
      %v3311 = vpop.f32.mrf.mxu0
      %v3312 = vadd.f32 %v2563, %v3311
      %v3313 = vpop.f32.mrf.mxu0
      %v3314 = vand.u32 %v314, 4294901760
      %v3315 = vsub.f32 %v314, %v3314
      %v3316 = vand.u32 %v3315, 4294901760
      %3317 = vmatprep.mubr.f32.mxu0 %v3316
      %v3318 = vand.u32 %v313, 4294901760
      %v3319 = vsub.f32 %v313, %v3318
      %v3320 = vand.u32 %v3319, 4294901760
      %3321 = vmatmul.mubr.f32.gmra.mxu0 %v3320
      %v3322 = vpop.f32.mrf.mxu0
      %v3323 = vadd.f32 %v2572, %v3322
      %v3324 = vpop.f32.mrf.mxu0
      %v3325 = vand.u32 %v316, 4294901760
      %v3326 = vsub.f32 %v316, %v3325
      %v3327 = vand.u32 %v3326, 4294901760
      %3328 = vmatprep.mubr.f32.mxu0 %v3327
      %v3329 = vand.u32 %v315, 4294901760
      %v3330 = vsub.f32 %v315, %v3329
      %v3331 = vand.u32 %v3330, 4294901760
      %3332 = vmatmul.mubr.f32.gmra.mxu0 %v3331
      %v3333 = vpop.f32.mrf.mxu0
      %v3334 = vadd.f32 %v2581, %v3333
      %v3335 = vpop.f32.mrf.mxu0
      %v3336 = vand.u32 %v318, 4294901760
      %v3337 = vsub.f32 %v318, %v3336
      %v3338 = vand.u32 %v3337, 4294901760
      %3339 = vmatprep.mubr.f32.mxu0 %v3338
      %v3340 = vand.u32 %v317, 4294901760
      %v3341 = vsub.f32 %v317, %v3340
      %v3342 = vand.u32 %v3341, 4294901760
      %3343 = vmatmul.mubr.f32.gmra.mxu0 %v3342
      %v3344 = vpop.f32.mrf.mxu0
      %v3345 = vadd.f32 %v2590, %v3344
      %v3346 = vpop.f32.mrf.mxu0
      %v3347 = vand.u32 %v320, 4294901760
      %v3348 = vsub.f32 %v320, %v3347
      %v3349 = vand.u32 %v3348, 4294901760
      %3350 = vmatprep.mubr.f32.mxu0 %v3349
      %v3351 = vand.u32 %v319, 4294901760
      %v3352 = vsub.f32 %v319, %v3351
      %v3353 = vand.u32 %v3352, 4294901760
      %3354 = vmatmul.mubr.f32.gmra.mxu0 %v3353
      %v3355 = vpop.f32.mrf.mxu0
      %v3356 = vadd.f32 %v2599, %v3355
      %v3357 = vpop.f32.mrf.mxu0
      %v3358 = vand.u32 %v322, 4294901760
      %v3359 = vsub.f32 %v322, %v3358
      %v3360 = vand.u32 %v3359, 4294901760
      %3361 = vmatprep.mubr.f32.mxu0 %v3360
      %v3362 = vand.u32 %v321, 4294901760
      %v3363 = vsub.f32 %v321, %v3362
      %v3364 = vand.u32 %v3363, 4294901760
      %3365 = vmatmul.mubr.f32.gmra.mxu0 %v3364
      %v3366 = vpop.f32.mrf.mxu0
      %v3367 = vadd.f32 %v2608, %v3366
      %v3368 = vpop.f32.mrf.mxu0
      %v3369 = vand.u32 %v324, 4294901760
      %v3370 = vsub.f32 %v324, %v3369
      %v3371 = vand.u32 %v3370, 4294901760
      %3372 = vmatprep.mubr.f32.mxu0 %v3371
      %v3373 = vand.u32 %v323, 4294901760
      %v3374 = vsub.f32 %v323, %v3373
      %v3375 = vand.u32 %v3374, 4294901760
      %3376 = vmatmul.mubr.f32.gmra.mxu0 %v3375
      %v3377 = vpop.f32.mrf.mxu0
      %v3378 = vadd.f32 %v2617, %v3377
      %v3379 = vpop.f32.mrf.mxu0
      %v3380 = vand.u32 %v326, 4294901760
      %v3381 = vsub.f32 %v326, %v3380
      %v3382 = vand.u32 %v3381, 4294901760
      %3383 = vmatprep.mubr.f32.mxu0 %v3382
      %v3384 = vand.u32 %v325, 4294901760
      %v3385 = vsub.f32 %v325, %v3384
      %v3386 = vand.u32 %v3385, 4294901760
      %3387 = vmatmul.mubr.f32.gmra.mxu0 %v3386
      %v3388 = vpop.f32.mrf.mxu0
      %v3389 = vadd.f32 %v2626, %v3388
      %v3390 = vpop.f32.mrf.mxu0
      %v3391 = vand.u32 %v328, 4294901760
      %v3392 = vsub.f32 %v328, %v3391
      %v3393 = vand.u32 %v3392, 4294901760
      %3394 = vmatprep.mubr.f32.mxu0 %v3393
      %v3395 = vand.u32 %v327, 4294901760
      %v3396 = vsub.f32 %v327, %v3395
      %v3397 = vand.u32 %v3396, 4294901760
      %3398 = vmatmul.mubr.f32.gmra.mxu0 %v3397
      %v3399 = vpop.f32.mrf.mxu0
      %v3400 = vadd.f32 %v2635, %v3399
      %v3401 = vpop.f32.mrf.mxu0
      %v3402 = vand.u32 %v330, 4294901760
      %v3403 = vsub.f32 %v330, %v3402
      %v3404 = vand.u32 %v3403, 4294901760
      %3405 = vmatprep.mubr.f32.mxu0 %v3404
      %v3406 = vand.u32 %v329, 4294901760
      %v3407 = vsub.f32 %v329, %v3406
      %v3408 = vand.u32 %v3407, 4294901760
      %3409 = vmatmul.mubr.f32.gmra.mxu0 %v3408
      %v3410 = vpop.f32.mrf.mxu0
      %v3411 = vadd.f32 %v2644, %v3410
      %v3412 = vpop.f32.mrf.mxu0
      %v3413 = vand.u32 %v332, 4294901760
      %v3414 = vsub.f32 %v332, %v3413
      %v3415 = vand.u32 %v3414, 4294901760
      %3416 = vmatprep.mubr.f32.mxu0 %v3415
      %v3417 = vand.u32 %v331, 4294901760
      %v3418 = vsub.f32 %v331, %v3417
      %v3419 = vand.u32 %v3418, 4294901760
      %3420 = vmatmul.mubr.f32.gmra.mxu0 %v3419
      %v3421 = vpop.f32.mrf.mxu0
      %v3422 = vadd.f32 %v2653, %v3421
      %v3423 = vpop.f32.mrf.mxu0
      %v3424 = vand.u32 %v334, 4294901760
      %v3425 = vsub.f32 %v334, %v3424
      %v3426 = vand.u32 %v3425, 4294901760
      %3427 = vmatprep.mubr.f32.mxu0 %v3426
      %v3428 = vand.u32 %v333, 4294901760
      %v3429 = vsub.f32 %v333, %v3428
      %v3430 = vand.u32 %v3429, 4294901760
      %3431 = vmatmul.mubr.f32.gmra.mxu0 %v3430
      %v3432 = vpop.f32.mrf.mxu0
      %v3433 = vadd.f32 %v2662, %v3432
      %v3434 = vpop.f32.mrf.mxu0
      %v3435 = vand.u32 %v336, 4294901760
      %v3436 = vsub.f32 %v336, %v3435
      %v3437 = vand.u32 %v3436, 4294901760
      %3438 = vmatprep.mubr.f32.mxu0 %v3437
      %v3439 = vand.u32 %v335, 4294901760
      %v3440 = vsub.f32 %v335, %v3439
      %v3441 = vand.u32 %v3440, 4294901760
      %3442 = vmatmul.mubr.f32.gmra.mxu0 %v3441
      %v3443 = vpop.f32.mrf.mxu0
      %v3444 = vadd.f32 %v2671, %v3443
      %v3445 = vpop.f32.mrf.mxu0
      %v3446 = vand.u32 %v338, 4294901760
      %v3447 = vsub.f32 %v338, %v3446
      %v3448 = vand.u32 %v3447, 4294901760
      %3449 = vmatprep.mubr.f32.mxu0 %v3448
      %v3450 = vand.u32 %v337, 4294901760
      %v3451 = vsub.f32 %v337, %v3450
      %v3452 = vand.u32 %v3451, 4294901760
      %3453 = vmatmul.mubr.f32.gmra.mxu0 %v3452
      %v3454 = vpop.f32.mrf.mxu0
      %v3455 = vadd.f32 %v2680, %v3454
      %v3456 = vpop.f32.mrf.mxu0
      %v3457 = vand.u32 %v340, 4294901760
      %v3458 = vsub.f32 %v340, %v3457
      %v3459 = vand.u32 %v3458, 4294901760
      %3460 = vmatprep.mubr.f32.mxu0 %v3459
      %v3461 = vand.u32 %v339, 4294901760
      %v3462 = vsub.f32 %v339, %v3461
      %v3463 = vand.u32 %v3462, 4294901760
      %3464 = vmatmul.mubr.f32.gmra.mxu0 %v3463
      %v3465 = vpop.f32.mrf.mxu0
      %v3466 = vadd.f32 %v2689, %v3465
      %v3467 = vpop.f32.mrf.mxu0
      %v3468 = vand.u32 %v342, 4294901760
      %v3469 = vsub.f32 %v342, %v3468
      %v3470 = vand.u32 %v3469, 4294901760
      %3471 = vmatprep.mubr.f32.mxu0 %v3470
      %v3472 = vand.u32 %v341, 4294901760
      %v3473 = vsub.f32 %v341, %v3472
      %v3474 = vand.u32 %v3473, 4294901760
      %3475 = vmatmul.mubr.f32.gmra.mxu0 %v3474
      %v3476 = vpop.f32.mrf.mxu0
      %v3477 = vadd.f32 %v2698, %v3476
      %v3478 = vpop.f32.mrf.mxu0
      %v3479 = vand.u32 %v344, 4294901760
      %v3480 = vsub.f32 %v344, %v3479
      %v3481 = vand.u32 %v3480, 4294901760
      %3482 = vmatprep.mubr.f32.mxu0 %v3481
      %v3483 = vand.u32 %v343, 4294901760
      %v3484 = vsub.f32 %v343, %v3483
      %v3485 = vand.u32 %v3484, 4294901760
      %3486 = vmatmul.mubr.f32.gmra.mxu0 %v3485
      %v3487 = vpop.f32.mrf.mxu0
      %v3488 = vadd.f32 %v2707, %v3487
      %v3489 = vpop.f32.mrf.mxu0
      %v3490 = vand.u32 %v346, 4294901760
      %v3491 = vsub.f32 %v346, %v3490
      %v3492 = vand.u32 %v3491, 4294901760
      %3493 = vmatprep.mubr.f32.mxu0 %v3492
      %v3494 = vand.u32 %v345, 4294901760
      %v3495 = vsub.f32 %v345, %v3494
      %v3496 = vand.u32 %v3495, 4294901760
      %3497 = vmatmul.mubr.f32.gmra.mxu0 %v3496
      %v3498 = vpop.f32.mrf.mxu0
      %v3499 = vadd.f32 %v2716, %v3498
      %v3500 = vpop.f32.mrf.mxu0
      %v3501 = vand.u32 %v348, 4294901760
      %v3502 = vsub.f32 %v348, %v3501
      %v3503 = vand.u32 %v3502, 4294901760
      %3504 = vmatprep.mubr.f32.mxu0 %v3503
      %v3505 = vand.u32 %v347, 4294901760
      %v3506 = vsub.f32 %v347, %v3505
      %v3507 = vand.u32 %v3506, 4294901760
      %3508 = vmatmul.mubr.f32.gmra.mxu0 %v3507
      %v3509 = vpop.f32.mrf.mxu0
      %v3510 = vadd.f32 %v2725, %v3509
      %v3511 = vpop.f32.mrf.mxu0
      %v3512 = vand.u32 %v350, 4294901760
      %v3513 = vsub.f32 %v350, %v3512
      %v3514 = vand.u32 %v3513, 4294901760
      %3515 = vmatprep.mubr.f32.mxu0 %v3514
      %v3516 = vand.u32 %v349, 4294901760
      %v3517 = vsub.f32 %v349, %v3516
      %v3518 = vand.u32 %v3517, 4294901760
      %3519 = vmatmul.mubr.f32.gmra.mxu0 %v3518
      %v3520 = vpop.f32.mrf.mxu0
      %v3521 = vadd.f32 %v2734, %v3520
      %v3522 = vpop.f32.mrf.mxu0
      %v3523 = vand.u32 %v352, 4294901760
      %v3524 = vsub.f32 %v352, %v3523
      %v3525 = vand.u32 %v3524, 4294901760
      %3526 = vmatprep.mubr.f32.mxu0 %v3525
      %v3527 = vand.u32 %v351, 4294901760
      %v3528 = vsub.f32 %v351, %v3527
      %v3529 = vand.u32 %v3528, 4294901760
      %3530 = vmatmul.mubr.f32.gmra.mxu0 %v3529
      %v3531 = vpop.f32.mrf.mxu0
      %v3532 = vadd.f32 %v2743, %v3531
      %v3533 = vpop.f32.mrf.mxu0
      %v3534 = vand.u32 %v354, 4294901760
      %v3535 = vsub.f32 %v354, %v3534
      %v3536 = vand.u32 %v3535, 4294901760
      %3537 = vmatprep.mubr.f32.mxu0 %v3536
      %v3538 = vand.u32 %v353, 4294901760
      %v3539 = vsub.f32 %v353, %v3538
      %v3540 = vand.u32 %v3539, 4294901760
      %3541 = vmatmul.mubr.f32.gmra.mxu0 %v3540
      %v3542 = vpop.f32.mrf.mxu0
      %v3543 = vadd.f32 %v2752, %v3542
      %v3544 = vpop.f32.mrf.mxu0
      %v3545 = vand.u32 %v356, 4294901760
      %v3546 = vsub.f32 %v356, %v3545
      %v3547 = vand.u32 %v3546, 4294901760
      %3548 = vmatprep.mubr.f32.mxu0 %v3547
      %v3549 = vand.u32 %v355, 4294901760
      %v3550 = vsub.f32 %v355, %v3549
      %v3551 = vand.u32 %v3550, 4294901760
      %3552 = vmatmul.mubr.f32.gmra.mxu0 %v3551
      %v3553 = vpop.f32.mrf.mxu0
      %v3554 = vadd.f32 %v2761, %v3553
      %v3555 = vpop.f32.mrf.mxu0
      %v3556 = vand.u32 %v358, 4294901760
      %v3557 = vsub.f32 %v358, %v3556
      %v3558 = vand.u32 %v3557, 4294901760
      %3559 = vmatprep.mubr.f32.mxu0 %v3558
      %v3560 = vand.u32 %v357, 4294901760
      %v3561 = vsub.f32 %v357, %v3560
      %v3562 = vand.u32 %v3561, 4294901760
      %3563 = vmatmul.mubr.f32.gmra.mxu0 %v3562
      %v3564 = vpop.f32.mrf.mxu0
      %v3565 = vadd.f32 %v2770, %v3564
      %v3566 = vpop.f32.mrf.mxu0
      %v3567 = vand.u32 %v360, 4294901760
      %v3568 = vsub.f32 %v360, %v3567
      %v3569 = vand.u32 %v3568, 4294901760
      %3570 = vmatprep.mubr.f32.mxu0 %v3569
      %v3571 = vand.u32 %v359, 4294901760
      %v3572 = vsub.f32 %v359, %v3571
      %v3573 = vand.u32 %v3572, 4294901760
      %3574 = vmatmul.mubr.f32.gmra.mxu0 %v3573
      %v3575 = vpop.f32.mrf.mxu0
      %v3576 = vadd.f32 %v2779, %v3575
      %v3577 = vpop.f32.mrf.mxu0
      %v3578 = vand.u32 %v362, 4294901760
      %v3579 = vsub.f32 %v362, %v3578
      %v3580 = vand.u32 %v3579, 4294901760
      %3581 = vmatprep.mubr.f32.mxu0 %v3580
      %v3582 = vand.u32 %v361, 4294901760
      %v3583 = vsub.f32 %v361, %v3582
      %v3584 = vand.u32 %v3583, 4294901760
      %3585 = vmatmul.mubr.f32.gmra.mxu0 %v3584
      %v3586 = vpop.f32.mrf.mxu0
      %v3587 = vadd.f32 %v2788, %v3586
      %v3588 = vpop.f32.mrf.mxu0
      %v3589 = vand.u32 %v364, 4294901760
      %v3590 = vsub.f32 %v364, %v3589
      %v3591 = vand.u32 %v3590, 4294901760
      %3592 = vmatprep.mubr.f32.mxu0 %v3591
      %v3593 = vand.u32 %v363, 4294901760
      %v3594 = vsub.f32 %v363, %v3593
      %v3595 = vand.u32 %v3594, 4294901760
      %3596 = vmatmul.mubr.f32.gmra.mxu0 %v3595
      %v3597 = vpop.f32.mrf.mxu0
      %v3598 = vadd.f32 %v2797, %v3597
      %v3599 = vpop.f32.mrf.mxu0
      %3600 = vdwg.mxu0
      %3601 = vmatprep.subr.mxu0 0.0
      %v3602 = vand.u32 %v220, 4294901760
      %v3603 = vsub.f32 %v220, %v3602
      %v3604 = vand.u32 %v3603, 4294901760
      %3605 = vmatpush1.msra.mxu0 %v3604
      %3606 = vmatprep.subr.mxu0 0.0
      %v3607 = vand.u32 %v219, 4294901760
      %v3608 = vsub.f32 %v219, %v3607
      %v3609 = vand.u32 %v3608, 4294901760
      %3610 = vmatpush1.msra.mxu0 %v3609
      %3611 = vmatprep.subr.mxu0 0.0
      %v3612 = vand.u32 %v218, 4294901760
      %v3613 = vsub.f32 %v218, %v3612
      %v3614 = vand.u32 %v3613, 4294901760
      %3615 = vmatpush1.msra.mxu0 %v3614
      %3616 = vmatprep.subr.mxu0 0.0
      %v3617 = vand.u32 %v217, 4294901760
      %v3618 = vsub.f32 %v217, %v3617
      %v3619 = vand.u32 %v3618, 4294901760
      %3620 = vmatpush1.msra.mxu0 %v3619
      %3621 = vmatprep.subr.mxu0 0.0
      %v3622 = vand.u32 %v216, 4294901760
      %v3623 = vsub.f32 %v216, %v3622
      %v3624 = vand.u32 %v3623, 4294901760
      %3625 = vmatpush1.msra.mxu0 %v3624
      %3626 = vmatprep.subr.mxu0 0.0
      %v3627 = vand.u32 %v215, 4294901760
      %v3628 = vsub.f32 %v215, %v3627
      %v3629 = vand.u32 %v3628, 4294901760
      %3630 = vmatpush1.msra.mxu0 %v3629
      %3631 = vmatprep.subr.mxu0 0.0
      %v3632 = vand.u32 %v214, 4294901760
      %v3633 = vsub.f32 %v214, %v3632
      %v3634 = vand.u32 %v3633, 4294901760
      %3635 = vmatpush1.msra.mxu0 %v3634
      %3636 = vmatprep.subr.mxu0 0.0
      %v3637 = vand.u32 %v213, 4294901760
      %v3638 = vsub.f32 %v213, %v3637
      %v3639 = vand.u32 %v3638, 4294901760
      %3640 = vmatpush1.msra.mxu0 %v3639
      %3641 = vmatprep.subr.mxu0 0.0
      %v3642 = vand.u32 %v212, 4294901760
      %v3643 = vsub.f32 %v212, %v3642
      %v3644 = vand.u32 %v3643, 4294901760
      %3645 = vmatpush1.msra.mxu0 %v3644
      %3646 = vmatprep.subr.mxu0 0.0
      %v3647 = vand.u32 %v211, 4294901760
      %v3648 = vsub.f32 %v211, %v3647
      %v3649 = vand.u32 %v3648, 4294901760
      %3650 = vmatpush1.msra.mxu0 %v3649
      %3651 = vmatprep.subr.mxu0 0.0
      %v3652 = vand.u32 %v210, 4294901760
      %v3653 = vsub.f32 %v210, %v3652
      %v3654 = vand.u32 %v3653, 4294901760
      %3655 = vmatpush1.msra.mxu0 %v3654
      %3656 = vmatprep.subr.mxu0 0.0
      %v3657 = vand.u32 %v209, 4294901760
      %v3658 = vsub.f32 %v209, %v3657
      %v3659 = vand.u32 %v3658, 4294901760
      %3660 = vmatpush1.msra.mxu0 %v3659
      %3661 = vmatprep.subr.mxu0 0.0
      %v3662 = vand.u32 %v208, 4294901760
      %v3663 = vsub.f32 %v208, %v3662
      %v3664 = vand.u32 %v3663, 4294901760
      %3665 = vmatpush1.msra.mxu0 %v3664
      %3666 = vmatprep.subr.mxu0 0.0
      %v3667 = vand.u32 %v207, 4294901760
      %v3668 = vsub.f32 %v207, %v3667
      %v3669 = vand.u32 %v3668, 4294901760
      %3670 = vmatpush1.msra.mxu0 %v3669
      %3671 = vmatprep.subr.mxu0 0.0
      %v3672 = vand.u32 %v206, 4294901760
      %v3673 = vsub.f32 %v206, %v3672
      %v3674 = vand.u32 %v3673, 4294901760
      %3675 = vmatpush1.msra.mxu0 %v3674
      %3676 = vmatprep.subr.mxu0 0.0
      %v3677 = vand.u32 %v205, 4294901760
      %v3678 = vsub.f32 %v205, %v3677
      %v3679 = vand.u32 %v3678, 4294901760
      %3680 = vmatpush1.msra.mxu0 %v3679
      %3681 = vmatprep.subr.mxu0 0.0
      %v3682 = vand.u32 %v236, 4294901760
      %v3683 = vsub.f32 %v236, %v3682
      %v3684 = vand.u32 %v3683, 4294901760
      %3685 = vmatpush2.msra.mxu0 %v3684
      %3686 = vmatprep.subr.mxu0 0.0
      %v3687 = vand.u32 %v235, 4294901760
      %v3688 = vsub.f32 %v235, %v3687
      %v3689 = vand.u32 %v3688, 4294901760
      %3690 = vmatpush2.msra.mxu0 %v3689
      %3691 = vmatprep.subr.mxu0 0.0
      %v3692 = vand.u32 %v234, 4294901760
      %v3693 = vsub.f32 %v234, %v3692
      %v3694 = vand.u32 %v3693, 4294901760
      %3695 = vmatpush2.msra.mxu0 %v3694
      %3696 = vmatprep.subr.mxu0 0.0
      %v3697 = vand.u32 %v233, 4294901760
      %v3698 = vsub.f32 %v233, %v3697
      %v3699 = vand.u32 %v3698, 4294901760
      %3700 = vmatpush2.msra.mxu0 %v3699
      %3701 = vmatprep.subr.mxu0 0.0
      %v3702 = vand.u32 %v232, 4294901760
      %v3703 = vsub.f32 %v232, %v3702
      %v3704 = vand.u32 %v3703, 4294901760
      %3705 = vmatpush2.msra.mxu0 %v3704
      %3706 = vmatprep.subr.mxu0 0.0
      %v3707 = vand.u32 %v231, 4294901760
      %v3708 = vsub.f32 %v231, %v3707
      %v3709 = vand.u32 %v3708, 4294901760
      %3710 = vmatpush2.msra.mxu0 %v3709
      %3711 = vmatprep.subr.mxu0 0.0
      %v3712 = vand.u32 %v230, 4294901760
      %v3713 = vsub.f32 %v230, %v3712
      %v3714 = vand.u32 %v3713, 4294901760
      %3715 = vmatpush2.msra.mxu0 %v3714
      %3716 = vmatprep.subr.mxu0 0.0
      %v3717 = vand.u32 %v229, 4294901760
      %v3718 = vsub.f32 %v229, %v3717
      %v3719 = vand.u32 %v3718, 4294901760
      %3720 = vmatpush2.msra.mxu0 %v3719
      %3721 = vmatprep.subr.mxu0 0.0
      %v3722 = vand.u32 %v228, 4294901760
      %v3723 = vsub.f32 %v228, %v3722
      %v3724 = vand.u32 %v3723, 4294901760
      %3725 = vmatpush2.msra.mxu0 %v3724
      %3726 = vmatprep.subr.mxu0 0.0
      %v3727 = vand.u32 %v227, 4294901760
      %v3728 = vsub.f32 %v227, %v3727
      %v3729 = vand.u32 %v3728, 4294901760
      %3730 = vmatpush2.msra.mxu0 %v3729
      %3731 = vmatprep.subr.mxu0 0.0
      %v3732 = vand.u32 %v226, 4294901760
      %v3733 = vsub.f32 %v226, %v3732
      %v3734 = vand.u32 %v3733, 4294901760
      %3735 = vmatpush2.msra.mxu0 %v3734
      %3736 = vmatprep.subr.mxu0 0.0
      %v3737 = vand.u32 %v225, 4294901760
      %v3738 = vsub.f32 %v225, %v3737
      %v3739 = vand.u32 %v3738, 4294901760
      %3740 = vmatpush2.msra.mxu0 %v3739
      %3741 = vmatprep.subr.mxu0 0.0
      %v3742 = vand.u32 %v224, 4294901760
      %v3743 = vsub.f32 %v224, %v3742
      %v3744 = vand.u32 %v3743, 4294901760
      %3745 = vmatpush2.msra.mxu0 %v3744
      %3746 = vmatprep.subr.mxu0 0.0
      %v3747 = vand.u32 %v223, 4294901760
      %v3748 = vsub.f32 %v223, %v3747
      %v3749 = vand.u32 %v3748, 4294901760
      %3750 = vmatpush2.msra.mxu0 %v3749
      %3751 = vmatprep.subr.mxu0 0.0
      %v3752 = vand.u32 %v222, 4294901760
      %v3753 = vsub.f32 %v222, %v3752
      %v3754 = vand.u32 %v3753, 4294901760
      %3755 = vmatpush2.msra.mxu0 %v3754
      %3756 = vmatprep.subr.mxu0 0.0
      %v3757 = vand.u32 %v221, 4294901760
      %v3758 = vsub.f32 %v221, %v3757
      %v3759 = vand.u32 %v3758, 4294901760
      %3760 = vmatpush2.msra.mxu0 %v3759
      %v3761 = vand.u32 %v238, 4294901760
      %3762 = vmatprep.mubr.f32.mxu0 %v3761
      %v3763 = vand.u32 %v237, 4294901760
      %3764 = vmatmul.mubr.f32.gmra.mxu0 %v3763
      %v3765 = vpop.f32.mrf.mxu0
      %v3766 = vadd.f32 %v2905, %v3765
      %v3767 = vpop.f32.mrf.mxu0
      %v3768 = vand.u32 %v240, 4294901760
      %3769 = vmatprep.mubr.f32.mxu0 %v3768
      %v3770 = vand.u32 %v239, 4294901760
      %3771 = vmatmul.mubr.f32.gmra.mxu0 %v3770
      %v3772 = vpop.f32.mrf.mxu0
      %v3773 = vadd.f32 %v2916, %v3772
      %v3774 = vpop.f32.mrf.mxu0
      %v3775 = vand.u32 %v242, 4294901760
      %3776 = vmatprep.mubr.f32.mxu0 %v3775
      %v3777 = vand.u32 %v241, 4294901760
      %3778 = vmatmul.mubr.f32.gmra.mxu0 %v3777
      %v3779 = vpop.f32.mrf.mxu0
      %v3780 = vadd.f32 %v2927, %v3779
      %v3781 = vpop.f32.mrf.mxu0
      %v3782 = vand.u32 %v244, 4294901760
      %3783 = vmatprep.mubr.f32.mxu0 %v3782
      %v3784 = vand.u32 %v243, 4294901760
      %3785 = vmatmul.mubr.f32.gmra.mxu0 %v3784
      %v3786 = vpop.f32.mrf.mxu0
      %v3787 = vadd.f32 %v2938, %v3786
      %v3788 = vpop.f32.mrf.mxu0
      %v3789 = vand.u32 %v246, 4294901760
      %3790 = vmatprep.mubr.f32.mxu0 %v3789
      %v3791 = vand.u32 %v245, 4294901760
      %3792 = vmatmul.mubr.f32.gmra.mxu0 %v3791
      %v3793 = vpop.f32.mrf.mxu0
      %v3794 = vadd.f32 %v2949, %v3793
      %v3795 = vpop.f32.mrf.mxu0
      %v3796 = vand.u32 %v248, 4294901760
      %3797 = vmatprep.mubr.f32.mxu0 %v3796
      %v3798 = vand.u32 %v247, 4294901760
      %3799 = vmatmul.mubr.f32.gmra.mxu0 %v3798
      %v3800 = vpop.f32.mrf.mxu0
      %v3801 = vadd.f32 %v2960, %v3800
      %v3802 = vpop.f32.mrf.mxu0
      %v3803 = vand.u32 %v250, 4294901760
      %3804 = vmatprep.mubr.f32.mxu0 %v3803
      %v3805 = vand.u32 %v249, 4294901760
      %3806 = vmatmul.mubr.f32.gmra.mxu0 %v3805
      %v3807 = vpop.f32.mrf.mxu0
      %v3808 = vadd.f32 %v2971, %v3807
      %v3809 = vpop.f32.mrf.mxu0
      %v3810 = vand.u32 %v252, 4294901760
      %3811 = vmatprep.mubr.f32.mxu0 %v3810
      %v3812 = vand.u32 %v251, 4294901760
      %3813 = vmatmul.mubr.f32.gmra.mxu0 %v3812
      %v3814 = vpop.f32.mrf.mxu0
      %v3815 = vadd.f32 %v2982, %v3814
      %v3816 = vpop.f32.mrf.mxu0
      %v3817 = vand.u32 %v254, 4294901760
      %3818 = vmatprep.mubr.f32.mxu0 %v3817
      %v3819 = vand.u32 %v253, 4294901760
      %3820 = vmatmul.mubr.f32.gmra.mxu0 %v3819
      %v3821 = vpop.f32.mrf.mxu0
      %v3822 = vadd.f32 %v2993, %v3821
      %v3823 = vpop.f32.mrf.mxu0
      %v3824 = vand.u32 %v256, 4294901760
      %3825 = vmatprep.mubr.f32.mxu0 %v3824
      %v3826 = vand.u32 %v255, 4294901760
      %3827 = vmatmul.mubr.f32.gmra.mxu0 %v3826
      %v3828 = vpop.f32.mrf.mxu0
      %v3829 = vadd.f32 %v3004, %v3828
      %v3830 = vpop.f32.mrf.mxu0
      %v3831 = vand.u32 %v258, 4294901760
      %3832 = vmatprep.mubr.f32.mxu0 %v3831
      %v3833 = vand.u32 %v257, 4294901760
      %3834 = vmatmul.mubr.f32.gmra.mxu0 %v3833
      %v3835 = vpop.f32.mrf.mxu0
      %v3836 = vadd.f32 %v3015, %v3835
      %v3837 = vpop.f32.mrf.mxu0
      %v3838 = vand.u32 %v260, 4294901760
      %3839 = vmatprep.mubr.f32.mxu0 %v3838
      %v3840 = vand.u32 %v259, 4294901760
      %3841 = vmatmul.mubr.f32.gmra.mxu0 %v3840
      %v3842 = vpop.f32.mrf.mxu0
      %v3843 = vadd.f32 %v3026, %v3842
      %v3844 = vpop.f32.mrf.mxu0
      %v3845 = vand.u32 %v262, 4294901760
      %3846 = vmatprep.mubr.f32.mxu0 %v3845
      %v3847 = vand.u32 %v261, 4294901760
      %3848 = vmatmul.mubr.f32.gmra.mxu0 %v3847
      %v3849 = vpop.f32.mrf.mxu0
      %v3850 = vadd.f32 %v3037, %v3849
      %v3851 = vpop.f32.mrf.mxu0
      %v3852 = vand.u32 %v264, 4294901760
      %3853 = vmatprep.mubr.f32.mxu0 %v3852
      %v3854 = vand.u32 %v263, 4294901760
      %3855 = vmatmul.mubr.f32.gmra.mxu0 %v3854
      %v3856 = vpop.f32.mrf.mxu0
      %v3857 = vadd.f32 %v3048, %v3856
      %v3858 = vpop.f32.mrf.mxu0
      %v3859 = vand.u32 %v266, 4294901760
      %3860 = vmatprep.mubr.f32.mxu0 %v3859
      %v3861 = vand.u32 %v265, 4294901760
      %3862 = vmatmul.mubr.f32.gmra.mxu0 %v3861
      %v3863 = vpop.f32.mrf.mxu0
      %v3864 = vadd.f32 %v3059, %v3863
      %v3865 = vpop.f32.mrf.mxu0
      %v3866 = vand.u32 %v268, 4294901760
      %3867 = vmatprep.mubr.f32.mxu0 %v3866
      %v3868 = vand.u32 %v267, 4294901760
      %3869 = vmatmul.mubr.f32.gmra.mxu0 %v3868
      %v3870 = vpop.f32.mrf.mxu0
      %v3871 = vadd.f32 %v3070, %v3870
      %v3872 = vpop.f32.mrf.mxu0
      %v3873 = vand.u32 %v270, 4294901760
      %3874 = vmatprep.mubr.f32.mxu0 %v3873
      %v3875 = vand.u32 %v269, 4294901760
      %3876 = vmatmul.mubr.f32.gmra.mxu0 %v3875
      %v3877 = vpop.f32.mrf.mxu0
      %v3878 = vadd.f32 %v3081, %v3877
      %v3879 = vpop.f32.mrf.mxu0
      %v3880 = vand.u32 %v272, 4294901760
      %3881 = vmatprep.mubr.f32.mxu0 %v3880
      %v3882 = vand.u32 %v271, 4294901760
      %3883 = vmatmul.mubr.f32.gmra.mxu0 %v3882
      %v3884 = vpop.f32.mrf.mxu0
      %v3885 = vadd.f32 %v3092, %v3884
      %v3886 = vpop.f32.mrf.mxu0
      %v3887 = vand.u32 %v274, 4294901760
      %3888 = vmatprep.mubr.f32.mxu0 %v3887
      %v3889 = vand.u32 %v273, 4294901760
      %3890 = vmatmul.mubr.f32.gmra.mxu0 %v3889
      %v3891 = vpop.f32.mrf.mxu0
      %v3892 = vadd.f32 %v3103, %v3891
      %v3893 = vpop.f32.mrf.mxu0
      %v3894 = vand.u32 %v276, 4294901760
      %3895 = vmatprep.mubr.f32.mxu0 %v3894
      %v3896 = vand.u32 %v275, 4294901760
      %3897 = vmatmul.mubr.f32.gmra.mxu0 %v3896
      %v3898 = vpop.f32.mrf.mxu0
      %v3899 = vadd.f32 %v3114, %v3898
      %v3900 = vpop.f32.mrf.mxu0
      %v3901 = vand.u32 %v278, 4294901760
      %3902 = vmatprep.mubr.f32.mxu0 %v3901
      %v3903 = vand.u32 %v277, 4294901760
      %3904 = vmatmul.mubr.f32.gmra.mxu0 %v3903
      %v3905 = vpop.f32.mrf.mxu0
      %v3906 = vadd.f32 %v3125, %v3905
      %v3907 = vpop.f32.mrf.mxu0
      %v3908 = vand.u32 %v280, 4294901760
      %3909 = vmatprep.mubr.f32.mxu0 %v3908
      %v3910 = vand.u32 %v279, 4294901760
      %3911 = vmatmul.mubr.f32.gmra.mxu0 %v3910
      %v3912 = vpop.f32.mrf.mxu0
      %v3913 = vadd.f32 %v3136, %v3912
      %v3914 = vpop.f32.mrf.mxu0
      %v3915 = vand.u32 %v282, 4294901760
      %3916 = vmatprep.mubr.f32.mxu0 %v3915
      %v3917 = vand.u32 %v281, 4294901760
      %3918 = vmatmul.mubr.f32.gmra.mxu0 %v3917
      %v3919 = vpop.f32.mrf.mxu0
      %v3920 = vadd.f32 %v3147, %v3919
      %v3921 = vpop.f32.mrf.mxu0
      %v3922 = vand.u32 %v284, 4294901760
      %3923 = vmatprep.mubr.f32.mxu0 %v3922
      %v3924 = vand.u32 %v283, 4294901760
      %3925 = vmatmul.mubr.f32.gmra.mxu0 %v3924
      %v3926 = vpop.f32.mrf.mxu0
      %v3927 = vadd.f32 %v3158, %v3926
      %v3928 = vpop.f32.mrf.mxu0
      %v3929 = vand.u32 %v286, 4294901760
      %3930 = vmatprep.mubr.f32.mxu0 %v3929
      %v3931 = vand.u32 %v285, 4294901760
      %3932 = vmatmul.mubr.f32.gmra.mxu0 %v3931
      %v3933 = vpop.f32.mrf.mxu0
      %v3934 = vadd.f32 %v3169, %v3933
      %v3935 = vpop.f32.mrf.mxu0
      %v3936 = vand.u32 %v288, 4294901760
      %3937 = vmatprep.mubr.f32.mxu0 %v3936
      %v3938 = vand.u32 %v287, 4294901760
      %3939 = vmatmul.mubr.f32.gmra.mxu0 %v3938
      %v3940 = vpop.f32.mrf.mxu0
      %v3941 = vadd.f32 %v3180, %v3940
      %v3942 = vpop.f32.mrf.mxu0
      %v3943 = vand.u32 %v290, 4294901760
      %3944 = vmatprep.mubr.f32.mxu0 %v3943
      %v3945 = vand.u32 %v289, 4294901760
      %3946 = vmatmul.mubr.f32.gmra.mxu0 %v3945
      %v3947 = vpop.f32.mrf.mxu0
      %v3948 = vadd.f32 %v3191, %v3947
      %v3949 = vpop.f32.mrf.mxu0
      %v3950 = vand.u32 %v292, 4294901760
      %3951 = vmatprep.mubr.f32.mxu0 %v3950
      %v3952 = vand.u32 %v291, 4294901760
      %3953 = vmatmul.mubr.f32.gmra.mxu0 %v3952
      %v3954 = vpop.f32.mrf.mxu0
      %v3955 = vadd.f32 %v3202, %v3954
      %v3956 = vpop.f32.mrf.mxu0
      %v3957 = vand.u32 %v294, 4294901760
      %3958 = vmatprep.mubr.f32.mxu0 %v3957
      %v3959 = vand.u32 %v293, 4294901760
      %3960 = vmatmul.mubr.f32.gmra.mxu0 %v3959
      %v3961 = vpop.f32.mrf.mxu0
      %v3962 = vadd.f32 %v3213, %v3961
      %v3963 = vpop.f32.mrf.mxu0
      %v3964 = vand.u32 %v296, 4294901760
      %3965 = vmatprep.mubr.f32.mxu0 %v3964
      %v3966 = vand.u32 %v295, 4294901760
      %3967 = vmatmul.mubr.f32.gmra.mxu0 %v3966
      %v3968 = vpop.f32.mrf.mxu0
      %v3969 = vadd.f32 %v3224, %v3968
      %v3970 = vpop.f32.mrf.mxu0
      %v3971 = vand.u32 %v298, 4294901760
      %3972 = vmatprep.mubr.f32.mxu0 %v3971
      %v3973 = vand.u32 %v297, 4294901760
      %3974 = vmatmul.mubr.f32.gmra.mxu0 %v3973
      %v3975 = vpop.f32.mrf.mxu0
      %v3976 = vadd.f32 %v3235, %v3975
      %v3977 = vpop.f32.mrf.mxu0
      %v3978 = vand.u32 %v300, 4294901760
      %3979 = vmatprep.mubr.f32.mxu0 %v3978
      %v3980 = vand.u32 %v299, 4294901760
      %3981 = vmatmul.mubr.f32.gmra.mxu0 %v3980
      %v3982 = vpop.f32.mrf.mxu0
      %v3983 = vadd.f32 %v3246, %v3982
      %v3984 = vpop.f32.mrf.mxu0
      %v3985 = vand.u32 %v302, 4294901760
      %3986 = vmatprep.mubr.f32.mxu0 %v3985
      %v3987 = vand.u32 %v301, 4294901760
      %3988 = vmatmul.mubr.f32.gmra.mxu0 %v3987
      %v3989 = vpop.f32.mrf.mxu0
      %v3990 = vadd.f32 %v3257, %v3989
      %v3991 = vpop.f32.mrf.mxu0
      %v3992 = vand.u32 %v304, 4294901760
      %3993 = vmatprep.mubr.f32.mxu0 %v3992
      %v3994 = vand.u32 %v303, 4294901760
      %3995 = vmatmul.mubr.f32.gmra.mxu0 %v3994
      %v3996 = vpop.f32.mrf.mxu0
      %v3997 = vadd.f32 %v3268, %v3996
      %v3998 = vpop.f32.mrf.mxu0
      %v3999 = vand.u32 %v306, 4294901760
      %4000 = vmatprep.mubr.f32.mxu0 %v3999
      %v4001 = vand.u32 %v305, 4294901760
      %4002 = vmatmul.mubr.f32.gmra.mxu0 %v4001
      %v4003 = vpop.f32.mrf.mxu0
      %v4004 = vadd.f32 %v3279, %v4003
      %v4005 = vpop.f32.mrf.mxu0
      %v4006 = vand.u32 %v308, 4294901760
      %4007 = vmatprep.mubr.f32.mxu0 %v4006
      %v4008 = vand.u32 %v307, 4294901760
      %4009 = vmatmul.mubr.f32.gmra.mxu0 %v4008
      %v4010 = vpop.f32.mrf.mxu0
      %v4011 = vadd.f32 %v3290, %v4010
      %v4012 = vpop.f32.mrf.mxu0
      %v4013 = vand.u32 %v310, 4294901760
      %4014 = vmatprep.mubr.f32.mxu0 %v4013
      %v4015 = vand.u32 %v309, 4294901760
      %4016 = vmatmul.mubr.f32.gmra.mxu0 %v4015
      %v4017 = vpop.f32.mrf.mxu0
      %v4018 = vadd.f32 %v3301, %v4017
      %v4019 = vpop.f32.mrf.mxu0
      %v4020 = vand.u32 %v312, 4294901760
      %4021 = vmatprep.mubr.f32.mxu0 %v4020
      %v4022 = vand.u32 %v311, 4294901760
      %4023 = vmatmul.mubr.f32.gmra.mxu0 %v4022
      %v4024 = vpop.f32.mrf.mxu0
      %v4025 = vadd.f32 %v3312, %v4024
      %v4026 = vpop.f32.mrf.mxu0
      %v4027 = vand.u32 %v314, 4294901760
      %4028 = vmatprep.mubr.f32.mxu0 %v4027
      %v4029 = vand.u32 %v313, 4294901760
      %4030 = vmatmul.mubr.f32.gmra.mxu0 %v4029
      %v4031 = vpop.f32.mrf.mxu0
      %v4032 = vadd.f32 %v3323, %v4031
      %v4033 = vpop.f32.mrf.mxu0
      %v4034 = vand.u32 %v316, 4294901760
      %4035 = vmatprep.mubr.f32.mxu0 %v4034
      %v4036 = vand.u32 %v315, 4294901760
      %4037 = vmatmul.mubr.f32.gmra.mxu0 %v4036
      %v4038 = vpop.f32.mrf.mxu0
      %v4039 = vadd.f32 %v3334, %v4038
      %v4040 = vpop.f32.mrf.mxu0
      %v4041 = vand.u32 %v318, 4294901760
      %4042 = vmatprep.mubr.f32.mxu0 %v4041
      %v4043 = vand.u32 %v317, 4294901760
      %4044 = vmatmul.mubr.f32.gmra.mxu0 %v4043
      %v4045 = vpop.f32.mrf.mxu0
      %v4046 = vadd.f32 %v3345, %v4045
      %v4047 = vpop.f32.mrf.mxu0
      %v4048 = vand.u32 %v320, 4294901760
      %4049 = vmatprep.mubr.f32.mxu0 %v4048
      %v4050 = vand.u32 %v319, 4294901760
      %4051 = vmatmul.mubr.f32.gmra.mxu0 %v4050
      %v4052 = vpop.f32.mrf.mxu0
      %v4053 = vadd.f32 %v3356, %v4052
      %v4054 = vpop.f32.mrf.mxu0
      %v4055 = vand.u32 %v322, 4294901760
      %4056 = vmatprep.mubr.f32.mxu0 %v4055
      %v4057 = vand.u32 %v321, 4294901760
      %4058 = vmatmul.mubr.f32.gmra.mxu0 %v4057
      %v4059 = vpop.f32.mrf.mxu0
      %v4060 = vadd.f32 %v3367, %v4059
      %v4061 = vpop.f32.mrf.mxu0
      %v4062 = vand.u32 %v324, 4294901760
      %4063 = vmatprep.mubr.f32.mxu0 %v4062
      %v4064 = vand.u32 %v323, 4294901760
      %4065 = vmatmul.mubr.f32.gmra.mxu0 %v4064
      %v4066 = vpop.f32.mrf.mxu0
      %v4067 = vadd.f32 %v3378, %v4066
      %v4068 = vpop.f32.mrf.mxu0
      %v4069 = vand.u32 %v326, 4294901760
      %4070 = vmatprep.mubr.f32.mxu0 %v4069
      %v4071 = vand.u32 %v325, 4294901760
      %4072 = vmatmul.mubr.f32.gmra.mxu0 %v4071
      %v4073 = vpop.f32.mrf.mxu0
      %v4074 = vadd.f32 %v3389, %v4073
      %v4075 = vpop.f32.mrf.mxu0
      %v4076 = vand.u32 %v328, 4294901760
      %4077 = vmatprep.mubr.f32.mxu0 %v4076
      %v4078 = vand.u32 %v327, 4294901760
      %4079 = vmatmul.mubr.f32.gmra.mxu0 %v4078
      %v4080 = vpop.f32.mrf.mxu0
      %v4081 = vadd.f32 %v3400, %v4080
      %v4082 = vpop.f32.mrf.mxu0
      %v4083 = vand.u32 %v330, 4294901760
      %4084 = vmatprep.mubr.f32.mxu0 %v4083
      %v4085 = vand.u32 %v329, 4294901760
      %4086 = vmatmul.mubr.f32.gmra.mxu0 %v4085
      %v4087 = vpop.f32.mrf.mxu0
      %v4088 = vadd.f32 %v3411, %v4087
      %v4089 = vpop.f32.mrf.mxu0
      %v4090 = vand.u32 %v332, 4294901760
      %4091 = vmatprep.mubr.f32.mxu0 %v4090
      %v4092 = vand.u32 %v331, 4294901760
      %4093 = vmatmul.mubr.f32.gmra.mxu0 %v4092
      %v4094 = vpop.f32.mrf.mxu0
      %v4095 = vadd.f32 %v3422, %v4094
      %v4096 = vpop.f32.mrf.mxu0
      %v4097 = vand.u32 %v334, 4294901760
      %4098 = vmatprep.mubr.f32.mxu0 %v4097
      %v4099 = vand.u32 %v333, 4294901760
      %4100 = vmatmul.mubr.f32.gmra.mxu0 %v4099
      %v4101 = vpop.f32.mrf.mxu0
      %v4102 = vadd.f32 %v3433, %v4101
      %v4103 = vpop.f32.mrf.mxu0
      %v4104 = vand.u32 %v336, 4294901760
      %4105 = vmatprep.mubr.f32.mxu0 %v4104
      %v4106 = vand.u32 %v335, 4294901760
      %4107 = vmatmul.mubr.f32.gmra.mxu0 %v4106
      %v4108 = vpop.f32.mrf.mxu0
      %v4109 = vadd.f32 %v3444, %v4108
      %v4110 = vpop.f32.mrf.mxu0
      %v4111 = vand.u32 %v338, 4294901760
      %4112 = vmatprep.mubr.f32.mxu0 %v4111
      %v4113 = vand.u32 %v337, 4294901760
      %4114 = vmatmul.mubr.f32.gmra.mxu0 %v4113
      %v4115 = vpop.f32.mrf.mxu0
      %v4116 = vadd.f32 %v3455, %v4115
      %v4117 = vpop.f32.mrf.mxu0
      %v4118 = vand.u32 %v340, 4294901760
      %4119 = vmatprep.mubr.f32.mxu0 %v4118
      %v4120 = vand.u32 %v339, 4294901760
      %4121 = vmatmul.mubr.f32.gmra.mxu0 %v4120
      %v4122 = vpop.f32.mrf.mxu0
      %v4123 = vadd.f32 %v3466, %v4122
      %v4124 = vpop.f32.mrf.mxu0
      %v4125 = vand.u32 %v342, 4294901760
      %4126 = vmatprep.mubr.f32.mxu0 %v4125
      %v4127 = vand.u32 %v341, 4294901760
      %4128 = vmatmul.mubr.f32.gmra.mxu0 %v4127
      %v4129 = vpop.f32.mrf.mxu0
      %v4130 = vadd.f32 %v3477, %v4129
      %v4131 = vpop.f32.mrf.mxu0
      %v4132 = vand.u32 %v344, 4294901760
      %4133 = vmatprep.mubr.f32.mxu0 %v4132
      %v4134 = vand.u32 %v343, 4294901760
      %4135 = vmatmul.mubr.f32.gmra.mxu0 %v4134
      %v4136 = vpop.f32.mrf.mxu0
      %v4137 = vadd.f32 %v3488, %v4136
      %v4138 = vpop.f32.mrf.mxu0
      %v4139 = vand.u32 %v346, 4294901760
      %4140 = vmatprep.mubr.f32.mxu0 %v4139
      %v4141 = vand.u32 %v345, 4294901760
      %4142 = vmatmul.mubr.f32.gmra.mxu0 %v4141
      %v4143 = vpop.f32.mrf.mxu0
      %v4144 = vadd.f32 %v3499, %v4143
      %v4145 = vpop.f32.mrf.mxu0
      %v4146 = vand.u32 %v348, 4294901760
      %4147 = vmatprep.mubr.f32.mxu0 %v4146
      %v4148 = vand.u32 %v347, 4294901760
      %4149 = vmatmul.mubr.f32.gmra.mxu0 %v4148
      %v4150 = vpop.f32.mrf.mxu0
      %v4151 = vadd.f32 %v3510, %v4150
      %v4152 = vpop.f32.mrf.mxu0
      %v4153 = vand.u32 %v350, 4294901760
      %4154 = vmatprep.mubr.f32.mxu0 %v4153
      %v4155 = vand.u32 %v349, 4294901760
      %4156 = vmatmul.mubr.f32.gmra.mxu0 %v4155
      %v4157 = vpop.f32.mrf.mxu0
      %v4158 = vadd.f32 %v3521, %v4157
      %v4159 = vpop.f32.mrf.mxu0
      %v4160 = vand.u32 %v352, 4294901760
      %4161 = vmatprep.mubr.f32.mxu0 %v4160
      %v4162 = vand.u32 %v351, 4294901760
      %4163 = vmatmul.mubr.f32.gmra.mxu0 %v4162
      %v4164 = vpop.f32.mrf.mxu0
      %v4165 = vadd.f32 %v3532, %v4164
      %v4166 = vpop.f32.mrf.mxu0
      %v4167 = vand.u32 %v354, 4294901760
      %4168 = vmatprep.mubr.f32.mxu0 %v4167
      %v4169 = vand.u32 %v353, 4294901760
      %4170 = vmatmul.mubr.f32.gmra.mxu0 %v4169
      %v4171 = vpop.f32.mrf.mxu0
      %v4172 = vadd.f32 %v3543, %v4171
      %v4173 = vpop.f32.mrf.mxu0
      %v4174 = vand.u32 %v356, 4294901760
      %4175 = vmatprep.mubr.f32.mxu0 %v4174
      %v4176 = vand.u32 %v355, 4294901760
      %4177 = vmatmul.mubr.f32.gmra.mxu0 %v4176
      %v4178 = vpop.f32.mrf.mxu0
      %v4179 = vadd.f32 %v3554, %v4178
      %v4180 = vpop.f32.mrf.mxu0
      %v4181 = vand.u32 %v358, 4294901760
      %4182 = vmatprep.mubr.f32.mxu0 %v4181
      %v4183 = vand.u32 %v357, 4294901760
      %4184 = vmatmul.mubr.f32.gmra.mxu0 %v4183
      %v4185 = vpop.f32.mrf.mxu0
      %v4186 = vadd.f32 %v3565, %v4185
      %v4187 = vpop.f32.mrf.mxu0
      %v4188 = vand.u32 %v360, 4294901760
      %4189 = vmatprep.mubr.f32.mxu0 %v4188
      %v4190 = vand.u32 %v359, 4294901760
      %4191 = vmatmul.mubr.f32.gmra.mxu0 %v4190
      %v4192 = vpop.f32.mrf.mxu0
      %v4193 = vadd.f32 %v3576, %v4192
      %v4194 = vpop.f32.mrf.mxu0
      %v4195 = vand.u32 %v362, 4294901760
      %4196 = vmatprep.mubr.f32.mxu0 %v4195
      %v4197 = vand.u32 %v361, 4294901760
      %4198 = vmatmul.mubr.f32.gmra.mxu0 %v4197
      %v4199 = vpop.f32.mrf.mxu0
      %v4200 = vadd.f32 %v3587, %v4199
      %v4201 = vpop.f32.mrf.mxu0
      %v4202 = vand.u32 %v364, 4294901760
      %4203 = vmatprep.mubr.f32.mxu0 %v4202
      %v4204 = vand.u32 %v363, 4294901760
      %4205 = vmatmul.mubr.f32.gmra.mxu0 %v4204
      %v4206 = vpop.f32.mrf.mxu0
      %v4207 = vadd.f32 %v3598, %v4206
      %v4208 = vpop.f32.mrf.mxu0
      %4209 = vdwg.mxu0
      %4210 = vmatprep.subr.mxu0 0.0
      %v4211 = vand.u32 %v220, 4294901760
      %4212 = vmatpush1.msra.mxu0 %v4211
      %4213 = vmatprep.subr.mxu0 0.0
      %v4214 = vand.u32 %v219, 4294901760
      %4215 = vmatpush1.msra.mxu0 %v4214
      %4216 = vmatprep.subr.mxu0 0.0
      %v4217 = vand.u32 %v218, 4294901760
      %4218 = vmatpush1.msra.mxu0 %v4217
      %4219 = vmatprep.subr.mxu0 0.0
      %v4220 = vand.u32 %v217, 4294901760
      %4221 = vmatpush1.msra.mxu0 %v4220
      %4222 = vmatprep.subr.mxu0 0.0
      %v4223 = vand.u32 %v216, 4294901760
      %4224 = vmatpush1.msra.mxu0 %v4223
      %4225 = vmatprep.subr.mxu0 0.0
      %v4226 = vand.u32 %v215, 4294901760
      %4227 = vmatpush1.msra.mxu0 %v4226
      %4228 = vmatprep.subr.mxu0 0.0
      %v4229 = vand.u32 %v214, 4294901760
      %4230 = vmatpush1.msra.mxu0 %v4229
      %4231 = vmatprep.subr.mxu0 0.0
      %v4232 = vand.u32 %v213, 4294901760
      %4233 = vmatpush1.msra.mxu0 %v4232
      %4234 = vmatprep.subr.mxu0 0.0
      %v4235 = vand.u32 %v212, 4294901760
      %4236 = vmatpush1.msra.mxu0 %v4235
      %4237 = vmatprep.subr.mxu0 0.0
      %v4238 = vand.u32 %v211, 4294901760
      %4239 = vmatpush1.msra.mxu0 %v4238
      %4240 = vmatprep.subr.mxu0 0.0
      %v4241 = vand.u32 %v210, 4294901760
      %4242 = vmatpush1.msra.mxu0 %v4241
      %4243 = vmatprep.subr.mxu0 0.0
      %v4244 = vand.u32 %v209, 4294901760
      %4245 = vmatpush1.msra.mxu0 %v4244
      %4246 = vmatprep.subr.mxu0 0.0
      %v4247 = vand.u32 %v208, 4294901760
      %4248 = vmatpush1.msra.mxu0 %v4247
      %4249 = vmatprep.subr.mxu0 0.0
      %v4250 = vand.u32 %v207, 4294901760
      %4251 = vmatpush1.msra.mxu0 %v4250
      %4252 = vmatprep.subr.mxu0 0.0
      %v4253 = vand.u32 %v206, 4294901760
      %4254 = vmatpush1.msra.mxu0 %v4253
      %4255 = vmatprep.subr.mxu0 0.0
      %v4256 = vand.u32 %v205, 4294901760
      %4257 = vmatpush1.msra.mxu0 %v4256
      %4258 = vmatprep.subr.mxu0 0.0
      %v4259 = vand.u32 %v236, 4294901760
      %4260 = vmatpush2.msra.mxu0 %v4259
      %4261 = vmatprep.subr.mxu0 0.0
      %v4262 = vand.u32 %v235, 4294901760
      %4263 = vmatpush2.msra.mxu0 %v4262
      %4264 = vmatprep.subr.mxu0 0.0
      %v4265 = vand.u32 %v234, 4294901760
      %4266 = vmatpush2.msra.mxu0 %v4265
      %4267 = vmatprep.subr.mxu0 0.0
      %v4268 = vand.u32 %v233, 4294901760
      %4269 = vmatpush2.msra.mxu0 %v4268
      %4270 = vmatprep.subr.mxu0 0.0
      %v4271 = vand.u32 %v232, 4294901760
      %4272 = vmatpush2.msra.mxu0 %v4271
      %4273 = vmatprep.subr.mxu0 0.0
      %v4274 = vand.u32 %v231, 4294901760
      %4275 = vmatpush2.msra.mxu0 %v4274
      %4276 = vmatprep.subr.mxu0 0.0
      %v4277 = vand.u32 %v230, 4294901760
      %4278 = vmatpush2.msra.mxu0 %v4277
      %4279 = vmatprep.subr.mxu0 0.0
      %v4280 = vand.u32 %v229, 4294901760
      %4281 = vmatpush2.msra.mxu0 %v4280
      %4282 = vmatprep.subr.mxu0 0.0
      %v4283 = vand.u32 %v228, 4294901760
      %4284 = vmatpush2.msra.mxu0 %v4283
      %4285 = vmatprep.subr.mxu0 0.0
      %v4286 = vand.u32 %v227, 4294901760
      %4287 = vmatpush2.msra.mxu0 %v4286
      %4288 = vmatprep.subr.mxu0 0.0
      %v4289 = vand.u32 %v226, 4294901760
      %4290 = vmatpush2.msra.mxu0 %v4289
      %4291 = vmatprep.subr.mxu0 0.0
      %v4292 = vand.u32 %v225, 4294901760
      %4293 = vmatpush2.msra.mxu0 %v4292
      %4294 = vmatprep.subr.mxu0 0.0
      %v4295 = vand.u32 %v224, 4294901760
      %4296 = vmatpush2.msra.mxu0 %v4295
      %4297 = vmatprep.subr.mxu0 0.0
      %v4298 = vand.u32 %v223, 4294901760
      %4299 = vmatpush2.msra.mxu0 %v4298
      %4300 = vmatprep.subr.mxu0 0.0
      %v4301 = vand.u32 %v222, 4294901760
      %4302 = vmatpush2.msra.mxu0 %v4301
      %4303 = vmatprep.subr.mxu0 0.0
      %v4304 = vand.u32 %v221, 4294901760
      %4305 = vmatpush2.msra.mxu0 %v4304
      %v4306 = vand.u32 %v238, 4294901760
      %4307 = vmatprep.mubr.f32.mxu0 %v4306
      %v4308 = vand.u32 %v237, 4294901760
      %4309 = vmatmul.mubr.f32.gmra.mxu0 %v4308
      %v4310 = vpop.f32.mrf.mxu0
      %v4311 = vadd.f32 %v3766, %v4310
      %v4312 = vpop.f32.mrf.mxu0
      %v4313 = vand.u32 %v240, 4294901760
      %4314 = vmatprep.mubr.f32.mxu0 %v4313
      %v4315 = vand.u32 %v239, 4294901760
      %4316 = vmatmul.mubr.f32.gmra.mxu0 %v4315
      %v4317 = vpop.f32.mrf.mxu0
      %v4318 = vadd.f32 %v3773, %v4317
      %v4319 = vpop.f32.mrf.mxu0
      %v4320 = vand.u32 %v242, 4294901760
      %4321 = vmatprep.mubr.f32.mxu0 %v4320
      %v4322 = vand.u32 %v241, 4294901760
      %4323 = vmatmul.mubr.f32.gmra.mxu0 %v4322
      %v4324 = vpop.f32.mrf.mxu0
      %v4325 = vadd.f32 %v3780, %v4324
      %v4326 = vpop.f32.mrf.mxu0
      %v4327 = vand.u32 %v244, 4294901760
      %4328 = vmatprep.mubr.f32.mxu0 %v4327
      %v4329 = vand.u32 %v243, 4294901760
      %4330 = vmatmul.mubr.f32.gmra.mxu0 %v4329
      %v4331 = vpop.f32.mrf.mxu0
      %v4332 = vadd.f32 %v3787, %v4331
      %v4333 = vpop.f32.mrf.mxu0
      %v4334 = vand.u32 %v246, 4294901760
      %4335 = vmatprep.mubr.f32.mxu0 %v4334
      %v4336 = vand.u32 %v245, 4294901760
      %4337 = vmatmul.mubr.f32.gmra.mxu0 %v4336
      %v4338 = vpop.f32.mrf.mxu0
      %v4339 = vadd.f32 %v3794, %v4338
      %v4340 = vpop.f32.mrf.mxu0
      %v4341 = vand.u32 %v248, 4294901760
      %4342 = vmatprep.mubr.f32.mxu0 %v4341
      %v4343 = vand.u32 %v247, 4294901760
      %4344 = vmatmul.mubr.f32.gmra.mxu0 %v4343
      %v4345 = vpop.f32.mrf.mxu0
      %v4346 = vadd.f32 %v3801, %v4345
      %v4347 = vpop.f32.mrf.mxu0
      %v4348 = vand.u32 %v250, 4294901760
      %4349 = vmatprep.mubr.f32.mxu0 %v4348
      %v4350 = vand.u32 %v249, 4294901760
      %4351 = vmatmul.mubr.f32.gmra.mxu0 %v4350
      %v4352 = vpop.f32.mrf.mxu0
      %v4353 = vadd.f32 %v3808, %v4352
      %v4354 = vpop.f32.mrf.mxu0
      %v4355 = vand.u32 %v252, 4294901760
      %4356 = vmatprep.mubr.f32.mxu0 %v4355
      %v4357 = vand.u32 %v251, 4294901760
      %4358 = vmatmul.mubr.f32.gmra.mxu0 %v4357
      %v4359 = vpop.f32.mrf.mxu0
      %v4360 = vadd.f32 %v3815, %v4359
      %v4361 = vpop.f32.mrf.mxu0
      %v4362 = vand.u32 %v254, 4294901760
      %4363 = vmatprep.mubr.f32.mxu0 %v4362
      %v4364 = vand.u32 %v253, 4294901760
      %4365 = vmatmul.mubr.f32.gmra.mxu0 %v4364
      %v4366 = vpop.f32.mrf.mxu0
      %v4367 = vadd.f32 %v3822, %v4366
      %v4368 = vpop.f32.mrf.mxu0
      %v4369 = vand.u32 %v256, 4294901760
      %4370 = vmatprep.mubr.f32.mxu0 %v4369
      %v4371 = vand.u32 %v255, 4294901760
      %4372 = vmatmul.mubr.f32.gmra.mxu0 %v4371
      %v4373 = vpop.f32.mrf.mxu0
      %v4374 = vadd.f32 %v3829, %v4373
      %v4375 = vpop.f32.mrf.mxu0
      %v4376 = vand.u32 %v258, 4294901760
      %4377 = vmatprep.mubr.f32.mxu0 %v4376
      %v4378 = vand.u32 %v257, 4294901760
      %4379 = vmatmul.mubr.f32.gmra.mxu0 %v4378
      %v4380 = vpop.f32.mrf.mxu0
      %v4381 = vadd.f32 %v3836, %v4380
      %v4382 = vpop.f32.mrf.mxu0
      %v4383 = vand.u32 %v260, 4294901760
      %4384 = vmatprep.mubr.f32.mxu0 %v4383
      %v4385 = vand.u32 %v259, 4294901760
      %4386 = vmatmul.mubr.f32.gmra.mxu0 %v4385
      %v4387 = vpop.f32.mrf.mxu0
      %v4388 = vadd.f32 %v3843, %v4387
      %v4389 = vpop.f32.mrf.mxu0
      %v4390 = vand.u32 %v262, 4294901760
      %4391 = vmatprep.mubr.f32.mxu0 %v4390
      %v4392 = vand.u32 %v261, 4294901760
      %4393 = vmatmul.mubr.f32.gmra.mxu0 %v4392
      %v4394 = vpop.f32.mrf.mxu0
      %v4395 = vadd.f32 %v3850, %v4394
      %v4396 = vpop.f32.mrf.mxu0
      %v4397 = vand.u32 %v264, 4294901760
      %4398 = vmatprep.mubr.f32.mxu0 %v4397
      %v4399 = vand.u32 %v263, 4294901760
      %4400 = vmatmul.mubr.f32.gmra.mxu0 %v4399
      %v4401 = vpop.f32.mrf.mxu0
      %v4402 = vadd.f32 %v3857, %v4401
      %v4403 = vpop.f32.mrf.mxu0
      %v4404 = vand.u32 %v266, 4294901760
      %4405 = vmatprep.mubr.f32.mxu0 %v4404
      %v4406 = vand.u32 %v265, 4294901760
      %4407 = vmatmul.mubr.f32.gmra.mxu0 %v4406
      %v4408 = vpop.f32.mrf.mxu0
      %v4409 = vadd.f32 %v3864, %v4408
      %v4410 = vpop.f32.mrf.mxu0
      %v4411 = vand.u32 %v268, 4294901760
      %4412 = vmatprep.mubr.f32.mxu0 %v4411
      %v4413 = vand.u32 %v267, 4294901760
      %4414 = vmatmul.mubr.f32.gmra.mxu0 %v4413
      %v4415 = vpop.f32.mrf.mxu0
      %v4416 = vadd.f32 %v3871, %v4415
      %v4417 = vpop.f32.mrf.mxu0
      %v4418 = vand.u32 %v270, 4294901760
      %4419 = vmatprep.mubr.f32.mxu0 %v4418
      %v4420 = vand.u32 %v269, 4294901760
      %4421 = vmatmul.mubr.f32.gmra.mxu0 %v4420
      %v4422 = vpop.f32.mrf.mxu0
      %v4423 = vadd.f32 %v3878, %v4422
      %v4424 = vpop.f32.mrf.mxu0
      %v4425 = vand.u32 %v272, 4294901760
      %4426 = vmatprep.mubr.f32.mxu0 %v4425
      %v4427 = vand.u32 %v271, 4294901760
      %4428 = vmatmul.mubr.f32.gmra.mxu0 %v4427
      %v4429 = vpop.f32.mrf.mxu0
      %v4430 = vadd.f32 %v3885, %v4429
      %v4431 = vpop.f32.mrf.mxu0
      %v4432 = vand.u32 %v274, 4294901760
      %4433 = vmatprep.mubr.f32.mxu0 %v4432
      %v4434 = vand.u32 %v273, 4294901760
      %4435 = vmatmul.mubr.f32.gmra.mxu0 %v4434
      %v4436 = vpop.f32.mrf.mxu0
      %v4437 = vadd.f32 %v3892, %v4436
      %v4438 = vpop.f32.mrf.mxu0
      %v4439 = vand.u32 %v276, 4294901760
      %4440 = vmatprep.mubr.f32.mxu0 %v4439
      %v4441 = vand.u32 %v275, 4294901760
      %4442 = vmatmul.mubr.f32.gmra.mxu0 %v4441
      %v4443 = vpop.f32.mrf.mxu0
      %v4444 = vadd.f32 %v3899, %v4443
      %v4445 = vpop.f32.mrf.mxu0
      %v4446 = vand.u32 %v278, 4294901760
      %4447 = vmatprep.mubr.f32.mxu0 %v4446
      %v4448 = vand.u32 %v277, 4294901760
      %4449 = vmatmul.mubr.f32.gmra.mxu0 %v4448
      %v4450 = vpop.f32.mrf.mxu0
      %v4451 = vadd.f32 %v3906, %v4450
      %v4452 = vpop.f32.mrf.mxu0
      %v4453 = vand.u32 %v280, 4294901760
      %4454 = vmatprep.mubr.f32.mxu0 %v4453
      %v4455 = vand.u32 %v279, 4294901760
      %4456 = vmatmul.mubr.f32.gmra.mxu0 %v4455
      %v4457 = vpop.f32.mrf.mxu0
      %v4458 = vadd.f32 %v3913, %v4457
      %v4459 = vpop.f32.mrf.mxu0
      %v4460 = vand.u32 %v282, 4294901760
      %4461 = vmatprep.mubr.f32.mxu0 %v4460
      %v4462 = vand.u32 %v281, 4294901760
      %4463 = vmatmul.mubr.f32.gmra.mxu0 %v4462
      %v4464 = vpop.f32.mrf.mxu0
      %v4465 = vadd.f32 %v3920, %v4464
      %v4466 = vpop.f32.mrf.mxu0
      %v4467 = vand.u32 %v284, 4294901760
      %4468 = vmatprep.mubr.f32.mxu0 %v4467
      %v4469 = vand.u32 %v283, 4294901760
      %4470 = vmatmul.mubr.f32.gmra.mxu0 %v4469
      %v4471 = vpop.f32.mrf.mxu0
      %v4472 = vadd.f32 %v3927, %v4471
      %v4473 = vpop.f32.mrf.mxu0
      %v4474 = vand.u32 %v286, 4294901760
      %4475 = vmatprep.mubr.f32.mxu0 %v4474
      %v4476 = vand.u32 %v285, 4294901760
      %4477 = vmatmul.mubr.f32.gmra.mxu0 %v4476
      %v4478 = vpop.f32.mrf.mxu0
      %v4479 = vadd.f32 %v3934, %v4478
      %v4480 = vpop.f32.mrf.mxu0
      %v4481 = vand.u32 %v288, 4294901760
      %4482 = vmatprep.mubr.f32.mxu0 %v4481
      %v4483 = vand.u32 %v287, 4294901760
      %4484 = vmatmul.mubr.f32.gmra.mxu0 %v4483
      %v4485 = vpop.f32.mrf.mxu0
      %v4486 = vadd.f32 %v3941, %v4485
      %v4487 = vpop.f32.mrf.mxu0
      %v4488 = vand.u32 %v290, 4294901760
      %4489 = vmatprep.mubr.f32.mxu0 %v4488
      %v4490 = vand.u32 %v289, 4294901760
      %4491 = vmatmul.mubr.f32.gmra.mxu0 %v4490
      %v4492 = vpop.f32.mrf.mxu0
      %v4493 = vadd.f32 %v3948, %v4492
      %v4494 = vpop.f32.mrf.mxu0
      %v4495 = vand.u32 %v292, 4294901760
      %4496 = vmatprep.mubr.f32.mxu0 %v4495
      %v4497 = vand.u32 %v291, 4294901760
      %4498 = vmatmul.mubr.f32.gmra.mxu0 %v4497
      %v4499 = vpop.f32.mrf.mxu0
      %v4500 = vadd.f32 %v3955, %v4499
      %v4501 = vpop.f32.mrf.mxu0
      %v4502 = vand.u32 %v294, 4294901760
      %4503 = vmatprep.mubr.f32.mxu0 %v4502
      %v4504 = vand.u32 %v293, 4294901760
      %4505 = vmatmul.mubr.f32.gmra.mxu0 %v4504
      %v4506 = vpop.f32.mrf.mxu0
      %v4507 = vadd.f32 %v3962, %v4506
      %v4508 = vpop.f32.mrf.mxu0
      %v4509 = vand.u32 %v296, 4294901760
      %4510 = vmatprep.mubr.f32.mxu0 %v4509
      %v4511 = vand.u32 %v295, 4294901760
      %4512 = vmatmul.mubr.f32.gmra.mxu0 %v4511
      %v4513 = vpop.f32.mrf.mxu0
      %v4514 = vadd.f32 %v3969, %v4513
      %v4515 = vpop.f32.mrf.mxu0
      %v4516 = vand.u32 %v298, 4294901760
      %4517 = vmatprep.mubr.f32.mxu0 %v4516
      %v4518 = vand.u32 %v297, 4294901760
      %4519 = vmatmul.mubr.f32.gmra.mxu0 %v4518
      %v4520 = vpop.f32.mrf.mxu0
      %v4521 = vadd.f32 %v3976, %v4520
      %v4522 = vpop.f32.mrf.mxu0
      %v4523 = vand.u32 %v300, 4294901760
      %4524 = vmatprep.mubr.f32.mxu0 %v4523
      %v4525 = vand.u32 %v299, 4294901760
      %4526 = vmatmul.mubr.f32.gmra.mxu0 %v4525
      %v4527 = vpop.f32.mrf.mxu0
      %v4528 = vadd.f32 %v3983, %v4527
      %v4529 = vpop.f32.mrf.mxu0
      %v4530 = vand.u32 %v302, 4294901760
      %4531 = vmatprep.mubr.f32.mxu0 %v4530
      %v4532 = vand.u32 %v301, 4294901760
      %4533 = vmatmul.mubr.f32.gmra.mxu0 %v4532
      %v4534 = vpop.f32.mrf.mxu0
      %v4535 = vadd.f32 %v3990, %v4534
      %v4536 = vpop.f32.mrf.mxu0
      %v4537 = vand.u32 %v304, 4294901760
      %4538 = vmatprep.mubr.f32.mxu0 %v4537
      %v4539 = vand.u32 %v303, 4294901760
      %4540 = vmatmul.mubr.f32.gmra.mxu0 %v4539
      %v4541 = vpop.f32.mrf.mxu0
      %v4542 = vadd.f32 %v3997, %v4541
      %v4543 = vpop.f32.mrf.mxu0
      %v4544 = vand.u32 %v306, 4294901760
      %4545 = vmatprep.mubr.f32.mxu0 %v4544
      %v4546 = vand.u32 %v305, 4294901760
      %4547 = vmatmul.mubr.f32.gmra.mxu0 %v4546
      %v4548 = vpop.f32.mrf.mxu0
      %v4549 = vadd.f32 %v4004, %v4548
      %v4550 = vpop.f32.mrf.mxu0
      %v4551 = vand.u32 %v308, 4294901760
      %4552 = vmatprep.mubr.f32.mxu0 %v4551
      %v4553 = vand.u32 %v307, 4294901760
      %4554 = vmatmul.mubr.f32.gmra.mxu0 %v4553
      %v4555 = vpop.f32.mrf.mxu0
      %v4556 = vadd.f32 %v4011, %v4555
      %v4557 = vpop.f32.mrf.mxu0
      %v4558 = vand.u32 %v310, 4294901760
      %4559 = vmatprep.mubr.f32.mxu0 %v4558
      %v4560 = vand.u32 %v309, 4294901760
      %4561 = vmatmul.mubr.f32.gmra.mxu0 %v4560
      %v4562 = vpop.f32.mrf.mxu0
      %v4563 = vadd.f32 %v4018, %v4562
      %v4564 = vpop.f32.mrf.mxu0
      %v4565 = vand.u32 %v312, 4294901760
      %4566 = vmatprep.mubr.f32.mxu0 %v4565
      %v4567 = vand.u32 %v311, 4294901760
      %4568 = vmatmul.mubr.f32.gmra.mxu0 %v4567
      %v4569 = vpop.f32.mrf.mxu0
      %v4570 = vadd.f32 %v4025, %v4569
      %v4571 = vpop.f32.mrf.mxu0
      %v4572 = vand.u32 %v314, 4294901760
      %4573 = vmatprep.mubr.f32.mxu0 %v4572
      %v4574 = vand.u32 %v313, 4294901760
      %4575 = vmatmul.mubr.f32.gmra.mxu0 %v4574
      %v4576 = vpop.f32.mrf.mxu0
      %v4577 = vadd.f32 %v4032, %v4576
      %v4578 = vpop.f32.mrf.mxu0
      %v4579 = vand.u32 %v316, 4294901760
      %4580 = vmatprep.mubr.f32.mxu0 %v4579
      %v4581 = vand.u32 %v315, 4294901760
      %4582 = vmatmul.mubr.f32.gmra.mxu0 %v4581
      %v4583 = vpop.f32.mrf.mxu0
      %v4584 = vadd.f32 %v4039, %v4583
      %v4585 = vpop.f32.mrf.mxu0
      %v4586 = vand.u32 %v318, 4294901760
      %4587 = vmatprep.mubr.f32.mxu0 %v4586
      %v4588 = vand.u32 %v317, 4294901760
      %4589 = vmatmul.mubr.f32.gmra.mxu0 %v4588
      %v4590 = vpop.f32.mrf.mxu0
      %v4591 = vadd.f32 %v4046, %v4590
      %v4592 = vpop.f32.mrf.mxu0
      %v4593 = vand.u32 %v320, 4294901760
      %4594 = vmatprep.mubr.f32.mxu0 %v4593
      %v4595 = vand.u32 %v319, 4294901760
      %4596 = vmatmul.mubr.f32.gmra.mxu0 %v4595
      %v4597 = vpop.f32.mrf.mxu0
      %v4598 = vadd.f32 %v4053, %v4597
      %v4599 = vpop.f32.mrf.mxu0
      %v4600 = vand.u32 %v322, 4294901760
      %4601 = vmatprep.mubr.f32.mxu0 %v4600
      %v4602 = vand.u32 %v321, 4294901760
      %4603 = vmatmul.mubr.f32.gmra.mxu0 %v4602
      %v4604 = vpop.f32.mrf.mxu0
      %v4605 = vadd.f32 %v4060, %v4604
      %v4606 = vpop.f32.mrf.mxu0
      %v4607 = vand.u32 %v324, 4294901760
      %4608 = vmatprep.mubr.f32.mxu0 %v4607
      %v4609 = vand.u32 %v323, 4294901760
      %4610 = vmatmul.mubr.f32.gmra.mxu0 %v4609
      %v4611 = vpop.f32.mrf.mxu0
      %v4612 = vadd.f32 %v4067, %v4611
      %v4613 = vpop.f32.mrf.mxu0
      %v4614 = vand.u32 %v326, 4294901760
      %4615 = vmatprep.mubr.f32.mxu0 %v4614
      %v4616 = vand.u32 %v325, 4294901760
      %4617 = vmatmul.mubr.f32.gmra.mxu0 %v4616
      %v4618 = vpop.f32.mrf.mxu0
      %v4619 = vadd.f32 %v4074, %v4618
      %v4620 = vpop.f32.mrf.mxu0
      %v4621 = vand.u32 %v328, 4294901760
      %4622 = vmatprep.mubr.f32.mxu0 %v4621
      %v4623 = vand.u32 %v327, 4294901760
      %4624 = vmatmul.mubr.f32.gmra.mxu0 %v4623
      %v4625 = vpop.f32.mrf.mxu0
      %v4626 = vadd.f32 %v4081, %v4625
      %v4627 = vpop.f32.mrf.mxu0
      %v4628 = vand.u32 %v330, 4294901760
      %4629 = vmatprep.mubr.f32.mxu0 %v4628
      %v4630 = vand.u32 %v329, 4294901760
      %4631 = vmatmul.mubr.f32.gmra.mxu0 %v4630
      %v4632 = vpop.f32.mrf.mxu0
      %v4633 = vadd.f32 %v4088, %v4632
      %v4634 = vpop.f32.mrf.mxu0
      %v4635 = vand.u32 %v332, 4294901760
      %4636 = vmatprep.mubr.f32.mxu0 %v4635
      %v4637 = vand.u32 %v331, 4294901760
      %4638 = vmatmul.mubr.f32.gmra.mxu0 %v4637
      %v4639 = vpop.f32.mrf.mxu0
      %v4640 = vadd.f32 %v4095, %v4639
      %v4641 = vpop.f32.mrf.mxu0
      %v4642 = vand.u32 %v334, 4294901760
      %4643 = vmatprep.mubr.f32.mxu0 %v4642
      %v4644 = vand.u32 %v333, 4294901760
      %4645 = vmatmul.mubr.f32.gmra.mxu0 %v4644
      %v4646 = vpop.f32.mrf.mxu0
      %v4647 = vadd.f32 %v4102, %v4646
      %v4648 = vpop.f32.mrf.mxu0
      %v4649 = vand.u32 %v336, 4294901760
      %4650 = vmatprep.mubr.f32.mxu0 %v4649
      %v4651 = vand.u32 %v335, 4294901760
      %4652 = vmatmul.mubr.f32.gmra.mxu0 %v4651
      %v4653 = vpop.f32.mrf.mxu0
      %v4654 = vadd.f32 %v4109, %v4653
      %v4655 = vpop.f32.mrf.mxu0
      %v4656 = vand.u32 %v338, 4294901760
      %4657 = vmatprep.mubr.f32.mxu0 %v4656
      %v4658 = vand.u32 %v337, 4294901760
      %4659 = vmatmul.mubr.f32.gmra.mxu0 %v4658
      %v4660 = vpop.f32.mrf.mxu0
      %v4661 = vadd.f32 %v4116, %v4660
      %v4662 = vpop.f32.mrf.mxu0
      %v4663 = vand.u32 %v340, 4294901760
      %4664 = vmatprep.mubr.f32.mxu0 %v4663
      %v4665 = vand.u32 %v339, 4294901760
      %4666 = vmatmul.mubr.f32.gmra.mxu0 %v4665
      %v4667 = vpop.f32.mrf.mxu0
      %v4668 = vadd.f32 %v4123, %v4667
      %v4669 = vpop.f32.mrf.mxu0
      %v4670 = vand.u32 %v342, 4294901760
      %4671 = vmatprep.mubr.f32.mxu0 %v4670
      %v4672 = vand.u32 %v341, 4294901760
      %4673 = vmatmul.mubr.f32.gmra.mxu0 %v4672
      %v4674 = vpop.f32.mrf.mxu0
      %v4675 = vadd.f32 %v4130, %v4674
      %v4676 = vpop.f32.mrf.mxu0
      %v4677 = vand.u32 %v344, 4294901760
      %4678 = vmatprep.mubr.f32.mxu0 %v4677
      %v4679 = vand.u32 %v343, 4294901760
      %4680 = vmatmul.mubr.f32.gmra.mxu0 %v4679
      %v4681 = vpop.f32.mrf.mxu0
      %v4682 = vadd.f32 %v4137, %v4681
      %v4683 = vpop.f32.mrf.mxu0
      %v4684 = vand.u32 %v346, 4294901760
      %4685 = vmatprep.mubr.f32.mxu0 %v4684
      %v4686 = vand.u32 %v345, 4294901760
      %4687 = vmatmul.mubr.f32.gmra.mxu0 %v4686
      %v4688 = vpop.f32.mrf.mxu0
      %v4689 = vadd.f32 %v4144, %v4688
      %v4690 = vpop.f32.mrf.mxu0
      %v4691 = vand.u32 %v348, 4294901760
      %4692 = vmatprep.mubr.f32.mxu0 %v4691
      %v4693 = vand.u32 %v347, 4294901760
      %4694 = vmatmul.mubr.f32.gmra.mxu0 %v4693
      %v4695 = vpop.f32.mrf.mxu0
      %v4696 = vadd.f32 %v4151, %v4695
      %v4697 = vpop.f32.mrf.mxu0
      %v4698 = vand.u32 %v350, 4294901760
      %4699 = vmatprep.mubr.f32.mxu0 %v4698
      %v4700 = vand.u32 %v349, 4294901760
      %4701 = vmatmul.mubr.f32.gmra.mxu0 %v4700
      %v4702 = vpop.f32.mrf.mxu0
      %v4703 = vadd.f32 %v4158, %v4702
      %v4704 = vpop.f32.mrf.mxu0
      %v4705 = vand.u32 %v352, 4294901760
      %4706 = vmatprep.mubr.f32.mxu0 %v4705
      %v4707 = vand.u32 %v351, 4294901760
      %4708 = vmatmul.mubr.f32.gmra.mxu0 %v4707
      %v4709 = vpop.f32.mrf.mxu0
      %v4710 = vadd.f32 %v4165, %v4709
      %v4711 = vpop.f32.mrf.mxu0
      %v4712 = vand.u32 %v354, 4294901760
      %4713 = vmatprep.mubr.f32.mxu0 %v4712
      %v4714 = vand.u32 %v353, 4294901760
      %4715 = vmatmul.mubr.f32.gmra.mxu0 %v4714
      %v4716 = vpop.f32.mrf.mxu0
      %v4717 = vadd.f32 %v4172, %v4716
      %v4718 = vpop.f32.mrf.mxu0
      %v4719 = vand.u32 %v356, 4294901760
      %4720 = vmatprep.mubr.f32.mxu0 %v4719
      %v4721 = vand.u32 %v355, 4294901760
      %4722 = vmatmul.mubr.f32.gmra.mxu0 %v4721
      %v4723 = vpop.f32.mrf.mxu0
      %v4724 = vadd.f32 %v4179, %v4723
      %v4725 = vpop.f32.mrf.mxu0
      %v4726 = vand.u32 %v358, 4294901760
      %4727 = vmatprep.mubr.f32.mxu0 %v4726
      %v4728 = vand.u32 %v357, 4294901760
      %4729 = vmatmul.mubr.f32.gmra.mxu0 %v4728
      %v4730 = vpop.f32.mrf.mxu0
      %v4731 = vadd.f32 %v4186, %v4730
      %v4732 = vpop.f32.mrf.mxu0
      %v4733 = vand.u32 %v360, 4294901760
      %4734 = vmatprep.mubr.f32.mxu0 %v4733
      %v4735 = vand.u32 %v359, 4294901760
      %4736 = vmatmul.mubr.f32.gmra.mxu0 %v4735
      %v4737 = vpop.f32.mrf.mxu0
      %v4738 = vadd.f32 %v4193, %v4737
      %v4739 = vpop.f32.mrf.mxu0
      %v4740 = vand.u32 %v362, 4294901760
      %4741 = vmatprep.mubr.f32.mxu0 %v4740
      %v4742 = vand.u32 %v361, 4294901760
      %4743 = vmatmul.mubr.f32.gmra.mxu0 %v4742
      %v4744 = vpop.f32.mrf.mxu0
      %v4745 = vadd.f32 %v4200, %v4744
      %v4746 = vpop.f32.mrf.mxu0
      %v4747 = vand.u32 %v364, 4294901760
      %4748 = vmatprep.mubr.f32.mxu0 %v4747
      %v4749 = vand.u32 %v363, 4294901760
      %4750 = vmatmul.mubr.f32.gmra.mxu0 %v4749
      %v4751 = vpop.f32.mrf.mxu0
      %v4752 = vadd.f32 %v4207, %v4751
      %v4753 = vpop.f32.mrf.mxu0
      %4754 = vdwg.mxu0
      %v4755 = vld [vmem:[%s2] sm:$0xff]
      %vm4756 = vcmask 64512
      %v4758 = vsel %vm4756, %v4311, 0
      %v4761 = vsel %vm4756, %v4318, 0
      %v4764 = vsel %vm4756, %v4325, 0
      %v4767 = vsel %vm4756, %v4332, 0
      %v4770 = vsel %vm4756, %v4339, 0
      %v4773 = vsel %vm4756, %v4346, 0
      %v4776 = vsel %vm4756, %v4353, 0
      %v4779 = vsel %vm4756, %v4360, 0
      %v4782 = vsel %vm4756, %v4367, 0
      %v4785 = vsel %vm4756, %v4374, 0
      %v4788 = vsel %vm4756, %v4381, 0
      %v4791 = vsel %vm4756, %v4388, 0
      %v4794 = vsel %vm4756, %v4395, 0
      %v4797 = vsel %vm4756, %v4402, 0
      %v4800 = vsel %vm4756, %v4409, 0
      %v4803 = vsel %vm4756, %v4416, 0
      %v4806 = vsel %vm4756, %v4423, 0
      %v4809 = vsel %vm4756, %v4430, 0
      %v4812 = vsel %vm4756, %v4437, 0
      %v4815 = vsel %vm4756, %v4444, 0
      %v4818 = vsel %vm4756, %v4451, 0
      %v4821 = vsel %vm4756, %v4458, 0
      %v4824 = vsel %vm4756, %v4465, 0
      %v4827 = vsel %vm4756, %v4472, 0
      %v4830 = vsel %vm4756, %v4479, 0
      %v4833 = vsel %vm4756, %v4486, 0
      %v4836 = vsel %vm4756, %v4493, 0
      %v4839 = vsel %vm4756, %v4500, 0
      %v4842 = vsel %vm4756, %v4507, 0
      %v4845 = vsel %vm4756, %v4514, 0
      %v4848 = vsel %vm4756, %v4521, 0
      %v4851 = vsel %vm4756, %v4528, 0
      %v4854 = vsel %vm4756, %v4535, 0
      %v4857 = vsel %vm4756, %v4542, 0
      %v4860 = vsel %vm4756, %v4549, 0
      %v4863 = vsel %vm4756, %v4556, 0
      %v4866 = vsel %vm4756, %v4563, 0
      %v4869 = vsel %vm4756, %v4570, 0
      %v4872 = vsel %vm4756, %v4577, 0
      %v4875 = vsel %vm4756, %v4584, 0
      %v4878 = vsel %vm4756, %v4591, 0
      %v4881 = vsel %vm4756, %v4598, 0
      %v4884 = vsel %vm4756, %v4605, 0
      %v4887 = vsel %vm4756, %v4612, 0
      %v4890 = vsel %vm4756, %v4619, 0
      %v4893 = vsel %vm4756, %v4626, 0
      %v4896 = vsel %vm4756, %v4633, 0
      %v4899 = vsel %vm4756, %v4640, 0
      %v4902 = vsel %vm4756, %v4647, 0
      %v4905 = vsel %vm4756, %v4654, 0
      %v4908 = vsel %vm4756, %v4661, 0
      %v4911 = vsel %vm4756, %v4668, 0
      %v4914 = vsel %vm4756, %v4675, 0
      %v4917 = vsel %vm4756, %v4682, 0
      %v4920 = vsel %vm4756, %v4689, 0
      %v4923 = vsel %vm4756, %v4696, 0
      %v4926 = vsel %vm4756, %v4703, 0
      %v4929 = vsel %vm4756, %v4710, 0
      %v4932 = vsel %vm4756, %v4717, 0
      %v4935 = vsel %vm4756, %v4724, 0
      %v4938 = vsel %vm4756, %v4731, 0
      %v4941 = vsel %vm4756, %v4738, 0
      %v4944 = vsel %vm4756, %v4745, 0
      %v4947 = vsel %vm4756, %v4752, 0
      %4949 = vmatprep.subr.mxu0 0.0
      %4950 = vmatpush1.msra.mxu0 0.0
      %4951 = vmatprep.subr.mxu0 0.0
      %4952 = vmatpush1.msra.mxu0 0.0
      %4953 = vmatprep.subr.mxu0 0.0
      %4954 = vmatpush1.msra.mxu0 0.0
      %4955 = vmatprep.subr.mxu0 0.0
      %4956 = vmatpush1.msra.mxu0 0.0
      %4957 = vmatprep.subr.mxu0 0.0
      %4958 = vmatpush1.msra.mxu0 0.0
      %4959 = vmatprep.subr.mxu0 0.0
      %4960 = vmatpush1.msra.mxu0 0.0
      %4961 = vmatprep.subr.mxu0 0.0
      %4962 = vmatpush1.msra.mxu0 0.0
      %4963 = vmatprep.subr.mxu0 0.0
      %4964 = vmatpush1.msra.mxu0 0.0
      %4965 = vmatprep.subr.mxu0 0.0
      %4966 = vmatpush1.msra.mxu0 0.0
      %4967 = vmatprep.subr.mxu0 0.0
      %4968 = vmatpush1.msra.mxu0 0.0
      %4969 = vmatprep.subr.mxu0 0.0
      %4970 = vmatpush1.msra.mxu0 0.0
      %4971 = vmatprep.subr.mxu0 0.0
      %4972 = vmatpush1.msra.mxu0 0.0
      %4973 = vmatprep.subr.mxu0 0.0
      %4974 = vmatpush1.msra.mxu0 0.0
      %4975 = vmatprep.subr.mxu0 0.0
      %4976 = vmatpush1.msra.mxu0 0.0
      %4977 = vmatprep.subr.mxu0 0.0
      %4978 = vmatpush1.msra.mxu0 0.0
      %4979 = vmatprep.subr.mxu0 0.0
      %v4980 = vand.u32 %v4755, 4294901760
      %4981 = vmatpush1.msra.mxu0 %v4980
      %4982 = vmatprep.subr.mxu0 0.0
      %4983 = vmatpush2.msra.mxu0 0.0
      %4984 = vmatprep.subr.mxu0 0.0
      %4985 = vmatpush2.msra.mxu0 0.0
      %4986 = vmatprep.subr.mxu0 0.0
      %4987 = vmatpush2.msra.mxu0 0.0
      %4988 = vmatprep.subr.mxu0 0.0
      %4989 = vmatpush2.msra.mxu0 0.0
      %4990 = vmatprep.subr.mxu0 0.0
      %4991 = vmatpush2.msra.mxu0 0.0
      %4992 = vmatprep.subr.mxu0 0.0
      %4993 = vmatpush2.msra.mxu0 0.0
      %4994 = vmatprep.subr.mxu0 0.0
      %4995 = vmatpush2.msra.mxu0 0.0
      %4996 = vmatprep.subr.mxu0 0.0
      %4997 = vmatpush2.msra.mxu0 0.0
      %4998 = vmatprep.subr.mxu0 0.0
      %4999 = vmatpush2.msra.mxu0 0.0
      %5000 = vmatprep.subr.mxu0 0.0
      %5001 = vmatpush2.msra.mxu0 0.0
      %5002 = vmatprep.subr.mxu0 0.0
      %5003 = vmatpush2.msra.mxu0 0.0
      %5004 = vmatprep.subr.mxu0 0.0
      %5005 = vmatpush2.msra.mxu0 0.0
      %5006 = vmatprep.subr.mxu0 0.0
      %5007 = vmatpush2.msra.mxu0 0.0
      %5008 = vmatprep.subr.mxu0 0.0
      %5009 = vmatpush2.msra.mxu0 0.0
      %5010 = vmatprep.subr.mxu0 0.0
      %5011 = vmatpush2.msra.mxu0 0.0
      %5012 = vmatprep.subr.mxu0 0.0
      %5013 = vmatpush2.msra.mxu0 0.0
      %5014 = vmatprep.mubr.f32.mxu0 0.0
      %v5015 = vand.u32 %v4758, 4294901760
      %v5016 = vsub.f32 %v4758, %v5015
      %v5017 = vand.u32 %v5016, 4294901760
      %v5018 = vsub.f32 %v5016, %v5017
      %v5019 = vand.u32 %v5018, 4294901760
      %5020 = vmatmul.mubr.f32.gmra.mxu0 %v5019
      %v5021 = vpop.f32.mrf.mxu0
      %v5022 = vadd.f32 0.0, %v5021
      %v5023 = vpop.f32.mrf.mxu0
      %5024 = vmatprep.mubr.f32.mxu0 0.0
      %v5025 = vand.u32 %v4761, 4294901760
      %v5026 = vsub.f32 %v4761, %v5025
      %v5027 = vand.u32 %v5026, 4294901760
      %v5028 = vsub.f32 %v5026, %v5027
      %v5029 = vand.u32 %v5028, 4294901760
      %5030 = vmatmul.mubr.f32.gmra.mxu0 %v5029
      %v5031 = vpop.f32.mrf.mxu0
      %v5032 = vadd.f32 0.0, %v5031
      %v5033 = vpop.f32.mrf.mxu0
      %5034 = vmatprep.mubr.f32.mxu0 0.0
      %v5035 = vand.u32 %v4764, 4294901760
      %v5036 = vsub.f32 %v4764, %v5035
      %v5037 = vand.u32 %v5036, 4294901760
      %v5038 = vsub.f32 %v5036, %v5037
      %v5039 = vand.u32 %v5038, 4294901760
      %5040 = vmatmul.mubr.f32.gmra.mxu0 %v5039
      %v5041 = vpop.f32.mrf.mxu0
      %v5042 = vadd.f32 0.0, %v5041
      %v5043 = vpop.f32.mrf.mxu0
      %5044 = vmatprep.mubr.f32.mxu0 0.0
      %v5045 = vand.u32 %v4767, 4294901760
      %v5046 = vsub.f32 %v4767, %v5045
      %v5047 = vand.u32 %v5046, 4294901760
      %v5048 = vsub.f32 %v5046, %v5047
      %v5049 = vand.u32 %v5048, 4294901760
      %5050 = vmatmul.mubr.f32.gmra.mxu0 %v5049
      %v5051 = vpop.f32.mrf.mxu0
      %v5052 = vadd.f32 0.0, %v5051
      %v5053 = vpop.f32.mrf.mxu0
      %5054 = vmatprep.mubr.f32.mxu0 0.0
      %v5055 = vand.u32 %v4770, 4294901760
      %v5056 = vsub.f32 %v4770, %v5055
      %v5057 = vand.u32 %v5056, 4294901760
      %v5058 = vsub.f32 %v5056, %v5057
      %v5059 = vand.u32 %v5058, 4294901760
      %5060 = vmatmul.mubr.f32.gmra.mxu0 %v5059
      %v5061 = vpop.f32.mrf.mxu0
      %v5062 = vadd.f32 0.0, %v5061
      %v5063 = vpop.f32.mrf.mxu0
      %5064 = vmatprep.mubr.f32.mxu0 0.0
      %v5065 = vand.u32 %v4773, 4294901760
      %v5066 = vsub.f32 %v4773, %v5065
      %v5067 = vand.u32 %v5066, 4294901760
      %v5068 = vsub.f32 %v5066, %v5067
      %v5069 = vand.u32 %v5068, 4294901760
      %5070 = vmatmul.mubr.f32.gmra.mxu0 %v5069
      %v5071 = vpop.f32.mrf.mxu0
      %v5072 = vadd.f32 0.0, %v5071
      %v5073 = vpop.f32.mrf.mxu0
      %5074 = vmatprep.mubr.f32.mxu0 0.0
      %v5075 = vand.u32 %v4776, 4294901760
      %v5076 = vsub.f32 %v4776, %v5075
      %v5077 = vand.u32 %v5076, 4294901760
      %v5078 = vsub.f32 %v5076, %v5077
      %v5079 = vand.u32 %v5078, 4294901760
      %5080 = vmatmul.mubr.f32.gmra.mxu0 %v5079
      %v5081 = vpop.f32.mrf.mxu0
      %v5082 = vadd.f32 0.0, %v5081
      %v5083 = vpop.f32.mrf.mxu0
      %5084 = vmatprep.mubr.f32.mxu0 0.0
      %v5085 = vand.u32 %v4779, 4294901760
      %v5086 = vsub.f32 %v4779, %v5085
      %v5087 = vand.u32 %v5086, 4294901760
      %v5088 = vsub.f32 %v5086, %v5087
      %v5089 = vand.u32 %v5088, 4294901760
      %5090 = vmatmul.mubr.f32.gmra.mxu0 %v5089
      %v5091 = vpop.f32.mrf.mxu0
      %v5092 = vadd.f32 0.0, %v5091
      %v5093 = vpop.f32.mrf.mxu0
      %5094 = vmatprep.mubr.f32.mxu0 0.0
      %v5095 = vand.u32 %v4782, 4294901760
      %v5096 = vsub.f32 %v4782, %v5095
      %v5097 = vand.u32 %v5096, 4294901760
      %v5098 = vsub.f32 %v5096, %v5097
      %v5099 = vand.u32 %v5098, 4294901760
      %5100 = vmatmul.mubr.f32.gmra.mxu0 %v5099
      %v5101 = vpop.f32.mrf.mxu0
      %v5102 = vadd.f32 0.0, %v5101
      %v5103 = vpop.f32.mrf.mxu0
      %5104 = vmatprep.mubr.f32.mxu0 0.0
      %v5105 = vand.u32 %v4785, 4294901760
      %v5106 = vsub.f32 %v4785, %v5105
      %v5107 = vand.u32 %v5106, 4294901760
      %v5108 = vsub.f32 %v5106, %v5107
      %v5109 = vand.u32 %v5108, 4294901760
      %5110 = vmatmul.mubr.f32.gmra.mxu0 %v5109
      %v5111 = vpop.f32.mrf.mxu0
      %v5112 = vadd.f32 0.0, %v5111
      %v5113 = vpop.f32.mrf.mxu0
      %5114 = vmatprep.mubr.f32.mxu0 0.0
      %v5115 = vand.u32 %v4788, 4294901760
      %v5116 = vsub.f32 %v4788, %v5115
      %v5117 = vand.u32 %v5116, 4294901760
      %v5118 = vsub.f32 %v5116, %v5117
      %v5119 = vand.u32 %v5118, 4294901760
      %5120 = vmatmul.mubr.f32.gmra.mxu0 %v5119
      %v5121 = vpop.f32.mrf.mxu0
      %v5122 = vadd.f32 0.0, %v5121
      %v5123 = vpop.f32.mrf.mxu0
      %5124 = vmatprep.mubr.f32.mxu0 0.0
      %v5125 = vand.u32 %v4791, 4294901760
      %v5126 = vsub.f32 %v4791, %v5125
      %v5127 = vand.u32 %v5126, 4294901760
      %v5128 = vsub.f32 %v5126, %v5127
      %v5129 = vand.u32 %v5128, 4294901760
      %5130 = vmatmul.mubr.f32.gmra.mxu0 %v5129
      %v5131 = vpop.f32.mrf.mxu0
      %v5132 = vadd.f32 0.0, %v5131
      %v5133 = vpop.f32.mrf.mxu0
      %5134 = vmatprep.mubr.f32.mxu0 0.0
      %v5135 = vand.u32 %v4794, 4294901760
      %v5136 = vsub.f32 %v4794, %v5135
      %v5137 = vand.u32 %v5136, 4294901760
      %v5138 = vsub.f32 %v5136, %v5137
      %v5139 = vand.u32 %v5138, 4294901760
      %5140 = vmatmul.mubr.f32.gmra.mxu0 %v5139
      %v5141 = vpop.f32.mrf.mxu0
      %v5142 = vadd.f32 0.0, %v5141
      %v5143 = vpop.f32.mrf.mxu0
      %5144 = vmatprep.mubr.f32.mxu0 0.0
      %v5145 = vand.u32 %v4797, 4294901760
      %v5146 = vsub.f32 %v4797, %v5145
      %v5147 = vand.u32 %v5146, 4294901760
      %v5148 = vsub.f32 %v5146, %v5147
      %v5149 = vand.u32 %v5148, 4294901760
      %5150 = vmatmul.mubr.f32.gmra.mxu0 %v5149
      %v5151 = vpop.f32.mrf.mxu0
      %v5152 = vadd.f32 0.0, %v5151
      %v5153 = vpop.f32.mrf.mxu0
      %5154 = vmatprep.mubr.f32.mxu0 0.0
      %v5155 = vand.u32 %v4800, 4294901760
      %v5156 = vsub.f32 %v4800, %v5155
      %v5157 = vand.u32 %v5156, 4294901760
      %v5158 = vsub.f32 %v5156, %v5157
      %v5159 = vand.u32 %v5158, 4294901760
      %5160 = vmatmul.mubr.f32.gmra.mxu0 %v5159
      %v5161 = vpop.f32.mrf.mxu0
      %v5162 = vadd.f32 0.0, %v5161
      %v5163 = vpop.f32.mrf.mxu0
      %5164 = vmatprep.mubr.f32.mxu0 0.0
      %v5165 = vand.u32 %v4803, 4294901760
      %v5166 = vsub.f32 %v4803, %v5165
      %v5167 = vand.u32 %v5166, 4294901760
      %v5168 = vsub.f32 %v5166, %v5167
      %v5169 = vand.u32 %v5168, 4294901760
      %5170 = vmatmul.mubr.f32.gmra.mxu0 %v5169
      %v5171 = vpop.f32.mrf.mxu0
      %v5172 = vadd.f32 0.0, %v5171
      %v5173 = vpop.f32.mrf.mxu0
      %5174 = vmatprep.mubr.f32.mxu0 0.0
      %v5175 = vand.u32 %v4806, 4294901760
      %v5176 = vsub.f32 %v4806, %v5175
      %v5177 = vand.u32 %v5176, 4294901760
      %v5178 = vsub.f32 %v5176, %v5177
      %v5179 = vand.u32 %v5178, 4294901760
      %5180 = vmatmul.mubr.f32.gmra.mxu0 %v5179
      %v5181 = vpop.f32.mrf.mxu0
      %v5182 = vadd.f32 0.0, %v5181
      %v5183 = vpop.f32.mrf.mxu0
      %5184 = vmatprep.mubr.f32.mxu0 0.0
      %v5185 = vand.u32 %v4809, 4294901760
      %v5186 = vsub.f32 %v4809, %v5185
      %v5187 = vand.u32 %v5186, 4294901760
      %v5188 = vsub.f32 %v5186, %v5187
      %v5189 = vand.u32 %v5188, 4294901760
      %5190 = vmatmul.mubr.f32.gmra.mxu0 %v5189
      %v5191 = vpop.f32.mrf.mxu0
      %v5192 = vadd.f32 0.0, %v5191
      %v5193 = vpop.f32.mrf.mxu0
      %5194 = vmatprep.mubr.f32.mxu0 0.0
      %v5195 = vand.u32 %v4812, 4294901760
      %v5196 = vsub.f32 %v4812, %v5195
      %v5197 = vand.u32 %v5196, 4294901760
      %v5198 = vsub.f32 %v5196, %v5197
      %v5199 = vand.u32 %v5198, 4294901760
      %5200 = vmatmul.mubr.f32.gmra.mxu0 %v5199
      %v5201 = vpop.f32.mrf.mxu0
      %v5202 = vadd.f32 0.0, %v5201
      %v5203 = vpop.f32.mrf.mxu0
      %5204 = vmatprep.mubr.f32.mxu0 0.0
      %v5205 = vand.u32 %v4815, 4294901760
      %v5206 = vsub.f32 %v4815, %v5205
      %v5207 = vand.u32 %v5206, 4294901760
      %v5208 = vsub.f32 %v5206, %v5207
      %v5209 = vand.u32 %v5208, 4294901760
      %5210 = vmatmul.mubr.f32.gmra.mxu0 %v5209
      %v5211 = vpop.f32.mrf.mxu0
      %v5212 = vadd.f32 0.0, %v5211
      %v5213 = vpop.f32.mrf.mxu0
      %5214 = vmatprep.mubr.f32.mxu0 0.0
      %v5215 = vand.u32 %v4818, 4294901760
      %v5216 = vsub.f32 %v4818, %v5215
      %v5217 = vand.u32 %v5216, 4294901760
      %v5218 = vsub.f32 %v5216, %v5217
      %v5219 = vand.u32 %v5218, 4294901760
      %5220 = vmatmul.mubr.f32.gmra.mxu0 %v5219
      %v5221 = vpop.f32.mrf.mxu0
      %v5222 = vadd.f32 0.0, %v5221
      %v5223 = vpop.f32.mrf.mxu0
      %5224 = vmatprep.mubr.f32.mxu0 0.0
      %v5225 = vand.u32 %v4821, 4294901760
      %v5226 = vsub.f32 %v4821, %v5225
      %v5227 = vand.u32 %v5226, 4294901760
      %v5228 = vsub.f32 %v5226, %v5227
      %v5229 = vand.u32 %v5228, 4294901760
      %5230 = vmatmul.mubr.f32.gmra.mxu0 %v5229
      %v5231 = vpop.f32.mrf.mxu0
      %v5232 = vadd.f32 0.0, %v5231
      %v5233 = vpop.f32.mrf.mxu0
      %5234 = vmatprep.mubr.f32.mxu0 0.0
      %v5235 = vand.u32 %v4824, 4294901760
      %v5236 = vsub.f32 %v4824, %v5235
      %v5237 = vand.u32 %v5236, 4294901760
      %v5238 = vsub.f32 %v5236, %v5237
      %v5239 = vand.u32 %v5238, 4294901760
      %5240 = vmatmul.mubr.f32.gmra.mxu0 %v5239
      %v5241 = vpop.f32.mrf.mxu0
      %v5242 = vadd.f32 0.0, %v5241
      %v5243 = vpop.f32.mrf.mxu0
      %5244 = vmatprep.mubr.f32.mxu0 0.0
      %v5245 = vand.u32 %v4827, 4294901760
      %v5246 = vsub.f32 %v4827, %v5245
      %v5247 = vand.u32 %v5246, 4294901760
      %v5248 = vsub.f32 %v5246, %v5247
      %v5249 = vand.u32 %v5248, 4294901760
      %5250 = vmatmul.mubr.f32.gmra.mxu0 %v5249
      %v5251 = vpop.f32.mrf.mxu0
      %v5252 = vadd.f32 0.0, %v5251
      %v5253 = vpop.f32.mrf.mxu0
      %5254 = vmatprep.mubr.f32.mxu0 0.0
      %v5255 = vand.u32 %v4830, 4294901760
      %v5256 = vsub.f32 %v4830, %v5255
      %v5257 = vand.u32 %v5256, 4294901760
      %v5258 = vsub.f32 %v5256, %v5257
      %v5259 = vand.u32 %v5258, 4294901760
      %5260 = vmatmul.mubr.f32.gmra.mxu0 %v5259
      %v5261 = vpop.f32.mrf.mxu0
      %v5262 = vadd.f32 0.0, %v5261
      %v5263 = vpop.f32.mrf.mxu0
      %5264 = vmatprep.mubr.f32.mxu0 0.0
      %v5265 = vand.u32 %v4833, 4294901760
      %v5266 = vsub.f32 %v4833, %v5265
      %v5267 = vand.u32 %v5266, 4294901760
      %v5268 = vsub.f32 %v5266, %v5267
      %v5269 = vand.u32 %v5268, 4294901760
      %5270 = vmatmul.mubr.f32.gmra.mxu0 %v5269
      %v5271 = vpop.f32.mrf.mxu0
      %v5272 = vadd.f32 0.0, %v5271
      %v5273 = vpop.f32.mrf.mxu0
      %5274 = vmatprep.mubr.f32.mxu0 0.0
      %v5275 = vand.u32 %v4836, 4294901760
      %v5276 = vsub.f32 %v4836, %v5275
      %v5277 = vand.u32 %v5276, 4294901760
      %v5278 = vsub.f32 %v5276, %v5277
      %v5279 = vand.u32 %v5278, 4294901760
      %5280 = vmatmul.mubr.f32.gmra.mxu0 %v5279
      %v5281 = vpop.f32.mrf.mxu0
      %v5282 = vadd.f32 0.0, %v5281
      %v5283 = vpop.f32.mrf.mxu0
      %5284 = vmatprep.mubr.f32.mxu0 0.0
      %v5285 = vand.u32 %v4839, 4294901760
      %v5286 = vsub.f32 %v4839, %v5285
      %v5287 = vand.u32 %v5286, 4294901760
      %v5288 = vsub.f32 %v5286, %v5287
      %v5289 = vand.u32 %v5288, 4294901760
      %5290 = vmatmul.mubr.f32.gmra.mxu0 %v5289
      %v5291 = vpop.f32.mrf.mxu0
      %v5292 = vadd.f32 0.0, %v5291
      %v5293 = vpop.f32.mrf.mxu0
      %5294 = vmatprep.mubr.f32.mxu0 0.0
      %v5295 = vand.u32 %v4842, 4294901760
      %v5296 = vsub.f32 %v4842, %v5295
      %v5297 = vand.u32 %v5296, 4294901760
      %v5298 = vsub.f32 %v5296, %v5297
      %v5299 = vand.u32 %v5298, 4294901760
      %5300 = vmatmul.mubr.f32.gmra.mxu0 %v5299
      %v5301 = vpop.f32.mrf.mxu0
      %v5302 = vadd.f32 0.0, %v5301
      %v5303 = vpop.f32.mrf.mxu0
      %5304 = vmatprep.mubr.f32.mxu0 0.0
      %v5305 = vand.u32 %v4845, 4294901760
      %v5306 = vsub.f32 %v4845, %v5305
      %v5307 = vand.u32 %v5306, 4294901760
      %v5308 = vsub.f32 %v5306, %v5307
      %v5309 = vand.u32 %v5308, 4294901760
      %5310 = vmatmul.mubr.f32.gmra.mxu0 %v5309
      %v5311 = vpop.f32.mrf.mxu0
      %v5312 = vadd.f32 0.0, %v5311
      %v5313 = vpop.f32.mrf.mxu0
      %5314 = vmatprep.mubr.f32.mxu0 0.0
      %v5315 = vand.u32 %v4848, 4294901760
      %v5316 = vsub.f32 %v4848, %v5315
      %v5317 = vand.u32 %v5316, 4294901760
      %v5318 = vsub.f32 %v5316, %v5317
      %v5319 = vand.u32 %v5318, 4294901760
      %5320 = vmatmul.mubr.f32.gmra.mxu0 %v5319
      %v5321 = vpop.f32.mrf.mxu0
      %v5322 = vadd.f32 0.0, %v5321
      %v5323 = vpop.f32.mrf.mxu0
      %5324 = vmatprep.mubr.f32.mxu0 0.0
      %v5325 = vand.u32 %v4851, 4294901760
      %v5326 = vsub.f32 %v4851, %v5325
      %v5327 = vand.u32 %v5326, 4294901760
      %v5328 = vsub.f32 %v5326, %v5327
      %v5329 = vand.u32 %v5328, 4294901760
      %5330 = vmatmul.mubr.f32.gmra.mxu0 %v5329
      %v5331 = vpop.f32.mrf.mxu0
      %v5332 = vadd.f32 0.0, %v5331
      %v5333 = vpop.f32.mrf.mxu0
      %5334 = vmatprep.mubr.f32.mxu0 0.0
      %v5335 = vand.u32 %v4854, 4294901760
      %v5336 = vsub.f32 %v4854, %v5335
      %v5337 = vand.u32 %v5336, 4294901760
      %v5338 = vsub.f32 %v5336, %v5337
      %v5339 = vand.u32 %v5338, 4294901760
      %5340 = vmatmul.mubr.f32.gmra.mxu0 %v5339
      %v5341 = vpop.f32.mrf.mxu0
      %v5342 = vadd.f32 0.0, %v5341
      %v5343 = vpop.f32.mrf.mxu0
      %5344 = vmatprep.mubr.f32.mxu0 0.0
      %v5345 = vand.u32 %v4857, 4294901760
      %v5346 = vsub.f32 %v4857, %v5345
      %v5347 = vand.u32 %v5346, 4294901760
      %v5348 = vsub.f32 %v5346, %v5347
      %v5349 = vand.u32 %v5348, 4294901760
      %5350 = vmatmul.mubr.f32.gmra.mxu0 %v5349
      %v5351 = vpop.f32.mrf.mxu0
      %v5352 = vadd.f32 0.0, %v5351
      %v5353 = vpop.f32.mrf.mxu0
      %5354 = vmatprep.mubr.f32.mxu0 0.0
      %v5355 = vand.u32 %v4860, 4294901760
      %v5356 = vsub.f32 %v4860, %v5355
      %v5357 = vand.u32 %v5356, 4294901760
      %v5358 = vsub.f32 %v5356, %v5357
      %v5359 = vand.u32 %v5358, 4294901760
      %5360 = vmatmul.mubr.f32.gmra.mxu0 %v5359
      %v5361 = vpop.f32.mrf.mxu0
      %v5362 = vadd.f32 0.0, %v5361
      %v5363 = vpop.f32.mrf.mxu0
      %5364 = vmatprep.mubr.f32.mxu0 0.0
      %v5365 = vand.u32 %v4863, 4294901760
      %v5366 = vsub.f32 %v4863, %v5365
      %v5367 = vand.u32 %v5366, 4294901760
      %v5368 = vsub.f32 %v5366, %v5367
      %v5369 = vand.u32 %v5368, 4294901760
      %5370 = vmatmul.mubr.f32.gmra.mxu0 %v5369
      %v5371 = vpop.f32.mrf.mxu0
      %v5372 = vadd.f32 0.0, %v5371
      %v5373 = vpop.f32.mrf.mxu0
      %5374 = vmatprep.mubr.f32.mxu0 0.0
      %v5375 = vand.u32 %v4866, 4294901760
      %v5376 = vsub.f32 %v4866, %v5375
      %v5377 = vand.u32 %v5376, 4294901760
      %v5378 = vsub.f32 %v5376, %v5377
      %v5379 = vand.u32 %v5378, 4294901760
      %5380 = vmatmul.mubr.f32.gmra.mxu0 %v5379
      %v5381 = vpop.f32.mrf.mxu0
      %v5382 = vadd.f32 0.0, %v5381
      %v5383 = vpop.f32.mrf.mxu0
      %5384 = vmatprep.mubr.f32.mxu0 0.0
      %v5385 = vand.u32 %v4869, 4294901760
      %v5386 = vsub.f32 %v4869, %v5385
      %v5387 = vand.u32 %v5386, 4294901760
      %v5388 = vsub.f32 %v5386, %v5387
      %v5389 = vand.u32 %v5388, 4294901760
      %5390 = vmatmul.mubr.f32.gmra.mxu0 %v5389
      %v5391 = vpop.f32.mrf.mxu0
      %v5392 = vadd.f32 0.0, %v5391
      %v5393 = vpop.f32.mrf.mxu0
      %5394 = vmatprep.mubr.f32.mxu0 0.0
      %v5395 = vand.u32 %v4872, 4294901760
      %v5396 = vsub.f32 %v4872, %v5395
      %v5397 = vand.u32 %v5396, 4294901760
      %v5398 = vsub.f32 %v5396, %v5397
      %v5399 = vand.u32 %v5398, 4294901760
      %5400 = vmatmul.mubr.f32.gmra.mxu0 %v5399
      %v5401 = vpop.f32.mrf.mxu0
      %v5402 = vadd.f32 0.0, %v5401
      %v5403 = vpop.f32.mrf.mxu0
      %5404 = vmatprep.mubr.f32.mxu0 0.0
      %v5405 = vand.u32 %v4875, 4294901760
      %v5406 = vsub.f32 %v4875, %v5405
      %v5407 = vand.u32 %v5406, 4294901760
      %v5408 = vsub.f32 %v5406, %v5407
      %v5409 = vand.u32 %v5408, 4294901760
      %5410 = vmatmul.mubr.f32.gmra.mxu0 %v5409
      %v5411 = vpop.f32.mrf.mxu0
      %v5412 = vadd.f32 0.0, %v5411
      %v5413 = vpop.f32.mrf.mxu0
      %5414 = vmatprep.mubr.f32.mxu0 0.0
      %v5415 = vand.u32 %v4878, 4294901760
      %v5416 = vsub.f32 %v4878, %v5415
      %v5417 = vand.u32 %v5416, 4294901760
      %v5418 = vsub.f32 %v5416, %v5417
      %v5419 = vand.u32 %v5418, 4294901760
      %5420 = vmatmul.mubr.f32.gmra.mxu0 %v5419
      %v5421 = vpop.f32.mrf.mxu0
      %v5422 = vadd.f32 0.0, %v5421
      %v5423 = vpop.f32.mrf.mxu0
      %5424 = vmatprep.mubr.f32.mxu0 0.0
      %v5425 = vand.u32 %v4881, 4294901760
      %v5426 = vsub.f32 %v4881, %v5425
      %v5427 = vand.u32 %v5426, 4294901760
      %v5428 = vsub.f32 %v5426, %v5427
      %v5429 = vand.u32 %v5428, 4294901760
      %5430 = vmatmul.mubr.f32.gmra.mxu0 %v5429
      %v5431 = vpop.f32.mrf.mxu0
      %v5432 = vadd.f32 0.0, %v5431
      %v5433 = vpop.f32.mrf.mxu0
      %5434 = vmatprep.mubr.f32.mxu0 0.0
      %v5435 = vand.u32 %v4884, 4294901760
      %v5436 = vsub.f32 %v4884, %v5435
      %v5437 = vand.u32 %v5436, 4294901760
      %v5438 = vsub.f32 %v5436, %v5437
      %v5439 = vand.u32 %v5438, 4294901760
      %5440 = vmatmul.mubr.f32.gmra.mxu0 %v5439
      %v5441 = vpop.f32.mrf.mxu0
      %v5442 = vadd.f32 0.0, %v5441
      %v5443 = vpop.f32.mrf.mxu0
      %5444 = vmatprep.mubr.f32.mxu0 0.0
      %v5445 = vand.u32 %v4887, 4294901760
      %v5446 = vsub.f32 %v4887, %v5445
      %v5447 = vand.u32 %v5446, 4294901760
      %v5448 = vsub.f32 %v5446, %v5447
      %v5449 = vand.u32 %v5448, 4294901760
      %5450 = vmatmul.mubr.f32.gmra.mxu0 %v5449
      %v5451 = vpop.f32.mrf.mxu0
      %v5452 = vadd.f32 0.0, %v5451
      %v5453 = vpop.f32.mrf.mxu0
      %5454 = vmatprep.mubr.f32.mxu0 0.0
      %v5455 = vand.u32 %v4890, 4294901760
      %v5456 = vsub.f32 %v4890, %v5455
      %v5457 = vand.u32 %v5456, 4294901760
      %v5458 = vsub.f32 %v5456, %v5457
      %v5459 = vand.u32 %v5458, 4294901760
      %5460 = vmatmul.mubr.f32.gmra.mxu0 %v5459
      %v5461 = vpop.f32.mrf.mxu0
      %v5462 = vadd.f32 0.0, %v5461
      %v5463 = vpop.f32.mrf.mxu0
      %5464 = vmatprep.mubr.f32.mxu0 0.0
      %v5465 = vand.u32 %v4893, 4294901760
      %v5466 = vsub.f32 %v4893, %v5465
      %v5467 = vand.u32 %v5466, 4294901760
      %v5468 = vsub.f32 %v5466, %v5467
      %v5469 = vand.u32 %v5468, 4294901760
      %5470 = vmatmul.mubr.f32.gmra.mxu0 %v5469
      %v5471 = vpop.f32.mrf.mxu0
      %v5472 = vadd.f32 0.0, %v5471
      %v5473 = vpop.f32.mrf.mxu0
      %5474 = vmatprep.mubr.f32.mxu0 0.0
      %v5475 = vand.u32 %v4896, 4294901760
      %v5476 = vsub.f32 %v4896, %v5475
      %v5477 = vand.u32 %v5476, 4294901760
      %v5478 = vsub.f32 %v5476, %v5477
      %v5479 = vand.u32 %v5478, 4294901760
      %5480 = vmatmul.mubr.f32.gmra.mxu0 %v5479
      %v5481 = vpop.f32.mrf.mxu0
      %v5482 = vadd.f32 0.0, %v5481
      %v5483 = vpop.f32.mrf.mxu0
      %5484 = vmatprep.mubr.f32.mxu0 0.0
      %v5485 = vand.u32 %v4899, 4294901760
      %v5486 = vsub.f32 %v4899, %v5485
      %v5487 = vand.u32 %v5486, 4294901760
      %v5488 = vsub.f32 %v5486, %v5487
      %v5489 = vand.u32 %v5488, 4294901760
      %5490 = vmatmul.mubr.f32.gmra.mxu0 %v5489
      %v5491 = vpop.f32.mrf.mxu0
      %v5492 = vadd.f32 0.0, %v5491
      %v5493 = vpop.f32.mrf.mxu0
      %5494 = vmatprep.mubr.f32.mxu0 0.0
      %v5495 = vand.u32 %v4902, 4294901760
      %v5496 = vsub.f32 %v4902, %v5495
      %v5497 = vand.u32 %v5496, 4294901760
      %v5498 = vsub.f32 %v5496, %v5497
      %v5499 = vand.u32 %v5498, 4294901760
      %5500 = vmatmul.mubr.f32.gmra.mxu0 %v5499
      %v5501 = vpop.f32.mrf.mxu0
      %v5502 = vadd.f32 0.0, %v5501
      %v5503 = vpop.f32.mrf.mxu0
      %5504 = vmatprep.mubr.f32.mxu0 0.0
      %v5505 = vand.u32 %v4905, 4294901760
      %v5506 = vsub.f32 %v4905, %v5505
      %v5507 = vand.u32 %v5506, 4294901760
      %v5508 = vsub.f32 %v5506, %v5507
      %v5509 = vand.u32 %v5508, 4294901760
      %5510 = vmatmul.mubr.f32.gmra.mxu0 %v5509
      %v5511 = vpop.f32.mrf.mxu0
      %v5512 = vadd.f32 0.0, %v5511
      %v5513 = vpop.f32.mrf.mxu0
      %5514 = vmatprep.mubr.f32.mxu0 0.0
      %v5515 = vand.u32 %v4908, 4294901760
      %v5516 = vsub.f32 %v4908, %v5515
      %v5517 = vand.u32 %v5516, 4294901760
      %v5518 = vsub.f32 %v5516, %v5517
      %v5519 = vand.u32 %v5518, 4294901760
      %5520 = vmatmul.mubr.f32.gmra.mxu0 %v5519
      %v5521 = vpop.f32.mrf.mxu0
      %v5522 = vadd.f32 0.0, %v5521
      %v5523 = vpop.f32.mrf.mxu0
      %5524 = vmatprep.mubr.f32.mxu0 0.0
      %v5525 = vand.u32 %v4911, 4294901760
      %v5526 = vsub.f32 %v4911, %v5525
      %v5527 = vand.u32 %v5526, 4294901760
      %v5528 = vsub.f32 %v5526, %v5527
      %v5529 = vand.u32 %v5528, 4294901760
      %5530 = vmatmul.mubr.f32.gmra.mxu0 %v5529
      %v5531 = vpop.f32.mrf.mxu0
      %v5532 = vadd.f32 0.0, %v5531
      %v5533 = vpop.f32.mrf.mxu0
      %5534 = vmatprep.mubr.f32.mxu0 0.0
      %v5535 = vand.u32 %v4914, 4294901760
      %v5536 = vsub.f32 %v4914, %v5535
      %v5537 = vand.u32 %v5536, 4294901760
      %v5538 = vsub.f32 %v5536, %v5537
      %v5539 = vand.u32 %v5538, 4294901760
      %5540 = vmatmul.mubr.f32.gmra.mxu0 %v5539
      %v5541 = vpop.f32.mrf.mxu0
      %v5542 = vadd.f32 0.0, %v5541
      %v5543 = vpop.f32.mrf.mxu0
      %5544 = vmatprep.mubr.f32.mxu0 0.0
      %v5545 = vand.u32 %v4917, 4294901760
      %v5546 = vsub.f32 %v4917, %v5545
      %v5547 = vand.u32 %v5546, 4294901760
      %v5548 = vsub.f32 %v5546, %v5547
      %v5549 = vand.u32 %v5548, 4294901760
      %5550 = vmatmul.mubr.f32.gmra.mxu0 %v5549
      %v5551 = vpop.f32.mrf.mxu0
      %v5552 = vadd.f32 0.0, %v5551
      %v5553 = vpop.f32.mrf.mxu0
      %5554 = vmatprep.mubr.f32.mxu0 0.0
      %v5555 = vand.u32 %v4920, 4294901760
      %v5556 = vsub.f32 %v4920, %v5555
      %v5557 = vand.u32 %v5556, 4294901760
      %v5558 = vsub.f32 %v5556, %v5557
      %v5559 = vand.u32 %v5558, 4294901760
      %5560 = vmatmul.mubr.f32.gmra.mxu0 %v5559
      %v5561 = vpop.f32.mrf.mxu0
      %v5562 = vadd.f32 0.0, %v5561
      %v5563 = vpop.f32.mrf.mxu0
      %5564 = vmatprep.mubr.f32.mxu0 0.0
      %v5565 = vand.u32 %v4923, 4294901760
      %v5566 = vsub.f32 %v4923, %v5565
      %v5567 = vand.u32 %v5566, 4294901760
      %v5568 = vsub.f32 %v5566, %v5567
      %v5569 = vand.u32 %v5568, 4294901760
      %5570 = vmatmul.mubr.f32.gmra.mxu0 %v5569
      %v5571 = vpop.f32.mrf.mxu0
      %v5572 = vadd.f32 0.0, %v5571
      %v5573 = vpop.f32.mrf.mxu0
      %5574 = vmatprep.mubr.f32.mxu0 0.0
      %v5575 = vand.u32 %v4926, 4294901760
      %v5576 = vsub.f32 %v4926, %v5575
      %v5577 = vand.u32 %v5576, 4294901760
      %v5578 = vsub.f32 %v5576, %v5577
      %v5579 = vand.u32 %v5578, 4294901760
      %5580 = vmatmul.mubr.f32.gmra.mxu0 %v5579
      %v5581 = vpop.f32.mrf.mxu0
      %v5582 = vadd.f32 0.0, %v5581
      %v5583 = vpop.f32.mrf.mxu0
      %5584 = vmatprep.mubr.f32.mxu0 0.0
      %v5585 = vand.u32 %v4929, 4294901760
      %v5586 = vsub.f32 %v4929, %v5585
      %v5587 = vand.u32 %v5586, 4294901760
      %v5588 = vsub.f32 %v5586, %v5587
      %v5589 = vand.u32 %v5588, 4294901760
      %5590 = vmatmul.mubr.f32.gmra.mxu0 %v5589
      %v5591 = vpop.f32.mrf.mxu0
      %v5592 = vadd.f32 0.0, %v5591
      %v5593 = vpop.f32.mrf.mxu0
      %5594 = vmatprep.mubr.f32.mxu0 0.0
      %v5595 = vand.u32 %v4932, 4294901760
      %v5596 = vsub.f32 %v4932, %v5595
      %v5597 = vand.u32 %v5596, 4294901760
      %v5598 = vsub.f32 %v5596, %v5597
      %v5599 = vand.u32 %v5598, 4294901760
      %5600 = vmatmul.mubr.f32.gmra.mxu0 %v5599
      %v5601 = vpop.f32.mrf.mxu0
      %v5602 = vadd.f32 0.0, %v5601
      %v5603 = vpop.f32.mrf.mxu0
      %5604 = vmatprep.mubr.f32.mxu0 0.0
      %v5605 = vand.u32 %v4935, 4294901760
      %v5606 = vsub.f32 %v4935, %v5605
      %v5607 = vand.u32 %v5606, 4294901760
      %v5608 = vsub.f32 %v5606, %v5607
      %v5609 = vand.u32 %v5608, 4294901760
      %5610 = vmatmul.mubr.f32.gmra.mxu0 %v5609
      %v5611 = vpop.f32.mrf.mxu0
      %v5612 = vadd.f32 0.0, %v5611
      %v5613 = vpop.f32.mrf.mxu0
      %5614 = vmatprep.mubr.f32.mxu0 0.0
      %v5615 = vand.u32 %v4938, 4294901760
      %v5616 = vsub.f32 %v4938, %v5615
      %v5617 = vand.u32 %v5616, 4294901760
      %v5618 = vsub.f32 %v5616, %v5617
      %v5619 = vand.u32 %v5618, 4294901760
      %5620 = vmatmul.mubr.f32.gmra.mxu0 %v5619
      %v5621 = vpop.f32.mrf.mxu0
      %v5622 = vadd.f32 0.0, %v5621
      %v5623 = vpop.f32.mrf.mxu0
      %5624 = vmatprep.mubr.f32.mxu0 0.0
      %v5625 = vand.u32 %v4941, 4294901760
      %v5626 = vsub.f32 %v4941, %v5625
      %v5627 = vand.u32 %v5626, 4294901760
      %v5628 = vsub.f32 %v5626, %v5627
      %v5629 = vand.u32 %v5628, 4294901760
      %5630 = vmatmul.mubr.f32.gmra.mxu0 %v5629
      %v5631 = vpop.f32.mrf.mxu0
      %v5632 = vadd.f32 0.0, %v5631
      %v5633 = vpop.f32.mrf.mxu0
      %5634 = vmatprep.mubr.f32.mxu0 0.0
      %v5635 = vand.u32 %v4944, 4294901760
      %v5636 = vsub.f32 %v4944, %v5635
      %v5637 = vand.u32 %v5636, 4294901760
      %v5638 = vsub.f32 %v5636, %v5637
      %v5639 = vand.u32 %v5638, 4294901760
      %5640 = vmatmul.mubr.f32.gmra.mxu0 %v5639
      %v5641 = vpop.f32.mrf.mxu0
      %v5642 = vadd.f32 0.0, %v5641
      %v5643 = vpop.f32.mrf.mxu0
      %5644 = vmatprep.mubr.f32.mxu0 0.0
      %v5645 = vand.u32 %v4947, 4294901760
      %v5646 = vsub.f32 %v4947, %v5645
      %v5647 = vand.u32 %v5646, 4294901760
      %v5648 = vsub.f32 %v5646, %v5647
      %v5649 = vand.u32 %v5648, 4294901760
      %5650 = vmatmul.mubr.f32.gmra.mxu0 %v5649
      %v5651 = vpop.f32.mrf.mxu0
      %v5652 = vadd.f32 0.0, %v5651
      %v5653 = vpop.f32.mrf.mxu0
      %5654 = vdwg.mxu0
      %5655 = vmatprep.subr.mxu0 0.0
      %5656 = vmatpush1.msra.mxu0 0.0
      %5657 = vmatprep.subr.mxu0 0.0
      %5658 = vmatpush1.msra.mxu0 0.0
      %5659 = vmatprep.subr.mxu0 0.0
      %5660 = vmatpush1.msra.mxu0 0.0
      %5661 = vmatprep.subr.mxu0 0.0
      %5662 = vmatpush1.msra.mxu0 0.0
      %5663 = vmatprep.subr.mxu0 0.0
      %5664 = vmatpush1.msra.mxu0 0.0
      %5665 = vmatprep.subr.mxu0 0.0
      %5666 = vmatpush1.msra.mxu0 0.0
      %5667 = vmatprep.subr.mxu0 0.0
      %5668 = vmatpush1.msra.mxu0 0.0
      %5669 = vmatprep.subr.mxu0 0.0
      %5670 = vmatpush1.msra.mxu0 0.0
      %5671 = vmatprep.subr.mxu0 0.0
      %5672 = vmatpush1.msra.mxu0 0.0
      %5673 = vmatprep.subr.mxu0 0.0
      %5674 = vmatpush1.msra.mxu0 0.0
      %5675 = vmatprep.subr.mxu0 0.0
      %5676 = vmatpush1.msra.mxu0 0.0
      %5677 = vmatprep.subr.mxu0 0.0
      %5678 = vmatpush1.msra.mxu0 0.0
      %5679 = vmatprep.subr.mxu0 0.0
      %5680 = vmatpush1.msra.mxu0 0.0
      %5681 = vmatprep.subr.mxu0 0.0
      %5682 = vmatpush1.msra.mxu0 0.0
      %5683 = vmatprep.subr.mxu0 0.0
      %5684 = vmatpush1.msra.mxu0 0.0
      %5685 = vmatprep.subr.mxu0 0.0
      %v5686 = vand.u32 %v4755, 4294901760
      %v5687 = vsub.f32 %v4755, %v5686
      %v5688 = vand.u32 %v5687, 4294901760
      %v5689 = vsub.f32 %v5687, %v5688
      %v5690 = vand.u32 %v5689, 4294901760
      %5691 = vmatpush1.msra.mxu0 %v5690
      %5692 = vmatprep.subr.mxu0 0.0
      %5693 = vmatpush2.msra.mxu0 0.0
      %5694 = vmatprep.subr.mxu0 0.0
      %5695 = vmatpush2.msra.mxu0 0.0
      %5696 = vmatprep.subr.mxu0 0.0
      %5697 = vmatpush2.msra.mxu0 0.0
      %5698 = vmatprep.subr.mxu0 0.0
      %5699 = vmatpush2.msra.mxu0 0.0
      %5700 = vmatprep.subr.mxu0 0.0
      %5701 = vmatpush2.msra.mxu0 0.0
      %5702 = vmatprep.subr.mxu0 0.0
      %5703 = vmatpush2.msra.mxu0 0.0
      %5704 = vmatprep.subr.mxu0 0.0
      %5705 = vmatpush2.msra.mxu0 0.0
      %5706 = vmatprep.subr.mxu0 0.0
      %5707 = vmatpush2.msra.mxu0 0.0
      %5708 = vmatprep.subr.mxu0 0.0
      %5709 = vmatpush2.msra.mxu0 0.0
      %5710 = vmatprep.subr.mxu0 0.0
      %5711 = vmatpush2.msra.mxu0 0.0
      %5712 = vmatprep.subr.mxu0 0.0
      %5713 = vmatpush2.msra.mxu0 0.0
      %5714 = vmatprep.subr.mxu0 0.0
      %5715 = vmatpush2.msra.mxu0 0.0
      %5716 = vmatprep.subr.mxu0 0.0
      %5717 = vmatpush2.msra.mxu0 0.0
      %5718 = vmatprep.subr.mxu0 0.0
      %5719 = vmatpush2.msra.mxu0 0.0
      %5720 = vmatprep.subr.mxu0 0.0
      %5721 = vmatpush2.msra.mxu0 0.0
      %5722 = vmatprep.subr.mxu0 0.0
      %5723 = vmatpush2.msra.mxu0 0.0
      %5724 = vmatprep.mubr.f32.mxu0 0.0
      %v5725 = vand.u32 %v4758, 4294901760
      %5726 = vmatmul.mubr.f32.gmra.mxu0 %v5725
      %v5727 = vpop.f32.mrf.mxu0
      %v5728 = vadd.f32 %v5022, %v5727
      %v5729 = vpop.f32.mrf.mxu0
      %5730 = vmatprep.mubr.f32.mxu0 0.0
      %v5731 = vand.u32 %v4761, 4294901760
      %5732 = vmatmul.mubr.f32.gmra.mxu0 %v5731
      %v5733 = vpop.f32.mrf.mxu0
      %v5734 = vadd.f32 %v5032, %v5733
      %v5735 = vpop.f32.mrf.mxu0
      %5736 = vmatprep.mubr.f32.mxu0 0.0
      %v5737 = vand.u32 %v4764, 4294901760
      %5738 = vmatmul.mubr.f32.gmra.mxu0 %v5737
      %v5739 = vpop.f32.mrf.mxu0
      %v5740 = vadd.f32 %v5042, %v5739
      %v5741 = vpop.f32.mrf.mxu0
      %5742 = vmatprep.mubr.f32.mxu0 0.0
      %v5743 = vand.u32 %v4767, 4294901760
      %5744 = vmatmul.mubr.f32.gmra.mxu0 %v5743
      %v5745 = vpop.f32.mrf.mxu0
      %v5746 = vadd.f32 %v5052, %v5745
      %v5747 = vpop.f32.mrf.mxu0
      %5748 = vmatprep.mubr.f32.mxu0 0.0
      %v5749 = vand.u32 %v4770, 4294901760
      %5750 = vmatmul.mubr.f32.gmra.mxu0 %v5749
      %v5751 = vpop.f32.mrf.mxu0
      %v5752 = vadd.f32 %v5062, %v5751
      %v5753 = vpop.f32.mrf.mxu0
      %5754 = vmatprep.mubr.f32.mxu0 0.0
      %v5755 = vand.u32 %v4773, 4294901760
      %5756 = vmatmul.mubr.f32.gmra.mxu0 %v5755
      %v5757 = vpop.f32.mrf.mxu0
      %v5758 = vadd.f32 %v5072, %v5757
      %v5759 = vpop.f32.mrf.mxu0
      %5760 = vmatprep.mubr.f32.mxu0 0.0
      %v5761 = vand.u32 %v4776, 4294901760
      %5762 = vmatmul.mubr.f32.gmra.mxu0 %v5761
      %v5763 = vpop.f32.mrf.mxu0
      %v5764 = vadd.f32 %v5082, %v5763
      %v5765 = vpop.f32.mrf.mxu0
      %5766 = vmatprep.mubr.f32.mxu0 0.0
      %v5767 = vand.u32 %v4779, 4294901760
      %5768 = vmatmul.mubr.f32.gmra.mxu0 %v5767
      %v5769 = vpop.f32.mrf.mxu0
      %v5770 = vadd.f32 %v5092, %v5769
      %v5771 = vpop.f32.mrf.mxu0
      %5772 = vmatprep.mubr.f32.mxu0 0.0
      %v5773 = vand.u32 %v4782, 4294901760
      %5774 = vmatmul.mubr.f32.gmra.mxu0 %v5773
      %v5775 = vpop.f32.mrf.mxu0
      %v5776 = vadd.f32 %v5102, %v5775
      %v5777 = vpop.f32.mrf.mxu0
      %5778 = vmatprep.mubr.f32.mxu0 0.0
      %v5779 = vand.u32 %v4785, 4294901760
      %5780 = vmatmul.mubr.f32.gmra.mxu0 %v5779
      %v5781 = vpop.f32.mrf.mxu0
      %v5782 = vadd.f32 %v5112, %v5781
      %v5783 = vpop.f32.mrf.mxu0
      %5784 = vmatprep.mubr.f32.mxu0 0.0
      %v5785 = vand.u32 %v4788, 4294901760
      %5786 = vmatmul.mubr.f32.gmra.mxu0 %v5785
      %v5787 = vpop.f32.mrf.mxu0
      %v5788 = vadd.f32 %v5122, %v5787
      %v5789 = vpop.f32.mrf.mxu0
      %5790 = vmatprep.mubr.f32.mxu0 0.0
      %v5791 = vand.u32 %v4791, 4294901760
      %5792 = vmatmul.mubr.f32.gmra.mxu0 %v5791
      %v5793 = vpop.f32.mrf.mxu0
      %v5794 = vadd.f32 %v5132, %v5793
      %v5795 = vpop.f32.mrf.mxu0
      %5796 = vmatprep.mubr.f32.mxu0 0.0
      %v5797 = vand.u32 %v4794, 4294901760
      %5798 = vmatmul.mubr.f32.gmra.mxu0 %v5797
      %v5799 = vpop.f32.mrf.mxu0
      %v5800 = vadd.f32 %v5142, %v5799
      %v5801 = vpop.f32.mrf.mxu0
      %5802 = vmatprep.mubr.f32.mxu0 0.0
      %v5803 = vand.u32 %v4797, 4294901760
      %5804 = vmatmul.mubr.f32.gmra.mxu0 %v5803
      %v5805 = vpop.f32.mrf.mxu0
      %v5806 = vadd.f32 %v5152, %v5805
      %v5807 = vpop.f32.mrf.mxu0
      %5808 = vmatprep.mubr.f32.mxu0 0.0
      %v5809 = vand.u32 %v4800, 4294901760
      %5810 = vmatmul.mubr.f32.gmra.mxu0 %v5809
      %v5811 = vpop.f32.mrf.mxu0
      %v5812 = vadd.f32 %v5162, %v5811
      %v5813 = vpop.f32.mrf.mxu0
      %5814 = vmatprep.mubr.f32.mxu0 0.0
      %v5815 = vand.u32 %v4803, 4294901760
      %5816 = vmatmul.mubr.f32.gmra.mxu0 %v5815
      %v5817 = vpop.f32.mrf.mxu0
      %v5818 = vadd.f32 %v5172, %v5817
      %v5819 = vpop.f32.mrf.mxu0
      %5820 = vmatprep.mubr.f32.mxu0 0.0
      %v5821 = vand.u32 %v4806, 4294901760
      %5822 = vmatmul.mubr.f32.gmra.mxu0 %v5821
      %v5823 = vpop.f32.mrf.mxu0
      %v5824 = vadd.f32 %v5182, %v5823
      %v5825 = vpop.f32.mrf.mxu0
      %5826 = vmatprep.mubr.f32.mxu0 0.0
      %v5827 = vand.u32 %v4809, 4294901760
      %5828 = vmatmul.mubr.f32.gmra.mxu0 %v5827
      %v5829 = vpop.f32.mrf.mxu0
      %v5830 = vadd.f32 %v5192, %v5829
      %v5831 = vpop.f32.mrf.mxu0
      %5832 = vmatprep.mubr.f32.mxu0 0.0
      %v5833 = vand.u32 %v4812, 4294901760
      %5834 = vmatmul.mubr.f32.gmra.mxu0 %v5833
      %v5835 = vpop.f32.mrf.mxu0
      %v5836 = vadd.f32 %v5202, %v5835
      %v5837 = vpop.f32.mrf.mxu0
      %5838 = vmatprep.mubr.f32.mxu0 0.0
      %v5839 = vand.u32 %v4815, 4294901760
      %5840 = vmatmul.mubr.f32.gmra.mxu0 %v5839
      %v5841 = vpop.f32.mrf.mxu0
      %v5842 = vadd.f32 %v5212, %v5841
      %v5843 = vpop.f32.mrf.mxu0
      %5844 = vmatprep.mubr.f32.mxu0 0.0
      %v5845 = vand.u32 %v4818, 4294901760
      %5846 = vmatmul.mubr.f32.gmra.mxu0 %v5845
      %v5847 = vpop.f32.mrf.mxu0
      %v5848 = vadd.f32 %v5222, %v5847
      %v5849 = vpop.f32.mrf.mxu0
      %5850 = vmatprep.mubr.f32.mxu0 0.0
      %v5851 = vand.u32 %v4821, 4294901760
      %5852 = vmatmul.mubr.f32.gmra.mxu0 %v5851
      %v5853 = vpop.f32.mrf.mxu0
      %v5854 = vadd.f32 %v5232, %v5853
      %v5855 = vpop.f32.mrf.mxu0
      %5856 = vmatprep.mubr.f32.mxu0 0.0
      %v5857 = vand.u32 %v4824, 4294901760
      %5858 = vmatmul.mubr.f32.gmra.mxu0 %v5857
      %v5859 = vpop.f32.mrf.mxu0
      %v5860 = vadd.f32 %v5242, %v5859
      %v5861 = vpop.f32.mrf.mxu0
      %5862 = vmatprep.mubr.f32.mxu0 0.0
      %v5863 = vand.u32 %v4827, 4294901760
      %5864 = vmatmul.mubr.f32.gmra.mxu0 %v5863
      %v5865 = vpop.f32.mrf.mxu0
      %v5866 = vadd.f32 %v5252, %v5865
      %v5867 = vpop.f32.mrf.mxu0
      %5868 = vmatprep.mubr.f32.mxu0 0.0
      %v5869 = vand.u32 %v4830, 4294901760
      %5870 = vmatmul.mubr.f32.gmra.mxu0 %v5869
      %v5871 = vpop.f32.mrf.mxu0
      %v5872 = vadd.f32 %v5262, %v5871
      %v5873 = vpop.f32.mrf.mxu0
      %5874 = vmatprep.mubr.f32.mxu0 0.0
      %v5875 = vand.u32 %v4833, 4294901760
      %5876 = vmatmul.mubr.f32.gmra.mxu0 %v5875
      %v5877 = vpop.f32.mrf.mxu0
      %v5878 = vadd.f32 %v5272, %v5877
      %v5879 = vpop.f32.mrf.mxu0
      %5880 = vmatprep.mubr.f32.mxu0 0.0
      %v5881 = vand.u32 %v4836, 4294901760
      %5882 = vmatmul.mubr.f32.gmra.mxu0 %v5881
      %v5883 = vpop.f32.mrf.mxu0
      %v5884 = vadd.f32 %v5282, %v5883
      %v5885 = vpop.f32.mrf.mxu0
      %5886 = vmatprep.mubr.f32.mxu0 0.0
      %v5887 = vand.u32 %v4839, 4294901760
      %5888 = vmatmul.mubr.f32.gmra.mxu0 %v5887
      %v5889 = vpop.f32.mrf.mxu0
      %v5890 = vadd.f32 %v5292, %v5889
      %v5891 = vpop.f32.mrf.mxu0
      %5892 = vmatprep.mubr.f32.mxu0 0.0
      %v5893 = vand.u32 %v4842, 4294901760
      %5894 = vmatmul.mubr.f32.gmra.mxu0 %v5893
      %v5895 = vpop.f32.mrf.mxu0
      %v5896 = vadd.f32 %v5302, %v5895
      %v5897 = vpop.f32.mrf.mxu0
      %5898 = vmatprep.mubr.f32.mxu0 0.0
      %v5899 = vand.u32 %v4845, 4294901760
      %5900 = vmatmul.mubr.f32.gmra.mxu0 %v5899
      %v5901 = vpop.f32.mrf.mxu0
      %v5902 = vadd.f32 %v5312, %v5901
      %v5903 = vpop.f32.mrf.mxu0
      %5904 = vmatprep.mubr.f32.mxu0 0.0
      %v5905 = vand.u32 %v4848, 4294901760
      %5906 = vmatmul.mubr.f32.gmra.mxu0 %v5905
      %v5907 = vpop.f32.mrf.mxu0
      %v5908 = vadd.f32 %v5322, %v5907
      %v5909 = vpop.f32.mrf.mxu0
      %5910 = vmatprep.mubr.f32.mxu0 0.0
      %v5911 = vand.u32 %v4851, 4294901760
      %5912 = vmatmul.mubr.f32.gmra.mxu0 %v5911
      %v5913 = vpop.f32.mrf.mxu0
      %v5914 = vadd.f32 %v5332, %v5913
      %v5915 = vpop.f32.mrf.mxu0
      %5916 = vmatprep.mubr.f32.mxu0 0.0
      %v5917 = vand.u32 %v4854, 4294901760
      %5918 = vmatmul.mubr.f32.gmra.mxu0 %v5917
      %v5919 = vpop.f32.mrf.mxu0
      %v5920 = vadd.f32 %v5342, %v5919
      %v5921 = vpop.f32.mrf.mxu0
      %5922 = vmatprep.mubr.f32.mxu0 0.0
      %v5923 = vand.u32 %v4857, 4294901760
      %5924 = vmatmul.mubr.f32.gmra.mxu0 %v5923
      %v5925 = vpop.f32.mrf.mxu0
      %v5926 = vadd.f32 %v5352, %v5925
      %v5927 = vpop.f32.mrf.mxu0
      %5928 = vmatprep.mubr.f32.mxu0 0.0
      %v5929 = vand.u32 %v4860, 4294901760
      %5930 = vmatmul.mubr.f32.gmra.mxu0 %v5929
      %v5931 = vpop.f32.mrf.mxu0
      %v5932 = vadd.f32 %v5362, %v5931
      %v5933 = vpop.f32.mrf.mxu0
      %5934 = vmatprep.mubr.f32.mxu0 0.0
      %v5935 = vand.u32 %v4863, 4294901760
      %5936 = vmatmul.mubr.f32.gmra.mxu0 %v5935
      %v5937 = vpop.f32.mrf.mxu0
      %v5938 = vadd.f32 %v5372, %v5937
      %v5939 = vpop.f32.mrf.mxu0
      %5940 = vmatprep.mubr.f32.mxu0 0.0
      %v5941 = vand.u32 %v4866, 4294901760
      %5942 = vmatmul.mubr.f32.gmra.mxu0 %v5941
      %v5943 = vpop.f32.mrf.mxu0
      %v5944 = vadd.f32 %v5382, %v5943
      %v5945 = vpop.f32.mrf.mxu0
      %5946 = vmatprep.mubr.f32.mxu0 0.0
      %v5947 = vand.u32 %v4869, 4294901760
      %5948 = vmatmul.mubr.f32.gmra.mxu0 %v5947
      %v5949 = vpop.f32.mrf.mxu0
      %v5950 = vadd.f32 %v5392, %v5949
      %v5951 = vpop.f32.mrf.mxu0
      %5952 = vmatprep.mubr.f32.mxu0 0.0
      %v5953 = vand.u32 %v4872, 4294901760
      %5954 = vmatmul.mubr.f32.gmra.mxu0 %v5953
      %v5955 = vpop.f32.mrf.mxu0
      %v5956 = vadd.f32 %v5402, %v5955
      %v5957 = vpop.f32.mrf.mxu0
      %5958 = vmatprep.mubr.f32.mxu0 0.0
      %v5959 = vand.u32 %v4875, 4294901760
      %5960 = vmatmul.mubr.f32.gmra.mxu0 %v5959
      %v5961 = vpop.f32.mrf.mxu0
      %v5962 = vadd.f32 %v5412, %v5961
      %v5963 = vpop.f32.mrf.mxu0
      %5964 = vmatprep.mubr.f32.mxu0 0.0
      %v5965 = vand.u32 %v4878, 4294901760
      %5966 = vmatmul.mubr.f32.gmra.mxu0 %v5965
      %v5967 = vpop.f32.mrf.mxu0
      %v5968 = vadd.f32 %v5422, %v5967
      %v5969 = vpop.f32.mrf.mxu0
      %5970 = vmatprep.mubr.f32.mxu0 0.0
      %v5971 = vand.u32 %v4881, 4294901760
      %5972 = vmatmul.mubr.f32.gmra.mxu0 %v5971
      %v5973 = vpop.f32.mrf.mxu0
      %v5974 = vadd.f32 %v5432, %v5973
      %v5975 = vpop.f32.mrf.mxu0
      %5976 = vmatprep.mubr.f32.mxu0 0.0
      %v5977 = vand.u32 %v4884, 4294901760
      %5978 = vmatmul.mubr.f32.gmra.mxu0 %v5977
      %v5979 = vpop.f32.mrf.mxu0
      %v5980 = vadd.f32 %v5442, %v5979
      %v5981 = vpop.f32.mrf.mxu0
      %5982 = vmatprep.mubr.f32.mxu0 0.0
      %v5983 = vand.u32 %v4887, 4294901760
      %5984 = vmatmul.mubr.f32.gmra.mxu0 %v5983
      %v5985 = vpop.f32.mrf.mxu0
      %v5986 = vadd.f32 %v5452, %v5985
      %v5987 = vpop.f32.mrf.mxu0
      %5988 = vmatprep.mubr.f32.mxu0 0.0
      %v5989 = vand.u32 %v4890, 4294901760
      %5990 = vmatmul.mubr.f32.gmra.mxu0 %v5989
      %v5991 = vpop.f32.mrf.mxu0
      %v5992 = vadd.f32 %v5462, %v5991
      %v5993 = vpop.f32.mrf.mxu0
      %5994 = vmatprep.mubr.f32.mxu0 0.0
      %v5995 = vand.u32 %v4893, 4294901760
      %5996 = vmatmul.mubr.f32.gmra.mxu0 %v5995
      %v5997 = vpop.f32.mrf.mxu0
      %v5998 = vadd.f32 %v5472, %v5997
      %v5999 = vpop.f32.mrf.mxu0
      %6000 = vmatprep.mubr.f32.mxu0 0.0
      %v6001 = vand.u32 %v4896, 4294901760
      %6002 = vmatmul.mubr.f32.gmra.mxu0 %v6001
      %v6003 = vpop.f32.mrf.mxu0
      %v6004 = vadd.f32 %v5482, %v6003
      %v6005 = vpop.f32.mrf.mxu0
      %6006 = vmatprep.mubr.f32.mxu0 0.0
      %v6007 = vand.u32 %v4899, 4294901760
      %6008 = vmatmul.mubr.f32.gmra.mxu0 %v6007
      %v6009 = vpop.f32.mrf.mxu0
      %v6010 = vadd.f32 %v5492, %v6009
      %v6011 = vpop.f32.mrf.mxu0
      %6012 = vmatprep.mubr.f32.mxu0 0.0
      %v6013 = vand.u32 %v4902, 4294901760
      %6014 = vmatmul.mubr.f32.gmra.mxu0 %v6013
      %v6015 = vpop.f32.mrf.mxu0
      %v6016 = vadd.f32 %v5502, %v6015
      %v6017 = vpop.f32.mrf.mxu0
      %6018 = vmatprep.mubr.f32.mxu0 0.0
      %v6019 = vand.u32 %v4905, 4294901760
      %6020 = vmatmul.mubr.f32.gmra.mxu0 %v6019
      %v6021 = vpop.f32.mrf.mxu0
      %v6022 = vadd.f32 %v5512, %v6021
      %v6023 = vpop.f32.mrf.mxu0
      %6024 = vmatprep.mubr.f32.mxu0 0.0
      %v6025 = vand.u32 %v4908, 4294901760
      %6026 = vmatmul.mubr.f32.gmra.mxu0 %v6025
      %v6027 = vpop.f32.mrf.mxu0
      %v6028 = vadd.f32 %v5522, %v6027
      %v6029 = vpop.f32.mrf.mxu0
      %6030 = vmatprep.mubr.f32.mxu0 0.0
      %v6031 = vand.u32 %v4911, 4294901760
      %6032 = vmatmul.mubr.f32.gmra.mxu0 %v6031
      %v6033 = vpop.f32.mrf.mxu0
      %v6034 = vadd.f32 %v5532, %v6033
      %v6035 = vpop.f32.mrf.mxu0
      %6036 = vmatprep.mubr.f32.mxu0 0.0
      %v6037 = vand.u32 %v4914, 4294901760
      %6038 = vmatmul.mubr.f32.gmra.mxu0 %v6037
      %v6039 = vpop.f32.mrf.mxu0
      %v6040 = vadd.f32 %v5542, %v6039
      %v6041 = vpop.f32.mrf.mxu0
      %6042 = vmatprep.mubr.f32.mxu0 0.0
      %v6043 = vand.u32 %v4917, 4294901760
      %6044 = vmatmul.mubr.f32.gmra.mxu0 %v6043
      %v6045 = vpop.f32.mrf.mxu0
      %v6046 = vadd.f32 %v5552, %v6045
      %v6047 = vpop.f32.mrf.mxu0
      %6048 = vmatprep.mubr.f32.mxu0 0.0
      %v6049 = vand.u32 %v4920, 4294901760
      %6050 = vmatmul.mubr.f32.gmra.mxu0 %v6049
      %v6051 = vpop.f32.mrf.mxu0
      %v6052 = vadd.f32 %v5562, %v6051
      %v6053 = vpop.f32.mrf.mxu0
      %6054 = vmatprep.mubr.f32.mxu0 0.0
      %v6055 = vand.u32 %v4923, 4294901760
      %6056 = vmatmul.mubr.f32.gmra.mxu0 %v6055
      %v6057 = vpop.f32.mrf.mxu0
      %v6058 = vadd.f32 %v5572, %v6057
      %v6059 = vpop.f32.mrf.mxu0
      %6060 = vmatprep.mubr.f32.mxu0 0.0
      %v6061 = vand.u32 %v4926, 4294901760
      %6062 = vmatmul.mubr.f32.gmra.mxu0 %v6061
      %v6063 = vpop.f32.mrf.mxu0
      %v6064 = vadd.f32 %v5582, %v6063
      %v6065 = vpop.f32.mrf.mxu0
      %6066 = vmatprep.mubr.f32.mxu0 0.0
      %v6067 = vand.u32 %v4929, 4294901760
      %6068 = vmatmul.mubr.f32.gmra.mxu0 %v6067
      %v6069 = vpop.f32.mrf.mxu0
      %v6070 = vadd.f32 %v5592, %v6069
      %v6071 = vpop.f32.mrf.mxu0
      %6072 = vmatprep.mubr.f32.mxu0 0.0
      %v6073 = vand.u32 %v4932, 4294901760
      %6074 = vmatmul.mubr.f32.gmra.mxu0 %v6073
      %v6075 = vpop.f32.mrf.mxu0
      %v6076 = vadd.f32 %v5602, %v6075
      %v6077 = vpop.f32.mrf.mxu0
      %6078 = vmatprep.mubr.f32.mxu0 0.0
      %v6079 = vand.u32 %v4935, 4294901760
      %6080 = vmatmul.mubr.f32.gmra.mxu0 %v6079
      %v6081 = vpop.f32.mrf.mxu0
      %v6082 = vadd.f32 %v5612, %v6081
      %v6083 = vpop.f32.mrf.mxu0
      %6084 = vmatprep.mubr.f32.mxu0 0.0
      %v6085 = vand.u32 %v4938, 4294901760
      %6086 = vmatmul.mubr.f32.gmra.mxu0 %v6085
      %v6087 = vpop.f32.mrf.mxu0
      %v6088 = vadd.f32 %v5622, %v6087
      %v6089 = vpop.f32.mrf.mxu0
      %6090 = vmatprep.mubr.f32.mxu0 0.0
      %v6091 = vand.u32 %v4941, 4294901760
      %6092 = vmatmul.mubr.f32.gmra.mxu0 %v6091
      %v6093 = vpop.f32.mrf.mxu0
      %v6094 = vadd.f32 %v5632, %v6093
      %v6095 = vpop.f32.mrf.mxu0
      %6096 = vmatprep.mubr.f32.mxu0 0.0
      %v6097 = vand.u32 %v4944, 4294901760
      %6098 = vmatmul.mubr.f32.gmra.mxu0 %v6097
      %v6099 = vpop.f32.mrf.mxu0
      %v6100 = vadd.f32 %v5642, %v6099
      %v6101 = vpop.f32.mrf.mxu0
      %6102 = vmatprep.mubr.f32.mxu0 0.0
      %v6103 = vand.u32 %v4947, 4294901760
      %6104 = vmatmul.mubr.f32.gmra.mxu0 %v6103
      %v6105 = vpop.f32.mrf.mxu0
      %v6106 = vadd.f32 %v5652, %v6105
      %v6107 = vpop.f32.mrf.mxu0
      %6108 = vdwg.mxu0
      %6109 = vmatprep.subr.mxu0 0.0
      %6110 = vmatpush1.msra.mxu0 0.0
      %6111 = vmatprep.subr.mxu0 0.0
      %6112 = vmatpush1.msra.mxu0 0.0
      %6113 = vmatprep.subr.mxu0 0.0
      %6114 = vmatpush1.msra.mxu0 0.0
      %6115 = vmatprep.subr.mxu0 0.0
      %6116 = vmatpush1.msra.mxu0 0.0
      %6117 = vmatprep.subr.mxu0 0.0
      %6118 = vmatpush1.msra.mxu0 0.0
      %6119 = vmatprep.subr.mxu0 0.0
      %6120 = vmatpush1.msra.mxu0 0.0
      %6121 = vmatprep.subr.mxu0 0.0
      %6122 = vmatpush1.msra.mxu0 0.0
      %6123 = vmatprep.subr.mxu0 0.0
      %6124 = vmatpush1.msra.mxu0 0.0
      %6125 = vmatprep.subr.mxu0 0.0
      %6126 = vmatpush1.msra.mxu0 0.0
      %6127 = vmatprep.subr.mxu0 0.0
      %6128 = vmatpush1.msra.mxu0 0.0
      %6129 = vmatprep.subr.mxu0 0.0
      %6130 = vmatpush1.msra.mxu0 0.0
      %6131 = vmatprep.subr.mxu0 0.0
      %6132 = vmatpush1.msra.mxu0 0.0
      %6133 = vmatprep.subr.mxu0 0.0
      %6134 = vmatpush1.msra.mxu0 0.0
      %6135 = vmatprep.subr.mxu0 0.0
      %6136 = vmatpush1.msra.mxu0 0.0
      %6137 = vmatprep.subr.mxu0 0.0
      %6138 = vmatpush1.msra.mxu0 0.0
      %6139 = vmatprep.subr.mxu0 0.0
      %v6140 = vand.u32 %v4755, 4294901760
      %v6141 = vsub.f32 %v4755, %v6140
      %6142 = vmatpush1.msra.mxu0 %v6141
      %6143 = vmatprep.subr.mxu0 0.0
      %6144 = vmatpush2.msra.mxu0 0.0
      %6145 = vmatprep.subr.mxu0 0.0
      %6146 = vmatpush2.msra.mxu0 0.0
      %6147 = vmatprep.subr.mxu0 0.0
      %6148 = vmatpush2.msra.mxu0 0.0
      %6149 = vmatprep.subr.mxu0 0.0
      %6150 = vmatpush2.msra.mxu0 0.0
      %6151 = vmatprep.subr.mxu0 0.0
      %6152 = vmatpush2.msra.mxu0 0.0
      %6153 = vmatprep.subr.mxu0 0.0
      %6154 = vmatpush2.msra.mxu0 0.0
      %6155 = vmatprep.subr.mxu0 0.0
      %6156 = vmatpush2.msra.mxu0 0.0
      %6157 = vmatprep.subr.mxu0 0.0
      %6158 = vmatpush2.msra.mxu0 0.0
      %6159 = vmatprep.subr.mxu0 0.0
      %6160 = vmatpush2.msra.mxu0 0.0
      %6161 = vmatprep.subr.mxu0 0.0
      %6162 = vmatpush2.msra.mxu0 0.0
      %6163 = vmatprep.subr.mxu0 0.0
      %6164 = vmatpush2.msra.mxu0 0.0
      %6165 = vmatprep.subr.mxu0 0.0
      %6166 = vmatpush2.msra.mxu0 0.0
      %6167 = vmatprep.subr.mxu0 0.0
      %6168 = vmatpush2.msra.mxu0 0.0
      %6169 = vmatprep.subr.mxu0 0.0
      %6170 = vmatpush2.msra.mxu0 0.0
      %6171 = vmatprep.subr.mxu0 0.0
      %6172 = vmatpush2.msra.mxu0 0.0
      %6173 = vmatprep.subr.mxu0 0.0
      %6174 = vmatpush2.msra.mxu0 0.0
      %6175 = vmatprep.mubr.f32.mxu0 0.0
      %v6176 = vand.u32 %v4758, 4294901760
      %v6177 = vsub.f32 %v4758, %v6176
      %6178 = vmatmul.mubr.f32.gmra.mxu0 %v6177
      %v6179 = vpop.f32.mrf.mxu0
      %v6180 = vadd.f32 %v5728, %v6179
      %v6181 = vpop.f32.mrf.mxu0
      %6182 = vmatprep.mubr.f32.mxu0 0.0
      %v6183 = vand.u32 %v4761, 4294901760
      %v6184 = vsub.f32 %v4761, %v6183
      %6185 = vmatmul.mubr.f32.gmra.mxu0 %v6184
      %v6186 = vpop.f32.mrf.mxu0
      %v6187 = vadd.f32 %v5734, %v6186
      %v6188 = vpop.f32.mrf.mxu0
      %6189 = vmatprep.mubr.f32.mxu0 0.0
      %v6190 = vand.u32 %v4764, 4294901760
      %v6191 = vsub.f32 %v4764, %v6190
      %6192 = vmatmul.mubr.f32.gmra.mxu0 %v6191
      %v6193 = vpop.f32.mrf.mxu0
      %v6194 = vadd.f32 %v5740, %v6193
      %v6195 = vpop.f32.mrf.mxu0
      %6196 = vmatprep.mubr.f32.mxu0 0.0
      %v6197 = vand.u32 %v4767, 4294901760
      %v6198 = vsub.f32 %v4767, %v6197
      %6199 = vmatmul.mubr.f32.gmra.mxu0 %v6198
      %v6200 = vpop.f32.mrf.mxu0
      %v6201 = vadd.f32 %v5746, %v6200
      %v6202 = vpop.f32.mrf.mxu0
      %6203 = vmatprep.mubr.f32.mxu0 0.0
      %v6204 = vand.u32 %v4770, 4294901760
      %v6205 = vsub.f32 %v4770, %v6204
      %6206 = vmatmul.mubr.f32.gmra.mxu0 %v6205
      %v6207 = vpop.f32.mrf.mxu0
      %v6208 = vadd.f32 %v5752, %v6207
      %v6209 = vpop.f32.mrf.mxu0
      %6210 = vmatprep.mubr.f32.mxu0 0.0
      %v6211 = vand.u32 %v4773, 4294901760
      %v6212 = vsub.f32 %v4773, %v6211
      %6213 = vmatmul.mubr.f32.gmra.mxu0 %v6212
      %v6214 = vpop.f32.mrf.mxu0
      %v6215 = vadd.f32 %v5758, %v6214
      %v6216 = vpop.f32.mrf.mxu0
      %6217 = vmatprep.mubr.f32.mxu0 0.0
      %v6218 = vand.u32 %v4776, 4294901760
      %v6219 = vsub.f32 %v4776, %v6218
      %6220 = vmatmul.mubr.f32.gmra.mxu0 %v6219
      %v6221 = vpop.f32.mrf.mxu0
      %v6222 = vadd.f32 %v5764, %v6221
      %v6223 = vpop.f32.mrf.mxu0
      %6224 = vmatprep.mubr.f32.mxu0 0.0
      %v6225 = vand.u32 %v4779, 4294901760
      %v6226 = vsub.f32 %v4779, %v6225
      %6227 = vmatmul.mubr.f32.gmra.mxu0 %v6226
      %v6228 = vpop.f32.mrf.mxu0
      %v6229 = vadd.f32 %v5770, %v6228
      %v6230 = vpop.f32.mrf.mxu0
      %6231 = vmatprep.mubr.f32.mxu0 0.0
      %v6232 = vand.u32 %v4782, 4294901760
      %v6233 = vsub.f32 %v4782, %v6232
      %6234 = vmatmul.mubr.f32.gmra.mxu0 %v6233
      %v6235 = vpop.f32.mrf.mxu0
      %v6236 = vadd.f32 %v5776, %v6235
      %v6237 = vpop.f32.mrf.mxu0
      %6238 = vmatprep.mubr.f32.mxu0 0.0
      %v6239 = vand.u32 %v4785, 4294901760
      %v6240 = vsub.f32 %v4785, %v6239
      %6241 = vmatmul.mubr.f32.gmra.mxu0 %v6240
      %v6242 = vpop.f32.mrf.mxu0
      %v6243 = vadd.f32 %v5782, %v6242
      %v6244 = vpop.f32.mrf.mxu0
      %6245 = vmatprep.mubr.f32.mxu0 0.0
      %v6246 = vand.u32 %v4788, 4294901760
      %v6247 = vsub.f32 %v4788, %v6246
      %6248 = vmatmul.mubr.f32.gmra.mxu0 %v6247
      %v6249 = vpop.f32.mrf.mxu0
      %v6250 = vadd.f32 %v5788, %v6249
      %v6251 = vpop.f32.mrf.mxu0
      %6252 = vmatprep.mubr.f32.mxu0 0.0
      %v6253 = vand.u32 %v4791, 4294901760
      %v6254 = vsub.f32 %v4791, %v6253
      %6255 = vmatmul.mubr.f32.gmra.mxu0 %v6254
      %v6256 = vpop.f32.mrf.mxu0
      %v6257 = vadd.f32 %v5794, %v6256
      %v6258 = vpop.f32.mrf.mxu0
      %6259 = vmatprep.mubr.f32.mxu0 0.0
      %v6260 = vand.u32 %v4794, 4294901760
      %v6261 = vsub.f32 %v4794, %v6260
      %6262 = vmatmul.mubr.f32.gmra.mxu0 %v6261
      %v6263 = vpop.f32.mrf.mxu0
      %v6264 = vadd.f32 %v5800, %v6263
      %v6265 = vpop.f32.mrf.mxu0
      %6266 = vmatprep.mubr.f32.mxu0 0.0
      %v6267 = vand.u32 %v4797, 4294901760
      %v6268 = vsub.f32 %v4797, %v6267
      %6269 = vmatmul.mubr.f32.gmra.mxu0 %v6268
      %v6270 = vpop.f32.mrf.mxu0
      %v6271 = vadd.f32 %v5806, %v6270
      %v6272 = vpop.f32.mrf.mxu0
      %6273 = vmatprep.mubr.f32.mxu0 0.0
      %v6274 = vand.u32 %v4800, 4294901760
      %v6275 = vsub.f32 %v4800, %v6274
      %6276 = vmatmul.mubr.f32.gmra.mxu0 %v6275
      %v6277 = vpop.f32.mrf.mxu0
      %v6278 = vadd.f32 %v5812, %v6277
      %v6279 = vpop.f32.mrf.mxu0
      %6280 = vmatprep.mubr.f32.mxu0 0.0
      %v6281 = vand.u32 %v4803, 4294901760
      %v6282 = vsub.f32 %v4803, %v6281
      %6283 = vmatmul.mubr.f32.gmra.mxu0 %v6282
      %v6284 = vpop.f32.mrf.mxu0
      %v6285 = vadd.f32 %v5818, %v6284
      %v6286 = vpop.f32.mrf.mxu0
      %6287 = vmatprep.mubr.f32.mxu0 0.0
      %v6288 = vand.u32 %v4806, 4294901760
      %v6289 = vsub.f32 %v4806, %v6288
      %6290 = vmatmul.mubr.f32.gmra.mxu0 %v6289
      %v6291 = vpop.f32.mrf.mxu0
      %v6292 = vadd.f32 %v5824, %v6291
      %v6293 = vpop.f32.mrf.mxu0
      %6294 = vmatprep.mubr.f32.mxu0 0.0
      %v6295 = vand.u32 %v4809, 4294901760
      %v6296 = vsub.f32 %v4809, %v6295
      %6297 = vmatmul.mubr.f32.gmra.mxu0 %v6296
      %v6298 = vpop.f32.mrf.mxu0
      %v6299 = vadd.f32 %v5830, %v6298
      %v6300 = vpop.f32.mrf.mxu0
      %6301 = vmatprep.mubr.f32.mxu0 0.0
      %v6302 = vand.u32 %v4812, 4294901760
      %v6303 = vsub.f32 %v4812, %v6302
      %6304 = vmatmul.mubr.f32.gmra.mxu0 %v6303
      %v6305 = vpop.f32.mrf.mxu0
      %v6306 = vadd.f32 %v5836, %v6305
      %v6307 = vpop.f32.mrf.mxu0
      %6308 = vmatprep.mubr.f32.mxu0 0.0
      %v6309 = vand.u32 %v4815, 4294901760
      %v6310 = vsub.f32 %v4815, %v6309
      %6311 = vmatmul.mubr.f32.gmra.mxu0 %v6310
      %v6312 = vpop.f32.mrf.mxu0
      %v6313 = vadd.f32 %v5842, %v6312
      %v6314 = vpop.f32.mrf.mxu0
      %6315 = vmatprep.mubr.f32.mxu0 0.0
      %v6316 = vand.u32 %v4818, 4294901760
      %v6317 = vsub.f32 %v4818, %v6316
      %6318 = vmatmul.mubr.f32.gmra.mxu0 %v6317
      %v6319 = vpop.f32.mrf.mxu0
      %v6320 = vadd.f32 %v5848, %v6319
      %v6321 = vpop.f32.mrf.mxu0
      %6322 = vmatprep.mubr.f32.mxu0 0.0
      %v6323 = vand.u32 %v4821, 4294901760
      %v6324 = vsub.f32 %v4821, %v6323
      %6325 = vmatmul.mubr.f32.gmra.mxu0 %v6324
      %v6326 = vpop.f32.mrf.mxu0
      %v6327 = vadd.f32 %v5854, %v6326
      %v6328 = vpop.f32.mrf.mxu0
      %6329 = vmatprep.mubr.f32.mxu0 0.0
      %v6330 = vand.u32 %v4824, 4294901760
      %v6331 = vsub.f32 %v4824, %v6330
      %6332 = vmatmul.mubr.f32.gmra.mxu0 %v6331
      %v6333 = vpop.f32.mrf.mxu0
      %v6334 = vadd.f32 %v5860, %v6333
      %v6335 = vpop.f32.mrf.mxu0
      %6336 = vmatprep.mubr.f32.mxu0 0.0
      %v6337 = vand.u32 %v4827, 4294901760
      %v6338 = vsub.f32 %v4827, %v6337
      %6339 = vmatmul.mubr.f32.gmra.mxu0 %v6338
      %v6340 = vpop.f32.mrf.mxu0
      %v6341 = vadd.f32 %v5866, %v6340
      %v6342 = vpop.f32.mrf.mxu0
      %6343 = vmatprep.mubr.f32.mxu0 0.0
      %v6344 = vand.u32 %v4830, 4294901760
      %v6345 = vsub.f32 %v4830, %v6344
      %6346 = vmatmul.mubr.f32.gmra.mxu0 %v6345
      %v6347 = vpop.f32.mrf.mxu0
      %v6348 = vadd.f32 %v5872, %v6347
      %v6349 = vpop.f32.mrf.mxu0
      %6350 = vmatprep.mubr.f32.mxu0 0.0
      %v6351 = vand.u32 %v4833, 4294901760
      %v6352 = vsub.f32 %v4833, %v6351
      %6353 = vmatmul.mubr.f32.gmra.mxu0 %v6352
      %v6354 = vpop.f32.mrf.mxu0
      %v6355 = vadd.f32 %v5878, %v6354
      %v6356 = vpop.f32.mrf.mxu0
      %6357 = vmatprep.mubr.f32.mxu0 0.0
      %v6358 = vand.u32 %v4836, 4294901760
      %v6359 = vsub.f32 %v4836, %v6358
      %6360 = vmatmul.mubr.f32.gmra.mxu0 %v6359
      %v6361 = vpop.f32.mrf.mxu0
      %v6362 = vadd.f32 %v5884, %v6361
      %v6363 = vpop.f32.mrf.mxu0
      %6364 = vmatprep.mubr.f32.mxu0 0.0
      %v6365 = vand.u32 %v4839, 4294901760
      %v6366 = vsub.f32 %v4839, %v6365
      %6367 = vmatmul.mubr.f32.gmra.mxu0 %v6366
      %v6368 = vpop.f32.mrf.mxu0
      %v6369 = vadd.f32 %v5890, %v6368
      %v6370 = vpop.f32.mrf.mxu0
      %6371 = vmatprep.mubr.f32.mxu0 0.0
      %v6372 = vand.u32 %v4842, 4294901760
      %v6373 = vsub.f32 %v4842, %v6372
      %6374 = vmatmul.mubr.f32.gmra.mxu0 %v6373
      %v6375 = vpop.f32.mrf.mxu0
      %v6376 = vadd.f32 %v5896, %v6375
      %v6377 = vpop.f32.mrf.mxu0
      %6378 = vmatprep.mubr.f32.mxu0 0.0
      %v6379 = vand.u32 %v4845, 4294901760
      %v6380 = vsub.f32 %v4845, %v6379
      %6381 = vmatmul.mubr.f32.gmra.mxu0 %v6380
      %v6382 = vpop.f32.mrf.mxu0
      %v6383 = vadd.f32 %v5902, %v6382
      %v6384 = vpop.f32.mrf.mxu0
      %6385 = vmatprep.mubr.f32.mxu0 0.0
      %v6386 = vand.u32 %v4848, 4294901760
      %v6387 = vsub.f32 %v4848, %v6386
      %6388 = vmatmul.mubr.f32.gmra.mxu0 %v6387
      %v6389 = vpop.f32.mrf.mxu0
      %v6390 = vadd.f32 %v5908, %v6389
      %v6391 = vpop.f32.mrf.mxu0
      %6392 = vmatprep.mubr.f32.mxu0 0.0
      %v6393 = vand.u32 %v4851, 4294901760
      %v6394 = vsub.f32 %v4851, %v6393
      %6395 = vmatmul.mubr.f32.gmra.mxu0 %v6394
      %v6396 = vpop.f32.mrf.mxu0
      %v6397 = vadd.f32 %v5914, %v6396
      %v6398 = vpop.f32.mrf.mxu0
      %6399 = vmatprep.mubr.f32.mxu0 0.0
      %v6400 = vand.u32 %v4854, 4294901760
      %v6401 = vsub.f32 %v4854, %v6400
      %6402 = vmatmul.mubr.f32.gmra.mxu0 %v6401
      %v6403 = vpop.f32.mrf.mxu0
      %v6404 = vadd.f32 %v5920, %v6403
      %v6405 = vpop.f32.mrf.mxu0
      %6406 = vmatprep.mubr.f32.mxu0 0.0
      %v6407 = vand.u32 %v4857, 4294901760
      %v6408 = vsub.f32 %v4857, %v6407
      %6409 = vmatmul.mubr.f32.gmra.mxu0 %v6408
      %v6410 = vpop.f32.mrf.mxu0
      %v6411 = vadd.f32 %v5926, %v6410
      %v6412 = vpop.f32.mrf.mxu0
      %6413 = vmatprep.mubr.f32.mxu0 0.0
      %v6414 = vand.u32 %v4860, 4294901760
      %v6415 = vsub.f32 %v4860, %v6414
      %6416 = vmatmul.mubr.f32.gmra.mxu0 %v6415
      %v6417 = vpop.f32.mrf.mxu0
      %v6418 = vadd.f32 %v5932, %v6417
      %v6419 = vpop.f32.mrf.mxu0
      %6420 = vmatprep.mubr.f32.mxu0 0.0
      %v6421 = vand.u32 %v4863, 4294901760
      %v6422 = vsub.f32 %v4863, %v6421
      %6423 = vmatmul.mubr.f32.gmra.mxu0 %v6422
      %v6424 = vpop.f32.mrf.mxu0
      %v6425 = vadd.f32 %v5938, %v6424
      %v6426 = vpop.f32.mrf.mxu0
      %6427 = vmatprep.mubr.f32.mxu0 0.0
      %v6428 = vand.u32 %v4866, 4294901760
      %v6429 = vsub.f32 %v4866, %v6428
      %6430 = vmatmul.mubr.f32.gmra.mxu0 %v6429
      %v6431 = vpop.f32.mrf.mxu0
      %v6432 = vadd.f32 %v5944, %v6431
      %v6433 = vpop.f32.mrf.mxu0
      %6434 = vmatprep.mubr.f32.mxu0 0.0
      %v6435 = vand.u32 %v4869, 4294901760
      %v6436 = vsub.f32 %v4869, %v6435
      %6437 = vmatmul.mubr.f32.gmra.mxu0 %v6436
      %v6438 = vpop.f32.mrf.mxu0
      %v6439 = vadd.f32 %v5950, %v6438
      %v6440 = vpop.f32.mrf.mxu0
      %6441 = vmatprep.mubr.f32.mxu0 0.0
      %v6442 = vand.u32 %v4872, 4294901760
      %v6443 = vsub.f32 %v4872, %v6442
      %6444 = vmatmul.mubr.f32.gmra.mxu0 %v6443
      %v6445 = vpop.f32.mrf.mxu0
      %v6446 = vadd.f32 %v5956, %v6445
      %v6447 = vpop.f32.mrf.mxu0
      %6448 = vmatprep.mubr.f32.mxu0 0.0
      %v6449 = vand.u32 %v4875, 4294901760
      %v6450 = vsub.f32 %v4875, %v6449
      %6451 = vmatmul.mubr.f32.gmra.mxu0 %v6450
      %v6452 = vpop.f32.mrf.mxu0
      %v6453 = vadd.f32 %v5962, %v6452
      %v6454 = vpop.f32.mrf.mxu0
      %6455 = vmatprep.mubr.f32.mxu0 0.0
      %v6456 = vand.u32 %v4878, 4294901760
      %v6457 = vsub.f32 %v4878, %v6456
      %6458 = vmatmul.mubr.f32.gmra.mxu0 %v6457
      %v6459 = vpop.f32.mrf.mxu0
      %v6460 = vadd.f32 %v5968, %v6459
      %v6461 = vpop.f32.mrf.mxu0
      %6462 = vmatprep.mubr.f32.mxu0 0.0
      %v6463 = vand.u32 %v4881, 4294901760
      %v6464 = vsub.f32 %v4881, %v6463
      %6465 = vmatmul.mubr.f32.gmra.mxu0 %v6464
      %v6466 = vpop.f32.mrf.mxu0
      %v6467 = vadd.f32 %v5974, %v6466
      %v6468 = vpop.f32.mrf.mxu0
      %6469 = vmatprep.mubr.f32.mxu0 0.0
      %v6470 = vand.u32 %v4884, 4294901760
      %v6471 = vsub.f32 %v4884, %v6470
      %6472 = vmatmul.mubr.f32.gmra.mxu0 %v6471
      %v6473 = vpop.f32.mrf.mxu0
      %v6474 = vadd.f32 %v5980, %v6473
      %v6475 = vpop.f32.mrf.mxu0
      %6476 = vmatprep.mubr.f32.mxu0 0.0
      %v6477 = vand.u32 %v4887, 4294901760
      %v6478 = vsub.f32 %v4887, %v6477
      %6479 = vmatmul.mubr.f32.gmra.mxu0 %v6478
      %v6480 = vpop.f32.mrf.mxu0
      %v6481 = vadd.f32 %v5986, %v6480
      %v6482 = vpop.f32.mrf.mxu0
      %6483 = vmatprep.mubr.f32.mxu0 0.0
      %v6484 = vand.u32 %v4890, 4294901760
      %v6485 = vsub.f32 %v4890, %v6484
      %6486 = vmatmul.mubr.f32.gmra.mxu0 %v6485
      %v6487 = vpop.f32.mrf.mxu0
      %v6488 = vadd.f32 %v5992, %v6487
      %v6489 = vpop.f32.mrf.mxu0
      %6490 = vmatprep.mubr.f32.mxu0 0.0
      %v6491 = vand.u32 %v4893, 4294901760
      %v6492 = vsub.f32 %v4893, %v6491
      %6493 = vmatmul.mubr.f32.gmra.mxu0 %v6492
      %v6494 = vpop.f32.mrf.mxu0
      %v6495 = vadd.f32 %v5998, %v6494
      %v6496 = vpop.f32.mrf.mxu0
      %6497 = vmatprep.mubr.f32.mxu0 0.0
      %v6498 = vand.u32 %v4896, 4294901760
      %v6499 = vsub.f32 %v4896, %v6498
      %6500 = vmatmul.mubr.f32.gmra.mxu0 %v6499
      %v6501 = vpop.f32.mrf.mxu0
      %v6502 = vadd.f32 %v6004, %v6501
      %v6503 = vpop.f32.mrf.mxu0
      %6504 = vmatprep.mubr.f32.mxu0 0.0
      %v6505 = vand.u32 %v4899, 4294901760
      %v6506 = vsub.f32 %v4899, %v6505
      %6507 = vmatmul.mubr.f32.gmra.mxu0 %v6506
      %v6508 = vpop.f32.mrf.mxu0
      %v6509 = vadd.f32 %v6010, %v6508
      %v6510 = vpop.f32.mrf.mxu0
      %6511 = vmatprep.mubr.f32.mxu0 0.0
      %v6512 = vand.u32 %v4902, 4294901760
      %v6513 = vsub.f32 %v4902, %v6512
      %6514 = vmatmul.mubr.f32.gmra.mxu0 %v6513
      %v6515 = vpop.f32.mrf.mxu0
      %v6516 = vadd.f32 %v6016, %v6515
      %v6517 = vpop.f32.mrf.mxu0
      %6518 = vmatprep.mubr.f32.mxu0 0.0
      %v6519 = vand.u32 %v4905, 4294901760
      %v6520 = vsub.f32 %v4905, %v6519
      %6521 = vmatmul.mubr.f32.gmra.mxu0 %v6520
      %v6522 = vpop.f32.mrf.mxu0
      %v6523 = vadd.f32 %v6022, %v6522
      %v6524 = vpop.f32.mrf.mxu0
      %6525 = vmatprep.mubr.f32.mxu0 0.0
      %v6526 = vand.u32 %v4908, 4294901760
      %v6527 = vsub.f32 %v4908, %v6526
      %6528 = vmatmul.mubr.f32.gmra.mxu0 %v6527
      %v6529 = vpop.f32.mrf.mxu0
      %v6530 = vadd.f32 %v6028, %v6529
      %v6531 = vpop.f32.mrf.mxu0
      %6532 = vmatprep.mubr.f32.mxu0 0.0
      %v6533 = vand.u32 %v4911, 4294901760
      %v6534 = vsub.f32 %v4911, %v6533
      %6535 = vmatmul.mubr.f32.gmra.mxu0 %v6534
      %v6536 = vpop.f32.mrf.mxu0
      %v6537 = vadd.f32 %v6034, %v6536
      %v6538 = vpop.f32.mrf.mxu0
      %6539 = vmatprep.mubr.f32.mxu0 0.0
      %v6540 = vand.u32 %v4914, 4294901760
      %v6541 = vsub.f32 %v4914, %v6540
      %6542 = vmatmul.mubr.f32.gmra.mxu0 %v6541
      %v6543 = vpop.f32.mrf.mxu0
      %v6544 = vadd.f32 %v6040, %v6543
      %v6545 = vpop.f32.mrf.mxu0
      %6546 = vmatprep.mubr.f32.mxu0 0.0
      %v6547 = vand.u32 %v4917, 4294901760
      %v6548 = vsub.f32 %v4917, %v6547
      %6549 = vmatmul.mubr.f32.gmra.mxu0 %v6548
      %v6550 = vpop.f32.mrf.mxu0
      %v6551 = vadd.f32 %v6046, %v6550
      %v6552 = vpop.f32.mrf.mxu0
      %6553 = vmatprep.mubr.f32.mxu0 0.0
      %v6554 = vand.u32 %v4920, 4294901760
      %v6555 = vsub.f32 %v4920, %v6554
      %6556 = vmatmul.mubr.f32.gmra.mxu0 %v6555
      %v6557 = vpop.f32.mrf.mxu0
      %v6558 = vadd.f32 %v6052, %v6557
      %v6559 = vpop.f32.mrf.mxu0
      %6560 = vmatprep.mubr.f32.mxu0 0.0
      %v6561 = vand.u32 %v4923, 4294901760
      %v6562 = vsub.f32 %v4923, %v6561
      %6563 = vmatmul.mubr.f32.gmra.mxu0 %v6562
      %v6564 = vpop.f32.mrf.mxu0
      %v6565 = vadd.f32 %v6058, %v6564
      %v6566 = vpop.f32.mrf.mxu0
      %6567 = vmatprep.mubr.f32.mxu0 0.0
      %v6568 = vand.u32 %v4926, 4294901760
      %v6569 = vsub.f32 %v4926, %v6568
      %6570 = vmatmul.mubr.f32.gmra.mxu0 %v6569
      %v6571 = vpop.f32.mrf.mxu0
      %v6572 = vadd.f32 %v6064, %v6571
      %v6573 = vpop.f32.mrf.mxu0
      %6574 = vmatprep.mubr.f32.mxu0 0.0
      %v6575 = vand.u32 %v4929, 4294901760
      %v6576 = vsub.f32 %v4929, %v6575
      %6577 = vmatmul.mubr.f32.gmra.mxu0 %v6576
      %v6578 = vpop.f32.mrf.mxu0
      %v6579 = vadd.f32 %v6070, %v6578
      %v6580 = vpop.f32.mrf.mxu0
      %6581 = vmatprep.mubr.f32.mxu0 0.0
      %v6582 = vand.u32 %v4932, 4294901760
      %v6583 = vsub.f32 %v4932, %v6582
      %6584 = vmatmul.mubr.f32.gmra.mxu0 %v6583
      %v6585 = vpop.f32.mrf.mxu0
      %v6586 = vadd.f32 %v6076, %v6585
      %v6587 = vpop.f32.mrf.mxu0
      %6588 = vmatprep.mubr.f32.mxu0 0.0
      %v6589 = vand.u32 %v4935, 4294901760
      %v6590 = vsub.f32 %v4935, %v6589
      %6591 = vmatmul.mubr.f32.gmra.mxu0 %v6590
      %v6592 = vpop.f32.mrf.mxu0
      %v6593 = vadd.f32 %v6082, %v6592
      %v6594 = vpop.f32.mrf.mxu0
      %6595 = vmatprep.mubr.f32.mxu0 0.0
      %v6596 = vand.u32 %v4938, 4294901760
      %v6597 = vsub.f32 %v4938, %v6596
      %6598 = vmatmul.mubr.f32.gmra.mxu0 %v6597
      %v6599 = vpop.f32.mrf.mxu0
      %v6600 = vadd.f32 %v6088, %v6599
      %v6601 = vpop.f32.mrf.mxu0
      %6602 = vmatprep.mubr.f32.mxu0 0.0
      %v6603 = vand.u32 %v4941, 4294901760
      %v6604 = vsub.f32 %v4941, %v6603
      %6605 = vmatmul.mubr.f32.gmra.mxu0 %v6604
      %v6606 = vpop.f32.mrf.mxu0
      %v6607 = vadd.f32 %v6094, %v6606
      %v6608 = vpop.f32.mrf.mxu0
      %6609 = vmatprep.mubr.f32.mxu0 0.0
      %v6610 = vand.u32 %v4944, 4294901760
      %v6611 = vsub.f32 %v4944, %v6610
      %6612 = vmatmul.mubr.f32.gmra.mxu0 %v6611
      %v6613 = vpop.f32.mrf.mxu0
      %v6614 = vadd.f32 %v6100, %v6613
      %v6615 = vpop.f32.mrf.mxu0
      %6616 = vmatprep.mubr.f32.mxu0 0.0
      %v6617 = vand.u32 %v4947, 4294901760
      %v6618 = vsub.f32 %v4947, %v6617
      %6619 = vmatmul.mubr.f32.gmra.mxu0 %v6618
      %v6620 = vpop.f32.mrf.mxu0
      %v6621 = vadd.f32 %v6106, %v6620
      %v6622 = vpop.f32.mrf.mxu0
      %6623 = vdwg.mxu0
      %6624 = vmatprep.subr.mxu0 0.0
      %6625 = vmatpush1.msra.mxu0 0.0
      %6626 = vmatprep.subr.mxu0 0.0
      %6627 = vmatpush1.msra.mxu0 0.0
      %6628 = vmatprep.subr.mxu0 0.0
      %6629 = vmatpush1.msra.mxu0 0.0
      %6630 = vmatprep.subr.mxu0 0.0
      %6631 = vmatpush1.msra.mxu0 0.0
      %6632 = vmatprep.subr.mxu0 0.0
      %6633 = vmatpush1.msra.mxu0 0.0
      %6634 = vmatprep.subr.mxu0 0.0
      %6635 = vmatpush1.msra.mxu0 0.0
      %6636 = vmatprep.subr.mxu0 0.0
      %6637 = vmatpush1.msra.mxu0 0.0
      %6638 = vmatprep.subr.mxu0 0.0
      %6639 = vmatpush1.msra.mxu0 0.0
      %6640 = vmatprep.subr.mxu0 0.0
      %6641 = vmatpush1.msra.mxu0 0.0
      %6642 = vmatprep.subr.mxu0 0.0
      %6643 = vmatpush1.msra.mxu0 0.0
      %6644 = vmatprep.subr.mxu0 0.0
      %6645 = vmatpush1.msra.mxu0 0.0
      %6646 = vmatprep.subr.mxu0 0.0
      %6647 = vmatpush1.msra.mxu0 0.0
      %6648 = vmatprep.subr.mxu0 0.0
      %6649 = vmatpush1.msra.mxu0 0.0
      %6650 = vmatprep.subr.mxu0 0.0
      %6651 = vmatpush1.msra.mxu0 0.0
      %6652 = vmatprep.subr.mxu0 0.0
      %6653 = vmatpush1.msra.mxu0 0.0
      %6654 = vmatprep.subr.mxu0 0.0
      %v6655 = vand.u32 %v4755, 4294901760
      %6656 = vmatpush1.msra.mxu0 %v6655
      %6657 = vmatprep.subr.mxu0 0.0
      %6658 = vmatpush2.msra.mxu0 0.0
      %6659 = vmatprep.subr.mxu0 0.0
      %6660 = vmatpush2.msra.mxu0 0.0
      %6661 = vmatprep.subr.mxu0 0.0
      %6662 = vmatpush2.msra.mxu0 0.0
      %6663 = vmatprep.subr.mxu0 0.0
      %6664 = vmatpush2.msra.mxu0 0.0
      %6665 = vmatprep.subr.mxu0 0.0
      %6666 = vmatpush2.msra.mxu0 0.0
      %6667 = vmatprep.subr.mxu0 0.0
      %6668 = vmatpush2.msra.mxu0 0.0
      %6669 = vmatprep.subr.mxu0 0.0
      %6670 = vmatpush2.msra.mxu0 0.0
      %6671 = vmatprep.subr.mxu0 0.0
      %6672 = vmatpush2.msra.mxu0 0.0
      %6673 = vmatprep.subr.mxu0 0.0
      %6674 = vmatpush2.msra.mxu0 0.0
      %6675 = vmatprep.subr.mxu0 0.0
      %6676 = vmatpush2.msra.mxu0 0.0
      %6677 = vmatprep.subr.mxu0 0.0
      %6678 = vmatpush2.msra.mxu0 0.0
      %6679 = vmatprep.subr.mxu0 0.0
      %6680 = vmatpush2.msra.mxu0 0.0
      %6681 = vmatprep.subr.mxu0 0.0
      %6682 = vmatpush2.msra.mxu0 0.0
      %6683 = vmatprep.subr.mxu0 0.0
      %6684 = vmatpush2.msra.mxu0 0.0
      %6685 = vmatprep.subr.mxu0 0.0
      %6686 = vmatpush2.msra.mxu0 0.0
      %6687 = vmatprep.subr.mxu0 0.0
      %6688 = vmatpush2.msra.mxu0 0.0
      %6689 = vmatprep.mubr.f32.mxu0 0.0
      %v6690 = vand.u32 %v4758, 4294901760
      %v6691 = vsub.f32 %v4758, %v6690
      %v6692 = vand.u32 %v6691, 4294901760
      %6693 = vmatmul.mubr.f32.gmra.mxu0 %v6692
      %v6694 = vpop.f32.mrf.mxu0
      %v6695 = vadd.f32 %v6180, %v6694
      %v6696 = vpop.f32.mrf.mxu0
      %6697 = vmatprep.mubr.f32.mxu0 0.0
      %v6698 = vand.u32 %v4761, 4294901760
      %v6699 = vsub.f32 %v4761, %v6698
      %v6700 = vand.u32 %v6699, 4294901760
      %6701 = vmatmul.mubr.f32.gmra.mxu0 %v6700
      %v6702 = vpop.f32.mrf.mxu0
      %v6703 = vadd.f32 %v6187, %v6702
      %v6704 = vpop.f32.mrf.mxu0
      %6705 = vmatprep.mubr.f32.mxu0 0.0
      %v6706 = vand.u32 %v4764, 4294901760
      %v6707 = vsub.f32 %v4764, %v6706
      %v6708 = vand.u32 %v6707, 4294901760
      %6709 = vmatmul.mubr.f32.gmra.mxu0 %v6708
      %v6710 = vpop.f32.mrf.mxu0
      %v6711 = vadd.f32 %v6194, %v6710
      %v6712 = vpop.f32.mrf.mxu0
      %6713 = vmatprep.mubr.f32.mxu0 0.0
      %v6714 = vand.u32 %v4767, 4294901760
      %v6715 = vsub.f32 %v4767, %v6714
      %v6716 = vand.u32 %v6715, 4294901760
      %6717 = vmatmul.mubr.f32.gmra.mxu0 %v6716
      %v6718 = vpop.f32.mrf.mxu0
      %v6719 = vadd.f32 %v6201, %v6718
      %v6720 = vpop.f32.mrf.mxu0
      %6721 = vmatprep.mubr.f32.mxu0 0.0
      %v6722 = vand.u32 %v4770, 4294901760
      %v6723 = vsub.f32 %v4770, %v6722
      %v6724 = vand.u32 %v6723, 4294901760
      %6725 = vmatmul.mubr.f32.gmra.mxu0 %v6724
      %v6726 = vpop.f32.mrf.mxu0
      %v6727 = vadd.f32 %v6208, %v6726
      %v6728 = vpop.f32.mrf.mxu0
      %6729 = vmatprep.mubr.f32.mxu0 0.0
      %v6730 = vand.u32 %v4773, 4294901760
      %v6731 = vsub.f32 %v4773, %v6730
      %v6732 = vand.u32 %v6731, 4294901760
      %6733 = vmatmul.mubr.f32.gmra.mxu0 %v6732
      %v6734 = vpop.f32.mrf.mxu0
      %v6735 = vadd.f32 %v6215, %v6734
      %v6736 = vpop.f32.mrf.mxu0
      %6737 = vmatprep.mubr.f32.mxu0 0.0
      %v6738 = vand.u32 %v4776, 4294901760
      %v6739 = vsub.f32 %v4776, %v6738
      %v6740 = vand.u32 %v6739, 4294901760
      %6741 = vmatmul.mubr.f32.gmra.mxu0 %v6740
      %v6742 = vpop.f32.mrf.mxu0
      %v6743 = vadd.f32 %v6222, %v6742
      %v6744 = vpop.f32.mrf.mxu0
      %6745 = vmatprep.mubr.f32.mxu0 0.0
      %v6746 = vand.u32 %v4779, 4294901760
      %v6747 = vsub.f32 %v4779, %v6746
      %v6748 = vand.u32 %v6747, 4294901760
      %6749 = vmatmul.mubr.f32.gmra.mxu0 %v6748
      %v6750 = vpop.f32.mrf.mxu0
      %v6751 = vadd.f32 %v6229, %v6750
      %v6752 = vpop.f32.mrf.mxu0
      %6753 = vmatprep.mubr.f32.mxu0 0.0
      %v6754 = vand.u32 %v4782, 4294901760
      %v6755 = vsub.f32 %v4782, %v6754
      %v6756 = vand.u32 %v6755, 4294901760
      %6757 = vmatmul.mubr.f32.gmra.mxu0 %v6756
      %v6758 = vpop.f32.mrf.mxu0
      %v6759 = vadd.f32 %v6236, %v6758
      %v6760 = vpop.f32.mrf.mxu0
      %6761 = vmatprep.mubr.f32.mxu0 0.0
      %v6762 = vand.u32 %v4785, 4294901760
      %v6763 = vsub.f32 %v4785, %v6762
      %v6764 = vand.u32 %v6763, 4294901760
      %6765 = vmatmul.mubr.f32.gmra.mxu0 %v6764
      %v6766 = vpop.f32.mrf.mxu0
      %v6767 = vadd.f32 %v6243, %v6766
      %v6768 = vpop.f32.mrf.mxu0
      %6769 = vmatprep.mubr.f32.mxu0 0.0
      %v6770 = vand.u32 %v4788, 4294901760
      %v6771 = vsub.f32 %v4788, %v6770
      %v6772 = vand.u32 %v6771, 4294901760
      %6773 = vmatmul.mubr.f32.gmra.mxu0 %v6772
      %v6774 = vpop.f32.mrf.mxu0
      %v6775 = vadd.f32 %v6250, %v6774
      %v6776 = vpop.f32.mrf.mxu0
      %6777 = vmatprep.mubr.f32.mxu0 0.0
      %v6778 = vand.u32 %v4791, 4294901760
      %v6779 = vsub.f32 %v4791, %v6778
      %v6780 = vand.u32 %v6779, 4294901760
      %6781 = vmatmul.mubr.f32.gmra.mxu0 %v6780
      %v6782 = vpop.f32.mrf.mxu0
      %v6783 = vadd.f32 %v6257, %v6782
      %v6784 = vpop.f32.mrf.mxu0
      %6785 = vmatprep.mubr.f32.mxu0 0.0
      %v6786 = vand.u32 %v4794, 4294901760
      %v6787 = vsub.f32 %v4794, %v6786
      %v6788 = vand.u32 %v6787, 4294901760
      %6789 = vmatmul.mubr.f32.gmra.mxu0 %v6788
      %v6790 = vpop.f32.mrf.mxu0
      %v6791 = vadd.f32 %v6264, %v6790
      %v6792 = vpop.f32.mrf.mxu0
      %6793 = vmatprep.mubr.f32.mxu0 0.0
      %v6794 = vand.u32 %v4797, 4294901760
      %v6795 = vsub.f32 %v4797, %v6794
      %v6796 = vand.u32 %v6795, 4294901760
      %6797 = vmatmul.mubr.f32.gmra.mxu0 %v6796
      %v6798 = vpop.f32.mrf.mxu0
      %v6799 = vadd.f32 %v6271, %v6798
      %v6800 = vpop.f32.mrf.mxu0
      %6801 = vmatprep.mubr.f32.mxu0 0.0
      %v6802 = vand.u32 %v4800, 4294901760
      %v6803 = vsub.f32 %v4800, %v6802
      %v6804 = vand.u32 %v6803, 4294901760
      %6805 = vmatmul.mubr.f32.gmra.mxu0 %v6804
      %v6806 = vpop.f32.mrf.mxu0
      %v6807 = vadd.f32 %v6278, %v6806
      %v6808 = vpop.f32.mrf.mxu0
      %6809 = vmatprep.mubr.f32.mxu0 0.0
      %v6810 = vand.u32 %v4803, 4294901760
      %v6811 = vsub.f32 %v4803, %v6810
      %v6812 = vand.u32 %v6811, 4294901760
      %6813 = vmatmul.mubr.f32.gmra.mxu0 %v6812
      %v6814 = vpop.f32.mrf.mxu0
      %v6815 = vadd.f32 %v6285, %v6814
      %v6816 = vpop.f32.mrf.mxu0
      %6817 = vmatprep.mubr.f32.mxu0 0.0
      %v6818 = vand.u32 %v4806, 4294901760
      %v6819 = vsub.f32 %v4806, %v6818
      %v6820 = vand.u32 %v6819, 4294901760
      %6821 = vmatmul.mubr.f32.gmra.mxu0 %v6820
      %v6822 = vpop.f32.mrf.mxu0
      %v6823 = vadd.f32 %v6292, %v6822
      %v6824 = vpop.f32.mrf.mxu0
      %6825 = vmatprep.mubr.f32.mxu0 0.0
      %v6826 = vand.u32 %v4809, 4294901760
      %v6827 = vsub.f32 %v4809, %v6826
      %v6828 = vand.u32 %v6827, 4294901760
      %6829 = vmatmul.mubr.f32.gmra.mxu0 %v6828
      %v6830 = vpop.f32.mrf.mxu0
      %v6831 = vadd.f32 %v6299, %v6830
      %v6832 = vpop.f32.mrf.mxu0
      %6833 = vmatprep.mubr.f32.mxu0 0.0
      %v6834 = vand.u32 %v4812, 4294901760
      %v6835 = vsub.f32 %v4812, %v6834
      %v6836 = vand.u32 %v6835, 4294901760
      %6837 = vmatmul.mubr.f32.gmra.mxu0 %v6836
      %v6838 = vpop.f32.mrf.mxu0
      %v6839 = vadd.f32 %v6306, %v6838
      %v6840 = vpop.f32.mrf.mxu0
      %6841 = vmatprep.mubr.f32.mxu0 0.0
      %v6842 = vand.u32 %v4815, 4294901760
      %v6843 = vsub.f32 %v4815, %v6842
      %v6844 = vand.u32 %v6843, 4294901760
      %6845 = vmatmul.mubr.f32.gmra.mxu0 %v6844
      %v6846 = vpop.f32.mrf.mxu0
      %v6847 = vadd.f32 %v6313, %v6846
      %v6848 = vpop.f32.mrf.mxu0
      %6849 = vmatprep.mubr.f32.mxu0 0.0
      %v6850 = vand.u32 %v4818, 4294901760
      %v6851 = vsub.f32 %v4818, %v6850
      %v6852 = vand.u32 %v6851, 4294901760
      %6853 = vmatmul.mubr.f32.gmra.mxu0 %v6852
      %v6854 = vpop.f32.mrf.mxu0
      %v6855 = vadd.f32 %v6320, %v6854
      %v6856 = vpop.f32.mrf.mxu0
      %6857 = vmatprep.mubr.f32.mxu0 0.0
      %v6858 = vand.u32 %v4821, 4294901760
      %v6859 = vsub.f32 %v4821, %v6858
      %v6860 = vand.u32 %v6859, 4294901760
      %6861 = vmatmul.mubr.f32.gmra.mxu0 %v6860
      %v6862 = vpop.f32.mrf.mxu0
      %v6863 = vadd.f32 %v6327, %v6862
      %v6864 = vpop.f32.mrf.mxu0
      %6865 = vmatprep.mubr.f32.mxu0 0.0
      %v6866 = vand.u32 %v4824, 4294901760
      %v6867 = vsub.f32 %v4824, %v6866
      %v6868 = vand.u32 %v6867, 4294901760
      %6869 = vmatmul.mubr.f32.gmra.mxu0 %v6868
      %v6870 = vpop.f32.mrf.mxu0
      %v6871 = vadd.f32 %v6334, %v6870
      %v6872 = vpop.f32.mrf.mxu0
      %6873 = vmatprep.mubr.f32.mxu0 0.0
      %v6874 = vand.u32 %v4827, 4294901760
      %v6875 = vsub.f32 %v4827, %v6874
      %v6876 = vand.u32 %v6875, 4294901760
      %6877 = vmatmul.mubr.f32.gmra.mxu0 %v6876
      %v6878 = vpop.f32.mrf.mxu0
      %v6879 = vadd.f32 %v6341, %v6878
      %v6880 = vpop.f32.mrf.mxu0
      %6881 = vmatprep.mubr.f32.mxu0 0.0
      %v6882 = vand.u32 %v4830, 4294901760
      %v6883 = vsub.f32 %v4830, %v6882
      %v6884 = vand.u32 %v6883, 4294901760
      %6885 = vmatmul.mubr.f32.gmra.mxu0 %v6884
      %v6886 = vpop.f32.mrf.mxu0
      %v6887 = vadd.f32 %v6348, %v6886
      %v6888 = vpop.f32.mrf.mxu0
      %6889 = vmatprep.mubr.f32.mxu0 0.0
      %v6890 = vand.u32 %v4833, 4294901760
      %v6891 = vsub.f32 %v4833, %v6890
      %v6892 = vand.u32 %v6891, 4294901760
      %6893 = vmatmul.mubr.f32.gmra.mxu0 %v6892
      %v6894 = vpop.f32.mrf.mxu0
      %v6895 = vadd.f32 %v6355, %v6894
      %v6896 = vpop.f32.mrf.mxu0
      %6897 = vmatprep.mubr.f32.mxu0 0.0
      %v6898 = vand.u32 %v4836, 4294901760
      %v6899 = vsub.f32 %v4836, %v6898
      %v6900 = vand.u32 %v6899, 4294901760
      %6901 = vmatmul.mubr.f32.gmra.mxu0 %v6900
      %v6902 = vpop.f32.mrf.mxu0
      %v6903 = vadd.f32 %v6362, %v6902
      %v6904 = vpop.f32.mrf.mxu0
      %6905 = vmatprep.mubr.f32.mxu0 0.0
      %v6906 = vand.u32 %v4839, 4294901760
      %v6907 = vsub.f32 %v4839, %v6906
      %v6908 = vand.u32 %v6907, 4294901760
      %6909 = vmatmul.mubr.f32.gmra.mxu0 %v6908
      %v6910 = vpop.f32.mrf.mxu0
      %v6911 = vadd.f32 %v6369, %v6910
      %v6912 = vpop.f32.mrf.mxu0
      %6913 = vmatprep.mubr.f32.mxu0 0.0
      %v6914 = vand.u32 %v4842, 4294901760
      %v6915 = vsub.f32 %v4842, %v6914
      %v6916 = vand.u32 %v6915, 4294901760
      %6917 = vmatmul.mubr.f32.gmra.mxu0 %v6916
      %v6918 = vpop.f32.mrf.mxu0
      %v6919 = vadd.f32 %v6376, %v6918
      %v6920 = vpop.f32.mrf.mxu0
      %6921 = vmatprep.mubr.f32.mxu0 0.0
      %v6922 = vand.u32 %v4845, 4294901760
      %v6923 = vsub.f32 %v4845, %v6922
      %v6924 = vand.u32 %v6923, 4294901760
      %6925 = vmatmul.mubr.f32.gmra.mxu0 %v6924
      %v6926 = vpop.f32.mrf.mxu0
      %v6927 = vadd.f32 %v6383, %v6926
      %v6928 = vpop.f32.mrf.mxu0
      %6929 = vmatprep.mubr.f32.mxu0 0.0
      %v6930 = vand.u32 %v4848, 4294901760
      %v6931 = vsub.f32 %v4848, %v6930
      %v6932 = vand.u32 %v6931, 4294901760
      %6933 = vmatmul.mubr.f32.gmra.mxu0 %v6932
      %v6934 = vpop.f32.mrf.mxu0
      %v6935 = vadd.f32 %v6390, %v6934
      %v6936 = vpop.f32.mrf.mxu0
      %6937 = vmatprep.mubr.f32.mxu0 0.0
      %v6938 = vand.u32 %v4851, 4294901760
      %v6939 = vsub.f32 %v4851, %v6938
      %v6940 = vand.u32 %v6939, 4294901760
      %6941 = vmatmul.mubr.f32.gmra.mxu0 %v6940
      %v6942 = vpop.f32.mrf.mxu0
      %v6943 = vadd.f32 %v6397, %v6942
      %v6944 = vpop.f32.mrf.mxu0
      %6945 = vmatprep.mubr.f32.mxu0 0.0
      %v6946 = vand.u32 %v4854, 4294901760
      %v6947 = vsub.f32 %v4854, %v6946
      %v6948 = vand.u32 %v6947, 4294901760
      %6949 = vmatmul.mubr.f32.gmra.mxu0 %v6948
      %v6950 = vpop.f32.mrf.mxu0
      %v6951 = vadd.f32 %v6404, %v6950
      %v6952 = vpop.f32.mrf.mxu0
      %6953 = vmatprep.mubr.f32.mxu0 0.0
      %v6954 = vand.u32 %v4857, 4294901760
      %v6955 = vsub.f32 %v4857, %v6954
      %v6956 = vand.u32 %v6955, 4294901760
      %6957 = vmatmul.mubr.f32.gmra.mxu0 %v6956
      %v6958 = vpop.f32.mrf.mxu0
      %v6959 = vadd.f32 %v6411, %v6958
      %v6960 = vpop.f32.mrf.mxu0
      %6961 = vmatprep.mubr.f32.mxu0 0.0
      %v6962 = vand.u32 %v4860, 4294901760
      %v6963 = vsub.f32 %v4860, %v6962
      %v6964 = vand.u32 %v6963, 4294901760
      %6965 = vmatmul.mubr.f32.gmra.mxu0 %v6964
      %v6966 = vpop.f32.mrf.mxu0
      %v6967 = vadd.f32 %v6418, %v6966
      %v6968 = vpop.f32.mrf.mxu0
      %6969 = vmatprep.mubr.f32.mxu0 0.0
      %v6970 = vand.u32 %v4863, 4294901760
      %v6971 = vsub.f32 %v4863, %v6970
      %v6972 = vand.u32 %v6971, 4294901760
      %6973 = vmatmul.mubr.f32.gmra.mxu0 %v6972
      %v6974 = vpop.f32.mrf.mxu0
      %v6975 = vadd.f32 %v6425, %v6974
      %v6976 = vpop.f32.mrf.mxu0
      %6977 = vmatprep.mubr.f32.mxu0 0.0
      %v6978 = vand.u32 %v4866, 4294901760
      %v6979 = vsub.f32 %v4866, %v6978
      %v6980 = vand.u32 %v6979, 4294901760
      %6981 = vmatmul.mubr.f32.gmra.mxu0 %v6980
      %v6982 = vpop.f32.mrf.mxu0
      %v6983 = vadd.f32 %v6432, %v6982
      %v6984 = vpop.f32.mrf.mxu0
      %6985 = vmatprep.mubr.f32.mxu0 0.0
      %v6986 = vand.u32 %v4869, 4294901760
      %v6987 = vsub.f32 %v4869, %v6986
      %v6988 = vand.u32 %v6987, 4294901760
      %6989 = vmatmul.mubr.f32.gmra.mxu0 %v6988
      %v6990 = vpop.f32.mrf.mxu0
      %v6991 = vadd.f32 %v6439, %v6990
      %v6992 = vpop.f32.mrf.mxu0
      %6993 = vmatprep.mubr.f32.mxu0 0.0
      %v6994 = vand.u32 %v4872, 4294901760
      %v6995 = vsub.f32 %v4872, %v6994
      %v6996 = vand.u32 %v6995, 4294901760
      %6997 = vmatmul.mubr.f32.gmra.mxu0 %v6996
      %v6998 = vpop.f32.mrf.mxu0
      %v6999 = vadd.f32 %v6446, %v6998
      %v7000 = vpop.f32.mrf.mxu0
      %7001 = vmatprep.mubr.f32.mxu0 0.0
      %v7002 = vand.u32 %v4875, 4294901760
      %v7003 = vsub.f32 %v4875, %v7002
      %v7004 = vand.u32 %v7003, 4294901760
      %7005 = vmatmul.mubr.f32.gmra.mxu0 %v7004
      %v7006 = vpop.f32.mrf.mxu0
      %v7007 = vadd.f32 %v6453, %v7006
      %v7008 = vpop.f32.mrf.mxu0
      %7009 = vmatprep.mubr.f32.mxu0 0.0
      %v7010 = vand.u32 %v4878, 4294901760
      %v7011 = vsub.f32 %v4878, %v7010
      %v7012 = vand.u32 %v7011, 4294901760
      %7013 = vmatmul.mubr.f32.gmra.mxu0 %v7012
      %v7014 = vpop.f32.mrf.mxu0
      %v7015 = vadd.f32 %v6460, %v7014
      %v7016 = vpop.f32.mrf.mxu0
      %7017 = vmatprep.mubr.f32.mxu0 0.0
      %v7018 = vand.u32 %v4881, 4294901760
      %v7019 = vsub.f32 %v4881, %v7018
      %v7020 = vand.u32 %v7019, 4294901760
      %7021 = vmatmul.mubr.f32.gmra.mxu0 %v7020
      %v7022 = vpop.f32.mrf.mxu0
      %v7023 = vadd.f32 %v6467, %v7022
      %v7024 = vpop.f32.mrf.mxu0
      %7025 = vmatprep.mubr.f32.mxu0 0.0
      %v7026 = vand.u32 %v4884, 4294901760
      %v7027 = vsub.f32 %v4884, %v7026
      %v7028 = vand.u32 %v7027, 4294901760
      %7029 = vmatmul.mubr.f32.gmra.mxu0 %v7028
      %v7030 = vpop.f32.mrf.mxu0
      %v7031 = vadd.f32 %v6474, %v7030
      %v7032 = vpop.f32.mrf.mxu0
      %7033 = vmatprep.mubr.f32.mxu0 0.0
      %v7034 = vand.u32 %v4887, 4294901760
      %v7035 = vsub.f32 %v4887, %v7034
      %v7036 = vand.u32 %v7035, 4294901760
      %7037 = vmatmul.mubr.f32.gmra.mxu0 %v7036
      %v7038 = vpop.f32.mrf.mxu0
      %v7039 = vadd.f32 %v6481, %v7038
      %v7040 = vpop.f32.mrf.mxu0
      %7041 = vmatprep.mubr.f32.mxu0 0.0
      %v7042 = vand.u32 %v4890, 4294901760
      %v7043 = vsub.f32 %v4890, %v7042
      %v7044 = vand.u32 %v7043, 4294901760
      %7045 = vmatmul.mubr.f32.gmra.mxu0 %v7044
      %v7046 = vpop.f32.mrf.mxu0
      %v7047 = vadd.f32 %v6488, %v7046
      %v7048 = vpop.f32.mrf.mxu0
      %7049 = vmatprep.mubr.f32.mxu0 0.0
      %v7050 = vand.u32 %v4893, 4294901760
      %v7051 = vsub.f32 %v4893, %v7050
      %v7052 = vand.u32 %v7051, 4294901760
      %7053 = vmatmul.mubr.f32.gmra.mxu0 %v7052
      %v7054 = vpop.f32.mrf.mxu0
      %v7055 = vadd.f32 %v6495, %v7054
      %v7056 = vpop.f32.mrf.mxu0
      %7057 = vmatprep.mubr.f32.mxu0 0.0
      %v7058 = vand.u32 %v4896, 4294901760
      %v7059 = vsub.f32 %v4896, %v7058
      %v7060 = vand.u32 %v7059, 4294901760
      %7061 = vmatmul.mubr.f32.gmra.mxu0 %v7060
      %v7062 = vpop.f32.mrf.mxu0
      %v7063 = vadd.f32 %v6502, %v7062
      %v7064 = vpop.f32.mrf.mxu0
      %7065 = vmatprep.mubr.f32.mxu0 0.0
      %v7066 = vand.u32 %v4899, 4294901760
      %v7067 = vsub.f32 %v4899, %v7066
      %v7068 = vand.u32 %v7067, 4294901760
      %7069 = vmatmul.mubr.f32.gmra.mxu0 %v7068
      %v7070 = vpop.f32.mrf.mxu0
      %v7071 = vadd.f32 %v6509, %v7070
      %v7072 = vpop.f32.mrf.mxu0
      %7073 = vmatprep.mubr.f32.mxu0 0.0
      %v7074 = vand.u32 %v4902, 4294901760
      %v7075 = vsub.f32 %v4902, %v7074
      %v7076 = vand.u32 %v7075, 4294901760
      %7077 = vmatmul.mubr.f32.gmra.mxu0 %v7076
      %v7078 = vpop.f32.mrf.mxu0
      %v7079 = vadd.f32 %v6516, %v7078
      %v7080 = vpop.f32.mrf.mxu0
      %7081 = vmatprep.mubr.f32.mxu0 0.0
      %v7082 = vand.u32 %v4905, 4294901760
      %v7083 = vsub.f32 %v4905, %v7082
      %v7084 = vand.u32 %v7083, 4294901760
      %7085 = vmatmul.mubr.f32.gmra.mxu0 %v7084
      %v7086 = vpop.f32.mrf.mxu0
      %v7087 = vadd.f32 %v6523, %v7086
      %v7088 = vpop.f32.mrf.mxu0
      %7089 = vmatprep.mubr.f32.mxu0 0.0
      %v7090 = vand.u32 %v4908, 4294901760
      %v7091 = vsub.f32 %v4908, %v7090
      %v7092 = vand.u32 %v7091, 4294901760
      %7093 = vmatmul.mubr.f32.gmra.mxu0 %v7092
      %v7094 = vpop.f32.mrf.mxu0
      %v7095 = vadd.f32 %v6530, %v7094
      %v7096 = vpop.f32.mrf.mxu0
      %7097 = vmatprep.mubr.f32.mxu0 0.0
      %v7098 = vand.u32 %v4911, 4294901760
      %v7099 = vsub.f32 %v4911, %v7098
      %v7100 = vand.u32 %v7099, 4294901760
      %7101 = vmatmul.mubr.f32.gmra.mxu0 %v7100
      %v7102 = vpop.f32.mrf.mxu0
      %v7103 = vadd.f32 %v6537, %v7102
      %v7104 = vpop.f32.mrf.mxu0
      %7105 = vmatprep.mubr.f32.mxu0 0.0
      %v7106 = vand.u32 %v4914, 4294901760
      %v7107 = vsub.f32 %v4914, %v7106
      %v7108 = vand.u32 %v7107, 4294901760
      %7109 = vmatmul.mubr.f32.gmra.mxu0 %v7108
      %v7110 = vpop.f32.mrf.mxu0
      %v7111 = vadd.f32 %v6544, %v7110
      %v7112 = vpop.f32.mrf.mxu0
      %7113 = vmatprep.mubr.f32.mxu0 0.0
      %v7114 = vand.u32 %v4917, 4294901760
      %v7115 = vsub.f32 %v4917, %v7114
      %v7116 = vand.u32 %v7115, 4294901760
      %7117 = vmatmul.mubr.f32.gmra.mxu0 %v7116
      %v7118 = vpop.f32.mrf.mxu0
      %v7119 = vadd.f32 %v6551, %v7118
      %v7120 = vpop.f32.mrf.mxu0
      %7121 = vmatprep.mubr.f32.mxu0 0.0
      %v7122 = vand.u32 %v4920, 4294901760
      %v7123 = vsub.f32 %v4920, %v7122
      %v7124 = vand.u32 %v7123, 4294901760
      %7125 = vmatmul.mubr.f32.gmra.mxu0 %v7124
      %v7126 = vpop.f32.mrf.mxu0
      %v7127 = vadd.f32 %v6558, %v7126
      %v7128 = vpop.f32.mrf.mxu0
      %7129 = vmatprep.mubr.f32.mxu0 0.0
      %v7130 = vand.u32 %v4923, 4294901760
      %v7131 = vsub.f32 %v4923, %v7130
      %v7132 = vand.u32 %v7131, 4294901760
      %7133 = vmatmul.mubr.f32.gmra.mxu0 %v7132
      %v7134 = vpop.f32.mrf.mxu0
      %v7135 = vadd.f32 %v6565, %v7134
      %v7136 = vpop.f32.mrf.mxu0
      %7137 = vmatprep.mubr.f32.mxu0 0.0
      %v7138 = vand.u32 %v4926, 4294901760
      %v7139 = vsub.f32 %v4926, %v7138
      %v7140 = vand.u32 %v7139, 4294901760
      %7141 = vmatmul.mubr.f32.gmra.mxu0 %v7140
      %v7142 = vpop.f32.mrf.mxu0
      %v7143 = vadd.f32 %v6572, %v7142
      %v7144 = vpop.f32.mrf.mxu0
      %7145 = vmatprep.mubr.f32.mxu0 0.0
      %v7146 = vand.u32 %v4929, 4294901760
      %v7147 = vsub.f32 %v4929, %v7146
      %v7148 = vand.u32 %v7147, 4294901760
      %7149 = vmatmul.mubr.f32.gmra.mxu0 %v7148
      %v7150 = vpop.f32.mrf.mxu0
      %v7151 = vadd.f32 %v6579, %v7150
      %v7152 = vpop.f32.mrf.mxu0
      %7153 = vmatprep.mubr.f32.mxu0 0.0
      %v7154 = vand.u32 %v4932, 4294901760
      %v7155 = vsub.f32 %v4932, %v7154
      %v7156 = vand.u32 %v7155, 4294901760
      %7157 = vmatmul.mubr.f32.gmra.mxu0 %v7156
      %v7158 = vpop.f32.mrf.mxu0
      %v7159 = vadd.f32 %v6586, %v7158
      %v7160 = vpop.f32.mrf.mxu0
      %7161 = vmatprep.mubr.f32.mxu0 0.0
      %v7162 = vand.u32 %v4935, 4294901760
      %v7163 = vsub.f32 %v4935, %v7162
      %v7164 = vand.u32 %v7163, 4294901760
      %7165 = vmatmul.mubr.f32.gmra.mxu0 %v7164
      %v7166 = vpop.f32.mrf.mxu0
      %v7167 = vadd.f32 %v6593, %v7166
      %v7168 = vpop.f32.mrf.mxu0
      %7169 = vmatprep.mubr.f32.mxu0 0.0
      %v7170 = vand.u32 %v4938, 4294901760
      %v7171 = vsub.f32 %v4938, %v7170
      %v7172 = vand.u32 %v7171, 4294901760
      %7173 = vmatmul.mubr.f32.gmra.mxu0 %v7172
      %v7174 = vpop.f32.mrf.mxu0
      %v7175 = vadd.f32 %v6600, %v7174
      %v7176 = vpop.f32.mrf.mxu0
      %7177 = vmatprep.mubr.f32.mxu0 0.0
      %v7178 = vand.u32 %v4941, 4294901760
      %v7179 = vsub.f32 %v4941, %v7178
      %v7180 = vand.u32 %v7179, 4294901760
      %7181 = vmatmul.mubr.f32.gmra.mxu0 %v7180
      %v7182 = vpop.f32.mrf.mxu0
      %v7183 = vadd.f32 %v6607, %v7182
      %v7184 = vpop.f32.mrf.mxu0
      %7185 = vmatprep.mubr.f32.mxu0 0.0
      %v7186 = vand.u32 %v4944, 4294901760
      %v7187 = vsub.f32 %v4944, %v7186
      %v7188 = vand.u32 %v7187, 4294901760
      %7189 = vmatmul.mubr.f32.gmra.mxu0 %v7188
      %v7190 = vpop.f32.mrf.mxu0
      %v7191 = vadd.f32 %v6614, %v7190
      %v7192 = vpop.f32.mrf.mxu0
      %7193 = vmatprep.mubr.f32.mxu0 0.0
      %v7194 = vand.u32 %v4947, 4294901760
      %v7195 = vsub.f32 %v4947, %v7194
      %v7196 = vand.u32 %v7195, 4294901760
      %7197 = vmatmul.mubr.f32.gmra.mxu0 %v7196
      %v7198 = vpop.f32.mrf.mxu0
      %v7199 = vadd.f32 %v6621, %v7198
      %v7200 = vpop.f32.mrf.mxu0
      %7201 = vdwg.mxu0
      %7202 = vmatprep.subr.mxu0 0.0
      %7203 = vmatpush1.msra.mxu0 0.0
      %7204 = vmatprep.subr.mxu0 0.0
      %7205 = vmatpush1.msra.mxu0 0.0
      %7206 = vmatprep.subr.mxu0 0.0
      %7207 = vmatpush1.msra.mxu0 0.0
      %7208 = vmatprep.subr.mxu0 0.0
      %7209 = vmatpush1.msra.mxu0 0.0
      %7210 = vmatprep.subr.mxu0 0.0
      %7211 = vmatpush1.msra.mxu0 0.0
      %7212 = vmatprep.subr.mxu0 0.0
      %7213 = vmatpush1.msra.mxu0 0.0
      %7214 = vmatprep.subr.mxu0 0.0
      %7215 = vmatpush1.msra.mxu0 0.0
      %7216 = vmatprep.subr.mxu0 0.0
      %7217 = vmatpush1.msra.mxu0 0.0
      %7218 = vmatprep.subr.mxu0 0.0
      %7219 = vmatpush1.msra.mxu0 0.0
      %7220 = vmatprep.subr.mxu0 0.0
      %7221 = vmatpush1.msra.mxu0 0.0
      %7222 = vmatprep.subr.mxu0 0.0
      %7223 = vmatpush1.msra.mxu0 0.0
      %7224 = vmatprep.subr.mxu0 0.0
      %7225 = vmatpush1.msra.mxu0 0.0
      %7226 = vmatprep.subr.mxu0 0.0
      %7227 = vmatpush1.msra.mxu0 0.0
      %7228 = vmatprep.subr.mxu0 0.0
      %7229 = vmatpush1.msra.mxu0 0.0
      %7230 = vmatprep.subr.mxu0 0.0
      %7231 = vmatpush1.msra.mxu0 0.0
      %7232 = vmatprep.subr.mxu0 0.0
      %v7233 = vand.u32 %v4755, 4294901760
      %v7234 = vsub.f32 %v4755, %v7233
      %v7235 = vand.u32 %v7234, 4294901760
      %7236 = vmatpush1.msra.mxu0 %v7235
      %7237 = vmatprep.subr.mxu0 0.0
      %7238 = vmatpush2.msra.mxu0 0.0
      %7239 = vmatprep.subr.mxu0 0.0
      %7240 = vmatpush2.msra.mxu0 0.0
      %7241 = vmatprep.subr.mxu0 0.0
      %7242 = vmatpush2.msra.mxu0 0.0
      %7243 = vmatprep.subr.mxu0 0.0
      %7244 = vmatpush2.msra.mxu0 0.0
      %7245 = vmatprep.subr.mxu0 0.0
      %7246 = vmatpush2.msra.mxu0 0.0
      %7247 = vmatprep.subr.mxu0 0.0
      %7248 = vmatpush2.msra.mxu0 0.0
      %7249 = vmatprep.subr.mxu0 0.0
      %7250 = vmatpush2.msra.mxu0 0.0
      %7251 = vmatprep.subr.mxu0 0.0
      %7252 = vmatpush2.msra.mxu0 0.0
      %7253 = vmatprep.subr.mxu0 0.0
      %7254 = vmatpush2.msra.mxu0 0.0
      %7255 = vmatprep.subr.mxu0 0.0
      %7256 = vmatpush2.msra.mxu0 0.0
      %7257 = vmatprep.subr.mxu0 0.0
      %7258 = vmatpush2.msra.mxu0 0.0
      %7259 = vmatprep.subr.mxu0 0.0
      %7260 = vmatpush2.msra.mxu0 0.0
      %7261 = vmatprep.subr.mxu0 0.0
      %7262 = vmatpush2.msra.mxu0 0.0
      %7263 = vmatprep.subr.mxu0 0.0
      %7264 = vmatpush2.msra.mxu0 0.0
      %7265 = vmatprep.subr.mxu0 0.0
      %7266 = vmatpush2.msra.mxu0 0.0
      %7267 = vmatprep.subr.mxu0 0.0
      %7268 = vmatpush2.msra.mxu0 0.0
      %7269 = vmatprep.mubr.f32.mxu0 0.0
      %v7270 = vand.u32 %v4758, 4294901760
      %7271 = vmatmul.mubr.f32.gmra.mxu0 %v7270
      %v7272 = vpop.f32.mrf.mxu0
      %v7273 = vadd.f32 %v6695, %v7272
      %v7274 = vpop.f32.mrf.mxu0
      %7275 = vmatprep.mubr.f32.mxu0 0.0
      %v7276 = vand.u32 %v4761, 4294901760
      %7277 = vmatmul.mubr.f32.gmra.mxu0 %v7276
      %v7278 = vpop.f32.mrf.mxu0
      %v7279 = vadd.f32 %v6703, %v7278
      %v7280 = vpop.f32.mrf.mxu0
      %7281 = vmatprep.mubr.f32.mxu0 0.0
      %v7282 = vand.u32 %v4764, 4294901760
      %7283 = vmatmul.mubr.f32.gmra.mxu0 %v7282
      %v7284 = vpop.f32.mrf.mxu0
      %v7285 = vadd.f32 %v6711, %v7284
      %v7286 = vpop.f32.mrf.mxu0
      %7287 = vmatprep.mubr.f32.mxu0 0.0
      %v7288 = vand.u32 %v4767, 4294901760
      %7289 = vmatmul.mubr.f32.gmra.mxu0 %v7288
      %v7290 = vpop.f32.mrf.mxu0
      %v7291 = vadd.f32 %v6719, %v7290
      %v7292 = vpop.f32.mrf.mxu0
      %7293 = vmatprep.mubr.f32.mxu0 0.0
      %v7294 = vand.u32 %v4770, 4294901760
      %7295 = vmatmul.mubr.f32.gmra.mxu0 %v7294
      %v7296 = vpop.f32.mrf.mxu0
      %v7297 = vadd.f32 %v6727, %v7296
      %v7298 = vpop.f32.mrf.mxu0
      %7299 = vmatprep.mubr.f32.mxu0 0.0
      %v7300 = vand.u32 %v4773, 4294901760
      %7301 = vmatmul.mubr.f32.gmra.mxu0 %v7300
      %v7302 = vpop.f32.mrf.mxu0
      %v7303 = vadd.f32 %v6735, %v7302
      %v7304 = vpop.f32.mrf.mxu0
      %7305 = vmatprep.mubr.f32.mxu0 0.0
      %v7306 = vand.u32 %v4776, 4294901760
      %7307 = vmatmul.mubr.f32.gmra.mxu0 %v7306
      %v7308 = vpop.f32.mrf.mxu0
      %v7309 = vadd.f32 %v6743, %v7308
      %v7310 = vpop.f32.mrf.mxu0
      %7311 = vmatprep.mubr.f32.mxu0 0.0
      %v7312 = vand.u32 %v4779, 4294901760
      %7313 = vmatmul.mubr.f32.gmra.mxu0 %v7312
      %v7314 = vpop.f32.mrf.mxu0
      %v7315 = vadd.f32 %v6751, %v7314
      %v7316 = vpop.f32.mrf.mxu0
      %7317 = vmatprep.mubr.f32.mxu0 0.0
      %v7318 = vand.u32 %v4782, 4294901760
      %7319 = vmatmul.mubr.f32.gmra.mxu0 %v7318
      %v7320 = vpop.f32.mrf.mxu0
      %v7321 = vadd.f32 %v6759, %v7320
      %v7322 = vpop.f32.mrf.mxu0
      %7323 = vmatprep.mubr.f32.mxu0 0.0
      %v7324 = vand.u32 %v4785, 4294901760
      %7325 = vmatmul.mubr.f32.gmra.mxu0 %v7324
      %v7326 = vpop.f32.mrf.mxu0
      %v7327 = vadd.f32 %v6767, %v7326
      %v7328 = vpop.f32.mrf.mxu0
      %7329 = vmatprep.mubr.f32.mxu0 0.0
      %v7330 = vand.u32 %v4788, 4294901760
      %7331 = vmatmul.mubr.f32.gmra.mxu0 %v7330
      %v7332 = vpop.f32.mrf.mxu0
      %v7333 = vadd.f32 %v6775, %v7332
      %v7334 = vpop.f32.mrf.mxu0
      %7335 = vmatprep.mubr.f32.mxu0 0.0
      %v7336 = vand.u32 %v4791, 4294901760
      %7337 = vmatmul.mubr.f32.gmra.mxu0 %v7336
      %v7338 = vpop.f32.mrf.mxu0
      %v7339 = vadd.f32 %v6783, %v7338
      %v7340 = vpop.f32.mrf.mxu0
      %7341 = vmatprep.mubr.f32.mxu0 0.0
      %v7342 = vand.u32 %v4794, 4294901760
      %7343 = vmatmul.mubr.f32.gmra.mxu0 %v7342
      %v7344 = vpop.f32.mrf.mxu0
      %v7345 = vadd.f32 %v6791, %v7344
      %v7346 = vpop.f32.mrf.mxu0
      %7347 = vmatprep.mubr.f32.mxu0 0.0
      %v7348 = vand.u32 %v4797, 4294901760
      %7349 = vmatmul.mubr.f32.gmra.mxu0 %v7348
      %v7350 = vpop.f32.mrf.mxu0
      %v7351 = vadd.f32 %v6799, %v7350
      %v7352 = vpop.f32.mrf.mxu0
      %7353 = vmatprep.mubr.f32.mxu0 0.0
      %v7354 = vand.u32 %v4800, 4294901760
      %7355 = vmatmul.mubr.f32.gmra.mxu0 %v7354
      %v7356 = vpop.f32.mrf.mxu0
      %v7357 = vadd.f32 %v6807, %v7356
      %v7358 = vpop.f32.mrf.mxu0
      %7359 = vmatprep.mubr.f32.mxu0 0.0
      %v7360 = vand.u32 %v4803, 4294901760
      %7361 = vmatmul.mubr.f32.gmra.mxu0 %v7360
      %v7362 = vpop.f32.mrf.mxu0
      %v7363 = vadd.f32 %v6815, %v7362
      %v7364 = vpop.f32.mrf.mxu0
      %7365 = vmatprep.mubr.f32.mxu0 0.0
      %v7366 = vand.u32 %v4806, 4294901760
      %7367 = vmatmul.mubr.f32.gmra.mxu0 %v7366
      %v7368 = vpop.f32.mrf.mxu0
      %v7369 = vadd.f32 %v6823, %v7368
      %v7370 = vpop.f32.mrf.mxu0
      %7371 = vmatprep.mubr.f32.mxu0 0.0
      %v7372 = vand.u32 %v4809, 4294901760
      %7373 = vmatmul.mubr.f32.gmra.mxu0 %v7372
      %v7374 = vpop.f32.mrf.mxu0
      %v7375 = vadd.f32 %v6831, %v7374
      %v7376 = vpop.f32.mrf.mxu0
      %7377 = vmatprep.mubr.f32.mxu0 0.0
      %v7378 = vand.u32 %v4812, 4294901760
      %7379 = vmatmul.mubr.f32.gmra.mxu0 %v7378
      %v7380 = vpop.f32.mrf.mxu0
      %v7381 = vadd.f32 %v6839, %v7380
      %v7382 = vpop.f32.mrf.mxu0
      %7383 = vmatprep.mubr.f32.mxu0 0.0
      %v7384 = vand.u32 %v4815, 4294901760
      %7385 = vmatmul.mubr.f32.gmra.mxu0 %v7384
      %v7386 = vpop.f32.mrf.mxu0
      %v7387 = vadd.f32 %v6847, %v7386
      %v7388 = vpop.f32.mrf.mxu0
      %7389 = vmatprep.mubr.f32.mxu0 0.0
      %v7390 = vand.u32 %v4818, 4294901760
      %7391 = vmatmul.mubr.f32.gmra.mxu0 %v7390
      %v7392 = vpop.f32.mrf.mxu0
      %v7393 = vadd.f32 %v6855, %v7392
      %v7394 = vpop.f32.mrf.mxu0
      %7395 = vmatprep.mubr.f32.mxu0 0.0
      %v7396 = vand.u32 %v4821, 4294901760
      %7397 = vmatmul.mubr.f32.gmra.mxu0 %v7396
      %v7398 = vpop.f32.mrf.mxu0
      %v7399 = vadd.f32 %v6863, %v7398
      %v7400 = vpop.f32.mrf.mxu0
      %7401 = vmatprep.mubr.f32.mxu0 0.0
      %v7402 = vand.u32 %v4824, 4294901760
      %7403 = vmatmul.mubr.f32.gmra.mxu0 %v7402
      %v7404 = vpop.f32.mrf.mxu0
      %v7405 = vadd.f32 %v6871, %v7404
      %v7406 = vpop.f32.mrf.mxu0
      %7407 = vmatprep.mubr.f32.mxu0 0.0
      %v7408 = vand.u32 %v4827, 4294901760
      %7409 = vmatmul.mubr.f32.gmra.mxu0 %v7408
      %v7410 = vpop.f32.mrf.mxu0
      %v7411 = vadd.f32 %v6879, %v7410
      %v7412 = vpop.f32.mrf.mxu0
      %7413 = vmatprep.mubr.f32.mxu0 0.0
      %v7414 = vand.u32 %v4830, 4294901760
      %7415 = vmatmul.mubr.f32.gmra.mxu0 %v7414
      %v7416 = vpop.f32.mrf.mxu0
      %v7417 = vadd.f32 %v6887, %v7416
      %v7418 = vpop.f32.mrf.mxu0
      %7419 = vmatprep.mubr.f32.mxu0 0.0
      %v7420 = vand.u32 %v4833, 4294901760
      %7421 = vmatmul.mubr.f32.gmra.mxu0 %v7420
      %v7422 = vpop.f32.mrf.mxu0
      %v7423 = vadd.f32 %v6895, %v7422
      %v7424 = vpop.f32.mrf.mxu0
      %7425 = vmatprep.mubr.f32.mxu0 0.0
      %v7426 = vand.u32 %v4836, 4294901760
      %7427 = vmatmul.mubr.f32.gmra.mxu0 %v7426
      %v7428 = vpop.f32.mrf.mxu0
      %v7429 = vadd.f32 %v6903, %v7428
      %v7430 = vpop.f32.mrf.mxu0
      %7431 = vmatprep.mubr.f32.mxu0 0.0
      %v7432 = vand.u32 %v4839, 4294901760
      %7433 = vmatmul.mubr.f32.gmra.mxu0 %v7432
      %v7434 = vpop.f32.mrf.mxu0
      %v7435 = vadd.f32 %v6911, %v7434
      %v7436 = vpop.f32.mrf.mxu0
      %7437 = vmatprep.mubr.f32.mxu0 0.0
      %v7438 = vand.u32 %v4842, 4294901760
      %7439 = vmatmul.mubr.f32.gmra.mxu0 %v7438
      %v7440 = vpop.f32.mrf.mxu0
      %v7441 = vadd.f32 %v6919, %v7440
      %v7442 = vpop.f32.mrf.mxu0
      %7443 = vmatprep.mubr.f32.mxu0 0.0
      %v7444 = vand.u32 %v4845, 4294901760
      %7445 = vmatmul.mubr.f32.gmra.mxu0 %v7444
      %v7446 = vpop.f32.mrf.mxu0
      %v7447 = vadd.f32 %v6927, %v7446
      %v7448 = vpop.f32.mrf.mxu0
      %7449 = vmatprep.mubr.f32.mxu0 0.0
      %v7450 = vand.u32 %v4848, 4294901760
      %7451 = vmatmul.mubr.f32.gmra.mxu0 %v7450
      %v7452 = vpop.f32.mrf.mxu0
      %v7453 = vadd.f32 %v6935, %v7452
      %v7454 = vpop.f32.mrf.mxu0
      %7455 = vmatprep.mubr.f32.mxu0 0.0
      %v7456 = vand.u32 %v4851, 4294901760
      %7457 = vmatmul.mubr.f32.gmra.mxu0 %v7456
      %v7458 = vpop.f32.mrf.mxu0
      %v7459 = vadd.f32 %v6943, %v7458
      %v7460 = vpop.f32.mrf.mxu0
      %7461 = vmatprep.mubr.f32.mxu0 0.0
      %v7462 = vand.u32 %v4854, 4294901760
      %7463 = vmatmul.mubr.f32.gmra.mxu0 %v7462
      %v7464 = vpop.f32.mrf.mxu0
      %v7465 = vadd.f32 %v6951, %v7464
      %v7466 = vpop.f32.mrf.mxu0
      %7467 = vmatprep.mubr.f32.mxu0 0.0
      %v7468 = vand.u32 %v4857, 4294901760
      %7469 = vmatmul.mubr.f32.gmra.mxu0 %v7468
      %v7470 = vpop.f32.mrf.mxu0
      %v7471 = vadd.f32 %v6959, %v7470
      %v7472 = vpop.f32.mrf.mxu0
      %7473 = vmatprep.mubr.f32.mxu0 0.0
      %v7474 = vand.u32 %v4860, 4294901760
      %7475 = vmatmul.mubr.f32.gmra.mxu0 %v7474
      %v7476 = vpop.f32.mrf.mxu0
      %v7477 = vadd.f32 %v6967, %v7476
      %v7478 = vpop.f32.mrf.mxu0
      %7479 = vmatprep.mubr.f32.mxu0 0.0
      %v7480 = vand.u32 %v4863, 4294901760
      %7481 = vmatmul.mubr.f32.gmra.mxu0 %v7480
      %v7482 = vpop.f32.mrf.mxu0
      %v7483 = vadd.f32 %v6975, %v7482
      %v7484 = vpop.f32.mrf.mxu0
      %7485 = vmatprep.mubr.f32.mxu0 0.0
      %v7486 = vand.u32 %v4866, 4294901760
      %7487 = vmatmul.mubr.f32.gmra.mxu0 %v7486
      %v7488 = vpop.f32.mrf.mxu0
      %v7489 = vadd.f32 %v6983, %v7488
      %v7490 = vpop.f32.mrf.mxu0
      %7491 = vmatprep.mubr.f32.mxu0 0.0
      %v7492 = vand.u32 %v4869, 4294901760
      %7493 = vmatmul.mubr.f32.gmra.mxu0 %v7492
      %v7494 = vpop.f32.mrf.mxu0
      %v7495 = vadd.f32 %v6991, %v7494
      %v7496 = vpop.f32.mrf.mxu0
      %7497 = vmatprep.mubr.f32.mxu0 0.0
      %v7498 = vand.u32 %v4872, 4294901760
      %7499 = vmatmul.mubr.f32.gmra.mxu0 %v7498
      %v7500 = vpop.f32.mrf.mxu0
      %v7501 = vadd.f32 %v6999, %v7500
      %v7502 = vpop.f32.mrf.mxu0
      %7503 = vmatprep.mubr.f32.mxu0 0.0
      %v7504 = vand.u32 %v4875, 4294901760
      %7505 = vmatmul.mubr.f32.gmra.mxu0 %v7504
      %v7506 = vpop.f32.mrf.mxu0
      %v7507 = vadd.f32 %v7007, %v7506
      %v7508 = vpop.f32.mrf.mxu0
      %7509 = vmatprep.mubr.f32.mxu0 0.0
      %v7510 = vand.u32 %v4878, 4294901760
      %7511 = vmatmul.mubr.f32.gmra.mxu0 %v7510
      %v7512 = vpop.f32.mrf.mxu0
      %v7513 = vadd.f32 %v7015, %v7512
      %v7514 = vpop.f32.mrf.mxu0
      %7515 = vmatprep.mubr.f32.mxu0 0.0
      %v7516 = vand.u32 %v4881, 4294901760
      %7517 = vmatmul.mubr.f32.gmra.mxu0 %v7516
      %v7518 = vpop.f32.mrf.mxu0
      %v7519 = vadd.f32 %v7023, %v7518
      %v7520 = vpop.f32.mrf.mxu0
      %7521 = vmatprep.mubr.f32.mxu0 0.0
      %v7522 = vand.u32 %v4884, 4294901760
      %7523 = vmatmul.mubr.f32.gmra.mxu0 %v7522
      %v7524 = vpop.f32.mrf.mxu0
      %v7525 = vadd.f32 %v7031, %v7524
      %v7526 = vpop.f32.mrf.mxu0
      %7527 = vmatprep.mubr.f32.mxu0 0.0
      %v7528 = vand.u32 %v4887, 4294901760
      %7529 = vmatmul.mubr.f32.gmra.mxu0 %v7528
      %v7530 = vpop.f32.mrf.mxu0
      %v7531 = vadd.f32 %v7039, %v7530
      %v7532 = vpop.f32.mrf.mxu0
      %7533 = vmatprep.mubr.f32.mxu0 0.0
      %v7534 = vand.u32 %v4890, 4294901760
      %7535 = vmatmul.mubr.f32.gmra.mxu0 %v7534
      %v7536 = vpop.f32.mrf.mxu0
      %v7537 = vadd.f32 %v7047, %v7536
      %v7538 = vpop.f32.mrf.mxu0
      %7539 = vmatprep.mubr.f32.mxu0 0.0
      %v7540 = vand.u32 %v4893, 4294901760
      %7541 = vmatmul.mubr.f32.gmra.mxu0 %v7540
      %v7542 = vpop.f32.mrf.mxu0
      %v7543 = vadd.f32 %v7055, %v7542
      %v7544 = vpop.f32.mrf.mxu0
      %7545 = vmatprep.mubr.f32.mxu0 0.0
      %v7546 = vand.u32 %v4896, 4294901760
      %7547 = vmatmul.mubr.f32.gmra.mxu0 %v7546
      %v7548 = vpop.f32.mrf.mxu0
      %v7549 = vadd.f32 %v7063, %v7548
      %v7550 = vpop.f32.mrf.mxu0
      %7551 = vmatprep.mubr.f32.mxu0 0.0
      %v7552 = vand.u32 %v4899, 4294901760
      %7553 = vmatmul.mubr.f32.gmra.mxu0 %v7552
      %v7554 = vpop.f32.mrf.mxu0
      %v7555 = vadd.f32 %v7071, %v7554
      %v7556 = vpop.f32.mrf.mxu0
      %7557 = vmatprep.mubr.f32.mxu0 0.0
      %v7558 = vand.u32 %v4902, 4294901760
      %7559 = vmatmul.mubr.f32.gmra.mxu0 %v7558
      %v7560 = vpop.f32.mrf.mxu0
      %v7561 = vadd.f32 %v7079, %v7560
      %v7562 = vpop.f32.mrf.mxu0
      %7563 = vmatprep.mubr.f32.mxu0 0.0
      %v7564 = vand.u32 %v4905, 4294901760
      %7565 = vmatmul.mubr.f32.gmra.mxu0 %v7564
      %v7566 = vpop.f32.mrf.mxu0
      %v7567 = vadd.f32 %v7087, %v7566
      %v7568 = vpop.f32.mrf.mxu0
      %7569 = vmatprep.mubr.f32.mxu0 0.0
      %v7570 = vand.u32 %v4908, 4294901760
      %7571 = vmatmul.mubr.f32.gmra.mxu0 %v7570
      %v7572 = vpop.f32.mrf.mxu0
      %v7573 = vadd.f32 %v7095, %v7572
      %v7574 = vpop.f32.mrf.mxu0
      %7575 = vmatprep.mubr.f32.mxu0 0.0
      %v7576 = vand.u32 %v4911, 4294901760
      %7577 = vmatmul.mubr.f32.gmra.mxu0 %v7576
      %v7578 = vpop.f32.mrf.mxu0
      %v7579 = vadd.f32 %v7103, %v7578
      %v7580 = vpop.f32.mrf.mxu0
      %7581 = vmatprep.mubr.f32.mxu0 0.0
      %v7582 = vand.u32 %v4914, 4294901760
      %7583 = vmatmul.mubr.f32.gmra.mxu0 %v7582
      %v7584 = vpop.f32.mrf.mxu0
      %v7585 = vadd.f32 %v7111, %v7584
      %v7586 = vpop.f32.mrf.mxu0
      %7587 = vmatprep.mubr.f32.mxu0 0.0
      %v7588 = vand.u32 %v4917, 4294901760
      %7589 = vmatmul.mubr.f32.gmra.mxu0 %v7588
      %v7590 = vpop.f32.mrf.mxu0
      %v7591 = vadd.f32 %v7119, %v7590
      %v7592 = vpop.f32.mrf.mxu0
      %7593 = vmatprep.mubr.f32.mxu0 0.0
      %v7594 = vand.u32 %v4920, 4294901760
      %7595 = vmatmul.mubr.f32.gmra.mxu0 %v7594
      %v7596 = vpop.f32.mrf.mxu0
      %v7597 = vadd.f32 %v7127, %v7596
      %v7598 = vpop.f32.mrf.mxu0
      %7599 = vmatprep.mubr.f32.mxu0 0.0
      %v7600 = vand.u32 %v4923, 4294901760
      %7601 = vmatmul.mubr.f32.gmra.mxu0 %v7600
      %v7602 = vpop.f32.mrf.mxu0
      %v7603 = vadd.f32 %v7135, %v7602
      %v7604 = vpop.f32.mrf.mxu0
      %7605 = vmatprep.mubr.f32.mxu0 0.0
      %v7606 = vand.u32 %v4926, 4294901760
      %7607 = vmatmul.mubr.f32.gmra.mxu0 %v7606
      %v7608 = vpop.f32.mrf.mxu0
      %v7609 = vadd.f32 %v7143, %v7608
      %v7610 = vpop.f32.mrf.mxu0
      %7611 = vmatprep.mubr.f32.mxu0 0.0
      %v7612 = vand.u32 %v4929, 4294901760
      %7613 = vmatmul.mubr.f32.gmra.mxu0 %v7612
      %v7614 = vpop.f32.mrf.mxu0
      %v7615 = vadd.f32 %v7151, %v7614
      %v7616 = vpop.f32.mrf.mxu0
      %7617 = vmatprep.mubr.f32.mxu0 0.0
      %v7618 = vand.u32 %v4932, 4294901760
      %7619 = vmatmul.mubr.f32.gmra.mxu0 %v7618
      %v7620 = vpop.f32.mrf.mxu0
      %v7621 = vadd.f32 %v7159, %v7620
      %v7622 = vpop.f32.mrf.mxu0
      %7623 = vmatprep.mubr.f32.mxu0 0.0
      %v7624 = vand.u32 %v4935, 4294901760
      %7625 = vmatmul.mubr.f32.gmra.mxu0 %v7624
      %v7626 = vpop.f32.mrf.mxu0
      %v7627 = vadd.f32 %v7167, %v7626
      %v7628 = vpop.f32.mrf.mxu0
      %7629 = vmatprep.mubr.f32.mxu0 0.0
      %v7630 = vand.u32 %v4938, 4294901760
      %7631 = vmatmul.mubr.f32.gmra.mxu0 %v7630
      %v7632 = vpop.f32.mrf.mxu0
      %v7633 = vadd.f32 %v7175, %v7632
      %v7634 = vpop.f32.mrf.mxu0
      %7635 = vmatprep.mubr.f32.mxu0 0.0
      %v7636 = vand.u32 %v4941, 4294901760
      %7637 = vmatmul.mubr.f32.gmra.mxu0 %v7636
      %v7638 = vpop.f32.mrf.mxu0
      %v7639 = vadd.f32 %v7183, %v7638
      %v7640 = vpop.f32.mrf.mxu0
      %7641 = vmatprep.mubr.f32.mxu0 0.0
      %v7642 = vand.u32 %v4944, 4294901760
      %7643 = vmatmul.mubr.f32.gmra.mxu0 %v7642
      %v7644 = vpop.f32.mrf.mxu0
      %v7645 = vadd.f32 %v7191, %v7644
      %v7646 = vpop.f32.mrf.mxu0
      %7647 = vmatprep.mubr.f32.mxu0 0.0
      %v7648 = vand.u32 %v4947, 4294901760
      %7649 = vmatmul.mubr.f32.gmra.mxu0 %v7648
      %v7650 = vpop.f32.mrf.mxu0
      %v7651 = vadd.f32 %v7199, %v7650
      %v7652 = vpop.f32.mrf.mxu0
      %7653 = vdwg.mxu0
      %7654 = vmatprep.subr.mxu0 0.0
      %7655 = vmatpush1.msra.mxu0 0.0
      %7656 = vmatprep.subr.mxu0 0.0
      %7657 = vmatpush1.msra.mxu0 0.0
      %7658 = vmatprep.subr.mxu0 0.0
      %7659 = vmatpush1.msra.mxu0 0.0
      %7660 = vmatprep.subr.mxu0 0.0
      %7661 = vmatpush1.msra.mxu0 0.0
      %7662 = vmatprep.subr.mxu0 0.0
      %7663 = vmatpush1.msra.mxu0 0.0
      %7664 = vmatprep.subr.mxu0 0.0
      %7665 = vmatpush1.msra.mxu0 0.0
      %7666 = vmatprep.subr.mxu0 0.0
      %7667 = vmatpush1.msra.mxu0 0.0
      %7668 = vmatprep.subr.mxu0 0.0
      %7669 = vmatpush1.msra.mxu0 0.0
      %7670 = vmatprep.subr.mxu0 0.0
      %7671 = vmatpush1.msra.mxu0 0.0
      %7672 = vmatprep.subr.mxu0 0.0
      %7673 = vmatpush1.msra.mxu0 0.0
      %7674 = vmatprep.subr.mxu0 0.0
      %7675 = vmatpush1.msra.mxu0 0.0
      %7676 = vmatprep.subr.mxu0 0.0
      %7677 = vmatpush1.msra.mxu0 0.0
      %7678 = vmatprep.subr.mxu0 0.0
      %7679 = vmatpush1.msra.mxu0 0.0
      %7680 = vmatprep.subr.mxu0 0.0
      %7681 = vmatpush1.msra.mxu0 0.0
      %7682 = vmatprep.subr.mxu0 0.0
      %7683 = vmatpush1.msra.mxu0 0.0
      %7684 = vmatprep.subr.mxu0 0.0
      %v7685 = vand.u32 %v4755, 4294901760
      %7686 = vmatpush1.msra.mxu0 %v7685
      %7687 = vmatprep.subr.mxu0 0.0
      %7688 = vmatpush2.msra.mxu0 0.0
      %7689 = vmatprep.subr.mxu0 0.0
      %7690 = vmatpush2.msra.mxu0 0.0
      %7691 = vmatprep.subr.mxu0 0.0
      %7692 = vmatpush2.msra.mxu0 0.0
      %7693 = vmatprep.subr.mxu0 0.0
      %7694 = vmatpush2.msra.mxu0 0.0
      %7695 = vmatprep.subr.mxu0 0.0
      %7696 = vmatpush2.msra.mxu0 0.0
      %7697 = vmatprep.subr.mxu0 0.0
      %7698 = vmatpush2.msra.mxu0 0.0
      %7699 = vmatprep.subr.mxu0 0.0
      %7700 = vmatpush2.msra.mxu0 0.0
      %7701 = vmatprep.subr.mxu0 0.0
      %7702 = vmatpush2.msra.mxu0 0.0
      %7703 = vmatprep.subr.mxu0 0.0
      %7704 = vmatpush2.msra.mxu0 0.0
      %7705 = vmatprep.subr.mxu0 0.0
      %7706 = vmatpush2.msra.mxu0 0.0
      %7707 = vmatprep.subr.mxu0 0.0
      %7708 = vmatpush2.msra.mxu0 0.0
      %7709 = vmatprep.subr.mxu0 0.0
      %7710 = vmatpush2.msra.mxu0 0.0
      %7711 = vmatprep.subr.mxu0 0.0
      %7712 = vmatpush2.msra.mxu0 0.0
      %7713 = vmatprep.subr.mxu0 0.0
      %7714 = vmatpush2.msra.mxu0 0.0
      %7715 = vmatprep.subr.mxu0 0.0
      %7716 = vmatpush2.msra.mxu0 0.0
      %7717 = vmatprep.subr.mxu0 0.0
      %7718 = vmatpush2.msra.mxu0 0.0
      %7719 = vmatprep.mubr.f32.mxu0 0.0
      %v7720 = vand.u32 %v4758, 4294901760
      %7721 = vmatmul.mubr.f32.gmra.mxu0 %v7720
      %v7722 = vpop.f32.mrf.mxu0
      %v7723 = vadd.f32 %v7273, %v7722
      %v7724 = vpop.f32.mrf.mxu0
      %7725 = vmatprep.mubr.f32.mxu0 0.0
      %v7726 = vand.u32 %v4761, 4294901760
      %7727 = vmatmul.mubr.f32.gmra.mxu0 %v7726
      %v7728 = vpop.f32.mrf.mxu0
      %v7729 = vadd.f32 %v7279, %v7728
      %v7730 = vpop.f32.mrf.mxu0
      %7731 = vmatprep.mubr.f32.mxu0 0.0
      %v7732 = vand.u32 %v4764, 4294901760
      %7733 = vmatmul.mubr.f32.gmra.mxu0 %v7732
      %v7734 = vpop.f32.mrf.mxu0
      %v7735 = vadd.f32 %v7285, %v7734
      %v7736 = vpop.f32.mrf.mxu0
      %7737 = vmatprep.mubr.f32.mxu0 0.0
      %v7738 = vand.u32 %v4767, 4294901760
      %7739 = vmatmul.mubr.f32.gmra.mxu0 %v7738
      %v7740 = vpop.f32.mrf.mxu0
      %v7741 = vadd.f32 %v7291, %v7740
      %v7742 = vpop.f32.mrf.mxu0
      %7743 = vmatprep.mubr.f32.mxu0 0.0
      %v7744 = vand.u32 %v4770, 4294901760
      %7745 = vmatmul.mubr.f32.gmra.mxu0 %v7744
      %v7746 = vpop.f32.mrf.mxu0
      %v7747 = vadd.f32 %v7297, %v7746
      %v7748 = vpop.f32.mrf.mxu0
      %7749 = vmatprep.mubr.f32.mxu0 0.0
      %v7750 = vand.u32 %v4773, 4294901760
      %7751 = vmatmul.mubr.f32.gmra.mxu0 %v7750
      %v7752 = vpop.f32.mrf.mxu0
      %v7753 = vadd.f32 %v7303, %v7752
      %v7754 = vpop.f32.mrf.mxu0
      %7755 = vmatprep.mubr.f32.mxu0 0.0
      %v7756 = vand.u32 %v4776, 4294901760
      %7757 = vmatmul.mubr.f32.gmra.mxu0 %v7756
      %v7758 = vpop.f32.mrf.mxu0
      %v7759 = vadd.f32 %v7309, %v7758
      %v7760 = vpop.f32.mrf.mxu0
      %7761 = vmatprep.mubr.f32.mxu0 0.0
      %v7762 = vand.u32 %v4779, 4294901760
      %7763 = vmatmul.mubr.f32.gmra.mxu0 %v7762
      %v7764 = vpop.f32.mrf.mxu0
      %v7765 = vadd.f32 %v7315, %v7764
      %v7766 = vpop.f32.mrf.mxu0
      %7767 = vmatprep.mubr.f32.mxu0 0.0
      %v7768 = vand.u32 %v4782, 4294901760
      %7769 = vmatmul.mubr.f32.gmra.mxu0 %v7768
      %v7770 = vpop.f32.mrf.mxu0
      %v7771 = vadd.f32 %v7321, %v7770
      %v7772 = vpop.f32.mrf.mxu0
      %7773 = vmatprep.mubr.f32.mxu0 0.0
      %v7774 = vand.u32 %v4785, 4294901760
      %7775 = vmatmul.mubr.f32.gmra.mxu0 %v7774
      %v7776 = vpop.f32.mrf.mxu0
      %v7777 = vadd.f32 %v7327, %v7776
      %v7778 = vpop.f32.mrf.mxu0
      %7779 = vmatprep.mubr.f32.mxu0 0.0
      %v7780 = vand.u32 %v4788, 4294901760
      %7781 = vmatmul.mubr.f32.gmra.mxu0 %v7780
      %v7782 = vpop.f32.mrf.mxu0
      %v7783 = vadd.f32 %v7333, %v7782
      %v7784 = vpop.f32.mrf.mxu0
      %7785 = vmatprep.mubr.f32.mxu0 0.0
      %v7786 = vand.u32 %v4791, 4294901760
      %7787 = vmatmul.mubr.f32.gmra.mxu0 %v7786
      %v7788 = vpop.f32.mrf.mxu0
      %v7789 = vadd.f32 %v7339, %v7788
      %v7790 = vpop.f32.mrf.mxu0
      %7791 = vmatprep.mubr.f32.mxu0 0.0
      %v7792 = vand.u32 %v4794, 4294901760
      %7793 = vmatmul.mubr.f32.gmra.mxu0 %v7792
      %v7794 = vpop.f32.mrf.mxu0
      %v7795 = vadd.f32 %v7345, %v7794
      %v7796 = vpop.f32.mrf.mxu0
      %7797 = vmatprep.mubr.f32.mxu0 0.0
      %v7798 = vand.u32 %v4797, 4294901760
      %7799 = vmatmul.mubr.f32.gmra.mxu0 %v7798
      %v7800 = vpop.f32.mrf.mxu0
      %v7801 = vadd.f32 %v7351, %v7800
      %v7802 = vpop.f32.mrf.mxu0
      %7803 = vmatprep.mubr.f32.mxu0 0.0
      %v7804 = vand.u32 %v4800, 4294901760
      %7805 = vmatmul.mubr.f32.gmra.mxu0 %v7804
      %v7806 = vpop.f32.mrf.mxu0
      %v7807 = vadd.f32 %v7357, %v7806
      %v7808 = vpop.f32.mrf.mxu0
      %7809 = vmatprep.mubr.f32.mxu0 0.0
      %v7810 = vand.u32 %v4803, 4294901760
      %7811 = vmatmul.mubr.f32.gmra.mxu0 %v7810
      %v7812 = vpop.f32.mrf.mxu0
      %v7813 = vadd.f32 %v7363, %v7812
      %v7814 = vpop.f32.mrf.mxu0
      %7815 = vmatprep.mubr.f32.mxu0 0.0
      %v7816 = vand.u32 %v4806, 4294901760
      %7817 = vmatmul.mubr.f32.gmra.mxu0 %v7816
      %v7818 = vpop.f32.mrf.mxu0
      %v7819 = vadd.f32 %v7369, %v7818
      %v7820 = vpop.f32.mrf.mxu0
      %7821 = vmatprep.mubr.f32.mxu0 0.0
      %v7822 = vand.u32 %v4809, 4294901760
      %7823 = vmatmul.mubr.f32.gmra.mxu0 %v7822
      %v7824 = vpop.f32.mrf.mxu0
      %v7825 = vadd.f32 %v7375, %v7824
      %v7826 = vpop.f32.mrf.mxu0
      %7827 = vmatprep.mubr.f32.mxu0 0.0
      %v7828 = vand.u32 %v4812, 4294901760
      %7829 = vmatmul.mubr.f32.gmra.mxu0 %v7828
      %v7830 = vpop.f32.mrf.mxu0
      %v7831 = vadd.f32 %v7381, %v7830
      %v7832 = vpop.f32.mrf.mxu0
      %7833 = vmatprep.mubr.f32.mxu0 0.0
      %v7834 = vand.u32 %v4815, 4294901760
      %7835 = vmatmul.mubr.f32.gmra.mxu0 %v7834
      %v7836 = vpop.f32.mrf.mxu0
      %v7837 = vadd.f32 %v7387, %v7836
      %v7838 = vpop.f32.mrf.mxu0
      %7839 = vmatprep.mubr.f32.mxu0 0.0
      %v7840 = vand.u32 %v4818, 4294901760
      %7841 = vmatmul.mubr.f32.gmra.mxu0 %v7840
      %v7842 = vpop.f32.mrf.mxu0
      %v7843 = vadd.f32 %v7393, %v7842
      %v7844 = vpop.f32.mrf.mxu0
      %7845 = vmatprep.mubr.f32.mxu0 0.0
      %v7846 = vand.u32 %v4821, 4294901760
      %7847 = vmatmul.mubr.f32.gmra.mxu0 %v7846
      %v7848 = vpop.f32.mrf.mxu0
      %v7849 = vadd.f32 %v7399, %v7848
      %v7850 = vpop.f32.mrf.mxu0
      %7851 = vmatprep.mubr.f32.mxu0 0.0
      %v7852 = vand.u32 %v4824, 4294901760
      %7853 = vmatmul.mubr.f32.gmra.mxu0 %v7852
      %v7854 = vpop.f32.mrf.mxu0
      %v7855 = vadd.f32 %v7405, %v7854
      %v7856 = vpop.f32.mrf.mxu0
      %7857 = vmatprep.mubr.f32.mxu0 0.0
      %v7858 = vand.u32 %v4827, 4294901760
      %7859 = vmatmul.mubr.f32.gmra.mxu0 %v7858
      %v7860 = vpop.f32.mrf.mxu0
      %v7861 = vadd.f32 %v7411, %v7860
      %v7862 = vpop.f32.mrf.mxu0
      %7863 = vmatprep.mubr.f32.mxu0 0.0
      %v7864 = vand.u32 %v4830, 4294901760
      %7865 = vmatmul.mubr.f32.gmra.mxu0 %v7864
      %v7866 = vpop.f32.mrf.mxu0
      %v7867 = vadd.f32 %v7417, %v7866
      %v7868 = vpop.f32.mrf.mxu0
      %7869 = vmatprep.mubr.f32.mxu0 0.0
      %v7870 = vand.u32 %v4833, 4294901760
      %7871 = vmatmul.mubr.f32.gmra.mxu0 %v7870
      %v7872 = vpop.f32.mrf.mxu0
      %v7873 = vadd.f32 %v7423, %v7872
      %v7874 = vpop.f32.mrf.mxu0
      %7875 = vmatprep.mubr.f32.mxu0 0.0
      %v7876 = vand.u32 %v4836, 4294901760
      %7877 = vmatmul.mubr.f32.gmra.mxu0 %v7876
      %v7878 = vpop.f32.mrf.mxu0
      %v7879 = vadd.f32 %v7429, %v7878
      %v7880 = vpop.f32.mrf.mxu0
      %7881 = vmatprep.mubr.f32.mxu0 0.0
      %v7882 = vand.u32 %v4839, 4294901760
      %7883 = vmatmul.mubr.f32.gmra.mxu0 %v7882
      %v7884 = vpop.f32.mrf.mxu0
      %v7885 = vadd.f32 %v7435, %v7884
      %v7886 = vpop.f32.mrf.mxu0
      %7887 = vmatprep.mubr.f32.mxu0 0.0
      %v7888 = vand.u32 %v4842, 4294901760
      %7889 = vmatmul.mubr.f32.gmra.mxu0 %v7888
      %v7890 = vpop.f32.mrf.mxu0
      %v7891 = vadd.f32 %v7441, %v7890
      %v7892 = vpop.f32.mrf.mxu0
      %7893 = vmatprep.mubr.f32.mxu0 0.0
      %v7894 = vand.u32 %v4845, 4294901760
      %7895 = vmatmul.mubr.f32.gmra.mxu0 %v7894
      %v7896 = vpop.f32.mrf.mxu0
      %v7897 = vadd.f32 %v7447, %v7896
      %v7898 = vpop.f32.mrf.mxu0
      %7899 = vmatprep.mubr.f32.mxu0 0.0
      %v7900 = vand.u32 %v4848, 4294901760
      %7901 = vmatmul.mubr.f32.gmra.mxu0 %v7900
      %v7902 = vpop.f32.mrf.mxu0
      %v7903 = vadd.f32 %v7453, %v7902
      %v7904 = vpop.f32.mrf.mxu0
      %7905 = vmatprep.mubr.f32.mxu0 0.0
      %v7906 = vand.u32 %v4851, 4294901760
      %7907 = vmatmul.mubr.f32.gmra.mxu0 %v7906
      %v7908 = vpop.f32.mrf.mxu0
      %v7909 = vadd.f32 %v7459, %v7908
      %v7910 = vpop.f32.mrf.mxu0
      %7911 = vmatprep.mubr.f32.mxu0 0.0
      %v7912 = vand.u32 %v4854, 4294901760
      %7913 = vmatmul.mubr.f32.gmra.mxu0 %v7912
      %v7914 = vpop.f32.mrf.mxu0
      %v7915 = vadd.f32 %v7465, %v7914
      %v7916 = vpop.f32.mrf.mxu0
      %7917 = vmatprep.mubr.f32.mxu0 0.0
      %v7918 = vand.u32 %v4857, 4294901760
      %7919 = vmatmul.mubr.f32.gmra.mxu0 %v7918
      %v7920 = vpop.f32.mrf.mxu0
      %v7921 = vadd.f32 %v7471, %v7920
      %v7922 = vpop.f32.mrf.mxu0
      %7923 = vmatprep.mubr.f32.mxu0 0.0
      %v7924 = vand.u32 %v4860, 4294901760
      %7925 = vmatmul.mubr.f32.gmra.mxu0 %v7924
      %v7926 = vpop.f32.mrf.mxu0
      %v7927 = vadd.f32 %v7477, %v7926
      %v7928 = vpop.f32.mrf.mxu0
      %7929 = vmatprep.mubr.f32.mxu0 0.0
      %v7930 = vand.u32 %v4863, 4294901760
      %7931 = vmatmul.mubr.f32.gmra.mxu0 %v7930
      %v7932 = vpop.f32.mrf.mxu0
      %v7933 = vadd.f32 %v7483, %v7932
      %v7934 = vpop.f32.mrf.mxu0
      %7935 = vmatprep.mubr.f32.mxu0 0.0
      %v7936 = vand.u32 %v4866, 4294901760
      %7937 = vmatmul.mubr.f32.gmra.mxu0 %v7936
      %v7938 = vpop.f32.mrf.mxu0
      %v7939 = vadd.f32 %v7489, %v7938
      %v7940 = vpop.f32.mrf.mxu0
      %7941 = vmatprep.mubr.f32.mxu0 0.0
      %v7942 = vand.u32 %v4869, 4294901760
      %7943 = vmatmul.mubr.f32.gmra.mxu0 %v7942
      %v7944 = vpop.f32.mrf.mxu0
      %v7945 = vadd.f32 %v7495, %v7944
      %v7946 = vpop.f32.mrf.mxu0
      %7947 = vmatprep.mubr.f32.mxu0 0.0
      %v7948 = vand.u32 %v4872, 4294901760
      %7949 = vmatmul.mubr.f32.gmra.mxu0 %v7948
      %v7950 = vpop.f32.mrf.mxu0
      %v7951 = vadd.f32 %v7501, %v7950
      %v7952 = vpop.f32.mrf.mxu0
      %7953 = vmatprep.mubr.f32.mxu0 0.0
      %v7954 = vand.u32 %v4875, 4294901760
      %7955 = vmatmul.mubr.f32.gmra.mxu0 %v7954
      %v7956 = vpop.f32.mrf.mxu0
      %v7957 = vadd.f32 %v7507, %v7956
      %v7958 = vpop.f32.mrf.mxu0
      %7959 = vmatprep.mubr.f32.mxu0 0.0
      %v7960 = vand.u32 %v4878, 4294901760
      %7961 = vmatmul.mubr.f32.gmra.mxu0 %v7960
      %v7962 = vpop.f32.mrf.mxu0
      %v7963 = vadd.f32 %v7513, %v7962
      %v7964 = vpop.f32.mrf.mxu0
      %7965 = vmatprep.mubr.f32.mxu0 0.0
      %v7966 = vand.u32 %v4881, 4294901760
      %7967 = vmatmul.mubr.f32.gmra.mxu0 %v7966
      %v7968 = vpop.f32.mrf.mxu0
      %v7969 = vadd.f32 %v7519, %v7968
      %v7970 = vpop.f32.mrf.mxu0
      %7971 = vmatprep.mubr.f32.mxu0 0.0
      %v7972 = vand.u32 %v4884, 4294901760
      %7973 = vmatmul.mubr.f32.gmra.mxu0 %v7972
      %v7974 = vpop.f32.mrf.mxu0
      %v7975 = vadd.f32 %v7525, %v7974
      %v7976 = vpop.f32.mrf.mxu0
      %7977 = vmatprep.mubr.f32.mxu0 0.0
      %v7978 = vand.u32 %v4887, 4294901760
      %7979 = vmatmul.mubr.f32.gmra.mxu0 %v7978
      %v7980 = vpop.f32.mrf.mxu0
      %v7981 = vadd.f32 %v7531, %v7980
      %v7982 = vpop.f32.mrf.mxu0
      %7983 = vmatprep.mubr.f32.mxu0 0.0
      %v7984 = vand.u32 %v4890, 4294901760
      %7985 = vmatmul.mubr.f32.gmra.mxu0 %v7984
      %v7986 = vpop.f32.mrf.mxu0
      %v7987 = vadd.f32 %v7537, %v7986
      %v7988 = vpop.f32.mrf.mxu0
      %7989 = vmatprep.mubr.f32.mxu0 0.0
      %v7990 = vand.u32 %v4893, 4294901760
      %7991 = vmatmul.mubr.f32.gmra.mxu0 %v7990
      %v7992 = vpop.f32.mrf.mxu0
      %v7993 = vadd.f32 %v7543, %v7992
      %v7994 = vpop.f32.mrf.mxu0
      %7995 = vmatprep.mubr.f32.mxu0 0.0
      %v7996 = vand.u32 %v4896, 4294901760
      %7997 = vmatmul.mubr.f32.gmra.mxu0 %v7996
      %v7998 = vpop.f32.mrf.mxu0
      %v7999 = vadd.f32 %v7549, %v7998
      %v8000 = vpop.f32.mrf.mxu0
      %8001 = vmatprep.mubr.f32.mxu0 0.0
      %v8002 = vand.u32 %v4899, 4294901760
      %8003 = vmatmul.mubr.f32.gmra.mxu0 %v8002
      %v8004 = vpop.f32.mrf.mxu0
      %v8005 = vadd.f32 %v7555, %v8004
      %v8006 = vpop.f32.mrf.mxu0
      %8007 = vmatprep.mubr.f32.mxu0 0.0
      %v8008 = vand.u32 %v4902, 4294901760
      %8009 = vmatmul.mubr.f32.gmra.mxu0 %v8008
      %v8010 = vpop.f32.mrf.mxu0
      %v8011 = vadd.f32 %v7561, %v8010
      %v8012 = vpop.f32.mrf.mxu0
      %8013 = vmatprep.mubr.f32.mxu0 0.0
      %v8014 = vand.u32 %v4905, 4294901760
      %8015 = vmatmul.mubr.f32.gmra.mxu0 %v8014
      %v8016 = vpop.f32.mrf.mxu0
      %v8017 = vadd.f32 %v7567, %v8016
      %v8018 = vpop.f32.mrf.mxu0
      %8019 = vmatprep.mubr.f32.mxu0 0.0
      %v8020 = vand.u32 %v4908, 4294901760
      %8021 = vmatmul.mubr.f32.gmra.mxu0 %v8020
      %v8022 = vpop.f32.mrf.mxu0
      %v8023 = vadd.f32 %v7573, %v8022
      %v8024 = vpop.f32.mrf.mxu0
      %8025 = vmatprep.mubr.f32.mxu0 0.0
      %v8026 = vand.u32 %v4911, 4294901760
      %8027 = vmatmul.mubr.f32.gmra.mxu0 %v8026
      %v8028 = vpop.f32.mrf.mxu0
      %v8029 = vadd.f32 %v7579, %v8028
      %v8030 = vpop.f32.mrf.mxu0
      %8031 = vmatprep.mubr.f32.mxu0 0.0
      %v8032 = vand.u32 %v4914, 4294901760
      %8033 = vmatmul.mubr.f32.gmra.mxu0 %v8032
      %v8034 = vpop.f32.mrf.mxu0
      %v8035 = vadd.f32 %v7585, %v8034
      %v8036 = vpop.f32.mrf.mxu0
      %8037 = vmatprep.mubr.f32.mxu0 0.0
      %v8038 = vand.u32 %v4917, 4294901760
      %8039 = vmatmul.mubr.f32.gmra.mxu0 %v8038
      %v8040 = vpop.f32.mrf.mxu0
      %v8041 = vadd.f32 %v7591, %v8040
      %v8042 = vpop.f32.mrf.mxu0
      %8043 = vmatprep.mubr.f32.mxu0 0.0
      %v8044 = vand.u32 %v4920, 4294901760
      %8045 = vmatmul.mubr.f32.gmra.mxu0 %v8044
      %v8046 = vpop.f32.mrf.mxu0
      %v8047 = vadd.f32 %v7597, %v8046
      %v8048 = vpop.f32.mrf.mxu0
      %8049 = vmatprep.mubr.f32.mxu0 0.0
      %v8050 = vand.u32 %v4923, 4294901760
      %8051 = vmatmul.mubr.f32.gmra.mxu0 %v8050
      %v8052 = vpop.f32.mrf.mxu0
      %v8053 = vadd.f32 %v7603, %v8052
      %v8054 = vpop.f32.mrf.mxu0
      %8055 = vmatprep.mubr.f32.mxu0 0.0
      %v8056 = vand.u32 %v4926, 4294901760
      %8057 = vmatmul.mubr.f32.gmra.mxu0 %v8056
      %v8058 = vpop.f32.mrf.mxu0
      %v8059 = vadd.f32 %v7609, %v8058
      %v8060 = vpop.f32.mrf.mxu0
      %8061 = vmatprep.mubr.f32.mxu0 0.0
      %v8062 = vand.u32 %v4929, 4294901760
      %8063 = vmatmul.mubr.f32.gmra.mxu0 %v8062
      %v8064 = vpop.f32.mrf.mxu0
      %v8065 = vadd.f32 %v7615, %v8064
      %v8066 = vpop.f32.mrf.mxu0
      %8067 = vmatprep.mubr.f32.mxu0 0.0
      %v8068 = vand.u32 %v4932, 4294901760
      %8069 = vmatmul.mubr.f32.gmra.mxu0 %v8068
      %v8070 = vpop.f32.mrf.mxu0
      %v8071 = vadd.f32 %v7621, %v8070
      %v8072 = vpop.f32.mrf.mxu0
      %8073 = vmatprep.mubr.f32.mxu0 0.0
      %v8074 = vand.u32 %v4935, 4294901760
      %8075 = vmatmul.mubr.f32.gmra.mxu0 %v8074
      %v8076 = vpop.f32.mrf.mxu0
      %v8077 = vadd.f32 %v7627, %v8076
      %v8078 = vpop.f32.mrf.mxu0
      %8079 = vmatprep.mubr.f32.mxu0 0.0
      %v8080 = vand.u32 %v4938, 4294901760
      %8081 = vmatmul.mubr.f32.gmra.mxu0 %v8080
      %v8082 = vpop.f32.mrf.mxu0
      %v8083 = vadd.f32 %v7633, %v8082
      %v8084 = vpop.f32.mrf.mxu0
      %8085 = vmatprep.mubr.f32.mxu0 0.0
      %v8086 = vand.u32 %v4941, 4294901760
      %8087 = vmatmul.mubr.f32.gmra.mxu0 %v8086
      %v8088 = vpop.f32.mrf.mxu0
      %v8089 = vadd.f32 %v7639, %v8088
      %v8090 = vpop.f32.mrf.mxu0
      %8091 = vmatprep.mubr.f32.mxu0 0.0
      %v8092 = vand.u32 %v4944, 4294901760
      %8093 = vmatmul.mubr.f32.gmra.mxu0 %v8092
      %v8094 = vpop.f32.mrf.mxu0
      %v8095 = vadd.f32 %v7645, %v8094
      %v8096 = vpop.f32.mrf.mxu0
      %8097 = vmatprep.mubr.f32.mxu0 0.0
      %v8098 = vand.u32 %v4947, 4294901760
      %8099 = vmatmul.mubr.f32.gmra.mxu0 %v8098
      %v8100 = vpop.f32.mrf.mxu0
      %v8101 = vadd.f32 %v7651, %v8100
      %v8102 = vpop.f32.mrf.mxu0
      %8103 = vdwg.mxu0
      %vm8104 = vcmask 130048
      %8105 = vst.msk [vmem:[%s203] sm:$0xff] %vm8104, %v7723
      %8106 = vst.msk [vmem:[%s203 + $0x8] sm:$0xff] %vm8104, %v7729
      %8107 = vst.msk [vmem:[%s203 + $0x10] sm:$0xff] %vm8104, %v7735
      %8108 = vst.msk [vmem:[%s203 + $0x18] sm:$0xff] %vm8104, %v7741
      %8109 = vst.msk [vmem:[%s203 + $0x20] sm:$0xff] %vm8104, %v7747
      %8110 = vst.msk [vmem:[%s203 + $0x28] sm:$0xff] %vm8104, %v7753
      %8111 = vst.msk [vmem:[%s203 + $0x30] sm:$0xff] %vm8104, %v7759
      %8112 = vst.msk [vmem:[%s203 + $0x38] sm:$0xff] %vm8104, %v7765
      %8113 = vst.msk [vmem:[%s203 + $0x40] sm:$0xff] %vm8104, %v7771
      %8114 = vst.msk [vmem:[%s203 + $0x48] sm:$0xff] %vm8104, %v7777
      %8115 = vst.msk [vmem:[%s203 + $0x50] sm:$0xff] %vm8104, %v7783
      %8116 = vst.msk [vmem:[%s203 + $0x58] sm:$0xff] %vm8104, %v7789
      %8117 = vst.msk [vmem:[%s203 + $0x60] sm:$0xff] %vm8104, %v7795
      %8118 = vst.msk [vmem:[%s203 + $0x68] sm:$0xff] %vm8104, %v7801
      %8119 = vst.msk [vmem:[%s203 + $0x70] sm:$0xff] %vm8104, %v7807
      %8120 = vst.msk [vmem:[%s203 + $0x78] sm:$0xff] %vm8104, %v7813
      %8121 = vst.msk [vmem:[%s203 + $0x80] sm:$0xff] %vm8104, %v7819
      %8122 = vst.msk [vmem:[%s203 + $0x88] sm:$0xff] %vm8104, %v7825
      %8123 = vst.msk [vmem:[%s203 + $0x90] sm:$0xff] %vm8104, %v7831
      %8124 = vst.msk [vmem:[%s203 + $0x98] sm:$0xff] %vm8104, %v7837
      %8125 = vst.msk [vmem:[%s203 + $0xa0] sm:$0xff] %vm8104, %v7843
      %8126 = vst.msk [vmem:[%s203 + $0xa8] sm:$0xff] %vm8104, %v7849
      %8127 = vst.msk [vmem:[%s203 + $0xb0] sm:$0xff] %vm8104, %v7855
      %8128 = vst.msk [vmem:[%s203 + $0xb8] sm:$0xff] %vm8104, %v7861
      %8129 = vst.msk [vmem:[%s203 + $0xc0] sm:$0xff] %vm8104, %v7867
      %8130 = vst.msk [vmem:[%s203 + $0xc8] sm:$0xff] %vm8104, %v7873
      %8131 = vst.msk [vmem:[%s203 + $0xd0] sm:$0xff] %vm8104, %v7879
      %8132 = vst.msk [vmem:[%s203 + $0xd8] sm:$0xff] %vm8104, %v7885
      %8133 = vst.msk [vmem:[%s203 + $0xe0] sm:$0xff] %vm8104, %v7891
      %8134 = vst.msk [vmem:[%s203 + $0xe8] sm:$0xff] %vm8104, %v7897
      %8135 = vst.msk [vmem:[%s203 + $0xf0] sm:$0xff] %vm8104, %v7903
      %8136 = vst.msk [vmem:[%s203 + $0xf8] sm:$0xff] %vm8104, %v7909
      %8137 = vst.msk [vmem:[%s203 + $0x100] sm:$0xff] %vm8104, %v7915
      %8138 = vst.msk [vmem:[%s203 + $0x108] sm:$0xff] %vm8104, %v7921
      %8139 = vst.msk [vmem:[%s203 + $0x110] sm:$0xff] %vm8104, %v7927
      %8140 = vst.msk [vmem:[%s203 + $0x118] sm:$0xff] %vm8104, %v7933
      %8141 = vst.msk [vmem:[%s203 + $0x120] sm:$0xff] %vm8104, %v7939
      %8142 = vst.msk [vmem:[%s203 + $0x128] sm:$0xff] %vm8104, %v7945
      %8143 = vst.msk [vmem:[%s203 + $0x130] sm:$0xff] %vm8104, %v7951
      %8144 = vst.msk [vmem:[%s203 + $0x138] sm:$0xff] %vm8104, %v7957
      %8145 = vst.msk [vmem:[%s203 + $0x140] sm:$0xff] %vm8104, %v7963
      %8146 = vst.msk [vmem:[%s203 + $0x148] sm:$0xff] %vm8104, %v7969
      %8147 = vst.msk [vmem:[%s203 + $0x150] sm:$0xff] %vm8104, %v7975
      %8148 = vst.msk [vmem:[%s203 + $0x158] sm:$0xff] %vm8104, %v7981
      %8149 = vst.msk [vmem:[%s203 + $0x160] sm:$0xff] %vm8104, %v7987
      %8150 = vst.msk [vmem:[%s203 + $0x168] sm:$0xff] %vm8104, %v7993
      %8151 = vst.msk [vmem:[%s203 + $0x170] sm:$0xff] %vm8104, %v7999
      %8152 = vst.msk [vmem:[%s203 + $0x178] sm:$0xff] %vm8104, %v8005
      %8153 = vst.msk [vmem:[%s203 + $0x180] sm:$0xff] %vm8104, %v8011
      %8154 = vst.msk [vmem:[%s203 + $0x188] sm:$0xff] %vm8104, %v8017
      %8155 = vst.msk [vmem:[%s203 + $0x190] sm:$0xff] %vm8104, %v8023
      %8156 = vst.msk [vmem:[%s203 + $0x198] sm:$0xff] %vm8104, %v8029
      %8157 = vst.msk [vmem:[%s203 + $0x1a0] sm:$0xff] %vm8104, %v8035
      %8158 = vst.msk [vmem:[%s203 + $0x1a8] sm:$0xff] %vm8104, %v8041
      %8159 = vst.msk [vmem:[%s203 + $0x1b0] sm:$0xff] %vm8104, %v8047
      %8160 = vst.msk [vmem:[%s203 + $0x1b8] sm:$0xff] %vm8104, %v8053
      %8161 = vst.msk [vmem:[%s203 + $0x1c0] sm:$0xff] %vm8104, %v8059
      %8162 = vst.msk [vmem:[%s203 + $0x1c8] sm:$0xff] %vm8104, %v8065
      %8163 = vst.msk [vmem:[%s203 + $0x1d0] sm:$0xff] %vm8104, %v8071
      %8164 = vst.msk [vmem:[%s203 + $0x1d8] sm:$0xff] %vm8104, %v8077
      %8165 = vst.msk [vmem:[%s203 + $0x1e0] sm:$0xff] %vm8104, %v8083
      %8166 = vst.msk [vmem:[%s203 + $0x1e8] sm:$0xff] %vm8104, %v8089
      %8167 = vst.msk [vmem:[%s203 + $0x1f0] sm:$0xff] %vm8104, %v8095
      %8168 = vst.msk [vmem:[%s203 + $0x1f8] sm:$0xff] %vm8104, %v8101
      %s8169 = smul.u32 64, %s18
      %p8170 = scmp.lt.s32.totalorder %s8169, 383
      %s8171 = scalar_select %p8170, %s8169, 383
      %p8172 = scmp.lt.s32.totalorder %s19, 0
      %s8173 = scalar_select %p8172, %s19, 0
      %s8174 = sadd.s32 %s8173, %s8171
      %s8175 = smul.addr %s8174, 8
      %s8176 = scalar_lea.vmem %s3, %s8175
      // Predicated region
      $region33: #{a_call__.1} parent=31 // pred_check
        %p8177 = pneg %p116
      $region34: #{a_call__.1} parent=31 // pred_check_branch
        %8179 = sbr.rel (%p8177) target = $region36
      $region35: #{a_call__.1} parent=31 // pred_region
        %s8180 = smul.u32 64, %s18
      $region36: #{a_call__.1} parent=31 // pred_fallthru
        _
    $region32: #{a_call__.1} parent=5 // pred_fallthru
      _
    %p8181 = scmp.le.s32.totalorder 2, %s9
    // Predicated region
    $region37: #{a_call__.1} parent=5 // pred_check
      %p8182 = pneg %p8181
    $region38: #{a_call__.1} parent=5 // pred_check_branch
      %8184 = sbr.rel (%p8182) target = $region40
    $region39: #{a_call__.1} parent=5 // pred_region
      %s8185 = ssub.s32 %s9, 2
      // Predicated region
      $region41: #{a_call__.1} parent=39 // pred_check
        %p8186 = pneg %p122
      $region42: #{a_call__.1} parent=39 // pred_check_branch
        %8188 = sbr.rel (%p8186) target = $region44
      $region43: #{a_call__.1} parent=39 // pred_region
        %s8189 = smul.u32 64, %s20
        %p8190 = scmp.lt.s32.totalorder %s8189, 383
        %s8191 = scalar_select %p8190, %s8189, 383
        %p8192 = scmp.lt.s32.totalorder %s21, 0
        %s8193 = scalar_select %p8192, %s21, 0
        %s8194 = sadd.s32 %s8193, %s8191
        %s8195 = smul.addr %s8194, 8
        %s8196 = scalar_lea.vmem %s3, %s8195
      $region44: #{a_call__.1} parent=39 // pred_fallthru
        _
    $region40: #{a_call__.1} parent=5 // pred_fallthru
      _
  $region6: #{a_call__.1} parent=0 // loop_footer
    %s13 = sadd.s32 1, %s9
  $region7: #{a_call__.1} parent=0 // loop_footer_branch
    %8 = sbr.rel target = $region3
  $region8: #{a_call__.1} parent=0 // loop_exit
    _

</llo_original>
